<compile_context>
chip_gen: v5e
topology: v5e:2x2
jax: 0.10.0
libtpu: 0.0.40
codegen_flags: <defaults>
</compile_context>

<pallas_src>
import functools

import jax
import jax.numpy as jnp
from jax import lax
from jax.experimental import pallas as pl
from jax.experimental.pallas import tpu as pltpu


def _round_up(x, m):
    return (x + m - 1) // m * m


# ---------------------------------------------------------------------------
# Kernel: hoisted input projection + 2-layer LSTM recurrence + batched FC.
# ---------------------------------------------------------------------------
def _decoder_kernel(x_ref,                       # (T*B_pad, E_pad)    bf16
                    w0ih_ref, w0hh_ref, b0_ref,  # (E_pad,4H) (H_pad,4H) bf16, (1,4H) f32
                    w1ih_ref, w1hh_ref, b1_ref,  # (H_pad,4H) (H_pad,4H) bf16, (1,4H) f32
                    wfc_ref, bfc_ref,            # (H_pad, V_pad) bf16, (1, V_pad) f32
                    out_ref,                     # (T*B_pad, V_pad) f32
                    xproj_ref,                   # (T*B_pad, 4*H_pad) f32 scratch
                    hseq_ref,                    # (T*B_pad, H_pad)   f32 scratch
                    *, seq_len, b_pad, h_pad):
    H = h_pad
    f32 = jnp.float32
    bf16 = jnp.bfloat16

    # Hoisted layer-0 input projection for ALL steps in one big MXU matmul,
    # with the (summed) layer-0 bias folded in (single broadcast).
    xproj_ref[...] = (jnp.dot(x_ref[...], w0ih_ref[...],
                              preferred_element_type=f32)
                      + b0_ref[...])

    # Layer-1 bias broadcast hoisted out of the unrolled loop.
    b1_full = jnp.broadcast_to(b1_ref[...], (b_pad, 4 * H))

    def gates(pre):
        # Gate layout [i, f, o, g]: one contiguous sigmoid + one tanh.
        sig = jax.nn.sigmoid(pre[:, :3 * H])
        return (sig[:, 0 * H:1 * H], sig[:, 1 * H:2 * H],
                sig[:, 2 * H:3 * H], jnp.tanh(pre[:, 3 * H:4 * H]))

    zero = jnp.zeros((b_pad, H), f32)
    h0 = c0 = h1 = c1 = zero
    # NOTE: padded batch rows (B..b_pad) develop nonzero bias-driven state; the
    # wrapper slices them away, and zero-padded weight rows keep them from ever
    # influencing real rows.
    # TODO(synk): for long T use lax.fori_loop(..., unroll=k) with h/c in VMEM
    # scratch and pl.ds(pl.multiple_of(t*b_pad, 8), b_pad) row writes.
    for t in range(seq_len):
        # ---- layer 0: only the recurrent dot sits on the critical path ----
        pre0 = xproj_ref[t * b_pad:(t + 1) * b_pad, :] + jnp.dot(
            h0.astype(bf16), w0hh_ref[...], preferred_element_type=f32)
        i0, f0, o0, g0 = gates(pre0)
        c0 = f0 * c0 + i0 * g0
        h0 = o0 * jnp.tanh(c0)

        # ---- layer 1: two dots (no concat copy), f32 accumulate ----
        pre1 = (jnp.dot(h0.astype(bf16), w1ih_ref[...], preferred_element_type=f32)
                + jnp.dot(h1.astype(bf16), w1hh_ref[...], preferred_element_type=f32)
                + b1_full)
        i1, f1, o1, g1 = gates(pre1)
        c1 = f1 * c1 + i1 * g1
        h1 = o1 * jnp.tanh(c1)

        hseq_ref[t * b_pad:(t + 1) * b_pad, :] = h1

    # Batched FC over all T*B_pad rows at once (hoisted out of the recurrence);
    # output is lane-dense (V_pad multiple of 128) -> unmasked stores.
    out_ref[...] = (jnp.dot(hseq_ref[...].astype(bf16), wfc_ref[...],
                            preferred_element_type=f32)
                    + bfc_ref[...]).astype(out_ref.dtype)


# ---------------------------------------------------------------------------
# Parameter construction / packing (PyTorch layout -> padded Pallas layout).
# ---------------------------------------------------------------------------
def init_torch_params(key, embed_size, hidden_size, vocab_size):
    """Synthetic params with PyTorch DecoderRNN shapes."""
    H, E, V = hidden_size, embed_size, vocab_size
    ks = jax.random.split(key, 11)
    s = 0.1
    rnd = lambda k, shape: (s * jax.random.normal(k, shape)).astype(jnp.float32)
    return {
        "embedding":    rnd(ks[0], (V, E)),
        "weight_ih_l0": rnd(ks[1], (4 * H, E)),
        "weight_hh_l0": rnd(ks[2], (4 * H, H)),
        "bias_ih_l0":   rnd(ks[3], (4 * H,)),
        "bias_hh_l0":   rnd(ks[4], (4 * H,)),
        "weight_ih_l1": rnd(ks[5], (4 * H, H)),
        "weight_hh_l1": rnd(ks[6], (4 * H, H)),
        "bias_ih_l1":   rnd(ks[7], (4 * H,)),
        "bias_hh_l1":   rnd(ks[8], (4 * H,)),
        "fc_weight":    rnd(ks[9], (V, H)),
        "fc_bias":      rnd(ks[10], (V,)),
    }


# PyTorch gate order along 4H is [i, f, g, o]; kernel wants [i, f, o, g] so the
# three sigmoid gates are contiguous.
_GATE_PERM = (0, 1, 3, 2)


def _spread_gates(w, H, H_pad):
    """(rows, 4H) PyTorch order -> (rows, 4*H_pad) in [i,f,o,g] order; gate g
    occupies its own lane-aligned block [g*H_pad, g*H_pad+H)."""
    rows = w.shape[0]
    out = jnp.zeros((rows, 4 * H_pad), jnp.float32)
    for dst, src in enumerate(_GATE_PERM):
        out = out.at[:, dst * H_pad:dst * H_pad + H].set(w[:, src * H:(src + 1) * H])
    return out
    # TODO(synk): if production H is not a 128-multiple, consider packing 4H
    # contiguously instead of per-gate H_pad blocks to avoid wasted MXU lanes.


def _pad_rows(w, rows_pad):
    rows = w.shape[0]
    return jnp.zeros((rows_pad, w.shape[1]), w.dtype).at[:rows].set(w)


def pack_params(tp, embed_size, hidden_size, vocab_size):
    E, H, V = embed_size, hidden_size, vocab_size
    E_pad = _round_up(E, 128)
    H_pad = _round_up(H, 128)
    V_pad = _round_up(V, 128)

    def lstm_w(w, in_pad):
        # PyTorch (4H, in_dim) -> (in_pad, 4*H_pad) bf16, gates reordered/spread.
        return _pad_rows(_spread_gates(w.T, H, H_pad), in_pad).astype(jnp.bfloat16)

    def lstm_b(bih, bhh):
        return _spread_gates((bih + bhh)[None, :], H, H_pad)   # f32 (1, 4*H_pad)

    params = {
        "embedding": tp["embedding"],
        "w0ih": lstm_w(tp["weight_ih_l0"], E_pad),
        "w0hh": lstm_w(tp["weight_hh_l0"], H_pad),
        "b0":   lstm_b(tp["bias_ih_l0"], tp["bias_hh_l0"]),
        "w1ih": lstm_w(tp["weight_ih_l1"], H_pad),
        "w1hh": lstm_w(tp["weight_hh_l1"], H_pad),
        "b1":   lstm_b(tp["bias_ih_l1"], tp["bias_hh_l1"]),
        "wfc":  jnp.zeros((H_pad, V_pad), jnp.float32)
                   .at[:H, :V].set(tp["fc_weight"].T).astype(jnp.bfloat16),
        "bfc":  jnp.zeros((1, V_pad), jnp.float32).at[0, :V].set(tp["fc_bias"]),
    }
    dims = (E, H, V, E_pad, H_pad, V_pad)
    return params, dims


# ---------------------------------------------------------------------------
# Forward pass (mirrors DecoderRNN.forward(features, captions), eval mode).
# ---------------------------------------------------------------------------
def decoder_rnn_forward(features, captions, params, dims):
    E, H, V, E_pad, H_pad, V_pad = dims
    B = features.shape[0]
    B_pad = _round_up(B, 8)

    # Glue (plain JAX): embedding gather + concat; tiny at these shapes.
    # TODO(synk): for production sizes, scalar-prefetch caption ids and DMA the
    # embedding rows in-kernel instead of jnp.take + pad in HBM.
    embeds = jnp.take(params["embedding"], captions[:, :-1], axis=0)   # (B, T-1, E)
    x = jnp.concatenate([features[:, None, :], embeds], axis=1)        # (B, T, E)
    T = x.shape[1]

    # Time-major + pad batch (sublanes) and feature (lanes); flatten to 2-D so
    # the hoisted input projection is one large matmul. Cast to bf16 (weights
    # are bf16; accumulation stays f32 in-kernel).
    x_tm = jnp.zeros((T, B_pad, E_pad), jnp.float32)
    x_tm = x_tm.at[:, :B, :E].set(jnp.transpose(x, (1, 0, 2)))
    x_2d = x_tm.reshape(T * B_pad, E_pad).astype(jnp.bfloat16)

    operands = (x_2d, params["w0ih"], params["w0hh"], params["b0"],
                params["w1ih"], params["w1hh"], params["b1"],
                params["wfc"], params["bfc"])

    flops = (2 * T * B_pad * E_pad * 4 * H_pad             # hoisted input proj
             + T * 3 * 2 * B_pad * H_pad * 4 * H_pad       # per-step recurrent dots
             + 2 * T * B_pad * H_pad * V_pad)              # batched FC
    transcendentals = T * 2 * 5 * B_pad * H_pad
    bytes_accessed = (sum(int(a.size) * a.dtype.itemsize for a in operands)
                      + T * B_pad * V_pad * 4)

    kernel = functools.partial(_decoder_kernel, seq_len=T, b_pad=B_pad, h_pad=H_pad)

    logits2d = pl.pallas_call(
        kernel,
        out_shape=jax.ShapeDtypeStruct((T * B_pad, V_pad), jnp.float32),
        in_specs=[pl.BlockSpec(memory_space=pltpu.MemorySpace.VMEM)] * len(operands),
        out_specs=pl.BlockSpec(memory_space=pltpu.MemorySpace.VMEM),
        scratch_shapes=[pltpu.VMEM((T * B_pad, 4 * H_pad), jnp.float32),   # xproj
                        pltpu.VMEM((T * B_pad, H_pad), jnp.float32)],       # hseq
        compiler_params=pltpu.CompilerParams(vmem_limit_bytes=32 * 1024 * 1024),
        cost_estimate=pl.CostEstimate(flops=flops,
                                      transcendentals=transcendentals,
                                      bytes_accessed=bytes_accessed),
    )(*operands)

    # Un-pad + back to batch_first (tiny tensors at these shapes).
    logits = logits2d.reshape(T, B_pad, V_pad)[:, :B, :V]   # (T, B, V)
    return jnp.transpose(logits, (1, 0, 2))                 # (B, T, V)


# ---------------------------------------------------------------------------
# Pure-JAX f32 reference (for correctness check).
# ---------------------------------------------------------------------------
def decoder_rnn_reference(features, captions, tp):
    H = tp["weight_hh_l0"].shape[1]
    embeds = jnp.take(tp["embedding"], captions[:, :-1], axis=0)
    x = jnp.concatenate([features[:, None, :], embeds], axis=1)   # (B, T, E)
    B = x.shape[0]

    def run_layer(seq, wih, whh, bih, bhh):
        def step(carry, x_t):
            h, c = carry
            gates = x_t @ wih.T + h @ whh.T + bih + bhh
            i = jax.nn.sigmoid(gates[:, 0 * H:1 * H])
            f = jax.nn.sigmoid(gates[:, 1 * H:2 * H])
            g = jnp.tanh(gates[:, 2 * H:3 * H])
            o = jax.nn.sigmoid(gates[:, 3 * H:4 * H])
            c = f * c + i * g
            h = o * jnp.tanh(c)
            return (h, c), h
        init = (jnp.zeros((B, H), jnp.float32), jnp.zeros((B, H), jnp.float32))
        _, hs = lax.scan(step, init, jnp.transpose(seq, (1, 0, 2)))
        return jnp.transpose(hs, (1, 0, 2))

    h = run_layer(x, tp["weight_ih_l0"], tp["weight_hh_l0"],
                  tp["bias_ih_l0"], tp["bias_hh_l0"])
    h = run_layer(h, tp["weight_ih_l1"], tp["weight_hh_l1"],
                  tp["bias_ih_l1"], tp["bias_hh_l1"])
    return h @ tp["fc_weight"].T + tp["fc_bias"]


if __name__ == "__main__":
    embed_size, hidden_size, vocab_size = 32, 32, 64
    B, T_cap = 2, 8   # LSTM sequence length = 1 (features) + (T_cap - 1) = 8

    key = jax.random.PRNGKey(0)
    k_param, k_feat, k_cap = jax.random.split(key, 3)

    tparams = init_torch_params(k_param, embed_size, hidden_size, vocab_size)
    params, dims = pack_params(tparams, embed_size, hidden_size, vocab_size)

    features = jax.random.normal(k_feat, (B, embed_size), dtype=jnp.float32)
    captions = jax.random.randint(k_cap, (B, T_cap), 0, vocab_size, dtype=jnp.int32)

    logits = decoder_rnn_forward(features, captions, params, dims)
    jax.block_until_ready(logits)
    assert logits.shape == (B, T_cap, vocab_size), logits.shape

    with jax.default_matmul_precision("highest"):
        ref = decoder_rnn_reference(features, captions, tparams)
    max_err = float(jnp.max(jnp.abs(logits - ref)))
    # bf16 weights/activations with f32 accumulation/state: tolerance reflects bf16.
    assert jnp.allclose(logits, ref, atol=2e-2, rtol=2e-2), max_err

    print("KERNEL_OK")
</pallas_src>

<mosaic_0001>
module attributes {stable_mosaic.version = 11 : i64} {
  func.func @_decoder_kernel(%arg0: memref<64x128xbf16, #tpu.memory_space<vmem>>, %arg1: memref<128x512xbf16, #tpu.memory_space<vmem>>, %arg2: memref<128x512xbf16, #tpu.memory_space<vmem>>, %arg3: memref<1x512xf32, #tpu.memory_space<vmem>>, %arg4: memref<128x512xbf16, #tpu.memory_space<vmem>>, %arg5: memref<128x512xbf16, #tpu.memory_space<vmem>>, %arg6: memref<1x512xf32, #tpu.memory_space<vmem>>, %arg7: memref<128x128xbf16, #tpu.memory_space<vmem>>, %arg8: memref<1x128xf32, #tpu.memory_space<vmem>>, %arg9: memref<64x128xf32, #tpu.memory_space<vmem>>, %arg10: memref<64x512xf32, #tpu.memory_space<vmem>>, %arg11: memref<64x128xf32, #tpu.memory_space<vmem>>) attributes {dimension_semantics = [], scalar_prefetch = 0 : i64, scratch_operands = 2 : i64, tpu.core_type = #tpu.core_type<tc>} {
    %c0 = arith.constant 0 : index
    %c0_0 = arith.constant 0 : index
    %0 = vector.load %arg0[%c0, %c0_0] : memref<64x128xbf16, #tpu.memory_space<vmem>>, vector<64x128xbf16>
    %c0_1 = arith.constant 0 : index
    %c0_2 = arith.constant 0 : index
    %1 = vector.load %arg1[%c0_1, %c0_2] : memref<128x512xbf16, #tpu.memory_space<vmem>>, vector<128x512xbf16>
    %cst = arith.constant dense<0.000000e+00> : vector<64x512xf32>
    %2 = tpu.matmul %0, %1, %cst {dimension_numbers = #tpu.dot_dimension_numbers<[1], [0], [0], [1], [0, 0, 1, 1], [], []>} : vector<64x128xbf16>, vector<128x512xbf16>, vector<64x512xf32> -> vector<64x512xf32>
    %c0_3 = arith.constant 0 : index
    %c0_4 = arith.constant 0 : index
    %3 = vector.load %arg3[%c0_3, %c0_4] : memref<1x512xf32, #tpu.memory_space<vmem>>, vector<1x512xf32>
    %4 = vector.broadcast %3 : vector<1x512xf32> to vector<64x512xf32>
    %5 = arith.addf %2, %4 : vector<64x512xf32>
    %c0_5 = arith.constant 0 : index
    %c0_6 = arith.constant 0 : index
    %6 = vector.load %arg10[%c0_5, %c0_6] : memref<64x512xf32, #tpu.memory_space<vmem>>, vector<64x512xf32>
    tpu.vector_store %arg10[%c0_5, %c0_6], %5 {strides = array<i32>} : memref<64x512xf32, #tpu.memory_space<vmem>>, vector<64x512xf32>,
    %c0_7 = arith.constant 0 : index
    %c0_8 = arith.constant 0 : index
    %7 = vector.load %arg6[%c0_7, %c0_8] : memref<1x512xf32, #tpu.memory_space<vmem>>, vector<1x512xf32>
    %8 = vector.shape_cast %7 : vector<1x512xf32> to vector<1x512xf32>
    %9 = vector.broadcast %8 : vector<1x512xf32> to vector<8x512xf32>
    %cst_9 = arith.constant 0.000000e+00 : f32
    %10 = vector.broadcast %cst_9 : f32 to vector<8x128xf32>
    %c0_10 = arith.constant 0 : index
    %c0_11 = arith.constant 0 : index
    %11 = vector.load %arg10[%c0_10, %c0_11] : memref<64x512xf32, #tpu.memory_space<vmem>>, vector<8x512xf32>
    %12 = arith.truncf %10 : vector<8x128xf32> to vector<8x128xbf16>
    %c0_12 = arith.constant 0 : index
    %c0_13 = arith.constant 0 : index
    %13 = vector.load %arg2[%c0_12, %c0_13] : memref<128x512xbf16, #tpu.memory_space<vmem>>, vector<128x512xbf16>
    %cst_14 = arith.constant dense<0.000000e+00> : vector<8x512xf32>
    %14 = tpu.matmul %12, %13, %cst_14 {dimension_numbers = #tpu.dot_dimension_numbers<[1], [0], [0], [1], [0, 0, 1, 1], [], []>} : vector<8x128xbf16>, vector<128x512xbf16>, vector<8x512xf32> -> vector<8x512xf32>
    %15 = arith.addf %11, %14 : vector<8x512xf32>
    %16 = vector.extract_strided_slice %15 {offsets = [0, 0], sizes = [8, 384], strides = [1, 1]} : vector<8x512xf32> to vector<8x384xf32>
    %17 = arith.negf %16 : vector<8x384xf32>
    %18 = math.exp %17 : vector<8x384xf32>
    %cst_15 = arith.constant 1.000000e+00 : f32
    %19 = vector.broadcast %cst_15 : f32 to vector<8x384xf32>
    %20 = arith.addf %19, %18 : vector<8x384xf32>
    %21 = arith.divf %19, %20 : vector<8x384xf32>
    %22 = vector.extract_strided_slice %21 {offsets = [0, 0], sizes = [8, 128], strides = [1, 1]} : vector<8x384xf32> to vector<8x128xf32>
    %23 = vector.extract_strided_slice %21 {offsets = [0, 128], sizes = [8, 128], strides = [1, 1]} : vector<8x384xf32> to vector<8x128xf32>
    %24 = vector.extract_strided_slice %21 {offsets = [0, 256], sizes = [8, 128], strides = [1, 1]} : vector<8x384xf32> to vector<8x128xf32>
    %25 = vector.extract_strided_slice %15 {offsets = [0, 384], sizes = [8, 128], strides = [1, 1]} : vector<8x512xf32> to vector<8x128xf32>
    %26 = math.tanh %25 : vector<8x128xf32>
    %27 = arith.mulf %23, %10 : vector<8x128xf32>
    %28 = arith.mulf %22, %26 : vector<8x128xf32>
    %29 = arith.addf %27, %28 : vector<8x128xf32>
    %30 = math.tanh %29 : vector<8x128xf32>
    %31 = arith.mulf %24, %30 : vector<8x128xf32>
    %32 = arith.truncf %31 : vector<8x128xf32> to vector<8x128xbf16>
    %c0_16 = arith.constant 0 : index
    %c0_17 = arith.constant 0 : index
    %33 = vector.load %arg4[%c0_16, %c0_17] : memref<128x512xbf16, #tpu.memory_space<vmem>>, vector<128x512xbf16>
    %cst_18 = arith.constant dense<0.000000e+00> : vector<8x512xf32>
    %34 = tpu.matmul %32, %33, %cst_18 {dimension_numbers = #tpu.dot_dimension_numbers<[1], [0], [0], [1], [0, 0, 1, 1], [], []>} : vector<8x128xbf16>, vector<128x512xbf16>, vector<8x512xf32> -> vector<8x512xf32>
    %35 = arith.truncf %10 : vector<8x128xf32> to vector<8x128xbf16>
    %c0_19 = arith.constant 0 : index
    %c0_20 = arith.constant 0 : index
    %36 = vector.load %arg5[%c0_19, %c0_20] : memref<128x512xbf16, #tpu.memory_space<vmem>>, vector<128x512xbf16>
    %cst_21 = arith.constant dense<0.000000e+00> : vector<8x512xf32>
    %37 = tpu.matmul %35, %36, %cst_21 {dimension_numbers = #tpu.dot_dimension_numbers<[1], [0], [0], [1], [0, 0, 1, 1], [], []>} : vector<8x128xbf16>, vector<128x512xbf16>, vector<8x512xf32> -> vector<8x512xf32>
    %38 = arith.addf %34, %37 : vector<8x512xf32>
    %39 = arith.addf %38, %9 : vector<8x512xf32>
    %40 = vector.extract_strided_slice %39 {offsets = [0, 0], sizes = [8, 384], strides = [1, 1]} : vector<8x512xf32> to vector<8x384xf32>
    %41 = arith.negf %40 : vector<8x384xf32>
    %42 = math.exp %41 : vector<8x384xf32>
    %cst_22 = arith.constant 1.000000e+00 : f32
    %43 = vector.broadcast %cst_22 : f32 to vector<8x384xf32>
    %44 = arith.addf %43, %42 : vector<8x384xf32>
    %45 = arith.divf %43, %44 : vector<8x384xf32>
    %46 = vector.extract_strided_slice %45 {offsets = [0, 0], sizes = [8, 128], strides = [1, 1]} : vector<8x384xf32> to vector<8x128xf32>
    %47 = vector.extract_strided_slice %45 {offsets = [0, 128], sizes = [8, 128], strides = [1, 1]} : vector<8x384xf32> to vector<8x128xf32>
    %48 = vector.extract_strided_slice %45 {offsets = [0, 256], sizes = [8, 128], strides = [1, 1]} : vector<8x384xf32> to vector<8x128xf32>
    %49 = vector.extract_strided_slice %39 {offsets = [0, 384], sizes = [8, 128], strides = [1, 1]} : vector<8x512xf32> to vector<8x128xf32>
    %50 = math.tanh %49 : vector<8x128xf32>
    %51 = arith.mulf %47, %10 : vector<8x128xf32>
    %52 = arith.mulf %46, %50 : vector<8x128xf32>
    %53 = arith.addf %51, %52 : vector<8x128xf32>
    %54 = math.tanh %53 : vector<8x128xf32>
    %55 = arith.mulf %48, %54 : vector<8x128xf32>
    %c0_23 = arith.constant 0 : index
    %c0_24 = arith.constant 0 : index
    %56 = vector.load %arg11[%c0_23, %c0_24] : memref<64x128xf32, #tpu.memory_space<vmem>>, vector<8x128xf32>
    tpu.vector_store %arg11[%c0_23, %c0_24], %55 {strides = array<i32>} : memref<64x128xf32, #tpu.memory_space<vmem>>, vector<8x128xf32>,
    %c8 = arith.constant 8 : index
    %c0_25 = arith.constant 0 : index
    %57 = vector.load %arg10[%c8, %c0_25] : memref<64x512xf32, #tpu.memory_space<vmem>>, vector<8x512xf32>
    %58 = arith.truncf %31 : vector<8x128xf32> to vector<8x128xbf16>
    %c0_26 = arith.constant 0 : index
    %c0_27 = arith.constant 0 : index
    %59 = vector.load %arg2[%c0_26, %c0_27] : memref<128x512xbf16, #tpu.memory_space<vmem>>, vector<128x512xbf16>
    %cst_28 = arith.constant dense<0.000000e+00> : vector<8x512xf32>
    %60 = tpu.matmul %58, %59, %cst_28 {dimension_numbers = #tpu.dot_dimension_numbers<[1], [0], [0], [1], [0, 0, 1, 1], [], []>} : vector<8x128xbf16>, vector<128x512xbf16>, vector<8x512xf32> -> vector<8x512xf32>
    %61 = arith.addf %57, %60 : vector<8x512xf32>
    %62 = vector.extract_strided_slice %61 {offsets = [0, 0], sizes = [8, 384], strides = [1, 1]} : vector<8x512xf32> to vector<8x384xf32>
    %63 = arith.negf %62 : vector<8x384xf32>
    %64 = math.exp %63 : vector<8x384xf32>
    %cst_29 = arith.constant 1.000000e+00 : f32
    %65 = vector.broadcast %cst_29 : f32 to vector<8x384xf32>
    %66 = arith.addf %65, %64 : vector<8x384xf32>
    %67 = arith.divf %65, %66 : vector<8x384xf32>
    %68 = vector.extract_strided_slice %67 {offsets = [0, 0], sizes = [8, 128], strides = [1, 1]} : vector<8x384xf32> to vector<8x128xf32>
    %69 = vector.extract_strided_slice %67 {offsets = [0, 128], sizes = [8, 128], strides = [1, 1]} : vector<8x384xf32> to vector<8x128xf32>
    %70 = vector.extract_strided_slice %67 {offsets = [0, 256], sizes = [8, 128], strides = [1, 1]} : vector<8x384xf32> to vector<8x128xf32>
    %71 = vector.extract_strided_slice %61 {offsets = [0, 384], sizes = [8, 128], strides = [1, 1]} : vector<8x512xf32> to vector<8x128xf32>
    %72 = math.tanh %71 : vector<8x128xf32>
    %73 = arith.mulf %69, %29 : vector<8x128xf32>
    %74 = arith.mulf %68, %72 : vector<8x128xf32>
    %75 = arith.addf %73, %74 : vector<8x128xf32>
    %76 = math.tanh %75 : vector<8x128xf32>
    %77 = arith.mulf %70, %76 : vector<8x128xf32>
    %78 = arith.truncf %77 : vector<8x128xf32> to vector<8x128xbf16>
    %c0_30 = arith.constant 0 : index
    %c0_31 = arith.constant 0 : index
    %79 = vector.load %arg4[%c0_30, %c0_31] : memref<128x512xbf16, #tpu.memory_space<vmem>>, vector<128x512xbf16>
    %cst_32 = arith.constant dense<0.000000e+00> : vector<8x512xf32>
    %80 = tpu.matmul %78, %79, %cst_32 {dimension_numbers = #tpu.dot_dimension_numbers<[1], [0], [0], [1], [0, 0, 1, 1], [], []>} : vector<8x128xbf16>, vector<128x512xbf16>, vector<8x512xf32> -> vector<8x512xf32>
    %81 = arith.truncf %55 : vector<8x128xf32> to vector<8x128xbf16>
    %c0_33 = arith.constant 0 : index
    %c0_34 = arith.constant 0 : index
    %82 = vector.load %arg5[%c0_33, %c0_34] : memref<128x512xbf16, #tpu.memory_space<vmem>>, vector<128x512xbf16>
    %cst_35 = arith.constant dense<0.000000e+00> : vector<8x512xf32>
    %83 = tpu.matmul %81, %82, %cst_35 {dimension_numbers = #tpu.dot_dimension_numbers<[1], [0], [0], [1], [0, 0, 1, 1], [], []>} : vector<8x128xbf16>, vector<128x512xbf16>, vector<8x512xf32> -> vector<8x512xf32>
    %84 = arith.addf %80, %83 : vector<8x512xf32>
    %85 = arith.addf %84, %9 : vector<8x512xf32>
    %86 = vector.extract_strided_slice %85 {offsets = [0, 0], sizes = [8, 384], strides = [1, 1]} : vector<8x512xf32> to vector<8x384xf32>
    %87 = arith.negf %86 : vector<8x384xf32>
    %88 = math.exp %87 : vector<8x384xf32>
    %cst_36 = arith.constant 1.000000e+00 : f32
    %89 = vector.broadcast %cst_36 : f32 to vector<8x384xf32>
    %90 = arith.addf %89, %88 : vector<8x384xf32>
    %91 = arith.divf %89, %90 : vector<8x384xf32>
    %92 = vector.extract_strided_slice %91 {offsets = [0, 0], sizes = [8, 128], strides = [1, 1]} : vector<8x384xf32> to vector<8x128xf32>
    %93 = vector.extract_strided_slice %91 {offsets = [0, 128], sizes = [8, 128], strides = [1, 1]} : vector<8x384xf32> to vector<8x128xf32>
    %94 = vector.extract_strided_slice %91 {offsets = [0, 256], sizes = [8, 128], strides = [1, 1]} : vector<8x384xf32> to vector<8x128xf32>
    %95 = vector.extract_strided_slice %85 {offsets = [0, 384], sizes = [8, 128], strides = [1, 1]} : vector<8x512xf32> to vector<8x128xf32>
    %96 = math.tanh %95 : vector<8x128xf32>
    %97 = arith.mulf %93, %53 : vector<8x128xf32>
    %98 = arith.mulf %92, %96 : vector<8x128xf32>
    %99 = arith.addf %97, %98 : vector<8x128xf32>
    %100 = math.tanh %99 : vector<8x128xf32>
    %101 = arith.mulf %94, %100 : vector<8x128xf32>
    %c8_37 = arith.constant 8 : index
    %c0_38 = arith.constant 0 : index
    %102 = vector.load %arg11[%c8_37, %c0_38] : memref<64x128xf32, #tpu.memory_space<vmem>>, vector<8x128xf32>
    tpu.vector_store %arg11[%c8_37, %c0_38], %101 {strides = array<i32>} : memref<64x128xf32, #tpu.memory_space<vmem>>, vector<8x128xf32>,
    %c16 = arith.constant 16 : index
    %c0_39 = arith.constant 0 : index
    %103 = vector.load %arg10[%c16, %c0_39] : memref<64x512xf32, #tpu.memory_space<vmem>>, vector<8x512xf32>
    %104 = arith.truncf %77 : vector<8x128xf32> to vector<8x128xbf16>
    %c0_40 = arith.constant 0 : index
    %c0_41 = arith.constant 0 : index
    %105 = vector.load %arg2[%c0_40, %c0_41] : memref<128x512xbf16, #tpu.memory_space<vmem>>, vector<128x512xbf16>
    %cst_42 = arith.constant dense<0.000000e+00> : vector<8x512xf32>
    %106 = tpu.matmul %104, %105, %cst_42 {dimension_numbers = #tpu.dot_dimension_numbers<[1], [0], [0], [1], [0, 0, 1, 1], [], []>} : vector<8x128xbf16>, vector<128x512xbf16>, vector<8x512xf32> -> vector<8x512xf32>
    %107 = arith.addf %103, %106 : vector<8x512xf32>
    %108 = vector.extract_strided_slice %107 {offsets = [0, 0], sizes = [8, 384], strides = [1, 1]} : vector<8x512xf32> to vector<8x384xf32>
    %109 = arith.negf %108 : vector<8x384xf32>
    %110 = math.exp %109 : vector<8x384xf32>
    %cst_43 = arith.constant 1.000000e+00 : f32
    %111 = vector.broadcast %cst_43 : f32 to vector<8x384xf32>
    %112 = arith.addf %111, %110 : vector<8x384xf32>
    %113 = arith.divf %111, %112 : vector<8x384xf32>
    %114 = vector.extract_strided_slice %113 {offsets = [0, 0], sizes = [8, 128], strides = [1, 1]} : vector<8x384xf32> to vector<8x128xf32>
    %115 = vector.extract_strided_slice %113 {offsets = [0, 128], sizes = [8, 128], strides = [1, 1]} : vector<8x384xf32> to vector<8x128xf32>
    %116 = vector.extract_strided_slice %113 {offsets = [0, 256], sizes = [8, 128], strides = [1, 1]} : vector<8x384xf32> to vector<8x128xf32>
    %117 = vector.extract_strided_slice %107 {offsets = [0, 384], sizes = [8, 128], strides = [1, 1]} : vector<8x512xf32> to vector<8x128xf32>
    %118 = math.tanh %117 : vector<8x128xf32>
    %119 = arith.mulf %115, %75 : vector<8x128xf32>
    %120 = arith.mulf %114, %118 : vector<8x128xf32>
    %121 = arith.addf %119, %120 : vector<8x128xf32>
    %122 = math.tanh %121 : vector<8x128xf32>
    %123 = arith.mulf %116, %122 : vector<8x128xf32>
    %124 = arith.truncf %123 : vector<8x128xf32> to vector<8x128xbf16>
    %c0_44 = arith.constant 0 : index
    %c0_45 = arith.constant 0 : index
    %125 = vector.load %arg4[%c0_44, %c0_45] : memref<128x512xbf16, #tpu.memory_space<vmem>>, vector<128x512xbf16>
    %cst_46 = arith.constant dense<0.000000e+00> : vector<8x512xf32>
    %126 = tpu.matmul %124, %125, %cst_46 {dimension_numbers = #tpu.dot_dimension_numbers<[1], [0], [0], [1], [0, 0, 1, 1], [], []>} : vector<8x128xbf16>, vector<128x512xbf16>, vector<8x512xf32> -> vector<8x512xf32>
    %127 = arith.truncf %101 : vector<8x128xf32> to vector<8x128xbf16>
    %c0_47 = arith.constant 0 : index
    %c0_48 = arith.constant 0 : index
    %128 = vector.load %arg5[%c0_47, %c0_48] : memref<128x512xbf16, #tpu.memory_space<vmem>>, vector<128x512xbf16>
    %cst_49 = arith.constant dense<0.000000e+00> : vector<8x512xf32>
    %129 = tpu.matmul %127, %128, %cst_49 {dimension_numbers = #tpu.dot_dimension_numbers<[1], [0], [0], [1], [0, 0, 1, 1], [], []>} : vector<8x128xbf16>, vector<128x512xbf16>, vector<8x512xf32> -> vector<8x512xf32>
    %130 = arith.addf %126, %129 : vector<8x512xf32>
    %131 = arith.addf %130, %9 : vector<8x512xf32>
    %132 = vector.extract_strided_slice %131 {offsets = [0, 0], sizes = [8, 384], strides = [1, 1]} : vector<8x512xf32> to vector<8x384xf32>
    %133 = arith.negf %132 : vector<8x384xf32>
    %134 = math.exp %133 : vector<8x384xf32>
    %cst_50 = arith.constant 1.000000e+00 : f32
    %135 = vector.broadcast %cst_50 : f32 to vector<8x384xf32>
    %136 = arith.addf %135, %134 : vector<8x384xf32>
    %137 = arith.divf %135, %136 : vector<8x384xf32>
    %138 = vector.extract_strided_slice %137 {offsets = [0, 0], sizes = [8, 128], strides = [1, 1]} : vector<8x384xf32> to vector<8x128xf32>
    %139 = vector.extract_strided_slice %137 {offsets = [0, 128], sizes = [8, 128], strides = [1, 1]} : vector<8x384xf32> to vector<8x128xf32>
    %140 = vector.extract_strided_slice %137 {offsets = [0, 256], sizes = [8, 128], strides = [1, 1]} : vector<8x384xf32> to vector<8x128xf32>
    %141 = vector.extract_strided_slice %131 {offsets = [0, 384], sizes = [8, 128], strides = [1, 1]} : vector<8x512xf32> to vector<8x128xf32>
    %142 = math.tanh %141 : vector<8x128xf32>
    %143 = arith.mulf %139, %99 : vector<8x128xf32>
    %144 = arith.mulf %138, %142 : vector<8x128xf32>
    %145 = arith.addf %143, %144 : vector<8x128xf32>
    %146 = math.tanh %145 : vector<8x128xf32>
    %147 = arith.mulf %140, %146 : vector<8x128xf32>
    %c16_51 = arith.constant 16 : index
    %c0_52 = arith.constant 0 : index
    %148 = vector.load %arg11[%c16_51, %c0_52] : memref<64x128xf32, #tpu.memory_space<vmem>>, vector<8x128xf32>
    tpu.vector_store %arg11[%c16_51, %c0_52], %147 {strides = array<i32>} : memref<64x128xf32, #tpu.memory_space<vmem>>, vector<8x128xf32>,
    %c24 = arith.constant 24 : index
    %c0_53 = arith.constant 0 : index
    %149 = vector.load %arg10[%c24, %c0_53] : memref<64x512xf32, #tpu.memory_space<vmem>>, vector<8x512xf32>
    %150 = arith.truncf %123 : vector<8x128xf32> to vector<8x128xbf16>
    %c0_54 = arith.constant 0 : index
    %c0_55 = arith.constant 0 : index
    %151 = vector.load %arg2[%c0_54, %c0_55] : memref<128x512xbf16, #tpu.memory_space<vmem>>, vector<128x512xbf16>
    %cst_56 = arith.constant dense<0.000000e+00> : vector<8x512xf32>
    %152 = tpu.matmul %150, %151, %cst_56 {dimension_numbers = #tpu.dot_dimension_numbers<[1], [0], [0], [1], [0, 0, 1, 1], [], []>} : vector<8x128xbf16>, vector<128x512xbf16>, vector<8x512xf32> -> vector<8x512xf32>
    %153 = arith.addf %149, %152 : vector<8x512xf32>
    %154 = vector.extract_strided_slice %153 {offsets = [0, 0], sizes = [8, 384], strides = [1, 1]} : vector<8x512xf32> to vector<8x384xf32>
    %155 = arith.negf %154 : vector<8x384xf32>
    %156 = math.exp %155 : vector<8x384xf32>
    %cst_57 = arith.constant 1.000000e+00 : f32
    %157 = vector.broadcast %cst_57 : f32 to vector<8x384xf32>
    %158 = arith.addf %157, %156 : vector<8x384xf32>
    %159 = arith.divf %157, %158 : vector<8x384xf32>
    %160 = vector.extract_strided_slice %159 {offsets = [0, 0], sizes = [8, 128], strides = [1, 1]} : vector<8x384xf32> to vector<8x128xf32>
    %161 = vector.extract_strided_slice %159 {offsets = [0, 128], sizes = [8, 128], strides = [1, 1]} : vector<8x384xf32> to vector<8x128xf32>
    %162 = vector.extract_strided_slice %159 {offsets = [0, 256], sizes = [8, 128], strides = [1, 1]} : vector<8x384xf32> to vector<8x128xf32>
    %163 = vector.extract_strided_slice %153 {offsets = [0, 384], sizes = [8, 128], strides = [1, 1]} : vector<8x512xf32> to vector<8x128xf32>
    %164 = math.tanh %163 : vector<8x128xf32>
    %165 = arith.mulf %161, %121 : vector<8x128xf32>
    %166 = arith.mulf %160, %164 : vector<8x128xf32>
    %167 = arith.addf %165, %166 : vector<8x128xf32>
    %168 = math.tanh %167 : vector<8x128xf32>
    %169 = arith.mulf %162, %168 : vector<8x128xf32>
    %170 = arith.truncf %169 : vector<8x128xf32> to vector<8x128xbf16>
    %c0_58 = arith.constant 0 : index
    %c0_59 = arith.constant 0 : index
    %171 = vector.load %arg4[%c0_58, %c0_59] : memref<128x512xbf16, #tpu.memory_space<vmem>>, vector<128x512xbf16>
    %cst_60 = arith.constant dense<0.000000e+00> : vector<8x512xf32>
    %172 = tpu.matmul %170, %171, %cst_60 {dimension_numbers = #tpu.dot_dimension_numbers<[1], [0], [0], [1], [0, 0, 1, 1], [], []>} : vector<8x128xbf16>, vector<128x512xbf16>, vector<8x512xf32> -> vector<8x512xf32>
    %173 = arith.truncf %147 : vector<8x128xf32> to vector<8x128xbf16>
    %c0_61 = arith.constant 0 : index
    %c0_62 = arith.constant 0 : index
    %174 = vector.load %arg5[%c0_61, %c0_62] : memref<128x512xbf16, #tpu.memory_space<vmem>>, vector<128x512xbf16>
    %cst_63 = arith.constant dense<0.000000e+00> : vector<8x512xf32>
    %175 = tpu.matmul %173, %174, %cst_63 {dimension_numbers = #tpu.dot_dimension_numbers<[1], [0], [0], [1], [0, 0, 1, 1], [], []>} : vector<8x128xbf16>, vector<128x512xbf16>, vector<8x512xf32> -> vector<8x512xf32>
    %176 = arith.addf %172, %175 : vector<8x512xf32>
    %177 = arith.addf %176, %9 : vector<8x512xf32>
    %178 = vector.extract_strided_slice %177 {offsets = [0, 0], sizes = [8, 384], strides = [1, 1]} : vector<8x512xf32> to vector<8x384xf32>
    %179 = arith.negf %178 : vector<8x384xf32>
    %180 = math.exp %179 : vector<8x384xf32>
    %cst_64 = arith.constant 1.000000e+00 : f32
    %181 = vector.broadcast %cst_64 : f32 to vector<8x384xf32>
    %182 = arith.addf %181, %180 : vector<8x384xf32>
    %183 = arith.divf %181, %182 : vector<8x384xf32>
    %184 = vector.extract_strided_slice %183 {offsets = [0, 0], sizes = [8, 128], strides = [1, 1]} : vector<8x384xf32> to vector<8x128xf32>
    %185 = vector.extract_strided_slice %183 {offsets = [0, 128], sizes = [8, 128], strides = [1, 1]} : vector<8x384xf32> to vector<8x128xf32>
    %186 = vector.extract_strided_slice %183 {offsets = [0, 256], sizes = [8, 128], strides = [1, 1]} : vector<8x384xf32> to vector<8x128xf32>
    %187 = vector.extract_strided_slice %177 {offsets = [0, 384], sizes = [8, 128], strides = [1, 1]} : vector<8x512xf32> to vector<8x128xf32>
    %188 = math.tanh %187 : vector<8x128xf32>
    %189 = arith.mulf %185, %145 : vector<8x128xf32>
    %190 = arith.mulf %184, %188 : vector<8x128xf32>
    %191 = arith.addf %189, %190 : vector<8x128xf32>
    %192 = math.tanh %191 : vector<8x128xf32>
    %193 = arith.mulf %186, %192 : vector<8x128xf32>
    %c24_65 = arith.constant 24 : index
    %c0_66 = arith.constant 0 : index
    %194 = vector.load %arg11[%c24_65, %c0_66] : memref<64x128xf32, #tpu.memory_space<vmem>>, vector<8x128xf32>
    tpu.vector_store %arg11[%c24_65, %c0_66], %193 {strides = array<i32>} : memref<64x128xf32, #tpu.memory_space<vmem>>, vector<8x128xf32>,
    %c32 = arith.constant 32 : index
    %c0_67 = arith.constant 0 : index
    %195 = vector.load %arg10[%c32, %c0_67] : memref<64x512xf32, #tpu.memory_space<vmem>>, vector<8x512xf32>
    %196 = arith.truncf %169 : vector<8x128xf32> to vector<8x128xbf16>
    %c0_68 = arith.constant 0 : index
    %c0_69 = arith.constant 0 : index
    %197 = vector.load %arg2[%c0_68, %c0_69] : memref<128x512xbf16, #tpu.memory_space<vmem>>, vector<128x512xbf16>
    %cst_70 = arith.constant dense<0.000000e+00> : vector<8x512xf32>
    %198 = tpu.matmul %196, %197, %cst_70 {dimension_numbers = #tpu.dot_dimension_numbers<[1], [0], [0], [1], [0, 0, 1, 1], [], []>} : vector<8x128xbf16>, vector<128x512xbf16>, vector<8x512xf32> -> vector<8x512xf32>
    %199 = arith.addf %195, %198 : vector<8x512xf32>
    %200 = vector.extract_strided_slice %199 {offsets = [0, 0], sizes = [8, 384], strides = [1, 1]} : vector<8x512xf32> to vector<8x384xf32>
    %201 = arith.negf %200 : vector<8x384xf32>
    %202 = math.exp %201 : vector<8x384xf32>
    %cst_71 = arith.constant 1.000000e+00 : f32
    %203 = vector.broadcast %cst_71 : f32 to vector<8x384xf32>
    %204 = arith.addf %203, %202 : vector<8x384xf32>
    %205 = arith.divf %203, %204 : vector<8x384xf32>
    %206 = vector.extract_strided_slice %205 {offsets = [0, 0], sizes = [8, 128], strides = [1, 1]} : vector<8x384xf32> to vector<8x128xf32>
    %207 = vector.extract_strided_slice %205 {offsets = [0, 128], sizes = [8, 128], strides = [1, 1]} : vector<8x384xf32> to vector<8x128xf32>
    %208 = vector.extract_strided_slice %205 {offsets = [0, 256], sizes = [8, 128], strides = [1, 1]} : vector<8x384xf32> to vector<8x128xf32>
    %209 = vector.extract_strided_slice %199 {offsets = [0, 384], sizes = [8, 128], strides = [1, 1]} : vector<8x512xf32> to vector<8x128xf32>
    %210 = math.tanh %209 : vector<8x128xf32>
    %211 = arith.mulf %207, %167 : vector<8x128xf32>
    %212 = arith.mulf %206, %210 : vector<8x128xf32>
    %213 = arith.addf %211, %212 : vector<8x128xf32>
    %214 = math.tanh %213 : vector<8x128xf32>
    %215 = arith.mulf %208, %214 : vector<8x128xf32>
    %216 = arith.truncf %215 : vector<8x128xf32> to vector<8x128xbf16>
    %c0_72 = arith.constant 0 : index
    %c0_73 = arith.constant 0 : index
    %217 = vector.load %arg4[%c0_72, %c0_73] : memref<128x512xbf16, #tpu.memory_space<vmem>>, vector<128x512xbf16>
    %cst_74 = arith.constant dense<0.000000e+00> : vector<8x512xf32>
    %218 = tpu.matmul %216, %217, %cst_74 {dimension_numbers = #tpu.dot_dimension_numbers<[1], [0], [0], [1], [0, 0, 1, 1], [], []>} : vector<8x128xbf16>, vector<128x512xbf16>, vector<8x512xf32> -> vector<8x512xf32>
    %219 = arith.truncf %193 : vector<8x128xf32> to vector<8x128xbf16>
    %c0_75 = arith.constant 0 : index
    %c0_76 = arith.constant 0 : index
    %220 = vector.load %arg5[%c0_75, %c0_76] : memref<128x512xbf16, #tpu.memory_space<vmem>>, vector<128x512xbf16>
    %cst_77 = arith.constant dense<0.000000e+00> : vector<8x512xf32>
    %221 = tpu.matmul %219, %220, %cst_77 {dimension_numbers = #tpu.dot_dimension_numbers<[1], [0], [0], [1], [0, 0, 1, 1], [], []>} : vector<8x128xbf16>, vector<128x512xbf16>, vector<8x512xf32> -> vector<8x512xf32>
    %222 = arith.addf %218, %221 : vector<8x512xf32>
    %223 = arith.addf %222, %9 : vector<8x512xf32>
    %224 = vector.extract_strided_slice %223 {offsets = [0, 0], sizes = [8, 384], strides = [1, 1]} : vector<8x512xf32> to vector<8x384xf32>
    %225 = arith.negf %224 : vector<8x384xf32>
    %226 = math.exp %225 : vector<8x384xf32>
    %cst_78 = arith.constant 1.000000e+00 : f32
    %227 = vector.broadcast %cst_78 : f32 to vector<8x384xf32>
    %228 = arith.addf %227, %226 : vector<8x384xf32>
    %229 = arith.divf %227, %228 : vector<8x384xf32>
    %230 = vector.extract_strided_slice %229 {offsets = [0, 0], sizes = [8, 128], strides = [1, 1]} : vector<8x384xf32> to vector<8x128xf32>
    %231 = vector.extract_strided_slice %229 {offsets = [0, 128], sizes = [8, 128], strides = [1, 1]} : vector<8x384xf32> to vector<8x128xf32>
    %232 = vector.extract_strided_slice %229 {offsets = [0, 256], sizes = [8, 128], strides = [1, 1]} : vector<8x384xf32> to vector<8x128xf32>
    %233 = vector.extract_strided_slice %223 {offsets = [0, 384], sizes = [8, 128], strides = [1, 1]} : vector<8x512xf32> to vector<8x128xf32>
    %234 = math.tanh %233 : vector<8x128xf32>
    %235 = arith.mulf %231, %191 : vector<8x128xf32>
    %236 = arith.mulf %230, %234 : vector<8x128xf32>
    %237 = arith.addf %235, %236 : vector<8x128xf32>
    %238 = math.tanh %237 : vector<8x128xf32>
    %239 = arith.mulf %232, %238 : vector<8x128xf32>
    %c32_79 = arith.constant 32 : index
    %c0_80 = arith.constant 0 : index
    %240 = vector.load %arg11[%c32_79, %c0_80] : memref<64x128xf32, #tpu.memory_space<vmem>>, vector<8x128xf32>
    tpu.vector_store %arg11[%c32_79, %c0_80], %239 {strides = array<i32>} : memref<64x128xf32, #tpu.memory_space<vmem>>, vector<8x128xf32>,
    %c40 = arith.constant 40 : index
    %c0_81 = arith.constant 0 : index
    %241 = vector.load %arg10[%c40, %c0_81] : memref<64x512xf32, #tpu.memory_space<vmem>>, vector<8x512xf32>
    %242 = arith.truncf %215 : vector<8x128xf32> to vector<8x128xbf16>
    %c0_82 = arith.constant 0 : index
    %c0_83 = arith.constant 0 : index
    %243 = vector.load %arg2[%c0_82, %c0_83] : memref<128x512xbf16, #tpu.memory_space<vmem>>, vector<128x512xbf16>
    %cst_84 = arith.constant dense<0.000000e+00> : vector<8x512xf32>
    %244 = tpu.matmul %242, %243, %cst_84 {dimension_numbers = #tpu.dot_dimension_numbers<[1], [0], [0], [1], [0, 0, 1, 1], [], []>} : vector<8x128xbf16>, vector<128x512xbf16>, vector<8x512xf32> -> vector<8x512xf32>
    %245 = arith.addf %241, %244 : vector<8x512xf32>
    %246 = vector.extract_strided_slice %245 {offsets = [0, 0], sizes = [8, 384], strides = [1, 1]} : vector<8x512xf32> to vector<8x384xf32>
    %247 = arith.negf %246 : vector<8x384xf32>
    %248 = math.exp %247 : vector<8x384xf32>
    %cst_85 = arith.constant 1.000000e+00 : f32
    %249 = vector.broadcast %cst_85 : f32 to vector<8x384xf32>
    %250 = arith.addf %249, %248 : vector<8x384xf32>
    %251 = arith.divf %249, %250 : vector<8x384xf32>
    %252 = vector.extract_strided_slice %251 {offsets = [0, 0], sizes = [8, 128], strides = [1, 1]} : vector<8x384xf32> to vector<8x128xf32>
    %253 = vector.extract_strided_slice %251 {offsets = [0, 128], sizes = [8, 128], strides = [1, 1]} : vector<8x384xf32> to vector<8x128xf32>
    %254 = vector.extract_strided_slice %251 {offsets = [0, 256], sizes = [8, 128], strides = [1, 1]} : vector<8x384xf32> to vector<8x128xf32>
    %255 = vector.extract_strided_slice %245 {offsets = [0, 384], sizes = [8, 128], strides = [1, 1]} : vector<8x512xf32> to vector<8x128xf32>
    %256 = math.tanh %255 : vector<8x128xf32>
    %257 = arith.mulf %253, %213 : vector<8x128xf32>
    %258 = arith.mulf %252, %256 : vector<8x128xf32>
    %259 = arith.addf %257, %258 : vector<8x128xf32>
    %260 = math.tanh %259 : vector<8x128xf32>
    %261 = arith.mulf %254, %260 : vector<8x128xf32>
    %262 = arith.truncf %261 : vector<8x128xf32> to vector<8x128xbf16>
    %c0_86 = arith.constant 0 : index
    %c0_87 = arith.constant 0 : index
    %263 = vector.load %arg4[%c0_86, %c0_87] : memref<128x512xbf16, #tpu.memory_space<vmem>>, vector<128x512xbf16>
    %cst_88 = arith.constant dense<0.000000e+00> : vector<8x512xf32>
    %264 = tpu.matmul %262, %263, %cst_88 {dimension_numbers = #tpu.dot_dimension_numbers<[1], [0], [0], [1], [0, 0, 1, 1], [], []>} : vector<8x128xbf16>, vector<128x512xbf16>, vector<8x512xf32> -> vector<8x512xf32>
    %265 = arith.truncf %239 : vector<8x128xf32> to vector<8x128xbf16>
    %c0_89 = arith.constant 0 : index
    %c0_90 = arith.constant 0 : index
    %266 = vector.load %arg5[%c0_89, %c0_90] : memref<128x512xbf16, #tpu.memory_space<vmem>>, vector<128x512xbf16>
    %cst_91 = arith.constant dense<0.000000e+00> : vector<8x512xf32>
    %267 = tpu.matmul %265, %266, %cst_91 {dimension_numbers = #tpu.dot_dimension_numbers<[1], [0], [0], [1], [0, 0, 1, 1], [], []>} : vector<8x128xbf16>, vector<128x512xbf16>, vector<8x512xf32> -> vector<8x512xf32>
    %268 = arith.addf %264, %267 : vector<8x512xf32>
    %269 = arith.addf %268, %9 : vector<8x512xf32>
    %270 = vector.extract_strided_slice %269 {offsets = [0, 0], sizes = [8, 384], strides = [1, 1]} : vector<8x512xf32> to vector<8x384xf32>
    %271 = arith.negf %270 : vector<8x384xf32>
    %272 = math.exp %271 : vector<8x384xf32>
    %cst_92 = arith.constant 1.000000e+00 : f32
    %273 = vector.broadcast %cst_92 : f32 to vector<8x384xf32>
    %274 = arith.addf %273, %272 : vector<8x384xf32>
    %275 = arith.divf %273, %274 : vector<8x384xf32>
    %276 = vector.extract_strided_slice %275 {offsets = [0, 0], sizes = [8, 128], strides = [1, 1]} : vector<8x384xf32> to vector<8x128xf32>
    %277 = vector.extract_strided_slice %275 {offsets = [0, 128], sizes = [8, 128], strides = [1, 1]} : vector<8x384xf32> to vector<8x128xf32>
    %278 = vector.extract_strided_slice %275 {offsets = [0, 256], sizes = [8, 128], strides = [1, 1]} : vector<8x384xf32> to vector<8x128xf32>
    %279 = vector.extract_strided_slice %269 {offsets = [0, 384], sizes = [8, 128], strides = [1, 1]} : vector<8x512xf32> to vector<8x128xf32>
    %280 = math.tanh %279 : vector<8x128xf32>
    %281 = arith.mulf %277, %237 : vector<8x128xf32>
    %282 = arith.mulf %276, %280 : vector<8x128xf32>
    %283 = arith.addf %281, %282 : vector<8x128xf32>
    %284 = math.tanh %283 : vector<8x128xf32>
    %285 = arith.mulf %278, %284 : vector<8x128xf32>
    %c40_93 = arith.constant 40 : index
    %c0_94 = arith.constant 0 : index
    %286 = vector.load %arg11[%c40_93, %c0_94] : memref<64x128xf32, #tpu.memory_space<vmem>>, vector<8x128xf32>
    tpu.vector_store %arg11[%c40_93, %c0_94], %285 {strides = array<i32>} : memref<64x128xf32, #tpu.memory_space<vmem>>, vector<8x128xf32>,
    %c48 = arith.constant 48 : index
    %c0_95 = arith.constant 0 : index
    %287 = vector.load %arg10[%c48, %c0_95] : memref<64x512xf32, #tpu.memory_space<vmem>>, vector<8x512xf32>
    %288 = arith.truncf %261 : vector<8x128xf32> to vector<8x128xbf16>
    %c0_96 = arith.constant 0 : index
    %c0_97 = arith.constant 0 : index
    %289 = vector.load %arg2[%c0_96, %c0_97] : memref<128x512xbf16, #tpu.memory_space<vmem>>, vector<128x512xbf16>
    %cst_98 = arith.constant dense<0.000000e+00> : vector<8x512xf32>
    %290 = tpu.matmul %288, %289, %cst_98 {dimension_numbers = #tpu.dot_dimension_numbers<[1], [0], [0], [1], [0, 0, 1, 1], [], []>} : vector<8x128xbf16>, vector<128x512xbf16>, vector<8x512xf32> -> vector<8x512xf32>
    %291 = arith.addf %287, %290 : vector<8x512xf32>
    %292 = vector.extract_strided_slice %291 {offsets = [0, 0], sizes = [8, 384], strides = [1, 1]} : vector<8x512xf32> to vector<8x384xf32>
    %293 = arith.negf %292 : vector<8x384xf32>
    %294 = math.exp %293 : vector<8x384xf32>
    %cst_99 = arith.constant 1.000000e+00 : f32
    %295 = vector.broadcast %cst_99 : f32 to vector<8x384xf32>
    %296 = arith.addf %295, %294 : vector<8x384xf32>
    %297 = arith.divf %295, %296 : vector<8x384xf32>
    %298 = vector.extract_strided_slice %297 {offsets = [0, 0], sizes = [8, 128], strides = [1, 1]} : vector<8x384xf32> to vector<8x128xf32>
    %299 = vector.extract_strided_slice %297 {offsets = [0, 128], sizes = [8, 128], strides = [1, 1]} : vector<8x384xf32> to vector<8x128xf32>
    %300 = vector.extract_strided_slice %297 {offsets = [0, 256], sizes = [8, 128], strides = [1, 1]} : vector<8x384xf32> to vector<8x128xf32>
    %301 = vector.extract_strided_slice %291 {offsets = [0, 384], sizes = [8, 128], strides = [1, 1]} : vector<8x512xf32> to vector<8x128xf32>
    %302 = math.tanh %301 : vector<8x128xf32>
    %303 = arith.mulf %299, %259 : vector<8x128xf32>
    %304 = arith.mulf %298, %302 : vector<8x128xf32>
    %305 = arith.addf %303, %304 : vector<8x128xf32>
    %306 = math.tanh %305 : vector<8x128xf32>
    %307 = arith.mulf %300, %306 : vector<8x128xf32>
    %308 = arith.truncf %307 : vector<8x128xf32> to vector<8x128xbf16>
    %c0_100 = arith.constant 0 : index
    %c0_101 = arith.constant 0 : index
    %309 = vector.load %arg4[%c0_100, %c0_101] : memref<128x512xbf16, #tpu.memory_space<vmem>>, vector<128x512xbf16>
    %cst_102 = arith.constant dense<0.000000e+00> : vector<8x512xf32>
    %310 = tpu.matmul %308, %309, %cst_102 {dimension_numbers = #tpu.dot_dimension_numbers<[1], [0], [0], [1], [0, 0, 1, 1], [], []>} : vector<8x128xbf16>, vector<128x512xbf16>, vector<8x512xf32> -> vector<8x512xf32>
    %311 = arith.truncf %285 : vector<8x128xf32> to vector<8x128xbf16>
    %c0_103 = arith.constant 0 : index
    %c0_104 = arith.constant 0 : index
    %312 = vector.load %arg5[%c0_103, %c0_104] : memref<128x512xbf16, #tpu.memory_space<vmem>>, vector<128x512xbf16>
    %cst_105 = arith.constant dense<0.000000e+00> : vector<8x512xf32>
    %313 = tpu.matmul %311, %312, %cst_105 {dimension_numbers = #tpu.dot_dimension_numbers<[1], [0], [0], [1], [0, 0, 1, 1], [], []>} : vector<8x128xbf16>, vector<128x512xbf16>, vector<8x512xf32> -> vector<8x512xf32>
    %314 = arith.addf %310, %313 : vector<8x512xf32>
    %315 = arith.addf %314, %9 : vector<8x512xf32>
    %316 = vector.extract_strided_slice %315 {offsets = [0, 0], sizes = [8, 384], strides = [1, 1]} : vector<8x512xf32> to vector<8x384xf32>
    %317 = arith.negf %316 : vector<8x384xf32>
    %318 = math.exp %317 : vector<8x384xf32>
    %cst_106 = arith.constant 1.000000e+00 : f32
    %319 = vector.broadcast %cst_106 : f32 to vector<8x384xf32>
    %320 = arith.addf %319, %318 : vector<8x384xf32>
    %321 = arith.divf %319, %320 : vector<8x384xf32>
    %322 = vector.extract_strided_slice %321 {offsets = [0, 0], sizes = [8, 128], strides = [1, 1]} : vector<8x384xf32> to vector<8x128xf32>
    %323 = vector.extract_strided_slice %321 {offsets = [0, 128], sizes = [8, 128], strides = [1, 1]} : vector<8x384xf32> to vector<8x128xf32>
    %324 = vector.extract_strided_slice %321 {offsets = [0, 256], sizes = [8, 128], strides = [1, 1]} : vector<8x384xf32> to vector<8x128xf32>
    %325 = vector.extract_strided_slice %315 {offsets = [0, 384], sizes = [8, 128], strides = [1, 1]} : vector<8x512xf32> to vector<8x128xf32>
    %326 = math.tanh %325 : vector<8x128xf32>
    %327 = arith.mulf %323, %283 : vector<8x128xf32>
    %328 = arith.mulf %322, %326 : vector<8x128xf32>
    %329 = arith.addf %327, %328 : vector<8x128xf32>
    %330 = math.tanh %329 : vector<8x128xf32>
    %331 = arith.mulf %324, %330 : vector<8x128xf32>
    %c48_107 = arith.constant 48 : index
    %c0_108 = arith.constant 0 : index
    %332 = vector.load %arg11[%c48_107, %c0_108] : memref<64x128xf32, #tpu.memory_space<vmem>>, vector<8x128xf32>
    tpu.vector_store %arg11[%c48_107, %c0_108], %331 {strides = array<i32>} : memref<64x128xf32, #tpu.memory_space<vmem>>, vector<8x128xf32>,
    %c56 = arith.constant 56 : index
    %c0_109 = arith.constant 0 : index
    %333 = vector.load %arg10[%c56, %c0_109] : memref<64x512xf32, #tpu.memory_space<vmem>>, vector<8x512xf32>
    %334 = arith.truncf %307 : vector<8x128xf32> to vector<8x128xbf16>
    %c0_110 = arith.constant 0 : index
    %c0_111 = arith.constant 0 : index
    %335 = vector.load %arg2[%c0_110, %c0_111] : memref<128x512xbf16, #tpu.memory_space<vmem>>, vector<128x512xbf16>
    %cst_112 = arith.constant dense<0.000000e+00> : vector<8x512xf32>
    %336 = tpu.matmul %334, %335, %cst_112 {dimension_numbers = #tpu.dot_dimension_numbers<[1], [0], [0], [1], [0, 0, 1, 1], [], []>} : vector<8x128xbf16>, vector<128x512xbf16>, vector<8x512xf32> -> vector<8x512xf32>
    %337 = arith.addf %333, %336 : vector<8x512xf32>
    %338 = vector.extract_strided_slice %337 {offsets = [0, 0], sizes = [8, 384], strides = [1, 1]} : vector<8x512xf32> to vector<8x384xf32>
    %339 = arith.negf %338 : vector<8x384xf32>
    %340 = math.exp %339 : vector<8x384xf32>
    %cst_113 = arith.constant 1.000000e+00 : f32
    %341 = vector.broadcast %cst_113 : f32 to vector<8x384xf32>
    %342 = arith.addf %341, %340 : vector<8x384xf32>
    %343 = arith.divf %341, %342 : vector<8x384xf32>
    %344 = vector.extract_strided_slice %343 {offsets = [0, 0], sizes = [8, 128], strides = [1, 1]} : vector<8x384xf32> to vector<8x128xf32>
    %345 = vector.extract_strided_slice %343 {offsets = [0, 128], sizes = [8, 128], strides = [1, 1]} : vector<8x384xf32> to vector<8x128xf32>
    %346 = vector.extract_strided_slice %343 {offsets = [0, 256], sizes = [8, 128], strides = [1, 1]} : vector<8x384xf32> to vector<8x128xf32>
    %347 = vector.extract_strided_slice %337 {offsets = [0, 384], sizes = [8, 128], strides = [1, 1]} : vector<8x512xf32> to vector<8x128xf32>
    %348 = math.tanh %347 : vector<8x128xf32>
    %349 = arith.mulf %345, %305 : vector<8x128xf32>
    %350 = arith.mulf %344, %348 : vector<8x128xf32>
    %351 = arith.addf %349, %350 : vector<8x128xf32>
    %352 = math.tanh %351 : vector<8x128xf32>
    %353 = arith.mulf %346, %352 : vector<8x128xf32>
    %354 = arith.truncf %353 : vector<8x128xf32> to vector<8x128xbf16>
    %c0_114 = arith.constant 0 : index
    %c0_115 = arith.constant 0 : index
    %355 = vector.load %arg4[%c0_114, %c0_115] : memref<128x512xbf16, #tpu.memory_space<vmem>>, vector<128x512xbf16>
    %cst_116 = arith.constant dense<0.000000e+00> : vector<8x512xf32>
    %356 = tpu.matmul %354, %355, %cst_116 {dimension_numbers = #tpu.dot_dimension_numbers<[1], [0], [0], [1], [0, 0, 1, 1], [], []>} : vector<8x128xbf16>, vector<128x512xbf16>, vector<8x512xf32> -> vector<8x512xf32>
    %357 = arith.truncf %331 : vector<8x128xf32> to vector<8x128xbf16>
    %c0_117 = arith.constant 0 : index
    %c0_118 = arith.constant 0 : index
    %358 = vector.load %arg5[%c0_117, %c0_118] : memref<128x512xbf16, #tpu.memory_space<vmem>>, vector<128x512xbf16>
    %cst_119 = arith.constant dense<0.000000e+00> : vector<8x512xf32>
    %359 = tpu.matmul %357, %358, %cst_119 {dimension_numbers = #tpu.dot_dimension_numbers<[1], [0], [0], [1], [0, 0, 1, 1], [], []>} : vector<8x128xbf16>, vector<128x512xbf16>, vector<8x512xf32> -> vector<8x512xf32>
    %360 = arith.addf %356, %359 : vector<8x512xf32>
    %361 = arith.addf %360, %9 : vector<8x512xf32>
    %362 = vector.extract_strided_slice %361 {offsets = [0, 0], sizes = [8, 384], strides = [1, 1]} : vector<8x512xf32> to vector<8x384xf32>
    %363 = arith.negf %362 : vector<8x384xf32>
    %364 = math.exp %363 : vector<8x384xf32>
    %cst_120 = arith.constant 1.000000e+00 : f32
    %365 = vector.broadcast %cst_120 : f32 to vector<8x384xf32>
    %366 = arith.addf %365, %364 : vector<8x384xf32>
    %367 = arith.divf %365, %366 : vector<8x384xf32>
    %368 = vector.extract_strided_slice %367 {offsets = [0, 0], sizes = [8, 128], strides = [1, 1]} : vector<8x384xf32> to vector<8x128xf32>
    %369 = vector.extract_strided_slice %367 {offsets = [0, 128], sizes = [8, 128], strides = [1, 1]} : vector<8x384xf32> to vector<8x128xf32>
    %370 = vector.extract_strided_slice %367 {offsets = [0, 256], sizes = [8, 128], strides = [1, 1]} : vector<8x384xf32> to vector<8x128xf32>
    %371 = vector.extract_strided_slice %361 {offsets = [0, 384], sizes = [8, 128], strides = [1, 1]} : vector<8x512xf32> to vector<8x128xf32>
    %372 = math.tanh %371 : vector<8x128xf32>
    %373 = arith.mulf %369, %329 : vector<8x128xf32>
    %374 = arith.mulf %368, %372 : vector<8x128xf32>
    %375 = arith.addf %373, %374 : vector<8x128xf32>
    %376 = math.tanh %375 : vector<8x128xf32>
    %377 = arith.mulf %370, %376 : vector<8x128xf32>
    %c56_121 = arith.constant 56 : index
    %c0_122 = arith.constant 0 : index
    %378 = vector.load %arg11[%c56_121, %c0_122] : memref<64x128xf32, #tpu.memory_space<vmem>>, vector<8x128xf32>
    tpu.vector_store %arg11[%c56_121, %c0_122], %377 {strides = array<i32>} : memref<64x128xf32, #tpu.memory_space<vmem>>, vector<8x128xf32>,
    %c0_123 = arith.constant 0 : index
    %c0_124 = arith.constant 0 : index
    %379 = vector.load %arg11[%c0_123, %c0_124] : memref<64x128xf32, #tpu.memory_space<vmem>>, vector<64x128xf32>
    %380 = arith.truncf %379 : vector<64x128xf32> to vector<64x128xbf16>
    %c0_125 = arith.constant 0 : index
    %c0_126 = arith.constant 0 : index
    %381 = vector.load %arg7[%c0_125, %c0_126] : memref<128x128xbf16, #tpu.memory_space<vmem>>, vector<128x128xbf16>
    %cst_127 = arith.constant dense<0.000000e+00> : vector<64x128xf32>
    %382 = tpu.matmul %380, %381, %cst_127 {dimension_numbers = #tpu.dot_dimension_numbers<[1], [0], [0], [1], [0, 0, 1, 1], [], []>} : vector<64x128xbf16>, vector<128x128xbf16>, vector<64x128xf32> -> vector<64x128xf32>
    %c0_128 = arith.constant 0 : index
    %c0_129 = arith.constant 0 : index
    %383 = vector.load %arg8[%c0_128, %c0_129] : memref<1x128xf32, #tpu.memory_space<vmem>>, vector<1x128xf32>
    %384 = vector.broadcast %383 : vector<1x128xf32> to vector<64x128xf32>
    %385 = arith.addf %382, %384 : vector<64x128xf32>
    %c0_130 = arith.constant 0 : index
    %c0_131 = arith.constant 0 : index
    %386 = vector.load %arg9[%c0_130, %c0_131] : memref<64x128xf32, #tpu.memory_space<vmem>>, vector<64x128xf32>
    tpu.vector_store %arg9[%c0_130, %c0_131], %385 {strides = array<i32>} : memref<64x128xf32, #tpu.memory_space<vmem>>, vector<64x128xf32>,
    return
  }
}

</mosaic_0001>

<llo_original>
// kernel: tpu_custom_call.1
$region0: #{tpu_custom_call.1}
  #allocation0 [shape = 'u32[]', space=smem, size = 0x4, offset = 0x4, fixed_abs, tag = 'smem constant byte address 0x4 - core index']
  #allocation1 [shape = 'u32[72,128]{1,0:T(1,128)}', space=vmem, size = 0x9000, scoped, tag = 'internal scratch']
  #allocation2 [shape = 'f32[64,512]{1,0:T(8,128)}', space=vmem, size = 0x20000, scoped, tag = 'scratch operand']
  #allocation3 [shape = 'f32[64,128]{1,0:T(8,128)}', space=vmem, size = 0x8000, scoped, tag = 'scratch operand']
  %s0 = inlined_call_operand.hbm [shape: bf16[64,128], index: 0, kind: input, shape index: {}]
  %s1 = inlined_call_operand.hbm [shape: bf16[128,512], index: 1, kind: input, shape index: {}]
  %s2 = inlined_call_operand.hbm [shape: bf16[128,512], index: 2, kind: input, shape index: {}]
  %s3 = inlined_call_operand.hbm [shape: f32[1,512], index: 3, kind: input, shape index: {}]
  %s4 = inlined_call_operand.hbm [shape: bf16[128,512], index: 4, kind: input, shape index: {}]
  %s5 = inlined_call_operand.hbm [shape: bf16[128,512], index: 5, kind: input, shape index: {}]
  %s6 = inlined_call_operand.vmem [shape: f32[1,512], index: 6, kind: input, shape index: {}]
  %s7 = inlined_call_operand.hbm [shape: bf16[128,128], index: 7, kind: input, shape index: {}]
  %s8 = inlined_call_operand.vmem [shape: f32[1,128], index: 8, kind: input, shape index: {}]
  %s9 = inlined_call_operand.hbm [shape: f32[64,128], index: 9, kind: output, shape index: {}]
  %s10 = sld [smem:[#allocation0]]
  $region74: #{tpu_custom_call.1} parent=0
    _
  %s12 = ssub.s32 1, %s10
  %s13 = scalar_select 0, %s12, %s10
  $region1: #{tpu_custom_call.1} parent=0
    #allocation4 [shape = 'u8[16384]{0}', space=vmem, size = 0x4000, scoped, tag = 'input window, operand 0, single buffered']
    #allocation5 [shape = 's32[1]{0}', space=sflag, size = 0x4, scoped, tag = 'scoped memory for tpu_custom_call.1']
    #allocation6 [shape = 's32[1]{0}', space=sflag, size = 0x4, scoped, tag = 'scoped memory for tpu_custom_call.1']
    #allocation7 [shape = 'u8[131072]{0}', space=vmem, size = 0x20000, scoped, tag = 'input window, operand 1, single buffered']
    #allocation8 [shape = 's32[1]{0}', space=sflag, size = 0x4, scoped, tag = 'scoped memory for tpu_custom_call.1']
    #allocation9 [shape = 'u8[131072]{0}', space=vmem, size = 0x20000, scoped, tag = 'input window, operand 2, single buffered']
    #allocation10 [shape = 'u8[2048]{0}', space=vmem, size = 0x800, scoped, tag = 'input window, operand 3, single buffered']
    #allocation11 [shape = 's32[1]{0}', space=sflag, size = 0x4, scoped, tag = 'scoped memory for tpu_custom_call.1']
    #allocation12 [shape = 'u8[131072]{0}', space=vmem, size = 0x20000, scoped, tag = 'input window, operand 4, single buffered']
    #allocation13 [shape = 'u8[131072]{0}', space=vmem, size = 0x20000, scoped, tag = 'input window, operand 5, single buffered']
    #allocation14 [shape = 's32[1]{0}', space=sflag, size = 0x4, scoped, tag = 'scoped memory for tpu_custom_call.1']
    #allocation15 [shape = 'u8[32768]{0}', space=vmem, size = 0x8000, scoped, tag = 'input window, operand 7, single buffered']
    #allocation16 [shape = 'u8[32768]{0}', space=vmem, size = 0x8000, scoped, tag = 'output window, operand 0, single buffered']
    %14 = vsyncpa [#allocation5], 0
    %15 = vsyncpa [#allocation8], 0
    %16 = vsyncpa [#allocation11], 0
    %17 = vsyncpa [#allocation14], 0
    %18 = vsyncpa [#allocation6], 0
    // Predicated region
    $region2: #{tpu_custom_call.1} parent=1 // pred_check
      _
    $region3: #{tpu_custom_call.1} parent=1 // pred_check_branch
      %20 = sbr.rel (0) target = $region5
    $region4: #{tpu_custom_call.1} parent=1 // pred_region
      %22 = vsyncadd [#allocation5], 0
      %s23 = sshll.u32 %s0, 4
      %s24 = int_to_ptr.hbm [resolvable:$true] %s23
      %s25 = sshll.u32 [#allocation4], 4
      %s26 = int_to_ptr.vmem [resolvable:$true] %s25
      %31 = dma.hbm_to_vmem [thread:$0]  %s24, 512, %s26, [#allocation5], 64, 64, 4
    $region5: #{tpu_custom_call.1} parent=1 // pred_fallthru
      _
    // Predicated region
    $region6: #{tpu_custom_call.1} parent=1 // pred_check
      _
    $region7: #{tpu_custom_call.1} parent=1 // pred_check_branch
      %33 = sbr.rel (0) target = $region9
    $region8: #{tpu_custom_call.1} parent=1 // pred_region
      %35 = vsyncadd [#allocation8], 0
      %s36 = sshll.u32 %s1, 4
      %s37 = int_to_ptr.hbm [resolvable:$true] %s36
      %s38 = sshll.u32 [#allocation7], 4
      %s39 = int_to_ptr.vmem [resolvable:$true] %s38
      %44 = dma.hbm_to_vmem [thread:$0]  %s37, 4096, %s39, [#allocation8], 256, 256, 16
    $region9: #{tpu_custom_call.1} parent=1 // pred_fallthru
      _
    // Predicated region
    $region10: #{tpu_custom_call.1} parent=1 // pred_check
      _
    $region11: #{tpu_custom_call.1} parent=1 // pred_check_branch
      %46 = sbr.rel (0) target = $region13
    $region12: #{tpu_custom_call.1} parent=1 // pred_region
      %48 = vsyncadd [#allocation8], 0
      %s49 = sshll.u32 %s2, 4
      %s50 = int_to_ptr.hbm [resolvable:$true] %s49
      %s51 = sshll.u32 [#allocation9], 4
      %s52 = int_to_ptr.vmem [resolvable:$true] %s51
      %57 = dma.hbm_to_vmem [thread:$0]  %s50, 4096, %s52, [#allocation8], 256, 256, 16
    $region13: #{tpu_custom_call.1} parent=1 // pred_fallthru
      _
    // Predicated region
    $region14: #{tpu_custom_call.1} parent=1 // pred_check
      _
    $region15: #{tpu_custom_call.1} parent=1 // pred_check_branch
      %59 = sbr.rel (0) target = $region17
    $region16: #{tpu_custom_call.1} parent=1 // pred_region
      %61 = vsyncadd [#allocation11], 0
      %s63 = sshll.u32 %s3, 4
      %s64 = int_to_ptr.hbm [resolvable:$true] %s63
      %s65 = sshll.u32 [#allocation10], 4
      %s66 = int_to_ptr.vmem [resolvable:$true] %s65
      %68 = dma.hbm_to_vmem [thread:$0]  %s64, 64, %s66, [#allocation11]
    $region17: #{tpu_custom_call.1} parent=1 // pred_fallthru
      _
    // Predicated region
    $region18: #{tpu_custom_call.1} parent=1 // pred_check
      _
    $region19: #{tpu_custom_call.1} parent=1 // pred_check_branch
      %70 = sbr.rel (0) target = $region21
    $region20: #{tpu_custom_call.1} parent=1 // pred_region
      %72 = vsyncadd [#allocation11], 0
      %s73 = sshll.u32 %s4, 4
      %s74 = int_to_ptr.hbm [resolvable:$true] %s73
      %s75 = sshll.u32 [#allocation12], 4
      %s76 = int_to_ptr.vmem [resolvable:$true] %s75
      %81 = dma.hbm_to_vmem [thread:$0]  %s74, 4096, %s76, [#allocation11], 256, 256, 16
    $region21: #{tpu_custom_call.1} parent=1 // pred_fallthru
      _
    // Predicated region
    $region22: #{tpu_custom_call.1} parent=1 // pred_check
      _
    $region23: #{tpu_custom_call.1} parent=1 // pred_check_branch
      %83 = sbr.rel (0) target = $region25
    $region24: #{tpu_custom_call.1} parent=1 // pred_region
      %85 = vsyncadd [#allocation14], 0
      %s86 = sshll.u32 %s5, 4
      %s87 = int_to_ptr.hbm [resolvable:$true] %s86
      %s88 = sshll.u32 [#allocation13], 4
      %s89 = int_to_ptr.vmem [resolvable:$true] %s88
      %94 = dma.hbm_to_vmem [thread:$0]  %s87, 4096, %s89, [#allocation14], 256, 256, 16
    $region25: #{tpu_custom_call.1} parent=1 // pred_fallthru
      _
    // Predicated region
    $region26: #{tpu_custom_call.1} parent=1 // pred_check
      _
    $region27: #{tpu_custom_call.1} parent=1 // pred_check_branch
      %96 = sbr.rel (0) target = $region29
    $region28: #{tpu_custom_call.1} parent=1 // pred_region
      _
    $region29: #{tpu_custom_call.1} parent=1 // pred_fallthru
      _
    // Predicated region
    $region30: #{tpu_custom_call.1} parent=1 // pred_check
      _
    $region31: #{tpu_custom_call.1} parent=1 // pred_check_branch
      %98 = sbr.rel (0) target = $region33
    $region32: #{tpu_custom_call.1} parent=1 // pred_region
      %100 = vsyncadd [#allocation14], 0
      %s101 = sshll.u32 %s7, 4
      %s102 = int_to_ptr.hbm [resolvable:$true] %s101
      %s103 = sshll.u32 [#allocation15], 4
      %s104 = int_to_ptr.vmem [resolvable:$true] %s103
      %109 = dma.hbm_to_vmem [thread:$0]  %s102, 1024, %s104, [#allocation14], 64, 64, 4
    $region33: #{tpu_custom_call.1} parent=1 // pred_fallthru
      _
    // Predicated region
    $region34: #{tpu_custom_call.1} parent=1 // pred_check
      _
    $region35: #{tpu_custom_call.1} parent=1 // pred_check_branch
      %111 = sbr.rel (0) target = $region37
    $region36: #{tpu_custom_call.1} parent=1 // pred_region
      _
    $region37: #{tpu_custom_call.1} parent=1 // pred_fallthru
      _
    // Predicated region
    $region38: #{tpu_custom_call.1} parent=1 // pred_check
      _
    $region39: #{tpu_custom_call.1} parent=1 // pred_check_branch
      %113 = sbr.rel (0) target = $region41
    $region40: #{tpu_custom_call.1} parent=1 // pred_region
      %115 = dma.done [#allocation5], 512
    $region41: #{tpu_custom_call.1} parent=1 // pred_fallthru
      _
    // Predicated region
    $region42: #{tpu_custom_call.1} parent=1 // pred_check
      _
    $region43: #{tpu_custom_call.1} parent=1 // pred_check_branch
      %117 = sbr.rel (0) target = $region45
    $region44: #{tpu_custom_call.1} parent=1 // pred_region
      %119 = dma.done [#allocation8], 4096
    $region45: #{tpu_custom_call.1} parent=1 // pred_fallthru
      _
    // Predicated region
    $region46: #{tpu_custom_call.1} parent=1 // pred_check
      _
    $region47: #{tpu_custom_call.1} parent=1 // pred_check_branch
      %121 = sbr.rel (0) target = $region49
    $region48: #{tpu_custom_call.1} parent=1 // pred_region
      %123 = dma.done [#allocation8], 4096
    $region49: #{tpu_custom_call.1} parent=1 // pred_fallthru
      _
    // Predicated region
    $region50: #{tpu_custom_call.1} parent=1 // pred_check
      _
    $region51: #{tpu_custom_call.1} parent=1 // pred_check_branch
      %125 = sbr.rel (0) target = $region53
    $region52: #{tpu_custom_call.1} parent=1 // pred_region
      %127 = dma.done [#allocation11], 64
    $region53: #{tpu_custom_call.1} parent=1 // pred_fallthru
      _
    // Predicated region
    $region54: #{tpu_custom_call.1} parent=1 // pred_check
      _
    $region55: #{tpu_custom_call.1} parent=1 // pred_check_branch
      %129 = sbr.rel (0) target = $region57
    $region56: #{tpu_custom_call.1} parent=1 // pred_region
      %131 = dma.done [#allocation11], 4096
    $region57: #{tpu_custom_call.1} parent=1 // pred_fallthru
      _
    // Predicated region
    $region58: #{tpu_custom_call.1} parent=1 // pred_check
      _
    $region59: #{tpu_custom_call.1} parent=1 // pred_check_branch
      %133 = sbr.rel (0) target = $region61
    $region60: #{tpu_custom_call.1} parent=1 // pred_region
      %135 = dma.done [#allocation14], 4096
    $region61: #{tpu_custom_call.1} parent=1 // pred_fallthru
      _
    // Predicated region
    $region62: #{tpu_custom_call.1} parent=1 // pred_check
      _
    $region63: #{tpu_custom_call.1} parent=1 // pred_check_branch
      %137 = sbr.rel (0) target = $region65
    $region64: #{tpu_custom_call.1} parent=1 // pred_region
      %139 = dma.done [#allocation14], 1024
    $region65: #{tpu_custom_call.1} parent=1 // pred_fallthru
      _
    %v141 = vld [vmem:[#allocation4] sm:$0xf]
    %v142 = vld [vmem:[#allocation4 + $0x4] sm:$0xf]
    %v143 = vld [vmem:[#allocation4 + $0x8] sm:$0xf]
    %v144 = vld [vmem:[#allocation4 + $0xc] sm:$0xf]
    %v145 = vld [vmem:[#allocation4 + $0x10] sm:$0xf]
    %v146 = vld [vmem:[#allocation4 + $0x14] sm:$0xf]
    %v147 = vld [vmem:[#allocation4 + $0x18] sm:$0xf]
    %v148 = vld [vmem:[#allocation4 + $0x1c] sm:$0xf]
    %v149 = vld [vmem:[#allocation7] sm:$0xff]
    %v150 = vld [vmem:[#allocation7 + $0x8] sm:$0xff]
    %v151 = vld [vmem:[#allocation7 + $0x10] sm:$0xff]
    %v152 = vld [vmem:[#allocation7 + $0x18] sm:$0xff]
    %v153 = vld [vmem:[#allocation7 + $0x20] sm:$0xff]
    %v154 = vld [vmem:[#allocation7 + $0x28] sm:$0xff]
    %v155 = vld [vmem:[#allocation7 + $0x30] sm:$0xff]
    %v156 = vld [vmem:[#allocation7 + $0x38] sm:$0xff]
    %v157 = vld [vmem:[#allocation7 + $0x40] sm:$0xff]
    %v158 = vld [vmem:[#allocation7 + $0x48] sm:$0xff]
    %v159 = vld [vmem:[#allocation7 + $0x50] sm:$0xff]
    %v160 = vld [vmem:[#allocation7 + $0x58] sm:$0xff]
    %v161 = vld [vmem:[#allocation7 + $0x60] sm:$0xff]
    %v162 = vld [vmem:[#allocation7 + $0x68] sm:$0xff]
    %v163 = vld [vmem:[#allocation7 + $0x70] sm:$0xff]
    %v164 = vld [vmem:[#allocation7 + $0x78] sm:$0xff]
    %v165 = vld [vmem:[#allocation7 + $0x80] sm:$0xff]
    %v166 = vld [vmem:[#allocation7 + $0x88] sm:$0xff]
    %v167 = vld [vmem:[#allocation7 + $0x90] sm:$0xff]
    %v168 = vld [vmem:[#allocation7 + $0x98] sm:$0xff]
    %v169 = vld [vmem:[#allocation7 + $0xa0] sm:$0xff]
    %v170 = vld [vmem:[#allocation7 + $0xa8] sm:$0xff]
    %v171 = vld [vmem:[#allocation7 + $0xb0] sm:$0xff]
    %v172 = vld [vmem:[#allocation7 + $0xb8] sm:$0xff]
    %v173 = vld [vmem:[#allocation7 + $0xc0] sm:$0xff]
    %v174 = vld [vmem:[#allocation7 + $0xc8] sm:$0xff]
    %v175 = vld [vmem:[#allocation7 + $0xd0] sm:$0xff]
    %v176 = vld [vmem:[#allocation7 + $0xd8] sm:$0xff]
    %v177 = vld [vmem:[#allocation7 + $0xe0] sm:$0xff]
    %v178 = vld [vmem:[#allocation7 + $0xe8] sm:$0xff]
    %v179 = vld [vmem:[#allocation7 + $0xf0] sm:$0xff]
    %v180 = vld [vmem:[#allocation7 + $0xf8] sm:$0xff]
    %v181 = vld [vmem:[#allocation10] sm:$0xf]
    %v183 = vperm.slane %v181, 0
    %v184 = vperm.slane %v181, 1
    %v185 = vperm.slane %v181, 2
    %v186 = vperm.slane %v181, 3
    %v199 = vunpack.c.l.b16 %v141
    %v200 = vunpack.c.l.b16 %v142
    %v201 = vunpack.c.l.b16 %v143
    %v202 = vunpack.c.l.b16 %v144
    %v203 = vunpack.c.l.b16 %v145
    %v204 = vunpack.c.l.b16 %v146
    %v205 = vunpack.c.l.b16 %v147
    %v206 = vunpack.c.l.b16 %v148
    %v207 = vpack.c.b16 %v200, %v199
    %v208 = vpack.c.b16 %v202, %v201
    %v209 = vpack.c.b16 %v204, %v203
    %v210 = vpack.c.b16 %v206, %v205
    %v247 = vunpack.c.l.b16 %v149
    %v248 = vunpack.c.h.b16 %v149
    %v249 = vunpack.c.l.b16 %v150
    %v250 = vunpack.c.h.b16 %v150
    %v251 = vunpack.c.l.b16 %v151
    %v252 = vunpack.c.h.b16 %v151
    %v253 = vunpack.c.l.b16 %v152
    %v254 = vunpack.c.h.b16 %v152
    %v255 = vunpack.c.l.b16 %v153
    %v256 = vunpack.c.h.b16 %v153
    %v257 = vunpack.c.l.b16 %v154
    %v258 = vunpack.c.h.b16 %v154
    %v259 = vunpack.c.l.b16 %v155
    %v260 = vunpack.c.h.b16 %v155
    %v261 = vunpack.c.l.b16 %v156
    %v262 = vunpack.c.h.b16 %v156
    %v263 = vunpack.c.l.b16 %v157
    %v264 = vunpack.c.h.b16 %v157
    %v265 = vunpack.c.l.b16 %v158
    %v266 = vunpack.c.h.b16 %v158
    %v267 = vunpack.c.l.b16 %v159
    %v268 = vunpack.c.h.b16 %v159
    %v269 = vunpack.c.l.b16 %v160
    %v270 = vunpack.c.h.b16 %v160
    %v271 = vunpack.c.l.b16 %v161
    %v272 = vunpack.c.h.b16 %v161
    %v273 = vunpack.c.l.b16 %v162
    %v274 = vunpack.c.h.b16 %v162
    %v275 = vunpack.c.l.b16 %v163
    %v276 = vunpack.c.h.b16 %v163
    %v277 = vunpack.c.l.b16 %v164
    %v278 = vunpack.c.h.b16 %v164
    %v279 = vunpack.c.l.b16 %v165
    %v280 = vunpack.c.h.b16 %v165
    %v281 = vunpack.c.l.b16 %v166
    %v282 = vunpack.c.h.b16 %v166
    %v283 = vunpack.c.l.b16 %v167
    %v284 = vunpack.c.h.b16 %v167
    %v285 = vunpack.c.l.b16 %v168
    %v286 = vunpack.c.h.b16 %v168
    %v287 = vunpack.c.l.b16 %v169
    %v288 = vunpack.c.h.b16 %v169
    %v289 = vunpack.c.l.b16 %v170
    %v290 = vunpack.c.h.b16 %v170
    %v291 = vunpack.c.l.b16 %v171
    %v292 = vunpack.c.h.b16 %v171
    %v293 = vunpack.c.l.b16 %v172
    %v294 = vunpack.c.h.b16 %v172
    %v295 = vunpack.c.l.b16 %v173
    %v296 = vunpack.c.h.b16 %v173
    %v297 = vunpack.c.l.b16 %v174
    %v298 = vunpack.c.h.b16 %v174
    %v299 = vunpack.c.l.b16 %v175
    %v300 = vunpack.c.h.b16 %v175
    %v301 = vunpack.c.l.b16 %v176
    %v302 = vunpack.c.h.b16 %v176
    %v303 = vunpack.c.l.b16 %v177
    %v304 = vunpack.c.h.b16 %v177
    %v305 = vunpack.c.l.b16 %v178
    %v306 = vunpack.c.h.b16 %v178
    %v307 = vunpack.c.l.b16 %v179
    %v308 = vunpack.c.h.b16 %v179
    %v309 = vunpack.c.l.b16 %v180
    %v310 = vunpack.c.h.b16 %v180
    %v311 = vpack.c.b16 %v251, %v247
    %v312 = vpack.c.b16 %v252, %v248
    %v313 = vpack.c.b16 %v253, %v249
    %v314 = vpack.c.b16 %v254, %v250
    %v315 = vpack.c.b16 %v259, %v255
    %v316 = vpack.c.b16 %v260, %v256
    %v317 = vpack.c.b16 %v261, %v257
    %v318 = vpack.c.b16 %v262, %v258
    %v319 = vpack.c.b16 %v267, %v263
    %v320 = vpack.c.b16 %v268, %v264
    %v321 = vpack.c.b16 %v269, %v265
    %v322 = vpack.c.b16 %v270, %v266
    %v323 = vpack.c.b16 %v275, %v271
    %v324 = vpack.c.b16 %v276, %v272
    %v325 = vpack.c.b16 %v277, %v273
    %v326 = vpack.c.b16 %v278, %v274
    %v327 = vpack.c.b16 %v283, %v279
    %v328 = vpack.c.b16 %v284, %v280
    %v329 = vpack.c.b16 %v285, %v281
    %v330 = vpack.c.b16 %v286, %v282
    %v331 = vpack.c.b16 %v291, %v287
    %v332 = vpack.c.b16 %v292, %v288
    %v333 = vpack.c.b16 %v293, %v289
    %v334 = vpack.c.b16 %v294, %v290
    %v335 = vpack.c.b16 %v299, %v295
    %v336 = vpack.c.b16 %v300, %v296
    %v337 = vpack.c.b16 %v301, %v297
    %v338 = vpack.c.b16 %v302, %v298
    %v339 = vpack.c.b16 %v307, %v303
    %v340 = vpack.c.b16 %v308, %v304
    %v341 = vpack.c.b16 %v309, %v305
    %v342 = vpack.c.b16 %v310, %v306
    %375 = vmatpush.bf16.msra.mxu0 %v339
    %376 = vmatpush.bf16.msra.mxu0 %v335
    %377 = vmatpush.bf16.msra.mxu0 %v331
    %378 = vmatpush.bf16.msra.mxu0 %v327
    %379 = vmatpush.bf16.msra.mxu0 %v323
    %380 = vmatpush.bf16.msra.mxu0 %v319
    %381 = vmatpush.bf16.msra.mxu0 %v315
    %382 = vmatpush.bf16.msra.mxu0 %v311
    %383 = vmatmul.bf16.gmra.mxu0 %v207
    %v384 = vpop.f32.mrf.mxu0
    %v385 = vadd.f32 %v183, %v384
    %v386 = vpop.f32.mrf.mxu0
    %v387 = vadd.f32 %v183, %v386
    %388 = vmatmul.bf16.gmra.mxu0 %v208
    %v389 = vpop.f32.mrf.mxu0
    %v390 = vadd.f32 %v183, %v389
    %v391 = vpop.f32.mrf.mxu0
    %v392 = vadd.f32 %v183, %v391
    %393 = vmatmul.bf16.gmra.mxu0 %v209
    %v394 = vpop.f32.mrf.mxu0
    %v395 = vadd.f32 %v183, %v394
    %v396 = vpop.f32.mrf.mxu0
    %v397 = vadd.f32 %v183, %v396
    %398 = vmatmul.bf16.gmra.mxu0 %v210
    %v399 = vpop.f32.mrf.mxu0
    %v400 = vadd.f32 %v183, %v399
    %v401 = vpop.f32.mrf.mxu0
    %v402 = vadd.f32 %v183, %v401
    %403 = vdwg.mxu0
    %404 = vmatpush.bf16.msra.mxu0 %v340
    %405 = vmatpush.bf16.msra.mxu0 %v336
    %406 = vmatpush.bf16.msra.mxu0 %v332
    %407 = vmatpush.bf16.msra.mxu0 %v328
    %408 = vmatpush.bf16.msra.mxu0 %v324
    %409 = vmatpush.bf16.msra.mxu0 %v320
    %410 = vmatpush.bf16.msra.mxu0 %v316
    %411 = vmatpush.bf16.msra.mxu0 %v312
    %412 = vmatmul.bf16.gmra.mxu0 %v207
    %v413 = vpop.f32.mrf.mxu0
    %v414 = vadd.f32 %v184, %v413
    %v415 = vpop.f32.mrf.mxu0
    %v416 = vadd.f32 %v184, %v415
    %417 = vmatmul.bf16.gmra.mxu0 %v208
    %v418 = vpop.f32.mrf.mxu0
    %v419 = vadd.f32 %v184, %v418
    %v420 = vpop.f32.mrf.mxu0
    %v421 = vadd.f32 %v184, %v420
    %422 = vmatmul.bf16.gmra.mxu0 %v209
    %v423 = vpop.f32.mrf.mxu0
    %v424 = vadd.f32 %v184, %v423
    %v425 = vpop.f32.mrf.mxu0
    %v426 = vadd.f32 %v184, %v425
    %427 = vmatmul.bf16.gmra.mxu0 %v210
    %v428 = vpop.f32.mrf.mxu0
    %v429 = vadd.f32 %v184, %v428
    %v430 = vpop.f32.mrf.mxu0
    %v431 = vadd.f32 %v184, %v430
    %432 = vdwg.mxu0
    %433 = vmatpush.bf16.msra.mxu0 %v341
    %434 = vmatpush.bf16.msra.mxu0 %v337
    %435 = vmatpush.bf16.msra.mxu0 %v333
    %436 = vmatpush.bf16.msra.mxu0 %v329
    %437 = vmatpush.bf16.msra.mxu0 %v325
    %438 = vmatpush.bf16.msra.mxu0 %v321
    %439 = vmatpush.bf16.msra.mxu0 %v317
    %440 = vmatpush.bf16.msra.mxu0 %v313
    %441 = vmatmul.bf16.gmra.mxu0 %v207
    %v442 = vpop.f32.mrf.mxu0
    %v443 = vadd.f32 %v185, %v442
    %v444 = vpop.f32.mrf.mxu0
    %v445 = vadd.f32 %v185, %v444
    %446 = vmatmul.bf16.gmra.mxu0 %v208
    %v447 = vpop.f32.mrf.mxu0
    %v448 = vadd.f32 %v185, %v447
    %v449 = vpop.f32.mrf.mxu0
    %v450 = vadd.f32 %v185, %v449
    %451 = vmatmul.bf16.gmra.mxu0 %v209
    %v452 = vpop.f32.mrf.mxu0
    %v453 = vadd.f32 %v185, %v452
    %v454 = vpop.f32.mrf.mxu0
    %v455 = vadd.f32 %v185, %v454
    %456 = vmatmul.bf16.gmra.mxu0 %v210
    %v457 = vpop.f32.mrf.mxu0
    %v458 = vadd.f32 %v185, %v457
    %v459 = vpop.f32.mrf.mxu0
    %v460 = vadd.f32 %v185, %v459
    %461 = vdwg.mxu0
    %462 = vmatpush.bf16.msra.mxu0 %v342
    %463 = vmatpush.bf16.msra.mxu0 %v338
    %464 = vmatpush.bf16.msra.mxu0 %v334
    %465 = vmatpush.bf16.msra.mxu0 %v330
    %466 = vmatpush.bf16.msra.mxu0 %v326
    %467 = vmatpush.bf16.msra.mxu0 %v322
    %468 = vmatpush.bf16.msra.mxu0 %v318
    %469 = vmatpush.bf16.msra.mxu0 %v314
    %470 = vmatmul.bf16.gmra.mxu0 %v207
    %v471 = vpop.f32.mrf.mxu0
    %v472 = vadd.f32 %v186, %v471
    %v473 = vpop.f32.mrf.mxu0
    %v474 = vadd.f32 %v186, %v473
    %475 = vmatmul.bf16.gmra.mxu0 %v208
    %v476 = vpop.f32.mrf.mxu0
    %v477 = vadd.f32 %v186, %v476
    %v478 = vpop.f32.mrf.mxu0
    %v479 = vadd.f32 %v186, %v478
    %480 = vmatmul.bf16.gmra.mxu0 %v209
    %v481 = vpop.f32.mrf.mxu0
    %v482 = vadd.f32 %v186, %v481
    %v483 = vpop.f32.mrf.mxu0
    %v484 = vadd.f32 %v186, %v483
    %485 = vmatmul.bf16.gmra.mxu0 %v210
    %v486 = vpop.f32.mrf.mxu0
    %v487 = vadd.f32 %v186, %v486
    %v488 = vpop.f32.mrf.mxu0
    %v489 = vadd.f32 %v186, %v488
    %490 = vdwg.mxu0
    %491 = vst [vmem:[#allocation2] sm:$0xff] %v385
    %492 = vst [vmem:[#allocation2 + $0x8] sm:$0xff] %v414
    %493 = vst [vmem:[#allocation2 + $0x10] sm:$0xff] %v443
    %494 = vst [vmem:[#allocation2 + $0x18] sm:$0xff] %v472
    %495 = vst [vmem:[#allocation2 + $0x20] sm:$0xff] %v387
    %496 = vst [vmem:[#allocation2 + $0x28] sm:$0xff] %v416
    %497 = vst [vmem:[#allocation2 + $0x30] sm:$0xff] %v445
    %498 = vst [vmem:[#allocation2 + $0x38] sm:$0xff] %v474
    %499 = vst [vmem:[#allocation2 + $0x40] sm:$0xff] %v390
    %500 = vst [vmem:[#allocation2 + $0x48] sm:$0xff] %v419
    %501 = vst [vmem:[#allocation2 + $0x50] sm:$0xff] %v448
    %502 = vst [vmem:[#allocation2 + $0x58] sm:$0xff] %v477
    %503 = vst [vmem:[#allocation2 + $0x60] sm:$0xff] %v392
    %504 = vst [vmem:[#allocation2 + $0x68] sm:$0xff] %v421
    %505 = vst [vmem:[#allocation2 + $0x70] sm:$0xff] %v450
    %506 = vst [vmem:[#allocation2 + $0x78] sm:$0xff] %v479
    %507 = vst [vmem:[#allocation2 + $0x80] sm:$0xff] %v395
    %508 = vst [vmem:[#allocation2 + $0x88] sm:$0xff] %v424
    %509 = vst [vmem:[#allocation2 + $0x90] sm:$0xff] %v453
    %510 = vst [vmem:[#allocation2 + $0x98] sm:$0xff] %v482
    %511 = vst [vmem:[#allocation2 + $0xa0] sm:$0xff] %v397
    %512 = vst [vmem:[#allocation2 + $0xa8] sm:$0xff] %v426
    %513 = vst [vmem:[#allocation2 + $0xb0] sm:$0xff] %v455
    %514 = vst [vmem:[#allocation2 + $0xb8] sm:$0xff] %v484
    %515 = vst [vmem:[#allocation2 + $0xc0] sm:$0xff] %v400
    %516 = vst [vmem:[#allocation2 + $0xc8] sm:$0xff] %v429
    %517 = vst [vmem:[#allocation2 + $0xd0] sm:$0xff] %v458
    %518 = vst [vmem:[#allocation2 + $0xd8] sm:$0xff] %v487
    %519 = vst [vmem:[#allocation2 + $0xe0] sm:$0xff] %v402
    %520 = vst [vmem:[#allocation2 + $0xe8] sm:$0xff] %v431
    %521 = vst [vmem:[#allocation2 + $0xf0] sm:$0xff] %v460
    %522 = vst [vmem:[#allocation2 + $0xf8] sm:$0xff] %v489
    %v523 = vld [vmem:[%s6] sm:$0xf]
    %v525 = vperm.slane %v523, 0
    %v526 = vperm.slane %v523, 1
    %v527 = vperm.slane %v523, 2
    %v528 = vperm.slane %v523, 3
    %v533 = vld [vmem:[#allocation2] sm:$0xff]
    %v534 = vld [vmem:[#allocation2 + $0x8] sm:$0xff]
    %v535 = vld [vmem:[#allocation2 + $0x10] sm:$0xff]
    %v536 = vld [vmem:[#allocation2 + $0x18] sm:$0xff]
    %v537 = vld [vmem:[#allocation9] sm:$0xff]
    %v538 = vld [vmem:[#allocation9 + $0x8] sm:$0xff]
    %v539 = vld [vmem:[#allocation9 + $0x10] sm:$0xff]
    %v540 = vld [vmem:[#allocation9 + $0x18] sm:$0xff]
    %v541 = vld [vmem:[#allocation9 + $0x20] sm:$0xff]
    %v542 = vld [vmem:[#allocation9 + $0x28] sm:$0xff]
    %v543 = vld [vmem:[#allocation9 + $0x30] sm:$0xff]
    %v544 = vld [vmem:[#allocation9 + $0x38] sm:$0xff]
    %v545 = vld [vmem:[#allocation9 + $0x40] sm:$0xff]
    %v546 = vld [vmem:[#allocation9 + $0x48] sm:$0xff]
    %v547 = vld [vmem:[#allocation9 + $0x50] sm:$0xff]
    %v548 = vld [vmem:[#allocation9 + $0x58] sm:$0xff]
    %v549 = vld [vmem:[#allocation9 + $0x60] sm:$0xff]
    %v550 = vld [vmem:[#allocation9 + $0x68] sm:$0xff]
    %v551 = vld [vmem:[#allocation9 + $0x70] sm:$0xff]
    %v552 = vld [vmem:[#allocation9 + $0x78] sm:$0xff]
    %v553 = vld [vmem:[#allocation9 + $0x80] sm:$0xff]
    %v554 = vld [vmem:[#allocation9 + $0x88] sm:$0xff]
    %v555 = vld [vmem:[#allocation9 + $0x90] sm:$0xff]
    %v556 = vld [vmem:[#allocation9 + $0x98] sm:$0xff]
    %v557 = vld [vmem:[#allocation9 + $0xa0] sm:$0xff]
    %v558 = vld [vmem:[#allocation9 + $0xa8] sm:$0xff]
    %v559 = vld [vmem:[#allocation9 + $0xb0] sm:$0xff]
    %v560 = vld [vmem:[#allocation9 + $0xb8] sm:$0xff]
    %v561 = vld [vmem:[#allocation9 + $0xc0] sm:$0xff]
    %v562 = vld [vmem:[#allocation9 + $0xc8] sm:$0xff]
    %v563 = vld [vmem:[#allocation9 + $0xd0] sm:$0xff]
    %v564 = vld [vmem:[#allocation9 + $0xd8] sm:$0xff]
    %v565 = vld [vmem:[#allocation9 + $0xe0] sm:$0xff]
    %v566 = vld [vmem:[#allocation9 + $0xe8] sm:$0xff]
    %v567 = vld [vmem:[#allocation9 + $0xf0] sm:$0xff]
    %v568 = vld [vmem:[#allocation9 + $0xf8] sm:$0xff]
    %v601 = vunpack.c.l.b16 %v537
    %v602 = vunpack.c.h.b16 %v537
    %v603 = vunpack.c.l.b16 %v538
    %v604 = vunpack.c.h.b16 %v538
    %v605 = vunpack.c.l.b16 %v539
    %v606 = vunpack.c.h.b16 %v539
    %v607 = vunpack.c.l.b16 %v540
    %v608 = vunpack.c.h.b16 %v540
    %v609 = vunpack.c.l.b16 %v541
    %v610 = vunpack.c.h.b16 %v541
    %v611 = vunpack.c.l.b16 %v542
    %v612 = vunpack.c.h.b16 %v542
    %v613 = vunpack.c.l.b16 %v543
    %v614 = vunpack.c.h.b16 %v543
    %v615 = vunpack.c.l.b16 %v544
    %v616 = vunpack.c.h.b16 %v544
    %v617 = vunpack.c.l.b16 %v545
    %v618 = vunpack.c.h.b16 %v545
    %v619 = vunpack.c.l.b16 %v546
    %v620 = vunpack.c.h.b16 %v546
    %v621 = vunpack.c.l.b16 %v547
    %v622 = vunpack.c.h.b16 %v547
    %v623 = vunpack.c.l.b16 %v548
    %v624 = vunpack.c.h.b16 %v548
    %v625 = vunpack.c.l.b16 %v549
    %v626 = vunpack.c.h.b16 %v549
    %v627 = vunpack.c.l.b16 %v550
    %v628 = vunpack.c.h.b16 %v550
    %v629 = vunpack.c.l.b16 %v551
    %v630 = vunpack.c.h.b16 %v551
    %v631 = vunpack.c.l.b16 %v552
    %v632 = vunpack.c.h.b16 %v552
    %v633 = vunpack.c.l.b16 %v553
    %v634 = vunpack.c.h.b16 %v553
    %v635 = vunpack.c.l.b16 %v554
    %v636 = vunpack.c.h.b16 %v554
    %v637 = vunpack.c.l.b16 %v555
    %v638 = vunpack.c.h.b16 %v555
    %v639 = vunpack.c.l.b16 %v556
    %v640 = vunpack.c.h.b16 %v556
    %v641 = vunpack.c.l.b16 %v557
    %v642 = vunpack.c.h.b16 %v557
    %v643 = vunpack.c.l.b16 %v558
    %v644 = vunpack.c.h.b16 %v558
    %v645 = vunpack.c.l.b16 %v559
    %v646 = vunpack.c.h.b16 %v559
    %v647 = vunpack.c.l.b16 %v560
    %v648 = vunpack.c.h.b16 %v560
    %v649 = vunpack.c.l.b16 %v561
    %v650 = vunpack.c.h.b16 %v561
    %v651 = vunpack.c.l.b16 %v562
    %v652 = vunpack.c.h.b16 %v562
    %v653 = vunpack.c.l.b16 %v563
    %v654 = vunpack.c.h.b16 %v563
    %v655 = vunpack.c.l.b16 %v564
    %v656 = vunpack.c.h.b16 %v564
    %v657 = vunpack.c.l.b16 %v565
    %v658 = vunpack.c.h.b16 %v565
    %v659 = vunpack.c.l.b16 %v566
    %v660 = vunpack.c.h.b16 %v566
    %v661 = vunpack.c.l.b16 %v567
    %v662 = vunpack.c.h.b16 %v567
    %v663 = vunpack.c.l.b16 %v568
    %v664 = vunpack.c.h.b16 %v568
    %v665 = vpack.c.b16 %v605, %v601
    %v666 = vpack.c.b16 %v606, %v602
    %v667 = vpack.c.b16 %v607, %v603
    %v668 = vpack.c.b16 %v608, %v604
    %v669 = vpack.c.b16 %v613, %v609
    %v670 = vpack.c.b16 %v614, %v610
    %v671 = vpack.c.b16 %v615, %v611
    %v672 = vpack.c.b16 %v616, %v612
    %v673 = vpack.c.b16 %v621, %v617
    %v674 = vpack.c.b16 %v622, %v618
    %v675 = vpack.c.b16 %v623, %v619
    %v676 = vpack.c.b16 %v624, %v620
    %v677 = vpack.c.b16 %v629, %v625
    %v678 = vpack.c.b16 %v630, %v626
    %v679 = vpack.c.b16 %v631, %v627
    %v680 = vpack.c.b16 %v632, %v628
    %v681 = vpack.c.b16 %v637, %v633
    %v682 = vpack.c.b16 %v638, %v634
    %v683 = vpack.c.b16 %v639, %v635
    %v684 = vpack.c.b16 %v640, %v636
    %v685 = vpack.c.b16 %v645, %v641
    %v686 = vpack.c.b16 %v646, %v642
    %v687 = vpack.c.b16 %v647, %v643
    %v688 = vpack.c.b16 %v648, %v644
    %v689 = vpack.c.b16 %v653, %v649
    %v690 = vpack.c.b16 %v654, %v650
    %v691 = vpack.c.b16 %v655, %v651
    %v692 = vpack.c.b16 %v656, %v652
    %v693 = vpack.c.b16 %v661, %v657
    %v694 = vpack.c.b16 %v662, %v658
    %v695 = vpack.c.b16 %v663, %v659
    %v696 = vpack.c.b16 %v664, %v660
    %729 = vmatpush.bf16.msra.mxu0 %v693
    %730 = vmatpush.bf16.msra.mxu0 %v689
    %731 = vmatpush.bf16.msra.mxu0 %v685
    %732 = vmatpush.bf16.msra.mxu0 %v681
    %733 = vmatpush.bf16.msra.mxu0 %v677
    %734 = vmatpush.bf16.msra.mxu0 %v673
    %735 = vmatpush.bf16.msra.mxu0 %v669
    %736 = vmatpush.bf16.msra.mxu0 %v665
    %737 = vmatmul.bf16.gmra.mxu0 0
    %v738 = vpop.f32.mrf.mxu0
    %v739 = vadd.f32 0.0, %v738
    %v740 = vpop.f32.mrf.mxu0
    %741 = vdwg.mxu0
    %742 = vmatpush.bf16.msra.mxu0 %v694
    %743 = vmatpush.bf16.msra.mxu0 %v690
    %744 = vmatpush.bf16.msra.mxu0 %v686
    %745 = vmatpush.bf16.msra.mxu0 %v682
    %746 = vmatpush.bf16.msra.mxu0 %v678
    %747 = vmatpush.bf16.msra.mxu0 %v674
    %748 = vmatpush.bf16.msra.mxu0 %v670
    %749 = vmatpush.bf16.msra.mxu0 %v666
    %750 = vmatmul.bf16.gmra.mxu0 0
    %v751 = vpop.f32.mrf.mxu0
    %v752 = vadd.f32 0.0, %v751
    %v753 = vpop.f32.mrf.mxu0
    %754 = vdwg.mxu0
    %755 = vmatpush.bf16.msra.mxu0 %v695
    %756 = vmatpush.bf16.msra.mxu0 %v691
    %757 = vmatpush.bf16.msra.mxu0 %v687
    %758 = vmatpush.bf16.msra.mxu0 %v683
    %759 = vmatpush.bf16.msra.mxu0 %v679
    %760 = vmatpush.bf16.msra.mxu0 %v675
    %761 = vmatpush.bf16.msra.mxu0 %v671
    %762 = vmatpush.bf16.msra.mxu0 %v667
    %763 = vmatmul.bf16.gmra.mxu0 0
    %v764 = vpop.f32.mrf.mxu0
    %v765 = vadd.f32 0.0, %v764
    %v766 = vpop.f32.mrf.mxu0
    %767 = vdwg.mxu0
    %768 = vmatpush.bf16.msra.mxu0 %v696
    %769 = vmatpush.bf16.msra.mxu0 %v692
    %770 = vmatpush.bf16.msra.mxu0 %v688
    %771 = vmatpush.bf16.msra.mxu0 %v684
    %772 = vmatpush.bf16.msra.mxu0 %v680
    %773 = vmatpush.bf16.msra.mxu0 %v676
    %774 = vmatpush.bf16.msra.mxu0 %v672
    %775 = vmatpush.bf16.msra.mxu0 %v668
    %776 = vmatmul.bf16.gmra.mxu0 0
    %v777 = vpop.f32.mrf.mxu0
    %v778 = vadd.f32 0.0, %v777
    %v779 = vpop.f32.mrf.mxu0
    %780 = vdwg.mxu0
    %v781 = vadd.f32 %v533, %v739
    %v782 = vadd.f32 %v534, %v752
    %v783 = vadd.f32 %v535, %v765
    %v784 = vadd.f32 %v536, %v778
    %v785 = vxor.u32 %v781, 2147483648
    %v786 = vxor.u32 %v782, 2147483648
    %v787 = vxor.u32 %v783, 2147483648
    %v788 = vmul.f32 %v785, 1.442695
    %v789 = vpow.pop %v788
    %v790 = vmul.f32 %v786, 1.442695
    %v791 = vpow.pop %v790
    %v792 = vmul.f32 %v787, 1.442695
    %v793 = vpow.pop %v792
    %v794 = vadd.f32 %v789, 1.0
    %v795 = vadd.f32 %v791, 1.0
    %v796 = vadd.f32 %v793, 1.0
    %v797 = vrcp.pop %v794
    %v798 = vmul.f32 %v794, %v797
    %v799 = vsub.f32 1.0, %v798
    %v800 = vmul.f32 %v797, %v799
    %v801 = vadd.f32 %v797, %v800
    %vm802 = vweird.f32 %v794
    %vm803 = vweird.f32 %v797
    %vm804 = vmor %vm802, %vm803
    %v805 = vsel %vm804, %v797, %v801
    %v806 = vand.u32 2147483647, %v794
    %vm807 = vcmp.eq.f32.partialorder %v806, 8.507059e+37
    %v808 = vand.u32 %v794, 2147483648
    %v809 = vor.u32 1.1754944e-38, %v808
    %v810 = vsel %vm807, %v809, %v805
    %v811 = vmul.f32 1.0, %v810
    %v812 = vrcp.pop %v795
    %v813 = vmul.f32 %v795, %v812
    %v814 = vsub.f32 1.0, %v813
    %v815 = vmul.f32 %v812, %v814
    %v816 = vadd.f32 %v812, %v815
    %vm817 = vweird.f32 %v795
    %vm818 = vweird.f32 %v812
    %vm819 = vmor %vm817, %vm818
    %v820 = vsel %vm819, %v812, %v816
    %v821 = vand.u32 2147483647, %v795
    %vm822 = vcmp.eq.f32.partialorder %v821, 8.507059e+37
    %v823 = vand.u32 %v795, 2147483648
    %v824 = vor.u32 1.1754944e-38, %v823
    %v825 = vsel %vm822, %v824, %v820
    %v826 = vmul.f32 1.0, %v825
    %v827 = vrcp.pop %v796
    %v828 = vmul.f32 %v796, %v827
    %v829 = vsub.f32 1.0, %v828
    %v830 = vmul.f32 %v827, %v829
    %v831 = vadd.f32 %v827, %v830
    %vm832 = vweird.f32 %v796
    %vm833 = vweird.f32 %v827
    %vm834 = vmor %vm832, %vm833
    %v835 = vsel %vm834, %v827, %v831
    %v836 = vand.u32 2147483647, %v796
    %vm837 = vcmp.eq.f32.partialorder %v836, 8.507059e+37
    %v838 = vand.u32 %v796, 2147483648
    %v839 = vor.u32 1.1754944e-38, %v838
    %v840 = vsel %vm837, %v839, %v835
    %v841 = vmul.f32 1.0, %v840
    %v842 = vtanh.pop %v784
    %v843 = vmul.f32 %v826, 0.0
    %v844 = vmul.f32 %v811, %v842
    %v845 = vadd.f32 %v843, %v844
    %v846 = vtanh.pop %v845
    %v847 = vmul.f32 %v841, %v846
    %v848 = vpack.c.bf16 %v847, %v847
    %v849 = vld [vmem:[#allocation12] sm:$0xff]
    %v850 = vld [vmem:[#allocation12 + $0x8] sm:$0xff]
    %v851 = vld [vmem:[#allocation12 + $0x10] sm:$0xff]
    %v852 = vld [vmem:[#allocation12 + $0x18] sm:$0xff]
    %v853 = vld [vmem:[#allocation12 + $0x20] sm:$0xff]
    %v854 = vld [vmem:[#allocation12 + $0x28] sm:$0xff]
    %v855 = vld [vmem:[#allocation12 + $0x30] sm:$0xff]
    %v856 = vld [vmem:[#allocation12 + $0x38] sm:$0xff]
    %v857 = vld [vmem:[#allocation12 + $0x40] sm:$0xff]
    %v858 = vld [vmem:[#allocation12 + $0x48] sm:$0xff]
    %v859 = vld [vmem:[#allocation12 + $0x50] sm:$0xff]
    %v860 = vld [vmem:[#allocation12 + $0x58] sm:$0xff]
    %v861 = vld [vmem:[#allocation12 + $0x60] sm:$0xff]
    %v862 = vld [vmem:[#allocation12 + $0x68] sm:$0xff]
    %v863 = vld [vmem:[#allocation12 + $0x70] sm:$0xff]
    %v864 = vld [vmem:[#allocation12 + $0x78] sm:$0xff]
    %v865 = vld [vmem:[#allocation12 + $0x80] sm:$0xff]
    %v866 = vld [vmem:[#allocation12 + $0x88] sm:$0xff]
    %v867 = vld [vmem:[#allocation12 + $0x90] sm:$0xff]
    %v868 = vld [vmem:[#allocation12 + $0x98] sm:$0xff]
    %v869 = vld [vmem:[#allocation12 + $0xa0] sm:$0xff]
    %v870 = vld [vmem:[#allocation12 + $0xa8] sm:$0xff]
    %v871 = vld [vmem:[#allocation12 + $0xb0] sm:$0xff]
    %v872 = vld [vmem:[#allocation12 + $0xb8] sm:$0xff]
    %v873 = vld [vmem:[#allocation12 + $0xc0] sm:$0xff]
    %v874 = vld [vmem:[#allocation12 + $0xc8] sm:$0xff]
    %v875 = vld [vmem:[#allocation12 + $0xd0] sm:$0xff]
    %v876 = vld [vmem:[#allocation12 + $0xd8] sm:$0xff]
    %v877 = vld [vmem:[#allocation12 + $0xe0] sm:$0xff]
    %v878 = vld [vmem:[#allocation12 + $0xe8] sm:$0xff]
    %v879 = vld [vmem:[#allocation12 + $0xf0] sm:$0xff]
    %v880 = vld [vmem:[#allocation12 + $0xf8] sm:$0xff]
    %v881 = vld [vmem:[#allocation13] sm:$0xff]
    %v882 = vld [vmem:[#allocation13 + $0x8] sm:$0xff]
    %v883 = vld [vmem:[#allocation13 + $0x10] sm:$0xff]
    %v884 = vld [vmem:[#allocation13 + $0x18] sm:$0xff]
    %v885 = vld [vmem:[#allocation13 + $0x20] sm:$0xff]
    %v886 = vld [vmem:[#allocation13 + $0x28] sm:$0xff]
    %v887 = vld [vmem:[#allocation13 + $0x30] sm:$0xff]
    %v888 = vld [vmem:[#allocation13 + $0x38] sm:$0xff]
    %v889 = vld [vmem:[#allocation13 + $0x40] sm:$0xff]
    %v890 = vld [vmem:[#allocation13 + $0x48] sm:$0xff]
    %v891 = vld [vmem:[#allocation13 + $0x50] sm:$0xff]
    %v892 = vld [vmem:[#allocation13 + $0x58] sm:$0xff]
    %v893 = vld [vmem:[#allocation13 + $0x60] sm:$0xff]
    %v894 = vld [vmem:[#allocation13 + $0x68] sm:$0xff]
    %v895 = vld [vmem:[#allocation13 + $0x70] sm:$0xff]
    %v896 = vld [vmem:[#allocation13 + $0x78] sm:$0xff]
    %v897 = vld [vmem:[#allocation13 + $0x80] sm:$0xff]
    %v898 = vld [vmem:[#allocation13 + $0x88] sm:$0xff]
    %v899 = vld [vmem:[#allocation13 + $0x90] sm:$0xff]
    %v900 = vld [vmem:[#allocation13 + $0x98] sm:$0xff]
    %v901 = vld [vmem:[#allocation13 + $0xa0] sm:$0xff]
    %v902 = vld [vmem:[#allocation13 + $0xa8] sm:$0xff]
    %v903 = vld [vmem:[#allocation13 + $0xb0] sm:$0xff]
    %v904 = vld [vmem:[#allocation13 + $0xb8] sm:$0xff]
    %v905 = vld [vmem:[#allocation13 + $0xc0] sm:$0xff]
    %v906 = vld [vmem:[#allocation13 + $0xc8] sm:$0xff]
    %v907 = vld [vmem:[#allocation13 + $0xd0] sm:$0xff]
    %v908 = vld [vmem:[#allocation13 + $0xd8] sm:$0xff]
    %v909 = vld [vmem:[#allocation13 + $0xe0] sm:$0xff]
    %v910 = vld [vmem:[#allocation13 + $0xe8] sm:$0xff]
    %v911 = vld [vmem:[#allocation13 + $0xf0] sm:$0xff]
    %v912 = vld [vmem:[#allocation13 + $0xf8] sm:$0xff]
    %v945 = vunpack.c.l.b16 %v881
    %v946 = vunpack.c.h.b16 %v881
    %v947 = vunpack.c.l.b16 %v882
    %v948 = vunpack.c.h.b16 %v882
    %v949 = vunpack.c.l.b16 %v883
    %v950 = vunpack.c.h.b16 %v883
    %v951 = vunpack.c.l.b16 %v884
    %v952 = vunpack.c.h.b16 %v884
    %v953 = vunpack.c.l.b16 %v885
    %v954 = vunpack.c.h.b16 %v885
    %v955 = vunpack.c.l.b16 %v886
    %v956 = vunpack.c.h.b16 %v886
    %v957 = vunpack.c.l.b16 %v887
    %v958 = vunpack.c.h.b16 %v887
    %v959 = vunpack.c.l.b16 %v888
    %v960 = vunpack.c.h.b16 %v888
    %v961 = vunpack.c.l.b16 %v889
    %v962 = vunpack.c.h.b16 %v889
    %v963 = vunpack.c.l.b16 %v890
    %v964 = vunpack.c.h.b16 %v890
    %v965 = vunpack.c.l.b16 %v891
    %v966 = vunpack.c.h.b16 %v891
    %v967 = vunpack.c.l.b16 %v892
    %v968 = vunpack.c.h.b16 %v892
    %v969 = vunpack.c.l.b16 %v893
    %v970 = vunpack.c.h.b16 %v893
    %v971 = vunpack.c.l.b16 %v894
    %v972 = vunpack.c.h.b16 %v894
    %v973 = vunpack.c.l.b16 %v895
    %v974 = vunpack.c.h.b16 %v895
    %v975 = vunpack.c.l.b16 %v896
    %v976 = vunpack.c.h.b16 %v896
    %v977 = vunpack.c.l.b16 %v897
    %v978 = vunpack.c.h.b16 %v897
    %v979 = vunpack.c.l.b16 %v898
    %v980 = vunpack.c.h.b16 %v898
    %v981 = vunpack.c.l.b16 %v899
    %v982 = vunpack.c.h.b16 %v899
    %v983 = vunpack.c.l.b16 %v900
    %v984 = vunpack.c.h.b16 %v900
    %v985 = vunpack.c.l.b16 %v901
    %v986 = vunpack.c.h.b16 %v901
    %v987 = vunpack.c.l.b16 %v902
    %v988 = vunpack.c.h.b16 %v902
    %v989 = vunpack.c.l.b16 %v903
    %v990 = vunpack.c.h.b16 %v903
    %v991 = vunpack.c.l.b16 %v904
    %v992 = vunpack.c.h.b16 %v904
    %v993 = vunpack.c.l.b16 %v905
    %v994 = vunpack.c.h.b16 %v905
    %v995 = vunpack.c.l.b16 %v906
    %v996 = vunpack.c.h.b16 %v906
    %v997 = vunpack.c.l.b16 %v907
    %v998 = vunpack.c.h.b16 %v907
    %v999 = vunpack.c.l.b16 %v908
    %v1000 = vunpack.c.h.b16 %v908
    %v1001 = vunpack.c.l.b16 %v909
    %v1002 = vunpack.c.h.b16 %v909
    %v1003 = vunpack.c.l.b16 %v910
    %v1004 = vunpack.c.h.b16 %v910
    %v1005 = vunpack.c.l.b16 %v911
    %v1006 = vunpack.c.h.b16 %v911
    %v1007 = vunpack.c.l.b16 %v912
    %v1008 = vunpack.c.h.b16 %v912
    %v1009 = vpack.c.b16 %v949, %v945
    %v1010 = vpack.c.b16 %v950, %v946
    %v1011 = vpack.c.b16 %v951, %v947
    %v1012 = vpack.c.b16 %v952, %v948
    %v1013 = vpack.c.b16 %v957, %v953
    %v1014 = vpack.c.b16 %v958, %v954
    %v1015 = vpack.c.b16 %v959, %v955
    %v1016 = vpack.c.b16 %v960, %v956
    %v1017 = vpack.c.b16 %v965, %v961
    %v1018 = vpack.c.b16 %v966, %v962
    %v1019 = vpack.c.b16 %v967, %v963
    %v1020 = vpack.c.b16 %v968, %v964
    %v1021 = vpack.c.b16 %v973, %v969
    %v1022 = vpack.c.b16 %v974, %v970
    %v1023 = vpack.c.b16 %v975, %v971
    %v1024 = vpack.c.b16 %v976, %v972
    %v1025 = vpack.c.b16 %v981, %v977
    %v1026 = vpack.c.b16 %v982, %v978
    %v1027 = vpack.c.b16 %v983, %v979
    %v1028 = vpack.c.b16 %v984, %v980
    %v1029 = vpack.c.b16 %v989, %v985
    %v1030 = vpack.c.b16 %v990, %v986
    %v1031 = vpack.c.b16 %v991, %v987
    %v1032 = vpack.c.b16 %v992, %v988
    %v1033 = vpack.c.b16 %v997, %v993
    %v1034 = vpack.c.b16 %v998, %v994
    %v1035 = vpack.c.b16 %v999, %v995
    %v1036 = vpack.c.b16 %v1000, %v996
    %v1037 = vpack.c.b16 %v1005, %v1001
    %v1038 = vpack.c.b16 %v1006, %v1002
    %v1039 = vpack.c.b16 %v1007, %v1003
    %v1040 = vpack.c.b16 %v1008, %v1004
    %1073 = vmatpush.bf16.msra.mxu0 %v1037
    %1074 = vmatpush.bf16.msra.mxu0 %v1033
    %1075 = vmatpush.bf16.msra.mxu0 %v1029
    %1076 = vmatpush.bf16.msra.mxu0 %v1025
    %1077 = vmatpush.bf16.msra.mxu0 %v1021
    %1078 = vmatpush.bf16.msra.mxu0 %v1017
    %1079 = vmatpush.bf16.msra.mxu0 %v1013
    %1080 = vmatpush.bf16.msra.mxu0 %v1009
    %1081 = vmatmul.bf16.gmra.mxu0 0
    %v1082 = vpop.f32.mrf.mxu0
    %v1083 = vadd.f32 0.0, %v1082
    %v1084 = vpop.f32.mrf.mxu0
    %1085 = vdwg.mxu0
    %1086 = vmatpush.bf16.msra.mxu0 %v1038
    %1087 = vmatpush.bf16.msra.mxu0 %v1034
    %1088 = vmatpush.bf16.msra.mxu0 %v1030
    %1089 = vmatpush.bf16.msra.mxu0 %v1026
    %1090 = vmatpush.bf16.msra.mxu0 %v1022
    %1091 = vmatpush.bf16.msra.mxu0 %v1018
    %1092 = vmatpush.bf16.msra.mxu0 %v1014
    %1093 = vmatpush.bf16.msra.mxu0 %v1010
    %1094 = vmatmul.bf16.gmra.mxu0 0
    %v1095 = vpop.f32.mrf.mxu0
    %v1096 = vadd.f32 0.0, %v1095
    %v1097 = vpop.f32.mrf.mxu0
    %1098 = vdwg.mxu0
    %1099 = vmatpush.bf16.msra.mxu0 %v1039
    %1100 = vmatpush.bf16.msra.mxu0 %v1035
    %1101 = vmatpush.bf16.msra.mxu0 %v1031
    %1102 = vmatpush.bf16.msra.mxu0 %v1027
    %1103 = vmatpush.bf16.msra.mxu0 %v1023
    %1104 = vmatpush.bf16.msra.mxu0 %v1019
    %1105 = vmatpush.bf16.msra.mxu0 %v1015
    %1106 = vmatpush.bf16.msra.mxu0 %v1011
    %1107 = vmatmul.bf16.gmra.mxu0 0
    %v1108 = vpop.f32.mrf.mxu0
    %v1109 = vadd.f32 0.0, %v1108
    %v1110 = vpop.f32.mrf.mxu0
    %1111 = vdwg.mxu0
    %1112 = vmatpush.bf16.msra.mxu0 %v1040
    %1113 = vmatpush.bf16.msra.mxu0 %v1036
    %1114 = vmatpush.bf16.msra.mxu0 %v1032
    %1115 = vmatpush.bf16.msra.mxu0 %v1028
    %1116 = vmatpush.bf16.msra.mxu0 %v1024
    %1117 = vmatpush.bf16.msra.mxu0 %v1020
    %1118 = vmatpush.bf16.msra.mxu0 %v1016
    %1119 = vmatpush.bf16.msra.mxu0 %v1012
    %1120 = vmatmul.bf16.gmra.mxu0 0
    %v1121 = vpop.f32.mrf.mxu0
    %v1122 = vadd.f32 0.0, %v1121
    %v1123 = vpop.f32.mrf.mxu0
    %1124 = vdwg.mxu0
    %v1157 = vunpack.c.l.b16 %v849
    %v1158 = vunpack.c.h.b16 %v849
    %v1159 = vunpack.c.l.b16 %v850
    %v1160 = vunpack.c.h.b16 %v850
    %v1161 = vunpack.c.l.b16 %v851
    %v1162 = vunpack.c.h.b16 %v851
    %v1163 = vunpack.c.l.b16 %v852
    %v1164 = vunpack.c.h.b16 %v852
    %v1165 = vunpack.c.l.b16 %v853
    %v1166 = vunpack.c.h.b16 %v853
    %v1167 = vunpack.c.l.b16 %v854
    %v1168 = vunpack.c.h.b16 %v854
    %v1169 = vunpack.c.l.b16 %v855
    %v1170 = vunpack.c.h.b16 %v855
    %v1171 = vunpack.c.l.b16 %v856
    %v1172 = vunpack.c.h.b16 %v856
    %v1173 = vunpack.c.l.b16 %v857
    %v1174 = vunpack.c.h.b16 %v857
    %v1175 = vunpack.c.l.b16 %v858
    %v1176 = vunpack.c.h.b16 %v858
    %v1177 = vunpack.c.l.b16 %v859
    %v1178 = vunpack.c.h.b16 %v859
    %v1179 = vunpack.c.l.b16 %v860
    %v1180 = vunpack.c.h.b16 %v860
    %v1181 = vunpack.c.l.b16 %v861
    %v1182 = vunpack.c.h.b16 %v861
    %v1183 = vunpack.c.l.b16 %v862
    %v1184 = vunpack.c.h.b16 %v862
    %v1185 = vunpack.c.l.b16 %v863
    %v1186 = vunpack.c.h.b16 %v863
    %v1187 = vunpack.c.l.b16 %v864
    %v1188 = vunpack.c.h.b16 %v864
    %v1189 = vunpack.c.l.b16 %v865
    %v1190 = vunpack.c.h.b16 %v865
    %v1191 = vunpack.c.l.b16 %v866
    %v1192 = vunpack.c.h.b16 %v866
    %v1193 = vunpack.c.l.b16 %v867
    %v1194 = vunpack.c.h.b16 %v867
    %v1195 = vunpack.c.l.b16 %v868
    %v1196 = vunpack.c.h.b16 %v868
    %v1197 = vunpack.c.l.b16 %v869
    %v1198 = vunpack.c.h.b16 %v869
    %v1199 = vunpack.c.l.b16 %v870
    %v1200 = vunpack.c.h.b16 %v870
    %v1201 = vunpack.c.l.b16 %v871
    %v1202 = vunpack.c.h.b16 %v871
    %v1203 = vunpack.c.l.b16 %v872
    %v1204 = vunpack.c.h.b16 %v872
    %v1205 = vunpack.c.l.b16 %v873
    %v1206 = vunpack.c.h.b16 %v873
    %v1207 = vunpack.c.l.b16 %v874
    %v1208 = vunpack.c.h.b16 %v874
    %v1209 = vunpack.c.l.b16 %v875
    %v1210 = vunpack.c.h.b16 %v875
    %v1211 = vunpack.c.l.b16 %v876
    %v1212 = vunpack.c.h.b16 %v876
    %v1213 = vunpack.c.l.b16 %v877
    %v1214 = vunpack.c.h.b16 %v877
    %v1215 = vunpack.c.l.b16 %v878
    %v1216 = vunpack.c.h.b16 %v878
    %v1217 = vunpack.c.l.b16 %v879
    %v1218 = vunpack.c.h.b16 %v879
    %v1219 = vunpack.c.l.b16 %v880
    %v1220 = vunpack.c.h.b16 %v880
    %v1221 = vpack.c.b16 %v1161, %v1157
    %v1222 = vpack.c.b16 %v1162, %v1158
    %v1223 = vpack.c.b16 %v1163, %v1159
    %v1224 = vpack.c.b16 %v1164, %v1160
    %v1225 = vpack.c.b16 %v1169, %v1165
    %v1226 = vpack.c.b16 %v1170, %v1166
    %v1227 = vpack.c.b16 %v1171, %v1167
    %v1228 = vpack.c.b16 %v1172, %v1168
    %v1229 = vpack.c.b16 %v1177, %v1173
    %v1230 = vpack.c.b16 %v1178, %v1174
    %v1231 = vpack.c.b16 %v1179, %v1175
    %v1232 = vpack.c.b16 %v1180, %v1176
    %v1233 = vpack.c.b16 %v1185, %v1181
    %v1234 = vpack.c.b16 %v1186, %v1182
    %v1235 = vpack.c.b16 %v1187, %v1183
    %v1236 = vpack.c.b16 %v1188, %v1184
    %v1237 = vpack.c.b16 %v1193, %v1189
    %v1238 = vpack.c.b16 %v1194, %v1190
    %v1239 = vpack.c.b16 %v1195, %v1191
    %v1240 = vpack.c.b16 %v1196, %v1192
    %v1241 = vpack.c.b16 %v1201, %v1197
    %v1242 = vpack.c.b16 %v1202, %v1198
    %v1243 = vpack.c.b16 %v1203, %v1199
    %v1244 = vpack.c.b16 %v1204, %v1200
    %v1245 = vpack.c.b16 %v1209, %v1205
    %v1246 = vpack.c.b16 %v1210, %v1206
    %v1247 = vpack.c.b16 %v1211, %v1207
    %v1248 = vpack.c.b16 %v1212, %v1208
    %v1249 = vpack.c.b16 %v1217, %v1213
    %v1250 = vpack.c.b16 %v1218, %v1214
    %v1251 = vpack.c.b16 %v1219, %v1215
    %v1252 = vpack.c.b16 %v1220, %v1216
    %1285 = vmatpush.bf16.msra.mxu0 %v1249
    %1286 = vmatpush.bf16.msra.mxu0 %v1245
    %1287 = vmatpush.bf16.msra.mxu0 %v1241
    %1288 = vmatpush.bf16.msra.mxu0 %v1237
    %1289 = vmatpush.bf16.msra.mxu0 %v1233
    %1290 = vmatpush.bf16.msra.mxu0 %v1229
    %1291 = vmatpush.bf16.msra.mxu0 %v1225
    %1292 = vmatpush.bf16.msra.mxu0 %v1221
    %1293 = vmatmul.bf16.gmra.mxu0 %v848
    %v1294 = vpop.f32.mrf.mxu0
    %v1295 = vadd.f32 %v1083, %v1294
    %v1296 = vpop.f32.mrf.mxu0
    %1297 = vdwg.mxu0
    %1298 = vmatpush.bf16.msra.mxu0 %v1250
    %1299 = vmatpush.bf16.msra.mxu0 %v1246
    %1300 = vmatpush.bf16.msra.mxu0 %v1242
    %1301 = vmatpush.bf16.msra.mxu0 %v1238
    %1302 = vmatpush.bf16.msra.mxu0 %v1234
    %1303 = vmatpush.bf16.msra.mxu0 %v1230
    %1304 = vmatpush.bf16.msra.mxu0 %v1226
    %1305 = vmatpush.bf16.msra.mxu0 %v1222
    %1306 = vmatmul.bf16.gmra.mxu0 %v848
    %v1307 = vpop.f32.mrf.mxu0
    %v1308 = vadd.f32 %v1096, %v1307
    %v1309 = vpop.f32.mrf.mxu0
    %1310 = vdwg.mxu0
    %1311 = vmatpush.bf16.msra.mxu0 %v1251
    %1312 = vmatpush.bf16.msra.mxu0 %v1247
    %1313 = vmatpush.bf16.msra.mxu0 %v1243
    %1314 = vmatpush.bf16.msra.mxu0 %v1239
    %1315 = vmatpush.bf16.msra.mxu0 %v1235
    %1316 = vmatpush.bf16.msra.mxu0 %v1231
    %1317 = vmatpush.bf16.msra.mxu0 %v1227
    %1318 = vmatpush.bf16.msra.mxu0 %v1223
    %1319 = vmatmul.bf16.gmra.mxu0 %v848
    %v1320 = vpop.f32.mrf.mxu0
    %v1321 = vadd.f32 %v1109, %v1320
    %v1322 = vpop.f32.mrf.mxu0
    %1323 = vdwg.mxu0
    %1324 = vmatpush.bf16.msra.mxu0 %v1252
    %1325 = vmatpush.bf16.msra.mxu0 %v1248
    %1326 = vmatpush.bf16.msra.mxu0 %v1244
    %1327 = vmatpush.bf16.msra.mxu0 %v1240
    %1328 = vmatpush.bf16.msra.mxu0 %v1236
    %1329 = vmatpush.bf16.msra.mxu0 %v1232
    %1330 = vmatpush.bf16.msra.mxu0 %v1228
    %1331 = vmatpush.bf16.msra.mxu0 %v1224
    %1332 = vmatmul.bf16.gmra.mxu0 %v848
    %v1333 = vpop.f32.mrf.mxu0
    %v1334 = vadd.f32 %v1122, %v1333
    %v1335 = vpop.f32.mrf.mxu0
    %1336 = vdwg.mxu0
    %v1337 = vadd.f32 %v1295, %v525
    %v1338 = vadd.f32 %v1308, %v526
    %v1339 = vadd.f32 %v1321, %v527
    %v1340 = vadd.f32 %v1334, %v528
    %v1341 = vxor.u32 %v1337, 2147483648
    %v1342 = vxor.u32 %v1338, 2147483648
    %v1343 = vxor.u32 %v1339, 2147483648
    %v1344 = vmul.f32 %v1341, 1.442695
    %v1345 = vpow.pop %v1344
    %v1346 = vmul.f32 %v1342, 1.442695
    %v1347 = vpow.pop %v1346
    %v1348 = vmul.f32 %v1343, 1.442695
    %v1349 = vpow.pop %v1348
    %v1350 = vadd.f32 %v1345, 1.0
    %v1351 = vadd.f32 %v1347, 1.0
    %v1352 = vadd.f32 %v1349, 1.0
    %v1353 = vrcp.pop %v1350
    %v1354 = vmul.f32 %v1350, %v1353
    %v1355 = vsub.f32 1.0, %v1354
    %v1356 = vmul.f32 %v1353, %v1355
    %v1357 = vadd.f32 %v1353, %v1356
    %vm1358 = vweird.f32 %v1350
    %vm1359 = vweird.f32 %v1353
    %vm1360 = vmor %vm1358, %vm1359
    %v1361 = vsel %vm1360, %v1353, %v1357
    %v1362 = vand.u32 2147483647, %v1350
    %vm1363 = vcmp.eq.f32.partialorder %v1362, 8.507059e+37
    %v1364 = vand.u32 %v1350, 2147483648
    %v1365 = vor.u32 1.1754944e-38, %v1364
    %v1366 = vsel %vm1363, %v1365, %v1361
    %v1367 = vmul.f32 1.0, %v1366
    %v1368 = vrcp.pop %v1351
    %v1369 = vmul.f32 %v1351, %v1368
    %v1370 = vsub.f32 1.0, %v1369
    %v1371 = vmul.f32 %v1368, %v1370
    %v1372 = vadd.f32 %v1368, %v1371
    %vm1373 = vweird.f32 %v1351
    %vm1374 = vweird.f32 %v1368
    %vm1375 = vmor %vm1373, %vm1374
    %v1376 = vsel %vm1375, %v1368, %v1372
    %v1377 = vand.u32 2147483647, %v1351
    %vm1378 = vcmp.eq.f32.partialorder %v1377, 8.507059e+37
    %v1379 = vand.u32 %v1351, 2147483648
    %v1380 = vor.u32 1.1754944e-38, %v1379
    %v1381 = vsel %vm1378, %v1380, %v1376
    %v1382 = vmul.f32 1.0, %v1381
    %v1383 = vrcp.pop %v1352
    %v1384 = vmul.f32 %v1352, %v1383
    %v1385 = vsub.f32 1.0, %v1384
    %v1386 = vmul.f32 %v1383, %v1385
    %v1387 = vadd.f32 %v1383, %v1386
    %vm1388 = vweird.f32 %v1352
    %vm1389 = vweird.f32 %v1383
    %vm1390 = vmor %vm1388, %vm1389
    %v1391 = vsel %vm1390, %v1383, %v1387
    %v1392 = vand.u32 2147483647, %v1352
    %vm1393 = vcmp.eq.f32.partialorder %v1392, 8.507059e+37
    %v1394 = vand.u32 %v1352, 2147483648
    %v1395 = vor.u32 1.1754944e-38, %v1394
    %v1396 = vsel %vm1393, %v1395, %v1391
    %v1397 = vmul.f32 1.0, %v1396
    %v1398 = vtanh.pop %v1340
    %v1399 = vmul.f32 %v1382, 0.0
    %v1400 = vmul.f32 %v1367, %v1398
    %v1401 = vadd.f32 %v1399, %v1400
    %v1402 = vtanh.pop %v1401
    %v1403 = vmul.f32 %v1397, %v1402
    %1404 = vst [vmem:[#allocation3] sm:$0xff] %v1403
    %v1405 = vld [vmem:[#allocation2 + $0x20] sm:$0xff]
    %v1406 = vld [vmem:[#allocation2 + $0x28] sm:$0xff]
    %v1407 = vld [vmem:[#allocation2 + $0x30] sm:$0xff]
    %v1408 = vld [vmem:[#allocation2 + $0x38] sm:$0xff]
    %v1409 = vld [vmem:[#allocation9] sm:$0xff]
    %v1410 = vld [vmem:[#allocation9 + $0x8] sm:$0xff]
    %v1411 = vld [vmem:[#allocation9 + $0x10] sm:$0xff]
    %v1412 = vld [vmem:[#allocation9 + $0x18] sm:$0xff]
    %v1413 = vld [vmem:[#allocation9 + $0x20] sm:$0xff]
    %v1414 = vld [vmem:[#allocation9 + $0x28] sm:$0xff]
    %v1415 = vld [vmem:[#allocation9 + $0x30] sm:$0xff]
    %v1416 = vld [vmem:[#allocation9 + $0x38] sm:$0xff]
    %v1417 = vld [vmem:[#allocation9 + $0x40] sm:$0xff]
    %v1418 = vld [vmem:[#allocation9 + $0x48] sm:$0xff]
    %v1419 = vld [vmem:[#allocation9 + $0x50] sm:$0xff]
    %v1420 = vld [vmem:[#allocation9 + $0x58] sm:$0xff]
    %v1421 = vld [vmem:[#allocation9 + $0x60] sm:$0xff]
    %v1422 = vld [vmem:[#allocation9 + $0x68] sm:$0xff]
    %v1423 = vld [vmem:[#allocation9 + $0x70] sm:$0xff]
    %v1424 = vld [vmem:[#allocation9 + $0x78] sm:$0xff]
    %v1425 = vld [vmem:[#allocation9 + $0x80] sm:$0xff]
    %v1426 = vld [vmem:[#allocation9 + $0x88] sm:$0xff]
    %v1427 = vld [vmem:[#allocation9 + $0x90] sm:$0xff]
    %v1428 = vld [vmem:[#allocation9 + $0x98] sm:$0xff]
    %v1429 = vld [vmem:[#allocation9 + $0xa0] sm:$0xff]
    %v1430 = vld [vmem:[#allocation9 + $0xa8] sm:$0xff]
    %v1431 = vld [vmem:[#allocation9 + $0xb0] sm:$0xff]
    %v1432 = vld [vmem:[#allocation9 + $0xb8] sm:$0xff]
    %v1433 = vld [vmem:[#allocation9 + $0xc0] sm:$0xff]
    %v1434 = vld [vmem:[#allocation9 + $0xc8] sm:$0xff]
    %v1435 = vld [vmem:[#allocation9 + $0xd0] sm:$0xff]
    %v1436 = vld [vmem:[#allocation9 + $0xd8] sm:$0xff]
    %v1437 = vld [vmem:[#allocation9 + $0xe0] sm:$0xff]
    %v1438 = vld [vmem:[#allocation9 + $0xe8] sm:$0xff]
    %v1439 = vld [vmem:[#allocation9 + $0xf0] sm:$0xff]
    %v1440 = vld [vmem:[#allocation9 + $0xf8] sm:$0xff]
    %v1473 = vunpack.c.l.b16 %v1409
    %v1474 = vunpack.c.h.b16 %v1409
    %v1475 = vunpack.c.l.b16 %v1410
    %v1476 = vunpack.c.h.b16 %v1410
    %v1477 = vunpack.c.l.b16 %v1411
    %v1478 = vunpack.c.h.b16 %v1411
    %v1479 = vunpack.c.l.b16 %v1412
    %v1480 = vunpack.c.h.b16 %v1412
    %v1481 = vunpack.c.l.b16 %v1413
    %v1482 = vunpack.c.h.b16 %v1413
    %v1483 = vunpack.c.l.b16 %v1414
    %v1484 = vunpack.c.h.b16 %v1414
    %v1485 = vunpack.c.l.b16 %v1415
    %v1486 = vunpack.c.h.b16 %v1415
    %v1487 = vunpack.c.l.b16 %v1416
    %v1488 = vunpack.c.h.b16 %v1416
    %v1489 = vunpack.c.l.b16 %v1417
    %v1490 = vunpack.c.h.b16 %v1417
    %v1491 = vunpack.c.l.b16 %v1418
    %v1492 = vunpack.c.h.b16 %v1418
    %v1493 = vunpack.c.l.b16 %v1419
    %v1494 = vunpack.c.h.b16 %v1419
    %v1495 = vunpack.c.l.b16 %v1420
    %v1496 = vunpack.c.h.b16 %v1420
    %v1497 = vunpack.c.l.b16 %v1421
    %v1498 = vunpack.c.h.b16 %v1421
    %v1499 = vunpack.c.l.b16 %v1422
    %v1500 = vunpack.c.h.b16 %v1422
    %v1501 = vunpack.c.l.b16 %v1423
    %v1502 = vunpack.c.h.b16 %v1423
    %v1503 = vunpack.c.l.b16 %v1424
    %v1504 = vunpack.c.h.b16 %v1424
    %v1505 = vunpack.c.l.b16 %v1425
    %v1506 = vunpack.c.h.b16 %v1425
    %v1507 = vunpack.c.l.b16 %v1426
    %v1508 = vunpack.c.h.b16 %v1426
    %v1509 = vunpack.c.l.b16 %v1427
    %v1510 = vunpack.c.h.b16 %v1427
    %v1511 = vunpack.c.l.b16 %v1428
    %v1512 = vunpack.c.h.b16 %v1428
    %v1513 = vunpack.c.l.b16 %v1429
    %v1514 = vunpack.c.h.b16 %v1429
    %v1515 = vunpack.c.l.b16 %v1430
    %v1516 = vunpack.c.h.b16 %v1430
    %v1517 = vunpack.c.l.b16 %v1431
    %v1518 = vunpack.c.h.b16 %v1431
    %v1519 = vunpack.c.l.b16 %v1432
    %v1520 = vunpack.c.h.b16 %v1432
    %v1521 = vunpack.c.l.b16 %v1433
    %v1522 = vunpack.c.h.b16 %v1433
    %v1523 = vunpack.c.l.b16 %v1434
    %v1524 = vunpack.c.h.b16 %v1434
    %v1525 = vunpack.c.l.b16 %v1435
    %v1526 = vunpack.c.h.b16 %v1435
    %v1527 = vunpack.c.l.b16 %v1436
    %v1528 = vunpack.c.h.b16 %v1436
    %v1529 = vunpack.c.l.b16 %v1437
    %v1530 = vunpack.c.h.b16 %v1437
    %v1531 = vunpack.c.l.b16 %v1438
    %v1532 = vunpack.c.h.b16 %v1438
    %v1533 = vunpack.c.l.b16 %v1439
    %v1534 = vunpack.c.h.b16 %v1439
    %v1535 = vunpack.c.l.b16 %v1440
    %v1536 = vunpack.c.h.b16 %v1440
    %v1537 = vpack.c.b16 %v1477, %v1473
    %v1538 = vpack.c.b16 %v1478, %v1474
    %v1539 = vpack.c.b16 %v1479, %v1475
    %v1540 = vpack.c.b16 %v1480, %v1476
    %v1541 = vpack.c.b16 %v1485, %v1481
    %v1542 = vpack.c.b16 %v1486, %v1482
    %v1543 = vpack.c.b16 %v1487, %v1483
    %v1544 = vpack.c.b16 %v1488, %v1484
    %v1545 = vpack.c.b16 %v1493, %v1489
    %v1546 = vpack.c.b16 %v1494, %v1490
    %v1547 = vpack.c.b16 %v1495, %v1491
    %v1548 = vpack.c.b16 %v1496, %v1492
    %v1549 = vpack.c.b16 %v1501, %v1497
    %v1550 = vpack.c.b16 %v1502, %v1498
    %v1551 = vpack.c.b16 %v1503, %v1499
    %v1552 = vpack.c.b16 %v1504, %v1500
    %v1553 = vpack.c.b16 %v1509, %v1505
    %v1554 = vpack.c.b16 %v1510, %v1506
    %v1555 = vpack.c.b16 %v1511, %v1507
    %v1556 = vpack.c.b16 %v1512, %v1508
    %v1557 = vpack.c.b16 %v1517, %v1513
    %v1558 = vpack.c.b16 %v1518, %v1514
    %v1559 = vpack.c.b16 %v1519, %v1515
    %v1560 = vpack.c.b16 %v1520, %v1516
    %v1561 = vpack.c.b16 %v1525, %v1521
    %v1562 = vpack.c.b16 %v1526, %v1522
    %v1563 = vpack.c.b16 %v1527, %v1523
    %v1564 = vpack.c.b16 %v1528, %v1524
    %v1565 = vpack.c.b16 %v1533, %v1529
    %v1566 = vpack.c.b16 %v1534, %v1530
    %v1567 = vpack.c.b16 %v1535, %v1531
    %v1568 = vpack.c.b16 %v1536, %v1532
    %1601 = vmatpush.bf16.msra.mxu0 %v1565
    %1602 = vmatpush.bf16.msra.mxu0 %v1561
    %1603 = vmatpush.bf16.msra.mxu0 %v1557
    %1604 = vmatpush.bf16.msra.mxu0 %v1553
    %1605 = vmatpush.bf16.msra.mxu0 %v1549
    %1606 = vmatpush.bf16.msra.mxu0 %v1545
    %1607 = vmatpush.bf16.msra.mxu0 %v1541
    %1608 = vmatpush.bf16.msra.mxu0 %v1537
    %1609 = vmatmul.bf16.gmra.mxu0 %v848
    %v1610 = vpop.f32.mrf.mxu0
    %v1611 = vadd.f32 0.0, %v1610
    %v1612 = vpop.f32.mrf.mxu0
    %1613 = vdwg.mxu0
    %1614 = vmatpush.bf16.msra.mxu0 %v1566
    %1615 = vmatpush.bf16.msra.mxu0 %v1562
    %1616 = vmatpush.bf16.msra.mxu0 %v1558
    %1617 = vmatpush.bf16.msra.mxu0 %v1554
    %1618 = vmatpush.bf16.msra.mxu0 %v1550
    %1619 = vmatpush.bf16.msra.mxu0 %v1546
    %1620 = vmatpush.bf16.msra.mxu0 %v1542
    %1621 = vmatpush.bf16.msra.mxu0 %v1538
    %1622 = vmatmul.bf16.gmra.mxu0 %v848
    %v1623 = vpop.f32.mrf.mxu0
    %v1624 = vadd.f32 0.0, %v1623
    %v1625 = vpop.f32.mrf.mxu0
    %1626 = vdwg.mxu0
    %1627 = vmatpush.bf16.msra.mxu0 %v1567
    %1628 = vmatpush.bf16.msra.mxu0 %v1563
    %1629 = vmatpush.bf16.msra.mxu0 %v1559
    %1630 = vmatpush.bf16.msra.mxu0 %v1555
    %1631 = vmatpush.bf16.msra.mxu0 %v1551
    %1632 = vmatpush.bf16.msra.mxu0 %v1547
    %1633 = vmatpush.bf16.msra.mxu0 %v1543
    %1634 = vmatpush.bf16.msra.mxu0 %v1539
    %1635 = vmatmul.bf16.gmra.mxu0 %v848
    %v1636 = vpop.f32.mrf.mxu0
    %v1637 = vadd.f32 0.0, %v1636
    %v1638 = vpop.f32.mrf.mxu0
    %1639 = vdwg.mxu0
    %1640 = vmatpush.bf16.msra.mxu0 %v1568
    %1641 = vmatpush.bf16.msra.mxu0 %v1564
    %1642 = vmatpush.bf16.msra.mxu0 %v1560
    %1643 = vmatpush.bf16.msra.mxu0 %v1556
    %1644 = vmatpush.bf16.msra.mxu0 %v1552
    %1645 = vmatpush.bf16.msra.mxu0 %v1548
    %1646 = vmatpush.bf16.msra.mxu0 %v1544
    %1647 = vmatpush.bf16.msra.mxu0 %v1540
    %1648 = vmatmul.bf16.gmra.mxu0 %v848
    %v1649 = vpop.f32.mrf.mxu0
    %v1650 = vadd.f32 0.0, %v1649
    %v1651 = vpop.f32.mrf.mxu0
    %1652 = vdwg.mxu0
    %v1653 = vadd.f32 %v1405, %v1611
    %v1654 = vadd.f32 %v1406, %v1624
    %v1655 = vadd.f32 %v1407, %v1637
    %v1656 = vadd.f32 %v1408, %v1650
    %v1657 = vxor.u32 %v1653, 2147483648
    %v1658 = vxor.u32 %v1654, 2147483648
    %v1659 = vxor.u32 %v1655, 2147483648
    %v1660 = vmul.f32 %v1657, 1.442695
    %v1661 = vpow.pop %v1660
    %v1662 = vmul.f32 %v1658, 1.442695
    %v1663 = vpow.pop %v1662
    %v1664 = vmul.f32 %v1659, 1.442695
    %v1665 = vpow.pop %v1664
    %v1666 = vadd.f32 %v1661, 1.0
    %v1667 = vadd.f32 %v1663, 1.0
    %v1668 = vadd.f32 %v1665, 1.0
    %v1669 = vrcp.pop %v1666
    %v1670 = vmul.f32 %v1666, %v1669
    %v1671 = vsub.f32 1.0, %v1670
    %v1672 = vmul.f32 %v1669, %v1671
    %v1673 = vadd.f32 %v1669, %v1672
    %vm1674 = vweird.f32 %v1666
    %vm1675 = vweird.f32 %v1669
    %vm1676 = vmor %vm1674, %vm1675
    %v1677 = vsel %vm1676, %v1669, %v1673
    %v1678 = vand.u32 2147483647, %v1666
    %vm1679 = vcmp.eq.f32.partialorder %v1678, 8.507059e+37
    %v1680 = vand.u32 %v1666, 2147483648
    %v1681 = vor.u32 1.1754944e-38, %v1680
    %v1682 = vsel %vm1679, %v1681, %v1677
    %v1683 = vmul.f32 1.0, %v1682
    %v1684 = vrcp.pop %v1667
    %v1685 = vmul.f32 %v1667, %v1684
    %v1686 = vsub.f32 1.0, %v1685
    %v1687 = vmul.f32 %v1684, %v1686
    %v1688 = vadd.f32 %v1684, %v1687
    %vm1689 = vweird.f32 %v1667
    %vm1690 = vweird.f32 %v1684
    %vm1691 = vmor %vm1689, %vm1690
    %v1692 = vsel %vm1691, %v1684, %v1688
    %v1693 = vand.u32 2147483647, %v1667
    %vm1694 = vcmp.eq.f32.partialorder %v1693, 8.507059e+37
    %v1695 = vand.u32 %v1667, 2147483648
    %v1696 = vor.u32 1.1754944e-38, %v1695
    %v1697 = vsel %vm1694, %v1696, %v1692
    %v1698 = vmul.f32 1.0, %v1697
    %v1699 = vrcp.pop %v1668
    %v1700 = vmul.f32 %v1668, %v1699
    %v1701 = vsub.f32 1.0, %v1700
    %v1702 = vmul.f32 %v1699, %v1701
    %v1703 = vadd.f32 %v1699, %v1702
    %vm1704 = vweird.f32 %v1668
    %vm1705 = vweird.f32 %v1699
    %vm1706 = vmor %vm1704, %vm1705
    %v1707 = vsel %vm1706, %v1699, %v1703
    %v1708 = vand.u32 2147483647, %v1668
    %vm1709 = vcmp.eq.f32.partialorder %v1708, 8.507059e+37
    %v1710 = vand.u32 %v1668, 2147483648
    %v1711 = vor.u32 1.1754944e-38, %v1710
    %v1712 = vsel %vm1709, %v1711, %v1707
    %v1713 = vmul.f32 1.0, %v1712
    %v1714 = vtanh.pop %v1656
    %v1715 = vmul.f32 %v1698, %v845
    %v1716 = vmul.f32 %v1683, %v1714
    %v1717 = vadd.f32 %v1715, %v1716
    %v1718 = vtanh.pop %v1717
    %v1719 = vmul.f32 %v1713, %v1718
    %v1720 = vpack.c.bf16 %v1719, %v1719
    %v1721 = vld [vmem:[#allocation12] sm:$0xff]
    %v1722 = vld [vmem:[#allocation12 + $0x8] sm:$0xff]
    %v1723 = vld [vmem:[#allocation12 + $0x10] sm:$0xff]
    %v1724 = vld [vmem:[#allocation12 + $0x18] sm:$0xff]
    %v1725 = vld [vmem:[#allocation12 + $0x20] sm:$0xff]
    %v1726 = vld [vmem:[#allocation12 + $0x28] sm:$0xff]
    %v1727 = vld [vmem:[#allocation12 + $0x30] sm:$0xff]
    %v1728 = vld [vmem:[#allocation12 + $0x38] sm:$0xff]
    %v1729 = vld [vmem:[#allocation12 + $0x40] sm:$0xff]
    %v1730 = vld [vmem:[#allocation12 + $0x48] sm:$0xff]
    %v1731 = vld [vmem:[#allocation12 + $0x50] sm:$0xff]
    %v1732 = vld [vmem:[#allocation12 + $0x58] sm:$0xff]
    %v1733 = vld [vmem:[#allocation12 + $0x60] sm:$0xff]
    %v1734 = vld [vmem:[#allocation12 + $0x68] sm:$0xff]
    %v1735 = vld [vmem:[#allocation12 + $0x70] sm:$0xff]
    %v1736 = vld [vmem:[#allocation12 + $0x78] sm:$0xff]
    %v1737 = vld [vmem:[#allocation12 + $0x80] sm:$0xff]
    %v1738 = vld [vmem:[#allocation12 + $0x88] sm:$0xff]
    %v1739 = vld [vmem:[#allocation12 + $0x90] sm:$0xff]
    %v1740 = vld [vmem:[#allocation12 + $0x98] sm:$0xff]
    %v1741 = vld [vmem:[#allocation12 + $0xa0] sm:$0xff]
    %v1742 = vld [vmem:[#allocation12 + $0xa8] sm:$0xff]
    %v1743 = vld [vmem:[#allocation12 + $0xb0] sm:$0xff]
    %v1744 = vld [vmem:[#allocation12 + $0xb8] sm:$0xff]
    %v1745 = vld [vmem:[#allocation12 + $0xc0] sm:$0xff]
    %v1746 = vld [vmem:[#allocation12 + $0xc8] sm:$0xff]
    %v1747 = vld [vmem:[#allocation12 + $0xd0] sm:$0xff]
    %v1748 = vld [vmem:[#allocation12 + $0xd8] sm:$0xff]
    %v1749 = vld [vmem:[#allocation12 + $0xe0] sm:$0xff]
    %v1750 = vld [vmem:[#allocation12 + $0xe8] sm:$0xff]
    %v1751 = vld [vmem:[#allocation12 + $0xf0] sm:$0xff]
    %v1752 = vld [vmem:[#allocation12 + $0xf8] sm:$0xff]
    %v1753 = vpack.c.bf16 %v1403, %v1403
    %v1754 = vld [vmem:[#allocation13] sm:$0xff]
    %v1755 = vld [vmem:[#allocation13 + $0x8] sm:$0xff]
    %v1756 = vld [vmem:[#allocation13 + $0x10] sm:$0xff]
    %v1757 = vld [vmem:[#allocation13 + $0x18] sm:$0xff]
    %v1758 = vld [vmem:[#allocation13 + $0x20] sm:$0xff]
    %v1759 = vld [vmem:[#allocation13 + $0x28] sm:$0xff]
    %v1760 = vld [vmem:[#allocation13 + $0x30] sm:$0xff]
    %v1761 = vld [vmem:[#allocation13 + $0x38] sm:$0xff]
    %v1762 = vld [vmem:[#allocation13 + $0x40] sm:$0xff]
    %v1763 = vld [vmem:[#allocation13 + $0x48] sm:$0xff]
    %v1764 = vld [vmem:[#allocation13 + $0x50] sm:$0xff]
    %v1765 = vld [vmem:[#allocation13 + $0x58] sm:$0xff]
    %v1766 = vld [vmem:[#allocation13 + $0x60] sm:$0xff]
    %v1767 = vld [vmem:[#allocation13 + $0x68] sm:$0xff]
    %v1768 = vld [vmem:[#allocation13 + $0x70] sm:$0xff]
    %v1769 = vld [vmem:[#allocation13 + $0x78] sm:$0xff]
    %v1770 = vld [vmem:[#allocation13 + $0x80] sm:$0xff]
    %v1771 = vld [vmem:[#allocation13 + $0x88] sm:$0xff]
    %v1772 = vld [vmem:[#allocation13 + $0x90] sm:$0xff]
    %v1773 = vld [vmem:[#allocation13 + $0x98] sm:$0xff]
    %v1774 = vld [vmem:[#allocation13 + $0xa0] sm:$0xff]
    %v1775 = vld [vmem:[#allocation13 + $0xa8] sm:$0xff]
    %v1776 = vld [vmem:[#allocation13 + $0xb0] sm:$0xff]
    %v1777 = vld [vmem:[#allocation13 + $0xb8] sm:$0xff]
    %v1778 = vld [vmem:[#allocation13 + $0xc0] sm:$0xff]
    %v1779 = vld [vmem:[#allocation13 + $0xc8] sm:$0xff]
    %v1780 = vld [vmem:[#allocation13 + $0xd0] sm:$0xff]
    %v1781 = vld [vmem:[#allocation13 + $0xd8] sm:$0xff]
    %v1782 = vld [vmem:[#allocation13 + $0xe0] sm:$0xff]
    %v1783 = vld [vmem:[#allocation13 + $0xe8] sm:$0xff]
    %v1784 = vld [vmem:[#allocation13 + $0xf0] sm:$0xff]
    %v1785 = vld [vmem:[#allocation13 + $0xf8] sm:$0xff]
    %v1818 = vunpack.c.l.b16 %v1754
    %v1819 = vunpack.c.h.b16 %v1754
    %v1820 = vunpack.c.l.b16 %v1755
    %v1821 = vunpack.c.h.b16 %v1755
    %v1822 = vunpack.c.l.b16 %v1756
    %v1823 = vunpack.c.h.b16 %v1756
    %v1824 = vunpack.c.l.b16 %v1757
    %v1825 = vunpack.c.h.b16 %v1757
    %v1826 = vunpack.c.l.b16 %v1758
    %v1827 = vunpack.c.h.b16 %v1758
    %v1828 = vunpack.c.l.b16 %v1759
    %v1829 = vunpack.c.h.b16 %v1759
    %v1830 = vunpack.c.l.b16 %v1760
    %v1831 = vunpack.c.h.b16 %v1760
    %v1832 = vunpack.c.l.b16 %v1761
    %v1833 = vunpack.c.h.b16 %v1761
    %v1834 = vunpack.c.l.b16 %v1762
    %v1835 = vunpack.c.h.b16 %v1762
    %v1836 = vunpack.c.l.b16 %v1763
    %v1837 = vunpack.c.h.b16 %v1763
    %v1838 = vunpack.c.l.b16 %v1764
    %v1839 = vunpack.c.h.b16 %v1764
    %v1840 = vunpack.c.l.b16 %v1765
    %v1841 = vunpack.c.h.b16 %v1765
    %v1842 = vunpack.c.l.b16 %v1766
    %v1843 = vunpack.c.h.b16 %v1766
    %v1844 = vunpack.c.l.b16 %v1767
    %v1845 = vunpack.c.h.b16 %v1767
    %v1846 = vunpack.c.l.b16 %v1768
    %v1847 = vunpack.c.h.b16 %v1768
    %v1848 = vunpack.c.l.b16 %v1769
    %v1849 = vunpack.c.h.b16 %v1769
    %v1850 = vunpack.c.l.b16 %v1770
    %v1851 = vunpack.c.h.b16 %v1770
    %v1852 = vunpack.c.l.b16 %v1771
    %v1853 = vunpack.c.h.b16 %v1771
    %v1854 = vunpack.c.l.b16 %v1772
    %v1855 = vunpack.c.h.b16 %v1772
    %v1856 = vunpack.c.l.b16 %v1773
    %v1857 = vunpack.c.h.b16 %v1773
    %v1858 = vunpack.c.l.b16 %v1774
    %v1859 = vunpack.c.h.b16 %v1774
    %v1860 = vunpack.c.l.b16 %v1775
    %v1861 = vunpack.c.h.b16 %v1775
    %v1862 = vunpack.c.l.b16 %v1776
    %v1863 = vunpack.c.h.b16 %v1776
    %v1864 = vunpack.c.l.b16 %v1777
    %v1865 = vunpack.c.h.b16 %v1777
    %v1866 = vunpack.c.l.b16 %v1778
    %v1867 = vunpack.c.h.b16 %v1778
    %v1868 = vunpack.c.l.b16 %v1779
    %v1869 = vunpack.c.h.b16 %v1779
    %v1870 = vunpack.c.l.b16 %v1780
    %v1871 = vunpack.c.h.b16 %v1780
    %v1872 = vunpack.c.l.b16 %v1781
    %v1873 = vunpack.c.h.b16 %v1781
    %v1874 = vunpack.c.l.b16 %v1782
    %v1875 = vunpack.c.h.b16 %v1782
    %v1876 = vunpack.c.l.b16 %v1783
    %v1877 = vunpack.c.h.b16 %v1783
    %v1878 = vunpack.c.l.b16 %v1784
    %v1879 = vunpack.c.h.b16 %v1784
    %v1880 = vunpack.c.l.b16 %v1785
    %v1881 = vunpack.c.h.b16 %v1785
    %v1882 = vpack.c.b16 %v1822, %v1818
    %v1883 = vpack.c.b16 %v1823, %v1819
    %v1884 = vpack.c.b16 %v1824, %v1820
    %v1885 = vpack.c.b16 %v1825, %v1821
    %v1886 = vpack.c.b16 %v1830, %v1826
    %v1887 = vpack.c.b16 %v1831, %v1827
    %v1888 = vpack.c.b16 %v1832, %v1828
    %v1889 = vpack.c.b16 %v1833, %v1829
    %v1890 = vpack.c.b16 %v1838, %v1834
    %v1891 = vpack.c.b16 %v1839, %v1835
    %v1892 = vpack.c.b16 %v1840, %v1836
    %v1893 = vpack.c.b16 %v1841, %v1837
    %v1894 = vpack.c.b16 %v1846, %v1842
    %v1895 = vpack.c.b16 %v1847, %v1843
    %v1896 = vpack.c.b16 %v1848, %v1844
    %v1897 = vpack.c.b16 %v1849, %v1845
    %v1898 = vpack.c.b16 %v1854, %v1850
    %v1899 = vpack.c.b16 %v1855, %v1851
    %v1900 = vpack.c.b16 %v1856, %v1852
    %v1901 = vpack.c.b16 %v1857, %v1853
    %v1902 = vpack.c.b16 %v1862, %v1858
    %v1903 = vpack.c.b16 %v1863, %v1859
    %v1904 = vpack.c.b16 %v1864, %v1860
    %v1905 = vpack.c.b16 %v1865, %v1861
    %v1906 = vpack.c.b16 %v1870, %v1866
    %v1907 = vpack.c.b16 %v1871, %v1867
    %v1908 = vpack.c.b16 %v1872, %v1868
    %v1909 = vpack.c.b16 %v1873, %v1869
    %v1910 = vpack.c.b16 %v1878, %v1874
    %v1911 = vpack.c.b16 %v1879, %v1875
    %v1912 = vpack.c.b16 %v1880, %v1876
    %v1913 = vpack.c.b16 %v1881, %v1877
    %1946 = vmatpush.bf16.msra.mxu0 %v1910
    %1947 = vmatpush.bf16.msra.mxu0 %v1906
    %1948 = vmatpush.bf16.msra.mxu0 %v1902
    %1949 = vmatpush.bf16.msra.mxu0 %v1898
    %1950 = vmatpush.bf16.msra.mxu0 %v1894
    %1951 = vmatpush.bf16.msra.mxu0 %v1890
    %1952 = vmatpush.bf16.msra.mxu0 %v1886
    %1953 = vmatpush.bf16.msra.mxu0 %v1882
    %1954 = vmatmul.bf16.gmra.mxu0 %v1753
    %v1955 = vpop.f32.mrf.mxu0
    %v1956 = vadd.f32 0.0, %v1955
    %v1957 = vpop.f32.mrf.mxu0
    %1958 = vdwg.mxu0
    %1959 = vmatpush.bf16.msra.mxu0 %v1911
    %1960 = vmatpush.bf16.msra.mxu0 %v1907
    %1961 = vmatpush.bf16.msra.mxu0 %v1903
    %1962 = vmatpush.bf16.msra.mxu0 %v1899
    %1963 = vmatpush.bf16.msra.mxu0 %v1895
    %1964 = vmatpush.bf16.msra.mxu0 %v1891
    %1965 = vmatpush.bf16.msra.mxu0 %v1887
    %1966 = vmatpush.bf16.msra.mxu0 %v1883
    %1967 = vmatmul.bf16.gmra.mxu0 %v1753
    %v1968 = vpop.f32.mrf.mxu0
    %v1969 = vadd.f32 0.0, %v1968
    %v1970 = vpop.f32.mrf.mxu0
    %1971 = vdwg.mxu0
    %1972 = vmatpush.bf16.msra.mxu0 %v1912
    %1973 = vmatpush.bf16.msra.mxu0 %v1908
    %1974 = vmatpush.bf16.msra.mxu0 %v1904
    %1975 = vmatpush.bf16.msra.mxu0 %v1900
    %1976 = vmatpush.bf16.msra.mxu0 %v1896
    %1977 = vmatpush.bf16.msra.mxu0 %v1892
    %1978 = vmatpush.bf16.msra.mxu0 %v1888
    %1979 = vmatpush.bf16.msra.mxu0 %v1884
    %1980 = vmatmul.bf16.gmra.mxu0 %v1753
    %v1981 = vpop.f32.mrf.mxu0
    %v1982 = vadd.f32 0.0, %v1981
    %v1983 = vpop.f32.mrf.mxu0
    %1984 = vdwg.mxu0
    %1985 = vmatpush.bf16.msra.mxu0 %v1913
    %1986 = vmatpush.bf16.msra.mxu0 %v1909
    %1987 = vmatpush.bf16.msra.mxu0 %v1905
    %1988 = vmatpush.bf16.msra.mxu0 %v1901
    %1989 = vmatpush.bf16.msra.mxu0 %v1897
    %1990 = vmatpush.bf16.msra.mxu0 %v1893
    %1991 = vmatpush.bf16.msra.mxu0 %v1889
    %1992 = vmatpush.bf16.msra.mxu0 %v1885
    %1993 = vmatmul.bf16.gmra.mxu0 %v1753
    %v1994 = vpop.f32.mrf.mxu0
    %v1995 = vadd.f32 0.0, %v1994
    %v1996 = vpop.f32.mrf.mxu0
    %1997 = vdwg.mxu0
    %v2030 = vunpack.c.l.b16 %v1721
    %v2031 = vunpack.c.h.b16 %v1721
    %v2032 = vunpack.c.l.b16 %v1722
    %v2033 = vunpack.c.h.b16 %v1722
    %v2034 = vunpack.c.l.b16 %v1723
    %v2035 = vunpack.c.h.b16 %v1723
    %v2036 = vunpack.c.l.b16 %v1724
    %v2037 = vunpack.c.h.b16 %v1724
    %v2038 = vunpack.c.l.b16 %v1725
    %v2039 = vunpack.c.h.b16 %v1725
    %v2040 = vunpack.c.l.b16 %v1726
    %v2041 = vunpack.c.h.b16 %v1726
    %v2042 = vunpack.c.l.b16 %v1727
    %v2043 = vunpack.c.h.b16 %v1727
    %v2044 = vunpack.c.l.b16 %v1728
    %v2045 = vunpack.c.h.b16 %v1728
    %v2046 = vunpack.c.l.b16 %v1729
    %v2047 = vunpack.c.h.b16 %v1729
    %v2048 = vunpack.c.l.b16 %v1730
    %v2049 = vunpack.c.h.b16 %v1730
    %v2050 = vunpack.c.l.b16 %v1731
    %v2051 = vunpack.c.h.b16 %v1731
    %v2052 = vunpack.c.l.b16 %v1732
    %v2053 = vunpack.c.h.b16 %v1732
    %v2054 = vunpack.c.l.b16 %v1733
    %v2055 = vunpack.c.h.b16 %v1733
    %v2056 = vunpack.c.l.b16 %v1734
    %v2057 = vunpack.c.h.b16 %v1734
    %v2058 = vunpack.c.l.b16 %v1735
    %v2059 = vunpack.c.h.b16 %v1735
    %v2060 = vunpack.c.l.b16 %v1736
    %v2061 = vunpack.c.h.b16 %v1736
    %v2062 = vunpack.c.l.b16 %v1737
    %v2063 = vunpack.c.h.b16 %v1737
    %v2064 = vunpack.c.l.b16 %v1738
    %v2065 = vunpack.c.h.b16 %v1738
    %v2066 = vunpack.c.l.b16 %v1739
    %v2067 = vunpack.c.h.b16 %v1739
    %v2068 = vunpack.c.l.b16 %v1740
    %v2069 = vunpack.c.h.b16 %v1740
    %v2070 = vunpack.c.l.b16 %v1741
    %v2071 = vunpack.c.h.b16 %v1741
    %v2072 = vunpack.c.l.b16 %v1742
    %v2073 = vunpack.c.h.b16 %v1742
    %v2074 = vunpack.c.l.b16 %v1743
    %v2075 = vunpack.c.h.b16 %v1743
    %v2076 = vunpack.c.l.b16 %v1744
    %v2077 = vunpack.c.h.b16 %v1744
    %v2078 = vunpack.c.l.b16 %v1745
    %v2079 = vunpack.c.h.b16 %v1745
    %v2080 = vunpack.c.l.b16 %v1746
    %v2081 = vunpack.c.h.b16 %v1746
    %v2082 = vunpack.c.l.b16 %v1747
    %v2083 = vunpack.c.h.b16 %v1747
    %v2084 = vunpack.c.l.b16 %v1748
    %v2085 = vunpack.c.h.b16 %v1748
    %v2086 = vunpack.c.l.b16 %v1749
    %v2087 = vunpack.c.h.b16 %v1749
    %v2088 = vunpack.c.l.b16 %v1750
    %v2089 = vunpack.c.h.b16 %v1750
    %v2090 = vunpack.c.l.b16 %v1751
    %v2091 = vunpack.c.h.b16 %v1751
    %v2092 = vunpack.c.l.b16 %v1752
    %v2093 = vunpack.c.h.b16 %v1752
    %v2094 = vpack.c.b16 %v2034, %v2030
    %v2095 = vpack.c.b16 %v2035, %v2031
    %v2096 = vpack.c.b16 %v2036, %v2032
    %v2097 = vpack.c.b16 %v2037, %v2033
    %v2098 = vpack.c.b16 %v2042, %v2038
    %v2099 = vpack.c.b16 %v2043, %v2039
    %v2100 = vpack.c.b16 %v2044, %v2040
    %v2101 = vpack.c.b16 %v2045, %v2041
    %v2102 = vpack.c.b16 %v2050, %v2046
    %v2103 = vpack.c.b16 %v2051, %v2047
    %v2104 = vpack.c.b16 %v2052, %v2048
    %v2105 = vpack.c.b16 %v2053, %v2049
    %v2106 = vpack.c.b16 %v2058, %v2054
    %v2107 = vpack.c.b16 %v2059, %v2055
    %v2108 = vpack.c.b16 %v2060, %v2056
    %v2109 = vpack.c.b16 %v2061, %v2057
    %v2110 = vpack.c.b16 %v2066, %v2062
    %v2111 = vpack.c.b16 %v2067, %v2063
    %v2112 = vpack.c.b16 %v2068, %v2064
    %v2113 = vpack.c.b16 %v2069, %v2065
    %v2114 = vpack.c.b16 %v2074, %v2070
    %v2115 = vpack.c.b16 %v2075, %v2071
    %v2116 = vpack.c.b16 %v2076, %v2072
    %v2117 = vpack.c.b16 %v2077, %v2073
    %v2118 = vpack.c.b16 %v2082, %v2078
    %v2119 = vpack.c.b16 %v2083, %v2079
    %v2120 = vpack.c.b16 %v2084, %v2080
    %v2121 = vpack.c.b16 %v2085, %v2081
    %v2122 = vpack.c.b16 %v2090, %v2086
    %v2123 = vpack.c.b16 %v2091, %v2087
    %v2124 = vpack.c.b16 %v2092, %v2088
    %v2125 = vpack.c.b16 %v2093, %v2089
    %2158 = vmatpush.bf16.msra.mxu0 %v2122
    %2159 = vmatpush.bf16.msra.mxu0 %v2118
    %2160 = vmatpush.bf16.msra.mxu0 %v2114
    %2161 = vmatpush.bf16.msra.mxu0 %v2110
    %2162 = vmatpush.bf16.msra.mxu0 %v2106
    %2163 = vmatpush.bf16.msra.mxu0 %v2102
    %2164 = vmatpush.bf16.msra.mxu0 %v2098
    %2165 = vmatpush.bf16.msra.mxu0 %v2094
    %2166 = vmatmul.bf16.gmra.mxu0 %v1720
    %v2167 = vpop.f32.mrf.mxu0
    %v2168 = vadd.f32 %v1956, %v2167
    %v2169 = vpop.f32.mrf.mxu0
    %2170 = vdwg.mxu0
    %2171 = vmatpush.bf16.msra.mxu0 %v2123
    %2172 = vmatpush.bf16.msra.mxu0 %v2119
    %2173 = vmatpush.bf16.msra.mxu0 %v2115
    %2174 = vmatpush.bf16.msra.mxu0 %v2111
    %2175 = vmatpush.bf16.msra.mxu0 %v2107
    %2176 = vmatpush.bf16.msra.mxu0 %v2103
    %2177 = vmatpush.bf16.msra.mxu0 %v2099
    %2178 = vmatpush.bf16.msra.mxu0 %v2095
    %2179 = vmatmul.bf16.gmra.mxu0 %v1720
    %v2180 = vpop.f32.mrf.mxu0
    %v2181 = vadd.f32 %v1969, %v2180
    %v2182 = vpop.f32.mrf.mxu0
    %2183 = vdwg.mxu0
    %2184 = vmatpush.bf16.msra.mxu0 %v2124
    %2185 = vmatpush.bf16.msra.mxu0 %v2120
    %2186 = vmatpush.bf16.msra.mxu0 %v2116
    %2187 = vmatpush.bf16.msra.mxu0 %v2112
    %2188 = vmatpush.bf16.msra.mxu0 %v2108
    %2189 = vmatpush.bf16.msra.mxu0 %v2104
    %2190 = vmatpush.bf16.msra.mxu0 %v2100
    %2191 = vmatpush.bf16.msra.mxu0 %v2096
    %2192 = vmatmul.bf16.gmra.mxu0 %v1720
    %v2193 = vpop.f32.mrf.mxu0
    %v2194 = vadd.f32 %v1982, %v2193
    %v2195 = vpop.f32.mrf.mxu0
    %2196 = vdwg.mxu0
    %2197 = vmatpush.bf16.msra.mxu0 %v2125
    %2198 = vmatpush.bf16.msra.mxu0 %v2121
    %2199 = vmatpush.bf16.msra.mxu0 %v2117
    %2200 = vmatpush.bf16.msra.mxu0 %v2113
    %2201 = vmatpush.bf16.msra.mxu0 %v2109
    %2202 = vmatpush.bf16.msra.mxu0 %v2105
    %2203 = vmatpush.bf16.msra.mxu0 %v2101
    %2204 = vmatpush.bf16.msra.mxu0 %v2097
    %2205 = vmatmul.bf16.gmra.mxu0 %v1720
    %v2206 = vpop.f32.mrf.mxu0
    %v2207 = vadd.f32 %v1995, %v2206
    %v2208 = vpop.f32.mrf.mxu0
    %2209 = vdwg.mxu0
    %v2210 = vadd.f32 %v2168, %v525
    %v2211 = vadd.f32 %v2181, %v526
    %v2212 = vadd.f32 %v2194, %v527
    %v2213 = vadd.f32 %v2207, %v528
    %v2214 = vxor.u32 %v2210, 2147483648
    %v2215 = vxor.u32 %v2211, 2147483648
    %v2216 = vxor.u32 %v2212, 2147483648
    %v2217 = vmul.f32 %v2214, 1.442695
    %v2218 = vpow.pop %v2217
    %v2219 = vmul.f32 %v2215, 1.442695
    %v2220 = vpow.pop %v2219
    %v2221 = vmul.f32 %v2216, 1.442695
    %v2222 = vpow.pop %v2221
    %v2223 = vadd.f32 %v2218, 1.0
    %v2224 = vadd.f32 %v2220, 1.0
    %v2225 = vadd.f32 %v2222, 1.0
    %v2226 = vrcp.pop %v2223
    %v2227 = vmul.f32 %v2223, %v2226
    %v2228 = vsub.f32 1.0, %v2227
    %v2229 = vmul.f32 %v2226, %v2228
    %v2230 = vadd.f32 %v2226, %v2229
    %vm2231 = vweird.f32 %v2223
    %vm2232 = vweird.f32 %v2226
    %vm2233 = vmor %vm2231, %vm2232
    %v2234 = vsel %vm2233, %v2226, %v2230
    %v2235 = vand.u32 2147483647, %v2223
    %vm2236 = vcmp.eq.f32.partialorder %v2235, 8.507059e+37
    %v2237 = vand.u32 %v2223, 2147483648
    %v2238 = vor.u32 1.1754944e-38, %v2237
    %v2239 = vsel %vm2236, %v2238, %v2234
    %v2240 = vmul.f32 1.0, %v2239
    %v2241 = vrcp.pop %v2224
    %v2242 = vmul.f32 %v2224, %v2241
    %v2243 = vsub.f32 1.0, %v2242
    %v2244 = vmul.f32 %v2241, %v2243
    %v2245 = vadd.f32 %v2241, %v2244
    %vm2246 = vweird.f32 %v2224
    %vm2247 = vweird.f32 %v2241
    %vm2248 = vmor %vm2246, %vm2247
    %v2249 = vsel %vm2248, %v2241, %v2245
    %v2250 = vand.u32 2147483647, %v2224
    %vm2251 = vcmp.eq.f32.partialorder %v2250, 8.507059e+37
    %v2252 = vand.u32 %v2224, 2147483648
    %v2253 = vor.u32 1.1754944e-38, %v2252
    %v2254 = vsel %vm2251, %v2253, %v2249
    %v2255 = vmul.f32 1.0, %v2254
    %v2256 = vrcp.pop %v2225
    %v2257 = vmul.f32 %v2225, %v2256
    %v2258 = vsub.f32 1.0, %v2257
    %v2259 = vmul.f32 %v2256, %v2258
    %v2260 = vadd.f32 %v2256, %v2259
    %vm2261 = vweird.f32 %v2225
    %vm2262 = vweird.f32 %v2256
    %vm2263 = vmor %vm2261, %vm2262
    %v2264 = vsel %vm2263, %v2256, %v2260
    %v2265 = vand.u32 2147483647, %v2225
    %vm2266 = vcmp.eq.f32.partialorder %v2265, 8.507059e+37
    %v2267 = vand.u32 %v2225, 2147483648
    %v2268 = vor.u32 1.1754944e-38, %v2267
    %v2269 = vsel %vm2266, %v2268, %v2264
    %v2270 = vmul.f32 1.0, %v2269
    %v2271 = vtanh.pop %v2213
    %v2272 = vmul.f32 %v2255, %v1401
    %v2273 = vmul.f32 %v2240, %v2271
    %v2274 = vadd.f32 %v2272, %v2273
    %v2275 = vtanh.pop %v2274
    %v2276 = vmul.f32 %v2270, %v2275
    %2277 = vst [vmem:[#allocation3 + $0x8] sm:$0xff] %v2276
    %v2278 = vld [vmem:[#allocation2 + $0x40] sm:$0xff]
    %v2279 = vld [vmem:[#allocation2 + $0x48] sm:$0xff]
    %v2280 = vld [vmem:[#allocation2 + $0x50] sm:$0xff]
    %v2281 = vld [vmem:[#allocation2 + $0x58] sm:$0xff]
    %v2282 = vld [vmem:[#allocation9] sm:$0xff]
    %v2283 = vld [vmem:[#allocation9 + $0x8] sm:$0xff]
    %v2284 = vld [vmem:[#allocation9 + $0x10] sm:$0xff]
    %v2285 = vld [vmem:[#allocation9 + $0x18] sm:$0xff]
    %v2286 = vld [vmem:[#allocation9 + $0x20] sm:$0xff]
    %v2287 = vld [vmem:[#allocation9 + $0x28] sm:$0xff]
    %v2288 = vld [vmem:[#allocation9 + $0x30] sm:$0xff]
    %v2289 = vld [vmem:[#allocation9 + $0x38] sm:$0xff]
    %v2290 = vld [vmem:[#allocation9 + $0x40] sm:$0xff]
    %v2291 = vld [vmem:[#allocation9 + $0x48] sm:$0xff]
    %v2292 = vld [vmem:[#allocation9 + $0x50] sm:$0xff]
    %v2293 = vld [vmem:[#allocation9 + $0x58] sm:$0xff]
    %v2294 = vld [vmem:[#allocation9 + $0x60] sm:$0xff]
    %v2295 = vld [vmem:[#allocation9 + $0x68] sm:$0xff]
    %v2296 = vld [vmem:[#allocation9 + $0x70] sm:$0xff]
    %v2297 = vld [vmem:[#allocation9 + $0x78] sm:$0xff]
    %v2298 = vld [vmem:[#allocation9 + $0x80] sm:$0xff]
    %v2299 = vld [vmem:[#allocation9 + $0x88] sm:$0xff]
    %v2300 = vld [vmem:[#allocation9 + $0x90] sm:$0xff]
    %v2301 = vld [vmem:[#allocation9 + $0x98] sm:$0xff]
    %v2302 = vld [vmem:[#allocation9 + $0xa0] sm:$0xff]
    %v2303 = vld [vmem:[#allocation9 + $0xa8] sm:$0xff]
    %v2304 = vld [vmem:[#allocation9 + $0xb0] sm:$0xff]
    %v2305 = vld [vmem:[#allocation9 + $0xb8] sm:$0xff]
    %v2306 = vld [vmem:[#allocation9 + $0xc0] sm:$0xff]
    %v2307 = vld [vmem:[#allocation9 + $0xc8] sm:$0xff]
    %v2308 = vld [vmem:[#allocation9 + $0xd0] sm:$0xff]
    %v2309 = vld [vmem:[#allocation9 + $0xd8] sm:$0xff]
    %v2310 = vld [vmem:[#allocation9 + $0xe0] sm:$0xff]
    %v2311 = vld [vmem:[#allocation9 + $0xe8] sm:$0xff]
    %v2312 = vld [vmem:[#allocation9 + $0xf0] sm:$0xff]
    %v2313 = vld [vmem:[#allocation9 + $0xf8] sm:$0xff]
    %v2346 = vunpack.c.l.b16 %v2282
    %v2347 = vunpack.c.h.b16 %v2282
    %v2348 = vunpack.c.l.b16 %v2283
    %v2349 = vunpack.c.h.b16 %v2283
    %v2350 = vunpack.c.l.b16 %v2284
    %v2351 = vunpack.c.h.b16 %v2284
    %v2352 = vunpack.c.l.b16 %v2285
    %v2353 = vunpack.c.h.b16 %v2285
    %v2354 = vunpack.c.l.b16 %v2286
    %v2355 = vunpack.c.h.b16 %v2286
    %v2356 = vunpack.c.l.b16 %v2287
    %v2357 = vunpack.c.h.b16 %v2287
    %v2358 = vunpack.c.l.b16 %v2288
    %v2359 = vunpack.c.h.b16 %v2288
    %v2360 = vunpack.c.l.b16 %v2289
    %v2361 = vunpack.c.h.b16 %v2289
    %v2362 = vunpack.c.l.b16 %v2290
    %v2363 = vunpack.c.h.b16 %v2290
    %v2364 = vunpack.c.l.b16 %v2291
    %v2365 = vunpack.c.h.b16 %v2291
    %v2366 = vunpack.c.l.b16 %v2292
    %v2367 = vunpack.c.h.b16 %v2292
    %v2368 = vunpack.c.l.b16 %v2293
    %v2369 = vunpack.c.h.b16 %v2293
    %v2370 = vunpack.c.l.b16 %v2294
    %v2371 = vunpack.c.h.b16 %v2294
    %v2372 = vunpack.c.l.b16 %v2295
    %v2373 = vunpack.c.h.b16 %v2295
    %v2374 = vunpack.c.l.b16 %v2296
    %v2375 = vunpack.c.h.b16 %v2296
    %v2376 = vunpack.c.l.b16 %v2297
    %v2377 = vunpack.c.h.b16 %v2297
    %v2378 = vunpack.c.l.b16 %v2298
    %v2379 = vunpack.c.h.b16 %v2298
    %v2380 = vunpack.c.l.b16 %v2299
    %v2381 = vunpack.c.h.b16 %v2299
    %v2382 = vunpack.c.l.b16 %v2300
    %v2383 = vunpack.c.h.b16 %v2300
    %v2384 = vunpack.c.l.b16 %v2301
    %v2385 = vunpack.c.h.b16 %v2301
    %v2386 = vunpack.c.l.b16 %v2302
    %v2387 = vunpack.c.h.b16 %v2302
    %v2388 = vunpack.c.l.b16 %v2303
    %v2389 = vunpack.c.h.b16 %v2303
    %v2390 = vunpack.c.l.b16 %v2304
    %v2391 = vunpack.c.h.b16 %v2304
    %v2392 = vunpack.c.l.b16 %v2305
    %v2393 = vunpack.c.h.b16 %v2305
    %v2394 = vunpack.c.l.b16 %v2306
    %v2395 = vunpack.c.h.b16 %v2306
    %v2396 = vunpack.c.l.b16 %v2307
    %v2397 = vunpack.c.h.b16 %v2307
    %v2398 = vunpack.c.l.b16 %v2308
    %v2399 = vunpack.c.h.b16 %v2308
    %v2400 = vunpack.c.l.b16 %v2309
    %v2401 = vunpack.c.h.b16 %v2309
    %v2402 = vunpack.c.l.b16 %v2310
    %v2403 = vunpack.c.h.b16 %v2310
    %v2404 = vunpack.c.l.b16 %v2311
    %v2405 = vunpack.c.h.b16 %v2311
    %v2406 = vunpack.c.l.b16 %v2312
    %v2407 = vunpack.c.h.b16 %v2312
    %v2408 = vunpack.c.l.b16 %v2313
    %v2409 = vunpack.c.h.b16 %v2313
    %v2410 = vpack.c.b16 %v2350, %v2346
    %v2411 = vpack.c.b16 %v2351, %v2347
    %v2412 = vpack.c.b16 %v2352, %v2348
    %v2413 = vpack.c.b16 %v2353, %v2349
    %v2414 = vpack.c.b16 %v2358, %v2354
    %v2415 = vpack.c.b16 %v2359, %v2355
    %v2416 = vpack.c.b16 %v2360, %v2356
    %v2417 = vpack.c.b16 %v2361, %v2357
    %v2418 = vpack.c.b16 %v2366, %v2362
    %v2419 = vpack.c.b16 %v2367, %v2363
    %v2420 = vpack.c.b16 %v2368, %v2364
    %v2421 = vpack.c.b16 %v2369, %v2365
    %v2422 = vpack.c.b16 %v2374, %v2370
    %v2423 = vpack.c.b16 %v2375, %v2371
    %v2424 = vpack.c.b16 %v2376, %v2372
    %v2425 = vpack.c.b16 %v2377, %v2373
    %v2426 = vpack.c.b16 %v2382, %v2378
    %v2427 = vpack.c.b16 %v2383, %v2379
    %v2428 = vpack.c.b16 %v2384, %v2380
    %v2429 = vpack.c.b16 %v2385, %v2381
    %v2430 = vpack.c.b16 %v2390, %v2386
    %v2431 = vpack.c.b16 %v2391, %v2387
    %v2432 = vpack.c.b16 %v2392, %v2388
    %v2433 = vpack.c.b16 %v2393, %v2389
    %v2434 = vpack.c.b16 %v2398, %v2394
    %v2435 = vpack.c.b16 %v2399, %v2395
    %v2436 = vpack.c.b16 %v2400, %v2396
    %v2437 = vpack.c.b16 %v2401, %v2397
    %v2438 = vpack.c.b16 %v2406, %v2402
    %v2439 = vpack.c.b16 %v2407, %v2403
    %v2440 = vpack.c.b16 %v2408, %v2404
    %v2441 = vpack.c.b16 %v2409, %v2405
    %2474 = vmatpush.bf16.msra.mxu0 %v2438
    %2475 = vmatpush.bf16.msra.mxu0 %v2434
    %2476 = vmatpush.bf16.msra.mxu0 %v2430
    %2477 = vmatpush.bf16.msra.mxu0 %v2426
    %2478 = vmatpush.bf16.msra.mxu0 %v2422
    %2479 = vmatpush.bf16.msra.mxu0 %v2418
    %2480 = vmatpush.bf16.msra.mxu0 %v2414
    %2481 = vmatpush.bf16.msra.mxu0 %v2410
    %2482 = vmatmul.bf16.gmra.mxu0 %v1720
    %v2483 = vpop.f32.mrf.mxu0
    %v2484 = vadd.f32 0.0, %v2483
    %v2485 = vpop.f32.mrf.mxu0
    %2486 = vdwg.mxu0
    %2487 = vmatpush.bf16.msra.mxu0 %v2439
    %2488 = vmatpush.bf16.msra.mxu0 %v2435
    %2489 = vmatpush.bf16.msra.mxu0 %v2431
    %2490 = vmatpush.bf16.msra.mxu0 %v2427
    %2491 = vmatpush.bf16.msra.mxu0 %v2423
    %2492 = vmatpush.bf16.msra.mxu0 %v2419
    %2493 = vmatpush.bf16.msra.mxu0 %v2415
    %2494 = vmatpush.bf16.msra.mxu0 %v2411
    %2495 = vmatmul.bf16.gmra.mxu0 %v1720
    %v2496 = vpop.f32.mrf.mxu0
    %v2497 = vadd.f32 0.0, %v2496
    %v2498 = vpop.f32.mrf.mxu0
    %2499 = vdwg.mxu0
    %2500 = vmatpush.bf16.msra.mxu0 %v2440
    %2501 = vmatpush.bf16.msra.mxu0 %v2436
    %2502 = vmatpush.bf16.msra.mxu0 %v2432
    %2503 = vmatpush.bf16.msra.mxu0 %v2428
    %2504 = vmatpush.bf16.msra.mxu0 %v2424
    %2505 = vmatpush.bf16.msra.mxu0 %v2420
    %2506 = vmatpush.bf16.msra.mxu0 %v2416
    %2507 = vmatpush.bf16.msra.mxu0 %v2412
    %2508 = vmatmul.bf16.gmra.mxu0 %v1720
    %v2509 = vpop.f32.mrf.mxu0
    %v2510 = vadd.f32 0.0, %v2509
    %v2511 = vpop.f32.mrf.mxu0
    %2512 = vdwg.mxu0
    %2513 = vmatpush.bf16.msra.mxu0 %v2441
    %2514 = vmatpush.bf16.msra.mxu0 %v2437
    %2515 = vmatpush.bf16.msra.mxu0 %v2433
    %2516 = vmatpush.bf16.msra.mxu0 %v2429
    %2517 = vmatpush.bf16.msra.mxu0 %v2425
    %2518 = vmatpush.bf16.msra.mxu0 %v2421
    %2519 = vmatpush.bf16.msra.mxu0 %v2417
    %2520 = vmatpush.bf16.msra.mxu0 %v2413
    %2521 = vmatmul.bf16.gmra.mxu0 %v1720
    %v2522 = vpop.f32.mrf.mxu0
    %v2523 = vadd.f32 0.0, %v2522
    %v2524 = vpop.f32.mrf.mxu0
    %2525 = vdwg.mxu0
    %v2526 = vadd.f32 %v2278, %v2484
    %v2527 = vadd.f32 %v2279, %v2497
    %v2528 = vadd.f32 %v2280, %v2510
    %v2529 = vadd.f32 %v2281, %v2523
    %v2530 = vxor.u32 %v2526, 2147483648
    %v2531 = vxor.u32 %v2527, 2147483648
    %v2532 = vxor.u32 %v2528, 2147483648
    %v2533 = vmul.f32 %v2530, 1.442695
    %v2534 = vpow.pop %v2533
    %v2535 = vmul.f32 %v2531, 1.442695
    %v2536 = vpow.pop %v2535
    %v2537 = vmul.f32 %v2532, 1.442695
    %v2538 = vpow.pop %v2537
    %v2539 = vadd.f32 %v2534, 1.0
    %v2540 = vadd.f32 %v2536, 1.0
    %v2541 = vadd.f32 %v2538, 1.0
    %v2542 = vrcp.pop %v2539
    %v2543 = vmul.f32 %v2539, %v2542
    %v2544 = vsub.f32 1.0, %v2543
    %v2545 = vmul.f32 %v2542, %v2544
    %v2546 = vadd.f32 %v2542, %v2545
    %vm2547 = vweird.f32 %v2539
    %vm2548 = vweird.f32 %v2542
    %vm2549 = vmor %vm2547, %vm2548
    %v2550 = vsel %vm2549, %v2542, %v2546
    %v2551 = vand.u32 2147483647, %v2539
    %vm2552 = vcmp.eq.f32.partialorder %v2551, 8.507059e+37
    %v2553 = vand.u32 %v2539, 2147483648
    %v2554 = vor.u32 1.1754944e-38, %v2553
    %v2555 = vsel %vm2552, %v2554, %v2550
    %v2556 = vmul.f32 1.0, %v2555
    %v2557 = vrcp.pop %v2540
    %v2558 = vmul.f32 %v2540, %v2557
    %v2559 = vsub.f32 1.0, %v2558
    %v2560 = vmul.f32 %v2557, %v2559
    %v2561 = vadd.f32 %v2557, %v2560
    %vm2562 = vweird.f32 %v2540
    %vm2563 = vweird.f32 %v2557
    %vm2564 = vmor %vm2562, %vm2563
    %v2565 = vsel %vm2564, %v2557, %v2561
    %v2566 = vand.u32 2147483647, %v2540
    %vm2567 = vcmp.eq.f32.partialorder %v2566, 8.507059e+37
    %v2568 = vand.u32 %v2540, 2147483648
    %v2569 = vor.u32 1.1754944e-38, %v2568
    %v2570 = vsel %vm2567, %v2569, %v2565
    %v2571 = vmul.f32 1.0, %v2570
    %v2572 = vrcp.pop %v2541
    %v2573 = vmul.f32 %v2541, %v2572
    %v2574 = vsub.f32 1.0, %v2573
    %v2575 = vmul.f32 %v2572, %v2574
    %v2576 = vadd.f32 %v2572, %v2575
    %vm2577 = vweird.f32 %v2541
    %vm2578 = vweird.f32 %v2572
    %vm2579 = vmor %vm2577, %vm2578
    %v2580 = vsel %vm2579, %v2572, %v2576
    %v2581 = vand.u32 2147483647, %v2541
    %vm2582 = vcmp.eq.f32.partialorder %v2581, 8.507059e+37
    %v2583 = vand.u32 %v2541, 2147483648
    %v2584 = vor.u32 1.1754944e-38, %v2583
    %v2585 = vsel %vm2582, %v2584, %v2580
    %v2586 = vmul.f32 1.0, %v2585
    %v2587 = vtanh.pop %v2529
    %v2588 = vmul.f32 %v2571, %v1717
    %v2589 = vmul.f32 %v2556, %v2587
    %v2590 = vadd.f32 %v2588, %v2589
    %v2591 = vtanh.pop %v2590
    %v2592 = vmul.f32 %v2586, %v2591
    %v2593 = vpack.c.bf16 %v2592, %v2592
    %v2594 = vld [vmem:[#allocation12] sm:$0xff]
    %v2595 = vld [vmem:[#allocation12 + $0x8] sm:$0xff]
    %v2596 = vld [vmem:[#allocation12 + $0x10] sm:$0xff]
    %v2597 = vld [vmem:[#allocation12 + $0x18] sm:$0xff]
    %v2598 = vld [vmem:[#allocation12 + $0x20] sm:$0xff]
    %v2599 = vld [vmem:[#allocation12 + $0x28] sm:$0xff]
    %v2600 = vld [vmem:[#allocation12 + $0x30] sm:$0xff]
    %v2601 = vld [vmem:[#allocation12 + $0x38] sm:$0xff]
    %v2602 = vld [vmem:[#allocation12 + $0x40] sm:$0xff]
    %v2603 = vld [vmem:[#allocation12 + $0x48] sm:$0xff]
    %v2604 = vld [vmem:[#allocation12 + $0x50] sm:$0xff]
    %v2605 = vld [vmem:[#allocation12 + $0x58] sm:$0xff]
    %v2606 = vld [vmem:[#allocation12 + $0x60] sm:$0xff]
    %v2607 = vld [vmem:[#allocation12 + $0x68] sm:$0xff]
    %v2608 = vld [vmem:[#allocation12 + $0x70] sm:$0xff]
    %v2609 = vld [vmem:[#allocation12 + $0x78] sm:$0xff]
    %v2610 = vld [vmem:[#allocation12 + $0x80] sm:$0xff]
    %v2611 = vld [vmem:[#allocation12 + $0x88] sm:$0xff]
    %v2612 = vld [vmem:[#allocation12 + $0x90] sm:$0xff]
    %v2613 = vld [vmem:[#allocation12 + $0x98] sm:$0xff]
    %v2614 = vld [vmem:[#allocation12 + $0xa0] sm:$0xff]
    %v2615 = vld [vmem:[#allocation12 + $0xa8] sm:$0xff]
    %v2616 = vld [vmem:[#allocation12 + $0xb0] sm:$0xff]
    %v2617 = vld [vmem:[#allocation12 + $0xb8] sm:$0xff]
    %v2618 = vld [vmem:[#allocation12 + $0xc0] sm:$0xff]
    %v2619 = vld [vmem:[#allocation12 + $0xc8] sm:$0xff]
    %v2620 = vld [vmem:[#allocation12 + $0xd0] sm:$0xff]
    %v2621 = vld [vmem:[#allocation12 + $0xd8] sm:$0xff]
    %v2622 = vld [vmem:[#allocation12 + $0xe0] sm:$0xff]
    %v2623 = vld [vmem:[#allocation12 + $0xe8] sm:$0xff]
    %v2624 = vld [vmem:[#allocation12 + $0xf0] sm:$0xff]
    %v2625 = vld [vmem:[#allocation12 + $0xf8] sm:$0xff]
    %v2626 = vpack.c.bf16 %v2276, %v2276
    %v2627 = vld [vmem:[#allocation13] sm:$0xff]
    %v2628 = vld [vmem:[#allocation13 + $0x8] sm:$0xff]
    %v2629 = vld [vmem:[#allocation13 + $0x10] sm:$0xff]
    %v2630 = vld [vmem:[#allocation13 + $0x18] sm:$0xff]
    %v2631 = vld [vmem:[#allocation13 + $0x20] sm:$0xff]
    %v2632 = vld [vmem:[#allocation13 + $0x28] sm:$0xff]
    %v2633 = vld [vmem:[#allocation13 + $0x30] sm:$0xff]
    %v2634 = vld [vmem:[#allocation13 + $0x38] sm:$0xff]
    %v2635 = vld [vmem:[#allocation13 + $0x40] sm:$0xff]
    %v2636 = vld [vmem:[#allocation13 + $0x48] sm:$0xff]
    %v2637 = vld [vmem:[#allocation13 + $0x50] sm:$0xff]
    %v2638 = vld [vmem:[#allocation13 + $0x58] sm:$0xff]
    %v2639 = vld [vmem:[#allocation13 + $0x60] sm:$0xff]
    %v2640 = vld [vmem:[#allocation13 + $0x68] sm:$0xff]
    %v2641 = vld [vmem:[#allocation13 + $0x70] sm:$0xff]
    %v2642 = vld [vmem:[#allocation13 + $0x78] sm:$0xff]
    %v2643 = vld [vmem:[#allocation13 + $0x80] sm:$0xff]
    %v2644 = vld [vmem:[#allocation13 + $0x88] sm:$0xff]
    %v2645 = vld [vmem:[#allocation13 + $0x90] sm:$0xff]
    %v2646 = vld [vmem:[#allocation13 + $0x98] sm:$0xff]
    %v2647 = vld [vmem:[#allocation13 + $0xa0] sm:$0xff]
    %v2648 = vld [vmem:[#allocation13 + $0xa8] sm:$0xff]
    %v2649 = vld [vmem:[#allocation13 + $0xb0] sm:$0xff]
    %v2650 = vld [vmem:[#allocation13 + $0xb8] sm:$0xff]
    %v2651 = vld [vmem:[#allocation13 + $0xc0] sm:$0xff]
    %v2652 = vld [vmem:[#allocation13 + $0xc8] sm:$0xff]
    %v2653 = vld [vmem:[#allocation13 + $0xd0] sm:$0xff]
    %v2654 = vld [vmem:[#allocation13 + $0xd8] sm:$0xff]
    %v2655 = vld [vmem:[#allocation13 + $0xe0] sm:$0xff]
    %v2656 = vld [vmem:[#allocation13 + $0xe8] sm:$0xff]
    %v2657 = vld [vmem:[#allocation13 + $0xf0] sm:$0xff]
    %v2658 = vld [vmem:[#allocation13 + $0xf8] sm:$0xff]
    %v2691 = vunpack.c.l.b16 %v2627
    %v2692 = vunpack.c.h.b16 %v2627
    %v2693 = vunpack.c.l.b16 %v2628
    %v2694 = vunpack.c.h.b16 %v2628
    %v2695 = vunpack.c.l.b16 %v2629
    %v2696 = vunpack.c.h.b16 %v2629
    %v2697 = vunpack.c.l.b16 %v2630
    %v2698 = vunpack.c.h.b16 %v2630
    %v2699 = vunpack.c.l.b16 %v2631
    %v2700 = vunpack.c.h.b16 %v2631
    %v2701 = vunpack.c.l.b16 %v2632
    %v2702 = vunpack.c.h.b16 %v2632
    %v2703 = vunpack.c.l.b16 %v2633
    %v2704 = vunpack.c.h.b16 %v2633
    %v2705 = vunpack.c.l.b16 %v2634
    %v2706 = vunpack.c.h.b16 %v2634
    %v2707 = vunpack.c.l.b16 %v2635
    %v2708 = vunpack.c.h.b16 %v2635
    %v2709 = vunpack.c.l.b16 %v2636
    %v2710 = vunpack.c.h.b16 %v2636
    %v2711 = vunpack.c.l.b16 %v2637
    %v2712 = vunpack.c.h.b16 %v2637
    %v2713 = vunpack.c.l.b16 %v2638
    %v2714 = vunpack.c.h.b16 %v2638
    %v2715 = vunpack.c.l.b16 %v2639
    %v2716 = vunpack.c.h.b16 %v2639
    %v2717 = vunpack.c.l.b16 %v2640
    %v2718 = vunpack.c.h.b16 %v2640
    %v2719 = vunpack.c.l.b16 %v2641
    %v2720 = vunpack.c.h.b16 %v2641
    %v2721 = vunpack.c.l.b16 %v2642
    %v2722 = vunpack.c.h.b16 %v2642
    %v2723 = vunpack.c.l.b16 %v2643
    %v2724 = vunpack.c.h.b16 %v2643
    %v2725 = vunpack.c.l.b16 %v2644
    %v2726 = vunpack.c.h.b16 %v2644
    %v2727 = vunpack.c.l.b16 %v2645
    %v2728 = vunpack.c.h.b16 %v2645
    %v2729 = vunpack.c.l.b16 %v2646
    %v2730 = vunpack.c.h.b16 %v2646
    %v2731 = vunpack.c.l.b16 %v2647
    %v2732 = vunpack.c.h.b16 %v2647
    %v2733 = vunpack.c.l.b16 %v2648
    %v2734 = vunpack.c.h.b16 %v2648
    %v2735 = vunpack.c.l.b16 %v2649
    %v2736 = vunpack.c.h.b16 %v2649
    %v2737 = vunpack.c.l.b16 %v2650
    %v2738 = vunpack.c.h.b16 %v2650
    %v2739 = vunpack.c.l.b16 %v2651
    %v2740 = vunpack.c.h.b16 %v2651
    %v2741 = vunpack.c.l.b16 %v2652
    %v2742 = vunpack.c.h.b16 %v2652
    %v2743 = vunpack.c.l.b16 %v2653
    %v2744 = vunpack.c.h.b16 %v2653
    %v2745 = vunpack.c.l.b16 %v2654
    %v2746 = vunpack.c.h.b16 %v2654
    %v2747 = vunpack.c.l.b16 %v2655
    %v2748 = vunpack.c.h.b16 %v2655
    %v2749 = vunpack.c.l.b16 %v2656
    %v2750 = vunpack.c.h.b16 %v2656
    %v2751 = vunpack.c.l.b16 %v2657
    %v2752 = vunpack.c.h.b16 %v2657
    %v2753 = vunpack.c.l.b16 %v2658
    %v2754 = vunpack.c.h.b16 %v2658
    %v2755 = vpack.c.b16 %v2695, %v2691
    %v2756 = vpack.c.b16 %v2696, %v2692
    %v2757 = vpack.c.b16 %v2697, %v2693
    %v2758 = vpack.c.b16 %v2698, %v2694
    %v2759 = vpack.c.b16 %v2703, %v2699
    %v2760 = vpack.c.b16 %v2704, %v2700
    %v2761 = vpack.c.b16 %v2705, %v2701
    %v2762 = vpack.c.b16 %v2706, %v2702
    %v2763 = vpack.c.b16 %v2711, %v2707
    %v2764 = vpack.c.b16 %v2712, %v2708
    %v2765 = vpack.c.b16 %v2713, %v2709
    %v2766 = vpack.c.b16 %v2714, %v2710
    %v2767 = vpack.c.b16 %v2719, %v2715
    %v2768 = vpack.c.b16 %v2720, %v2716
    %v2769 = vpack.c.b16 %v2721, %v2717
    %v2770 = vpack.c.b16 %v2722, %v2718
    %v2771 = vpack.c.b16 %v2727, %v2723
    %v2772 = vpack.c.b16 %v2728, %v2724
    %v2773 = vpack.c.b16 %v2729, %v2725
    %v2774 = vpack.c.b16 %v2730, %v2726
    %v2775 = vpack.c.b16 %v2735, %v2731
    %v2776 = vpack.c.b16 %v2736, %v2732
    %v2777 = vpack.c.b16 %v2737, %v2733
    %v2778 = vpack.c.b16 %v2738, %v2734
    %v2779 = vpack.c.b16 %v2743, %v2739
    %v2780 = vpack.c.b16 %v2744, %v2740
    %v2781 = vpack.c.b16 %v2745, %v2741
    %v2782 = vpack.c.b16 %v2746, %v2742
    %v2783 = vpack.c.b16 %v2751, %v2747
    %v2784 = vpack.c.b16 %v2752, %v2748
    %v2785 = vpack.c.b16 %v2753, %v2749
    %v2786 = vpack.c.b16 %v2754, %v2750
    %2819 = vmatpush.bf16.msra.mxu0 %v2783
    %2820 = vmatpush.bf16.msra.mxu0 %v2779
    %2821 = vmatpush.bf16.msra.mxu0 %v2775
    %2822 = vmatpush.bf16.msra.mxu0 %v2771
    %2823 = vmatpush.bf16.msra.mxu0 %v2767
    %2824 = vmatpush.bf16.msra.mxu0 %v2763
    %2825 = vmatpush.bf16.msra.mxu0 %v2759
    %2826 = vmatpush.bf16.msra.mxu0 %v2755
    %2827 = vmatmul.bf16.gmra.mxu0 %v2626
    %v2828 = vpop.f32.mrf.mxu0
    %v2829 = vadd.f32 0.0, %v2828
    %v2830 = vpop.f32.mrf.mxu0
    %2831 = vdwg.mxu0
    %2832 = vmatpush.bf16.msra.mxu0 %v2784
    %2833 = vmatpush.bf16.msra.mxu0 %v2780
    %2834 = vmatpush.bf16.msra.mxu0 %v2776
    %2835 = vmatpush.bf16.msra.mxu0 %v2772
    %2836 = vmatpush.bf16.msra.mxu0 %v2768
    %2837 = vmatpush.bf16.msra.mxu0 %v2764
    %2838 = vmatpush.bf16.msra.mxu0 %v2760
    %2839 = vmatpush.bf16.msra.mxu0 %v2756
    %2840 = vmatmul.bf16.gmra.mxu0 %v2626
    %v2841 = vpop.f32.mrf.mxu0
    %v2842 = vadd.f32 0.0, %v2841
    %v2843 = vpop.f32.mrf.mxu0
    %2844 = vdwg.mxu0
    %2845 = vmatpush.bf16.msra.mxu0 %v2785
    %2846 = vmatpush.bf16.msra.mxu0 %v2781
    %2847 = vmatpush.bf16.msra.mxu0 %v2777
    %2848 = vmatpush.bf16.msra.mxu0 %v2773
    %2849 = vmatpush.bf16.msra.mxu0 %v2769
    %2850 = vmatpush.bf16.msra.mxu0 %v2765
    %2851 = vmatpush.bf16.msra.mxu0 %v2761
    %2852 = vmatpush.bf16.msra.mxu0 %v2757
    %2853 = vmatmul.bf16.gmra.mxu0 %v2626
    %v2854 = vpop.f32.mrf.mxu0
    %v2855 = vadd.f32 0.0, %v2854
    %v2856 = vpop.f32.mrf.mxu0
    %2857 = vdwg.mxu0
    %2858 = vmatpush.bf16.msra.mxu0 %v2786
    %2859 = vmatpush.bf16.msra.mxu0 %v2782
    %2860 = vmatpush.bf16.msra.mxu0 %v2778
    %2861 = vmatpush.bf16.msra.mxu0 %v2774
    %2862 = vmatpush.bf16.msra.mxu0 %v2770
    %2863 = vmatpush.bf16.msra.mxu0 %v2766
    %2864 = vmatpush.bf16.msra.mxu0 %v2762
    %2865 = vmatpush.bf16.msra.mxu0 %v2758
    %2866 = vmatmul.bf16.gmra.mxu0 %v2626
    %v2867 = vpop.f32.mrf.mxu0
    %v2868 = vadd.f32 0.0, %v2867
    %v2869 = vpop.f32.mrf.mxu0
    %2870 = vdwg.mxu0
    %v2903 = vunpack.c.l.b16 %v2594
    %v2904 = vunpack.c.h.b16 %v2594
    %v2905 = vunpack.c.l.b16 %v2595
    %v2906 = vunpack.c.h.b16 %v2595
    %v2907 = vunpack.c.l.b16 %v2596
    %v2908 = vunpack.c.h.b16 %v2596
    %v2909 = vunpack.c.l.b16 %v2597
    %v2910 = vunpack.c.h.b16 %v2597
    %v2911 = vunpack.c.l.b16 %v2598
    %v2912 = vunpack.c.h.b16 %v2598
    %v2913 = vunpack.c.l.b16 %v2599
    %v2914 = vunpack.c.h.b16 %v2599
    %v2915 = vunpack.c.l.b16 %v2600
    %v2916 = vunpack.c.h.b16 %v2600
    %v2917 = vunpack.c.l.b16 %v2601
    %v2918 = vunpack.c.h.b16 %v2601
    %v2919 = vunpack.c.l.b16 %v2602
    %v2920 = vunpack.c.h.b16 %v2602
    %v2921 = vunpack.c.l.b16 %v2603
    %v2922 = vunpack.c.h.b16 %v2603
    %v2923 = vunpack.c.l.b16 %v2604
    %v2924 = vunpack.c.h.b16 %v2604
    %v2925 = vunpack.c.l.b16 %v2605
    %v2926 = vunpack.c.h.b16 %v2605
    %v2927 = vunpack.c.l.b16 %v2606
    %v2928 = vunpack.c.h.b16 %v2606
    %v2929 = vunpack.c.l.b16 %v2607
    %v2930 = vunpack.c.h.b16 %v2607
    %v2931 = vunpack.c.l.b16 %v2608
    %v2932 = vunpack.c.h.b16 %v2608
    %v2933 = vunpack.c.l.b16 %v2609
    %v2934 = vunpack.c.h.b16 %v2609
    %v2935 = vunpack.c.l.b16 %v2610
    %v2936 = vunpack.c.h.b16 %v2610
    %v2937 = vunpack.c.l.b16 %v2611
    %v2938 = vunpack.c.h.b16 %v2611
    %v2939 = vunpack.c.l.b16 %v2612
    %v2940 = vunpack.c.h.b16 %v2612
    %v2941 = vunpack.c.l.b16 %v2613
    %v2942 = vunpack.c.h.b16 %v2613
    %v2943 = vunpack.c.l.b16 %v2614
    %v2944 = vunpack.c.h.b16 %v2614
    %v2945 = vunpack.c.l.b16 %v2615
    %v2946 = vunpack.c.h.b16 %v2615
    %v2947 = vunpack.c.l.b16 %v2616
    %v2948 = vunpack.c.h.b16 %v2616
    %v2949 = vunpack.c.l.b16 %v2617
    %v2950 = vunpack.c.h.b16 %v2617
    %v2951 = vunpack.c.l.b16 %v2618
    %v2952 = vunpack.c.h.b16 %v2618
    %v2953 = vunpack.c.l.b16 %v2619
    %v2954 = vunpack.c.h.b16 %v2619
    %v2955 = vunpack.c.l.b16 %v2620
    %v2956 = vunpack.c.h.b16 %v2620
    %v2957 = vunpack.c.l.b16 %v2621
    %v2958 = vunpack.c.h.b16 %v2621
    %v2959 = vunpack.c.l.b16 %v2622
    %v2960 = vunpack.c.h.b16 %v2622
    %v2961 = vunpack.c.l.b16 %v2623
    %v2962 = vunpack.c.h.b16 %v2623
    %v2963 = vunpack.c.l.b16 %v2624
    %v2964 = vunpack.c.h.b16 %v2624
    %v2965 = vunpack.c.l.b16 %v2625
    %v2966 = vunpack.c.h.b16 %v2625
    %v2967 = vpack.c.b16 %v2907, %v2903
    %v2968 = vpack.c.b16 %v2908, %v2904
    %v2969 = vpack.c.b16 %v2909, %v2905
    %v2970 = vpack.c.b16 %v2910, %v2906
    %v2971 = vpack.c.b16 %v2915, %v2911
    %v2972 = vpack.c.b16 %v2916, %v2912
    %v2973 = vpack.c.b16 %v2917, %v2913
    %v2974 = vpack.c.b16 %v2918, %v2914
    %v2975 = vpack.c.b16 %v2923, %v2919
    %v2976 = vpack.c.b16 %v2924, %v2920
    %v2977 = vpack.c.b16 %v2925, %v2921
    %v2978 = vpack.c.b16 %v2926, %v2922
    %v2979 = vpack.c.b16 %v2931, %v2927
    %v2980 = vpack.c.b16 %v2932, %v2928
    %v2981 = vpack.c.b16 %v2933, %v2929
    %v2982 = vpack.c.b16 %v2934, %v2930
    %v2983 = vpack.c.b16 %v2939, %v2935
    %v2984 = vpack.c.b16 %v2940, %v2936
    %v2985 = vpack.c.b16 %v2941, %v2937
    %v2986 = vpack.c.b16 %v2942, %v2938
    %v2987 = vpack.c.b16 %v2947, %v2943
    %v2988 = vpack.c.b16 %v2948, %v2944
    %v2989 = vpack.c.b16 %v2949, %v2945
    %v2990 = vpack.c.b16 %v2950, %v2946
    %v2991 = vpack.c.b16 %v2955, %v2951
    %v2992 = vpack.c.b16 %v2956, %v2952
    %v2993 = vpack.c.b16 %v2957, %v2953
    %v2994 = vpack.c.b16 %v2958, %v2954
    %v2995 = vpack.c.b16 %v2963, %v2959
    %v2996 = vpack.c.b16 %v2964, %v2960
    %v2997 = vpack.c.b16 %v2965, %v2961
    %v2998 = vpack.c.b16 %v2966, %v2962
    %3031 = vmatpush.bf16.msra.mxu0 %v2995
    %3032 = vmatpush.bf16.msra.mxu0 %v2991
    %3033 = vmatpush.bf16.msra.mxu0 %v2987
    %3034 = vmatpush.bf16.msra.mxu0 %v2983
    %3035 = vmatpush.bf16.msra.mxu0 %v2979
    %3036 = vmatpush.bf16.msra.mxu0 %v2975
    %3037 = vmatpush.bf16.msra.mxu0 %v2971
    %3038 = vmatpush.bf16.msra.mxu0 %v2967
    %3039 = vmatmul.bf16.gmra.mxu0 %v2593
    %v3040 = vpop.f32.mrf.mxu0
    %v3041 = vadd.f32 %v2829, %v3040
    %v3042 = vpop.f32.mrf.mxu0
    %3043 = vdwg.mxu0
    %3044 = vmatpush.bf16.msra.mxu0 %v2996
    %3045 = vmatpush.bf16.msra.mxu0 %v2992
    %3046 = vmatpush.bf16.msra.mxu0 %v2988
    %3047 = vmatpush.bf16.msra.mxu0 %v2984
    %3048 = vmatpush.bf16.msra.mxu0 %v2980
    %3049 = vmatpush.bf16.msra.mxu0 %v2976
    %3050 = vmatpush.bf16.msra.mxu0 %v2972
    %3051 = vmatpush.bf16.msra.mxu0 %v2968
    %3052 = vmatmul.bf16.gmra.mxu0 %v2593
    %v3053 = vpop.f32.mrf.mxu0
    %v3054 = vadd.f32 %v2842, %v3053
    %v3055 = vpop.f32.mrf.mxu0
    %3056 = vdwg.mxu0
    %3057 = vmatpush.bf16.msra.mxu0 %v2997
    %3058 = vmatpush.bf16.msra.mxu0 %v2993
    %3059 = vmatpush.bf16.msra.mxu0 %v2989
    %3060 = vmatpush.bf16.msra.mxu0 %v2985
    %3061 = vmatpush.bf16.msra.mxu0 %v2981
    %3062 = vmatpush.bf16.msra.mxu0 %v2977
    %3063 = vmatpush.bf16.msra.mxu0 %v2973
    %3064 = vmatpush.bf16.msra.mxu0 %v2969
    %3065 = vmatmul.bf16.gmra.mxu0 %v2593
    %v3066 = vpop.f32.mrf.mxu0
    %v3067 = vadd.f32 %v2855, %v3066
    %v3068 = vpop.f32.mrf.mxu0
    %3069 = vdwg.mxu0
    %3070 = vmatpush.bf16.msra.mxu0 %v2998
    %3071 = vmatpush.bf16.msra.mxu0 %v2994
    %3072 = vmatpush.bf16.msra.mxu0 %v2990
    %3073 = vmatpush.bf16.msra.mxu0 %v2986
    %3074 = vmatpush.bf16.msra.mxu0 %v2982
    %3075 = vmatpush.bf16.msra.mxu0 %v2978
    %3076 = vmatpush.bf16.msra.mxu0 %v2974
    %3077 = vmatpush.bf16.msra.mxu0 %v2970
    %3078 = vmatmul.bf16.gmra.mxu0 %v2593
    %v3079 = vpop.f32.mrf.mxu0
    %v3080 = vadd.f32 %v2868, %v3079
    %v3081 = vpop.f32.mrf.mxu0
    %3082 = vdwg.mxu0
    %v3083 = vadd.f32 %v3041, %v525
    %v3084 = vadd.f32 %v3054, %v526
    %v3085 = vadd.f32 %v3067, %v527
    %v3086 = vadd.f32 %v3080, %v528
    %v3087 = vxor.u32 %v3083, 2147483648
    %v3088 = vxor.u32 %v3084, 2147483648
    %v3089 = vxor.u32 %v3085, 2147483648
    %v3090 = vmul.f32 %v3087, 1.442695
    %v3091 = vpow.pop %v3090
    %v3092 = vmul.f32 %v3088, 1.442695
    %v3093 = vpow.pop %v3092
    %v3094 = vmul.f32 %v3089, 1.442695
    %v3095 = vpow.pop %v3094
    %v3096 = vadd.f32 %v3091, 1.0
    %v3097 = vadd.f32 %v3093, 1.0
    %v3098 = vadd.f32 %v3095, 1.0
    %v3099 = vrcp.pop %v3096
    %v3100 = vmul.f32 %v3096, %v3099
    %v3101 = vsub.f32 1.0, %v3100
    %v3102 = vmul.f32 %v3099, %v3101
    %v3103 = vadd.f32 %v3099, %v3102
    %vm3104 = vweird.f32 %v3096
    %vm3105 = vweird.f32 %v3099
    %vm3106 = vmor %vm3104, %vm3105
    %v3107 = vsel %vm3106, %v3099, %v3103
    %v3108 = vand.u32 2147483647, %v3096
    %vm3109 = vcmp.eq.f32.partialorder %v3108, 8.507059e+37
    %v3110 = vand.u32 %v3096, 2147483648
    %v3111 = vor.u32 1.1754944e-38, %v3110
    %v3112 = vsel %vm3109, %v3111, %v3107
    %v3113 = vmul.f32 1.0, %v3112
    %v3114 = vrcp.pop %v3097
    %v3115 = vmul.f32 %v3097, %v3114
    %v3116 = vsub.f32 1.0, %v3115
    %v3117 = vmul.f32 %v3114, %v3116
    %v3118 = vadd.f32 %v3114, %v3117
    %vm3119 = vweird.f32 %v3097
    %vm3120 = vweird.f32 %v3114
    %vm3121 = vmor %vm3119, %vm3120
    %v3122 = vsel %vm3121, %v3114, %v3118
    %v3123 = vand.u32 2147483647, %v3097
    %vm3124 = vcmp.eq.f32.partialorder %v3123, 8.507059e+37
    %v3125 = vand.u32 %v3097, 2147483648
    %v3126 = vor.u32 1.1754944e-38, %v3125
    %v3127 = vsel %vm3124, %v3126, %v3122
    %v3128 = vmul.f32 1.0, %v3127
    %v3129 = vrcp.pop %v3098
    %v3130 = vmul.f32 %v3098, %v3129
    %v3131 = vsub.f32 1.0, %v3130
    %v3132 = vmul.f32 %v3129, %v3131
    %v3133 = vadd.f32 %v3129, %v3132
    %vm3134 = vweird.f32 %v3098
    %vm3135 = vweird.f32 %v3129
    %vm3136 = vmor %vm3134, %vm3135
    %v3137 = vsel %vm3136, %v3129, %v3133
    %v3138 = vand.u32 2147483647, %v3098
    %vm3139 = vcmp.eq.f32.partialorder %v3138, 8.507059e+37
    %v3140 = vand.u32 %v3098, 2147483648
    %v3141 = vor.u32 1.1754944e-38, %v3140
    %v3142 = vsel %vm3139, %v3141, %v3137
    %v3143 = vmul.f32 1.0, %v3142
    %v3144 = vtanh.pop %v3086
    %v3145 = vmul.f32 %v3128, %v2274
    %v3146 = vmul.f32 %v3113, %v3144
    %v3147 = vadd.f32 %v3145, %v3146
    %v3148 = vtanh.pop %v3147
    %v3149 = vmul.f32 %v3143, %v3148
    %3150 = vst [vmem:[#allocation3 + $0x10] sm:$0xff] %v3149
    %v3151 = vld [vmem:[#allocation2 + $0x60] sm:$0xff]
    %v3152 = vld [vmem:[#allocation2 + $0x68] sm:$0xff]
    %v3153 = vld [vmem:[#allocation2 + $0x70] sm:$0xff]
    %v3154 = vld [vmem:[#allocation2 + $0x78] sm:$0xff]
    %v3155 = vld [vmem:[#allocation9] sm:$0xff]
    %v3156 = vld [vmem:[#allocation9 + $0x8] sm:$0xff]
    %v3157 = vld [vmem:[#allocation9 + $0x10] sm:$0xff]
    %v3158 = vld [vmem:[#allocation9 + $0x18] sm:$0xff]
    %v3159 = vld [vmem:[#allocation9 + $0x20] sm:$0xff]
    %v3160 = vld [vmem:[#allocation9 + $0x28] sm:$0xff]
    %v3161 = vld [vmem:[#allocation9 + $0x30] sm:$0xff]
    %v3162 = vld [vmem:[#allocation9 + $0x38] sm:$0xff]
    %v3163 = vld [vmem:[#allocation9 + $0x40] sm:$0xff]
    %v3164 = vld [vmem:[#allocation9 + $0x48] sm:$0xff]
    %v3165 = vld [vmem:[#allocation9 + $0x50] sm:$0xff]
    %v3166 = vld [vmem:[#allocation9 + $0x58] sm:$0xff]
    %v3167 = vld [vmem:[#allocation9 + $0x60] sm:$0xff]
    %v3168 = vld [vmem:[#allocation9 + $0x68] sm:$0xff]
    %v3169 = vld [vmem:[#allocation9 + $0x70] sm:$0xff]
    %v3170 = vld [vmem:[#allocation9 + $0x78] sm:$0xff]
    %v3171 = vld [vmem:[#allocation9 + $0x80] sm:$0xff]
    %v3172 = vld [vmem:[#allocation9 + $0x88] sm:$0xff]
    %v3173 = vld [vmem:[#allocation9 + $0x90] sm:$0xff]
    %v3174 = vld [vmem:[#allocation9 + $0x98] sm:$0xff]
    %v3175 = vld [vmem:[#allocation9 + $0xa0] sm:$0xff]
    %v3176 = vld [vmem:[#allocation9 + $0xa8] sm:$0xff]
    %v3177 = vld [vmem:[#allocation9 + $0xb0] sm:$0xff]
    %v3178 = vld [vmem:[#allocation9 + $0xb8] sm:$0xff]
    %v3179 = vld [vmem:[#allocation9 + $0xc0] sm:$0xff]
    %v3180 = vld [vmem:[#allocation9 + $0xc8] sm:$0xff]
    %v3181 = vld [vmem:[#allocation9 + $0xd0] sm:$0xff]
    %v3182 = vld [vmem:[#allocation9 + $0xd8] sm:$0xff]
    %v3183 = vld [vmem:[#allocation9 + $0xe0] sm:$0xff]
    %v3184 = vld [vmem:[#allocation9 + $0xe8] sm:$0xff]
    %v3185 = vld [vmem:[#allocation9 + $0xf0] sm:$0xff]
    %v3186 = vld [vmem:[#allocation9 + $0xf8] sm:$0xff]
    %v3219 = vunpack.c.l.b16 %v3155
    %v3220 = vunpack.c.h.b16 %v3155
    %v3221 = vunpack.c.l.b16 %v3156
    %v3222 = vunpack.c.h.b16 %v3156
    %v3223 = vunpack.c.l.b16 %v3157
    %v3224 = vunpack.c.h.b16 %v3157
    %v3225 = vunpack.c.l.b16 %v3158
    %v3226 = vunpack.c.h.b16 %v3158
    %v3227 = vunpack.c.l.b16 %v3159
    %v3228 = vunpack.c.h.b16 %v3159
    %v3229 = vunpack.c.l.b16 %v3160
    %v3230 = vunpack.c.h.b16 %v3160
    %v3231 = vunpack.c.l.b16 %v3161
    %v3232 = vunpack.c.h.b16 %v3161
    %v3233 = vunpack.c.l.b16 %v3162
    %v3234 = vunpack.c.h.b16 %v3162
    %v3235 = vunpack.c.l.b16 %v3163
    %v3236 = vunpack.c.h.b16 %v3163
    %v3237 = vunpack.c.l.b16 %v3164
    %v3238 = vunpack.c.h.b16 %v3164
    %v3239 = vunpack.c.l.b16 %v3165
    %v3240 = vunpack.c.h.b16 %v3165
    %v3241 = vunpack.c.l.b16 %v3166
    %v3242 = vunpack.c.h.b16 %v3166
    %v3243 = vunpack.c.l.b16 %v3167
    %v3244 = vunpack.c.h.b16 %v3167
    %v3245 = vunpack.c.l.b16 %v3168
    %v3246 = vunpack.c.h.b16 %v3168
    %v3247 = vunpack.c.l.b16 %v3169
    %v3248 = vunpack.c.h.b16 %v3169
    %v3249 = vunpack.c.l.b16 %v3170
    %v3250 = vunpack.c.h.b16 %v3170
    %v3251 = vunpack.c.l.b16 %v3171
    %v3252 = vunpack.c.h.b16 %v3171
    %v3253 = vunpack.c.l.b16 %v3172
    %v3254 = vunpack.c.h.b16 %v3172
    %v3255 = vunpack.c.l.b16 %v3173
    %v3256 = vunpack.c.h.b16 %v3173
    %v3257 = vunpack.c.l.b16 %v3174
    %v3258 = vunpack.c.h.b16 %v3174
    %v3259 = vunpack.c.l.b16 %v3175
    %v3260 = vunpack.c.h.b16 %v3175
    %v3261 = vunpack.c.l.b16 %v3176
    %v3262 = vunpack.c.h.b16 %v3176
    %v3263 = vunpack.c.l.b16 %v3177
    %v3264 = vunpack.c.h.b16 %v3177
    %v3265 = vunpack.c.l.b16 %v3178
    %v3266 = vunpack.c.h.b16 %v3178
    %v3267 = vunpack.c.l.b16 %v3179
    %v3268 = vunpack.c.h.b16 %v3179
    %v3269 = vunpack.c.l.b16 %v3180
    %v3270 = vunpack.c.h.b16 %v3180
    %v3271 = vunpack.c.l.b16 %v3181
    %v3272 = vunpack.c.h.b16 %v3181
    %v3273 = vunpack.c.l.b16 %v3182
    %v3274 = vunpack.c.h.b16 %v3182
    %v3275 = vunpack.c.l.b16 %v3183
    %v3276 = vunpack.c.h.b16 %v3183
    %v3277 = vunpack.c.l.b16 %v3184
    %v3278 = vunpack.c.h.b16 %v3184
    %v3279 = vunpack.c.l.b16 %v3185
    %v3280 = vunpack.c.h.b16 %v3185
    %v3281 = vunpack.c.l.b16 %v3186
    %v3282 = vunpack.c.h.b16 %v3186
    %v3283 = vpack.c.b16 %v3223, %v3219
    %v3284 = vpack.c.b16 %v3224, %v3220
    %v3285 = vpack.c.b16 %v3225, %v3221
    %v3286 = vpack.c.b16 %v3226, %v3222
    %v3287 = vpack.c.b16 %v3231, %v3227
    %v3288 = vpack.c.b16 %v3232, %v3228
    %v3289 = vpack.c.b16 %v3233, %v3229
    %v3290 = vpack.c.b16 %v3234, %v3230
    %v3291 = vpack.c.b16 %v3239, %v3235
    %v3292 = vpack.c.b16 %v3240, %v3236
    %v3293 = vpack.c.b16 %v3241, %v3237
    %v3294 = vpack.c.b16 %v3242, %v3238
    %v3295 = vpack.c.b16 %v3247, %v3243
    %v3296 = vpack.c.b16 %v3248, %v3244
    %v3297 = vpack.c.b16 %v3249, %v3245
    %v3298 = vpack.c.b16 %v3250, %v3246
    %v3299 = vpack.c.b16 %v3255, %v3251
    %v3300 = vpack.c.b16 %v3256, %v3252
    %v3301 = vpack.c.b16 %v3257, %v3253
    %v3302 = vpack.c.b16 %v3258, %v3254
    %v3303 = vpack.c.b16 %v3263, %v3259
    %v3304 = vpack.c.b16 %v3264, %v3260
    %v3305 = vpack.c.b16 %v3265, %v3261
    %v3306 = vpack.c.b16 %v3266, %v3262
    %v3307 = vpack.c.b16 %v3271, %v3267
    %v3308 = vpack.c.b16 %v3272, %v3268
    %v3309 = vpack.c.b16 %v3273, %v3269
    %v3310 = vpack.c.b16 %v3274, %v3270
    %v3311 = vpack.c.b16 %v3279, %v3275
    %v3312 = vpack.c.b16 %v3280, %v3276
    %v3313 = vpack.c.b16 %v3281, %v3277
    %v3314 = vpack.c.b16 %v3282, %v3278
    %3347 = vmatpush.bf16.msra.mxu0 %v3311
    %3348 = vmatpush.bf16.msra.mxu0 %v3307
    %3349 = vmatpush.bf16.msra.mxu0 %v3303
    %3350 = vmatpush.bf16.msra.mxu0 %v3299
    %3351 = vmatpush.bf16.msra.mxu0 %v3295
    %3352 = vmatpush.bf16.msra.mxu0 %v3291
    %3353 = vmatpush.bf16.msra.mxu0 %v3287
    %3354 = vmatpush.bf16.msra.mxu0 %v3283
    %3355 = vmatmul.bf16.gmra.mxu0 %v2593
    %v3356 = vpop.f32.mrf.mxu0
    %v3357 = vadd.f32 0.0, %v3356
    %v3358 = vpop.f32.mrf.mxu0
    %3359 = vdwg.mxu0
    %3360 = vmatpush.bf16.msra.mxu0 %v3312
    %3361 = vmatpush.bf16.msra.mxu0 %v3308
    %3362 = vmatpush.bf16.msra.mxu0 %v3304
    %3363 = vmatpush.bf16.msra.mxu0 %v3300
    %3364 = vmatpush.bf16.msra.mxu0 %v3296
    %3365 = vmatpush.bf16.msra.mxu0 %v3292
    %3366 = vmatpush.bf16.msra.mxu0 %v3288
    %3367 = vmatpush.bf16.msra.mxu0 %v3284
    %3368 = vmatmul.bf16.gmra.mxu0 %v2593
    %v3369 = vpop.f32.mrf.mxu0
    %v3370 = vadd.f32 0.0, %v3369
    %v3371 = vpop.f32.mrf.mxu0
    %3372 = vdwg.mxu0
    %3373 = vmatpush.bf16.msra.mxu0 %v3313
    %3374 = vmatpush.bf16.msra.mxu0 %v3309
    %3375 = vmatpush.bf16.msra.mxu0 %v3305
    %3376 = vmatpush.bf16.msra.mxu0 %v3301
    %3377 = vmatpush.bf16.msra.mxu0 %v3297
    %3378 = vmatpush.bf16.msra.mxu0 %v3293
    %3379 = vmatpush.bf16.msra.mxu0 %v3289
    %3380 = vmatpush.bf16.msra.mxu0 %v3285
    %3381 = vmatmul.bf16.gmra.mxu0 %v2593
    %v3382 = vpop.f32.mrf.mxu0
    %v3383 = vadd.f32 0.0, %v3382
    %v3384 = vpop.f32.mrf.mxu0
    %3385 = vdwg.mxu0
    %3386 = vmatpush.bf16.msra.mxu0 %v3314
    %3387 = vmatpush.bf16.msra.mxu0 %v3310
    %3388 = vmatpush.bf16.msra.mxu0 %v3306
    %3389 = vmatpush.bf16.msra.mxu0 %v3302
    %3390 = vmatpush.bf16.msra.mxu0 %v3298
    %3391 = vmatpush.bf16.msra.mxu0 %v3294
    %3392 = vmatpush.bf16.msra.mxu0 %v3290
    %3393 = vmatpush.bf16.msra.mxu0 %v3286
    %3394 = vmatmul.bf16.gmra.mxu0 %v2593
    %v3395 = vpop.f32.mrf.mxu0
    %v3396 = vadd.f32 0.0, %v3395
    %v3397 = vpop.f32.mrf.mxu0
    %3398 = vdwg.mxu0
    %v3399 = vadd.f32 %v3151, %v3357
    %v3400 = vadd.f32 %v3152, %v3370
    %v3401 = vadd.f32 %v3153, %v3383
    %v3402 = vadd.f32 %v3154, %v3396
    %v3403 = vxor.u32 %v3399, 2147483648
    %v3404 = vxor.u32 %v3400, 2147483648
    %v3405 = vxor.u32 %v3401, 2147483648
    %v3406 = vmul.f32 %v3403, 1.442695
    %v3407 = vpow.pop %v3406
    %v3408 = vmul.f32 %v3404, 1.442695
    %v3409 = vpow.pop %v3408
    %v3410 = vmul.f32 %v3405, 1.442695
    %v3411 = vpow.pop %v3410
    %v3412 = vadd.f32 %v3407, 1.0
    %v3413 = vadd.f32 %v3409, 1.0
    %v3414 = vadd.f32 %v3411, 1.0
    %v3415 = vrcp.pop %v3412
    %v3416 = vmul.f32 %v3412, %v3415
    %v3417 = vsub.f32 1.0, %v3416
    %v3418 = vmul.f32 %v3415, %v3417
    %v3419 = vadd.f32 %v3415, %v3418
    %vm3420 = vweird.f32 %v3412
    %vm3421 = vweird.f32 %v3415
    %vm3422 = vmor %vm3420, %vm3421
    %v3423 = vsel %vm3422, %v3415, %v3419
    %v3424 = vand.u32 2147483647, %v3412
    %vm3425 = vcmp.eq.f32.partialorder %v3424, 8.507059e+37
    %v3426 = vand.u32 %v3412, 2147483648
    %v3427 = vor.u32 1.1754944e-38, %v3426
    %v3428 = vsel %vm3425, %v3427, %v3423
    %v3429 = vmul.f32 1.0, %v3428
    %v3430 = vrcp.pop %v3413
    %v3431 = vmul.f32 %v3413, %v3430
    %v3432 = vsub.f32 1.0, %v3431
    %v3433 = vmul.f32 %v3430, %v3432
    %v3434 = vadd.f32 %v3430, %v3433
    %vm3435 = vweird.f32 %v3413
    %vm3436 = vweird.f32 %v3430
    %vm3437 = vmor %vm3435, %vm3436
    %v3438 = vsel %vm3437, %v3430, %v3434
    %v3439 = vand.u32 2147483647, %v3413
    %vm3440 = vcmp.eq.f32.partialorder %v3439, 8.507059e+37
    %v3441 = vand.u32 %v3413, 2147483648
    %v3442 = vor.u32 1.1754944e-38, %v3441
    %v3443 = vsel %vm3440, %v3442, %v3438
    %v3444 = vmul.f32 1.0, %v3443
    %v3445 = vrcp.pop %v3414
    %v3446 = vmul.f32 %v3414, %v3445
    %v3447 = vsub.f32 1.0, %v3446
    %v3448 = vmul.f32 %v3445, %v3447
    %v3449 = vadd.f32 %v3445, %v3448
    %vm3450 = vweird.f32 %v3414
    %vm3451 = vweird.f32 %v3445
    %vm3452 = vmor %vm3450, %vm3451
    %v3453 = vsel %vm3452, %v3445, %v3449
    %v3454 = vand.u32 2147483647, %v3414
    %vm3455 = vcmp.eq.f32.partialorder %v3454, 8.507059e+37
    %v3456 = vand.u32 %v3414, 2147483648
    %v3457 = vor.u32 1.1754944e-38, %v3456
    %v3458 = vsel %vm3455, %v3457, %v3453
    %v3459 = vmul.f32 1.0, %v3458
    %v3460 = vtanh.pop %v3402
    %v3461 = vmul.f32 %v3444, %v2590
    %v3462 = vmul.f32 %v3429, %v3460
    %v3463 = vadd.f32 %v3461, %v3462
    %v3464 = vtanh.pop %v3463
    %v3465 = vmul.f32 %v3459, %v3464
    %v3466 = vpack.c.bf16 %v3465, %v3465
    %v3467 = vld [vmem:[#allocation12] sm:$0xff]
    %v3468 = vld [vmem:[#allocation12 + $0x8] sm:$0xff]
    %v3469 = vld [vmem:[#allocation12 + $0x10] sm:$0xff]
    %v3470 = vld [vmem:[#allocation12 + $0x18] sm:$0xff]
    %v3471 = vld [vmem:[#allocation12 + $0x20] sm:$0xff]
    %v3472 = vld [vmem:[#allocation12 + $0x28] sm:$0xff]
    %v3473 = vld [vmem:[#allocation12 + $0x30] sm:$0xff]
    %v3474 = vld [vmem:[#allocation12 + $0x38] sm:$0xff]
    %v3475 = vld [vmem:[#allocation12 + $0x40] sm:$0xff]
    %v3476 = vld [vmem:[#allocation12 + $0x48] sm:$0xff]
    %v3477 = vld [vmem:[#allocation12 + $0x50] sm:$0xff]
    %v3478 = vld [vmem:[#allocation12 + $0x58] sm:$0xff]
    %v3479 = vld [vmem:[#allocation12 + $0x60] sm:$0xff]
    %v3480 = vld [vmem:[#allocation12 + $0x68] sm:$0xff]
    %v3481 = vld [vmem:[#allocation12 + $0x70] sm:$0xff]
    %v3482 = vld [vmem:[#allocation12 + $0x78] sm:$0xff]
    %v3483 = vld [vmem:[#allocation12 + $0x80] sm:$0xff]
    %v3484 = vld [vmem:[#allocation12 + $0x88] sm:$0xff]
    %v3485 = vld [vmem:[#allocation12 + $0x90] sm:$0xff]
    %v3486 = vld [vmem:[#allocation12 + $0x98] sm:$0xff]
    %v3487 = vld [vmem:[#allocation12 + $0xa0] sm:$0xff]
    %v3488 = vld [vmem:[#allocation12 + $0xa8] sm:$0xff]
    %v3489 = vld [vmem:[#allocation12 + $0xb0] sm:$0xff]
    %v3490 = vld [vmem:[#allocation12 + $0xb8] sm:$0xff]
    %v3491 = vld [vmem:[#allocation12 + $0xc0] sm:$0xff]
    %v3492 = vld [vmem:[#allocation12 + $0xc8] sm:$0xff]
    %v3493 = vld [vmem:[#allocation12 + $0xd0] sm:$0xff]
    %v3494 = vld [vmem:[#allocation12 + $0xd8] sm:$0xff]
    %v3495 = vld [vmem:[#allocation12 + $0xe0] sm:$0xff]
    %v3496 = vld [vmem:[#allocation12 + $0xe8] sm:$0xff]
    %v3497 = vld [vmem:[#allocation12 + $0xf0] sm:$0xff]
    %v3498 = vld [vmem:[#allocation12 + $0xf8] sm:$0xff]
    %v3499 = vpack.c.bf16 %v3149, %v3149
    %v3500 = vld [vmem:[#allocation13] sm:$0xff]
    %v3501 = vld [vmem:[#allocation13 + $0x8] sm:$0xff]
    %v3502 = vld [vmem:[#allocation13 + $0x10] sm:$0xff]
    %v3503 = vld [vmem:[#allocation13 + $0x18] sm:$0xff]
    %v3504 = vld [vmem:[#allocation13 + $0x20] sm:$0xff]
    %v3505 = vld [vmem:[#allocation13 + $0x28] sm:$0xff]
    %v3506 = vld [vmem:[#allocation13 + $0x30] sm:$0xff]
    %v3507 = vld [vmem:[#allocation13 + $0x38] sm:$0xff]
    %v3508 = vld [vmem:[#allocation13 + $0x40] sm:$0xff]
    %v3509 = vld [vmem:[#allocation13 + $0x48] sm:$0xff]
    %v3510 = vld [vmem:[#allocation13 + $0x50] sm:$0xff]
    %v3511 = vld [vmem:[#allocation13 + $0x58] sm:$0xff]
    %v3512 = vld [vmem:[#allocation13 + $0x60] sm:$0xff]
    %v3513 = vld [vmem:[#allocation13 + $0x68] sm:$0xff]
    %v3514 = vld [vmem:[#allocation13 + $0x70] sm:$0xff]
    %v3515 = vld [vmem:[#allocation13 + $0x78] sm:$0xff]
    %v3516 = vld [vmem:[#allocation13 + $0x80] sm:$0xff]
    %v3517 = vld [vmem:[#allocation13 + $0x88] sm:$0xff]
    %v3518 = vld [vmem:[#allocation13 + $0x90] sm:$0xff]
    %v3519 = vld [vmem:[#allocation13 + $0x98] sm:$0xff]
    %v3520 = vld [vmem:[#allocation13 + $0xa0] sm:$0xff]
    %v3521 = vld [vmem:[#allocation13 + $0xa8] sm:$0xff]
    %v3522 = vld [vmem:[#allocation13 + $0xb0] sm:$0xff]
    %v3523 = vld [vmem:[#allocation13 + $0xb8] sm:$0xff]
    %v3524 = vld [vmem:[#allocation13 + $0xc0] sm:$0xff]
    %v3525 = vld [vmem:[#allocation13 + $0xc8] sm:$0xff]
    %v3526 = vld [vmem:[#allocation13 + $0xd0] sm:$0xff]
    %v3527 = vld [vmem:[#allocation13 + $0xd8] sm:$0xff]
    %v3528 = vld [vmem:[#allocation13 + $0xe0] sm:$0xff]
    %v3529 = vld [vmem:[#allocation13 + $0xe8] sm:$0xff]
    %v3530 = vld [vmem:[#allocation13 + $0xf0] sm:$0xff]
    %v3531 = vld [vmem:[#allocation13 + $0xf8] sm:$0xff]
    %v3564 = vunpack.c.l.b16 %v3500
    %v3565 = vunpack.c.h.b16 %v3500
    %v3566 = vunpack.c.l.b16 %v3501
    %v3567 = vunpack.c.h.b16 %v3501
    %v3568 = vunpack.c.l.b16 %v3502
    %v3569 = vunpack.c.h.b16 %v3502
    %v3570 = vunpack.c.l.b16 %v3503
    %v3571 = vunpack.c.h.b16 %v3503
    %v3572 = vunpack.c.l.b16 %v3504
    %v3573 = vunpack.c.h.b16 %v3504
    %v3574 = vunpack.c.l.b16 %v3505
    %v3575 = vunpack.c.h.b16 %v3505
    %v3576 = vunpack.c.l.b16 %v3506
    %v3577 = vunpack.c.h.b16 %v3506
    %v3578 = vunpack.c.l.b16 %v3507
    %v3579 = vunpack.c.h.b16 %v3507
    %v3580 = vunpack.c.l.b16 %v3508
    %v3581 = vunpack.c.h.b16 %v3508
    %v3582 = vunpack.c.l.b16 %v3509
    %v3583 = vunpack.c.h.b16 %v3509
    %v3584 = vunpack.c.l.b16 %v3510
    %v3585 = vunpack.c.h.b16 %v3510
    %v3586 = vunpack.c.l.b16 %v3511
    %v3587 = vunpack.c.h.b16 %v3511
    %v3588 = vunpack.c.l.b16 %v3512
    %v3589 = vunpack.c.h.b16 %v3512
    %v3590 = vunpack.c.l.b16 %v3513
    %v3591 = vunpack.c.h.b16 %v3513
    %v3592 = vunpack.c.l.b16 %v3514
    %v3593 = vunpack.c.h.b16 %v3514
    %v3594 = vunpack.c.l.b16 %v3515
    %v3595 = vunpack.c.h.b16 %v3515
    %v3596 = vunpack.c.l.b16 %v3516
    %v3597 = vunpack.c.h.b16 %v3516
    %v3598 = vunpack.c.l.b16 %v3517
    %v3599 = vunpack.c.h.b16 %v3517
    %v3600 = vunpack.c.l.b16 %v3518
    %v3601 = vunpack.c.h.b16 %v3518
    %v3602 = vunpack.c.l.b16 %v3519
    %v3603 = vunpack.c.h.b16 %v3519
    %v3604 = vunpack.c.l.b16 %v3520
    %v3605 = vunpack.c.h.b16 %v3520
    %v3606 = vunpack.c.l.b16 %v3521
    %v3607 = vunpack.c.h.b16 %v3521
    %v3608 = vunpack.c.l.b16 %v3522
    %v3609 = vunpack.c.h.b16 %v3522
    %v3610 = vunpack.c.l.b16 %v3523
    %v3611 = vunpack.c.h.b16 %v3523
    %v3612 = vunpack.c.l.b16 %v3524
    %v3613 = vunpack.c.h.b16 %v3524
    %v3614 = vunpack.c.l.b16 %v3525
    %v3615 = vunpack.c.h.b16 %v3525
    %v3616 = vunpack.c.l.b16 %v3526
    %v3617 = vunpack.c.h.b16 %v3526
    %v3618 = vunpack.c.l.b16 %v3527
    %v3619 = vunpack.c.h.b16 %v3527
    %v3620 = vunpack.c.l.b16 %v3528
    %v3621 = vunpack.c.h.b16 %v3528
    %v3622 = vunpack.c.l.b16 %v3529
    %v3623 = vunpack.c.h.b16 %v3529
    %v3624 = vunpack.c.l.b16 %v3530
    %v3625 = vunpack.c.h.b16 %v3530
    %v3626 = vunpack.c.l.b16 %v3531
    %v3627 = vunpack.c.h.b16 %v3531
    %v3628 = vpack.c.b16 %v3568, %v3564
    %v3629 = vpack.c.b16 %v3569, %v3565
    %v3630 = vpack.c.b16 %v3570, %v3566
    %v3631 = vpack.c.b16 %v3571, %v3567
    %v3632 = vpack.c.b16 %v3576, %v3572
    %v3633 = vpack.c.b16 %v3577, %v3573
    %v3634 = vpack.c.b16 %v3578, %v3574
    %v3635 = vpack.c.b16 %v3579, %v3575
    %v3636 = vpack.c.b16 %v3584, %v3580
    %v3637 = vpack.c.b16 %v3585, %v3581
    %v3638 = vpack.c.b16 %v3586, %v3582
    %v3639 = vpack.c.b16 %v3587, %v3583
    %v3640 = vpack.c.b16 %v3592, %v3588
    %v3641 = vpack.c.b16 %v3593, %v3589
    %v3642 = vpack.c.b16 %v3594, %v3590
    %v3643 = vpack.c.b16 %v3595, %v3591
    %v3644 = vpack.c.b16 %v3600, %v3596
    %v3645 = vpack.c.b16 %v3601, %v3597
    %v3646 = vpack.c.b16 %v3602, %v3598
    %v3647 = vpack.c.b16 %v3603, %v3599
    %v3648 = vpack.c.b16 %v3608, %v3604
    %v3649 = vpack.c.b16 %v3609, %v3605
    %v3650 = vpack.c.b16 %v3610, %v3606
    %v3651 = vpack.c.b16 %v3611, %v3607
    %v3652 = vpack.c.b16 %v3616, %v3612
    %v3653 = vpack.c.b16 %v3617, %v3613
    %v3654 = vpack.c.b16 %v3618, %v3614
    %v3655 = vpack.c.b16 %v3619, %v3615
    %v3656 = vpack.c.b16 %v3624, %v3620
    %v3657 = vpack.c.b16 %v3625, %v3621
    %v3658 = vpack.c.b16 %v3626, %v3622
    %v3659 = vpack.c.b16 %v3627, %v3623
    %3692 = vmatpush.bf16.msra.mxu0 %v3656
    %3693 = vmatpush.bf16.msra.mxu0 %v3652
    %3694 = vmatpush.bf16.msra.mxu0 %v3648
    %3695 = vmatpush.bf16.msra.mxu0 %v3644
    %3696 = vmatpush.bf16.msra.mxu0 %v3640
    %3697 = vmatpush.bf16.msra.mxu0 %v3636
    %3698 = vmatpush.bf16.msra.mxu0 %v3632
    %3699 = vmatpush.bf16.msra.mxu0 %v3628
    %3700 = vmatmul.bf16.gmra.mxu0 %v3499
    %v3701 = vpop.f32.mrf.mxu0
    %v3702 = vadd.f32 0.0, %v3701
    %v3703 = vpop.f32.mrf.mxu0
    %3704 = vdwg.mxu0
    %3705 = vmatpush.bf16.msra.mxu0 %v3657
    %3706 = vmatpush.bf16.msra.mxu0 %v3653
    %3707 = vmatpush.bf16.msra.mxu0 %v3649
    %3708 = vmatpush.bf16.msra.mxu0 %v3645
    %3709 = vmatpush.bf16.msra.mxu0 %v3641
    %3710 = vmatpush.bf16.msra.mxu0 %v3637
    %3711 = vmatpush.bf16.msra.mxu0 %v3633
    %3712 = vmatpush.bf16.msra.mxu0 %v3629
    %3713 = vmatmul.bf16.gmra.mxu0 %v3499
    %v3714 = vpop.f32.mrf.mxu0
    %v3715 = vadd.f32 0.0, %v3714
    %v3716 = vpop.f32.mrf.mxu0
    %3717 = vdwg.mxu0
    %3718 = vmatpush.bf16.msra.mxu0 %v3658
    %3719 = vmatpush.bf16.msra.mxu0 %v3654
    %3720 = vmatpush.bf16.msra.mxu0 %v3650
    %3721 = vmatpush.bf16.msra.mxu0 %v3646
    %3722 = vmatpush.bf16.msra.mxu0 %v3642
    %3723 = vmatpush.bf16.msra.mxu0 %v3638
    %3724 = vmatpush.bf16.msra.mxu0 %v3634
    %3725 = vmatpush.bf16.msra.mxu0 %v3630
    %3726 = vmatmul.bf16.gmra.mxu0 %v3499
    %v3727 = vpop.f32.mrf.mxu0
    %v3728 = vadd.f32 0.0, %v3727
    %v3729 = vpop.f32.mrf.mxu0
    %3730 = vdwg.mxu0
    %3731 = vmatpush.bf16.msra.mxu0 %v3659
    %3732 = vmatpush.bf16.msra.mxu0 %v3655
    %3733 = vmatpush.bf16.msra.mxu0 %v3651
    %3734 = vmatpush.bf16.msra.mxu0 %v3647
    %3735 = vmatpush.bf16.msra.mxu0 %v3643
    %3736 = vmatpush.bf16.msra.mxu0 %v3639
    %3737 = vmatpush.bf16.msra.mxu0 %v3635
    %3738 = vmatpush.bf16.msra.mxu0 %v3631
    %3739 = vmatmul.bf16.gmra.mxu0 %v3499
    %v3740 = vpop.f32.mrf.mxu0
    %v3741 = vadd.f32 0.0, %v3740
    %v3742 = vpop.f32.mrf.mxu0
    %3743 = vdwg.mxu0
    %v3776 = vunpack.c.l.b16 %v3467
    %v3777 = vunpack.c.h.b16 %v3467
    %v3778 = vunpack.c.l.b16 %v3468
    %v3779 = vunpack.c.h.b16 %v3468
    %v3780 = vunpack.c.l.b16 %v3469
    %v3781 = vunpack.c.h.b16 %v3469
    %v3782 = vunpack.c.l.b16 %v3470
    %v3783 = vunpack.c.h.b16 %v3470
    %v3784 = vunpack.c.l.b16 %v3471
    %v3785 = vunpack.c.h.b16 %v3471
    %v3786 = vunpack.c.l.b16 %v3472
    %v3787 = vunpack.c.h.b16 %v3472
    %v3788 = vunpack.c.l.b16 %v3473
    %v3789 = vunpack.c.h.b16 %v3473
    %v3790 = vunpack.c.l.b16 %v3474
    %v3791 = vunpack.c.h.b16 %v3474
    %v3792 = vunpack.c.l.b16 %v3475
    %v3793 = vunpack.c.h.b16 %v3475
    %v3794 = vunpack.c.l.b16 %v3476
    %v3795 = vunpack.c.h.b16 %v3476
    %v3796 = vunpack.c.l.b16 %v3477
    %v3797 = vunpack.c.h.b16 %v3477
    %v3798 = vunpack.c.l.b16 %v3478
    %v3799 = vunpack.c.h.b16 %v3478
    %v3800 = vunpack.c.l.b16 %v3479
    %v3801 = vunpack.c.h.b16 %v3479
    %v3802 = vunpack.c.l.b16 %v3480
    %v3803 = vunpack.c.h.b16 %v3480
    %v3804 = vunpack.c.l.b16 %v3481
    %v3805 = vunpack.c.h.b16 %v3481
    %v3806 = vunpack.c.l.b16 %v3482
    %v3807 = vunpack.c.h.b16 %v3482
    %v3808 = vunpack.c.l.b16 %v3483
    %v3809 = vunpack.c.h.b16 %v3483
    %v3810 = vunpack.c.l.b16 %v3484
    %v3811 = vunpack.c.h.b16 %v3484
    %v3812 = vunpack.c.l.b16 %v3485
    %v3813 = vunpack.c.h.b16 %v3485
    %v3814 = vunpack.c.l.b16 %v3486
    %v3815 = vunpack.c.h.b16 %v3486
    %v3816 = vunpack.c.l.b16 %v3487
    %v3817 = vunpack.c.h.b16 %v3487
    %v3818 = vunpack.c.l.b16 %v3488
    %v3819 = vunpack.c.h.b16 %v3488
    %v3820 = vunpack.c.l.b16 %v3489
    %v3821 = vunpack.c.h.b16 %v3489
    %v3822 = vunpack.c.l.b16 %v3490
    %v3823 = vunpack.c.h.b16 %v3490
    %v3824 = vunpack.c.l.b16 %v3491
    %v3825 = vunpack.c.h.b16 %v3491
    %v3826 = vunpack.c.l.b16 %v3492
    %v3827 = vunpack.c.h.b16 %v3492
    %v3828 = vunpack.c.l.b16 %v3493
    %v3829 = vunpack.c.h.b16 %v3493
    %v3830 = vunpack.c.l.b16 %v3494
    %v3831 = vunpack.c.h.b16 %v3494
    %v3832 = vunpack.c.l.b16 %v3495
    %v3833 = vunpack.c.h.b16 %v3495
    %v3834 = vunpack.c.l.b16 %v3496
    %v3835 = vunpack.c.h.b16 %v3496
    %v3836 = vunpack.c.l.b16 %v3497
    %v3837 = vunpack.c.h.b16 %v3497
    %v3838 = vunpack.c.l.b16 %v3498
    %v3839 = vunpack.c.h.b16 %v3498
    %v3840 = vpack.c.b16 %v3780, %v3776
    %v3841 = vpack.c.b16 %v3781, %v3777
    %v3842 = vpack.c.b16 %v3782, %v3778
    %v3843 = vpack.c.b16 %v3783, %v3779
    %v3844 = vpack.c.b16 %v3788, %v3784
    %v3845 = vpack.c.b16 %v3789, %v3785
    %v3846 = vpack.c.b16 %v3790, %v3786
    %v3847 = vpack.c.b16 %v3791, %v3787
    %v3848 = vpack.c.b16 %v3796, %v3792
    %v3849 = vpack.c.b16 %v3797, %v3793
    %v3850 = vpack.c.b16 %v3798, %v3794
    %v3851 = vpack.c.b16 %v3799, %v3795
    %v3852 = vpack.c.b16 %v3804, %v3800
    %v3853 = vpack.c.b16 %v3805, %v3801
    %v3854 = vpack.c.b16 %v3806, %v3802
    %v3855 = vpack.c.b16 %v3807, %v3803
    %v3856 = vpack.c.b16 %v3812, %v3808
    %v3857 = vpack.c.b16 %v3813, %v3809
    %v3858 = vpack.c.b16 %v3814, %v3810
    %v3859 = vpack.c.b16 %v3815, %v3811
    %v3860 = vpack.c.b16 %v3820, %v3816
    %v3861 = vpack.c.b16 %v3821, %v3817
    %v3862 = vpack.c.b16 %v3822, %v3818
    %v3863 = vpack.c.b16 %v3823, %v3819
    %v3864 = vpack.c.b16 %v3828, %v3824
    %v3865 = vpack.c.b16 %v3829, %v3825
    %v3866 = vpack.c.b16 %v3830, %v3826
    %v3867 = vpack.c.b16 %v3831, %v3827
    %v3868 = vpack.c.b16 %v3836, %v3832
    %v3869 = vpack.c.b16 %v3837, %v3833
    %v3870 = vpack.c.b16 %v3838, %v3834
    %v3871 = vpack.c.b16 %v3839, %v3835
    %3904 = vmatpush.bf16.msra.mxu0 %v3868
    %3905 = vmatpush.bf16.msra.mxu0 %v3864
    %3906 = vmatpush.bf16.msra.mxu0 %v3860
    %3907 = vmatpush.bf16.msra.mxu0 %v3856
    %3908 = vmatpush.bf16.msra.mxu0 %v3852
    %3909 = vmatpush.bf16.msra.mxu0 %v3848
    %3910 = vmatpush.bf16.msra.mxu0 %v3844
    %3911 = vmatpush.bf16.msra.mxu0 %v3840
    %3912 = vmatmul.bf16.gmra.mxu0 %v3466
    %v3913 = vpop.f32.mrf.mxu0
    %v3914 = vadd.f32 %v3702, %v3913
    %v3915 = vpop.f32.mrf.mxu0
    %3916 = vdwg.mxu0
    %3917 = vmatpush.bf16.msra.mxu0 %v3869
    %3918 = vmatpush.bf16.msra.mxu0 %v3865
    %3919 = vmatpush.bf16.msra.mxu0 %v3861
    %3920 = vmatpush.bf16.msra.mxu0 %v3857
    %3921 = vmatpush.bf16.msra.mxu0 %v3853
    %3922 = vmatpush.bf16.msra.mxu0 %v3849
    %3923 = vmatpush.bf16.msra.mxu0 %v3845
    %3924 = vmatpush.bf16.msra.mxu0 %v3841
    %3925 = vmatmul.bf16.gmra.mxu0 %v3466
    %v3926 = vpop.f32.mrf.mxu0
    %v3927 = vadd.f32 %v3715, %v3926
    %v3928 = vpop.f32.mrf.mxu0
    %3929 = vdwg.mxu0
    %3930 = vmatpush.bf16.msra.mxu0 %v3870
    %3931 = vmatpush.bf16.msra.mxu0 %v3866
    %3932 = vmatpush.bf16.msra.mxu0 %v3862
    %3933 = vmatpush.bf16.msra.mxu0 %v3858
    %3934 = vmatpush.bf16.msra.mxu0 %v3854
    %3935 = vmatpush.bf16.msra.mxu0 %v3850
    %3936 = vmatpush.bf16.msra.mxu0 %v3846
    %3937 = vmatpush.bf16.msra.mxu0 %v3842
    %3938 = vmatmul.bf16.gmra.mxu0 %v3466
    %v3939 = vpop.f32.mrf.mxu0
    %v3940 = vadd.f32 %v3728, %v3939
    %v3941 = vpop.f32.mrf.mxu0
    %3942 = vdwg.mxu0
    %3943 = vmatpush.bf16.msra.mxu0 %v3871
    %3944 = vmatpush.bf16.msra.mxu0 %v3867
    %3945 = vmatpush.bf16.msra.mxu0 %v3863
    %3946 = vmatpush.bf16.msra.mxu0 %v3859
    %3947 = vmatpush.bf16.msra.mxu0 %v3855
    %3948 = vmatpush.bf16.msra.mxu0 %v3851
    %3949 = vmatpush.bf16.msra.mxu0 %v3847
    %3950 = vmatpush.bf16.msra.mxu0 %v3843
    %3951 = vmatmul.bf16.gmra.mxu0 %v3466
    %v3952 = vpop.f32.mrf.mxu0
    %v3953 = vadd.f32 %v3741, %v3952
    %v3954 = vpop.f32.mrf.mxu0
    %3955 = vdwg.mxu0
    %v3956 = vadd.f32 %v3914, %v525
    %v3957 = vadd.f32 %v3927, %v526
    %v3958 = vadd.f32 %v3940, %v527
    %v3959 = vadd.f32 %v3953, %v528
    %v3960 = vxor.u32 %v3956, 2147483648
    %v3961 = vxor.u32 %v3957, 2147483648
    %v3962 = vxor.u32 %v3958, 2147483648
    %v3963 = vmul.f32 %v3960, 1.442695
    %v3964 = vpow.pop %v3963
    %v3965 = vmul.f32 %v3961, 1.442695
    %v3966 = vpow.pop %v3965
    %v3967 = vmul.f32 %v3962, 1.442695
    %v3968 = vpow.pop %v3967
    %v3969 = vadd.f32 %v3964, 1.0
    %v3970 = vadd.f32 %v3966, 1.0
    %v3971 = vadd.f32 %v3968, 1.0
    %v3972 = vrcp.pop %v3969
    %v3973 = vmul.f32 %v3969, %v3972
    %v3974 = vsub.f32 1.0, %v3973
    %v3975 = vmul.f32 %v3972, %v3974
    %v3976 = vadd.f32 %v3972, %v3975
    %vm3977 = vweird.f32 %v3969
    %vm3978 = vweird.f32 %v3972
    %vm3979 = vmor %vm3977, %vm3978
    %v3980 = vsel %vm3979, %v3972, %v3976
    %v3981 = vand.u32 2147483647, %v3969
    %vm3982 = vcmp.eq.f32.partialorder %v3981, 8.507059e+37
    %v3983 = vand.u32 %v3969, 2147483648
    %v3984 = vor.u32 1.1754944e-38, %v3983
    %v3985 = vsel %vm3982, %v3984, %v3980
    %v3986 = vmul.f32 1.0, %v3985
    %v3987 = vrcp.pop %v3970
    %v3988 = vmul.f32 %v3970, %v3987
    %v3989 = vsub.f32 1.0, %v3988
    %v3990 = vmul.f32 %v3987, %v3989
    %v3991 = vadd.f32 %v3987, %v3990
    %vm3992 = vweird.f32 %v3970
    %vm3993 = vweird.f32 %v3987
    %vm3994 = vmor %vm3992, %vm3993
    %v3995 = vsel %vm3994, %v3987, %v3991
    %v3996 = vand.u32 2147483647, %v3970
    %vm3997 = vcmp.eq.f32.partialorder %v3996, 8.507059e+37
    %v3998 = vand.u32 %v3970, 2147483648
    %v3999 = vor.u32 1.1754944e-38, %v3998
    %v4000 = vsel %vm3997, %v3999, %v3995
    %v4001 = vmul.f32 1.0, %v4000
    %v4002 = vrcp.pop %v3971
    %v4003 = vmul.f32 %v3971, %v4002
    %v4004 = vsub.f32 1.0, %v4003
    %v4005 = vmul.f32 %v4002, %v4004
    %v4006 = vadd.f32 %v4002, %v4005
    %vm4007 = vweird.f32 %v3971
    %vm4008 = vweird.f32 %v4002
    %vm4009 = vmor %vm4007, %vm4008
    %v4010 = vsel %vm4009, %v4002, %v4006
    %v4011 = vand.u32 2147483647, %v3971
    %vm4012 = vcmp.eq.f32.partialorder %v4011, 8.507059e+37
    %v4013 = vand.u32 %v3971, 2147483648
    %v4014 = vor.u32 1.1754944e-38, %v4013
    %v4015 = vsel %vm4012, %v4014, %v4010
    %v4016 = vmul.f32 1.0, %v4015
    %v4017 = vtanh.pop %v3959
    %v4018 = vmul.f32 %v4001, %v3147
    %v4019 = vmul.f32 %v3986, %v4017
    %v4020 = vadd.f32 %v4018, %v4019
    %v4021 = vtanh.pop %v4020
    %v4022 = vmul.f32 %v4016, %v4021
    %4023 = vst [vmem:[#allocation3 + $0x18] sm:$0xff] %v4022
    %v4024 = vld [vmem:[#allocation2 + $0x80] sm:$0xff]
    %v4025 = vld [vmem:[#allocation2 + $0x88] sm:$0xff]
    %v4026 = vld [vmem:[#allocation2 + $0x90] sm:$0xff]
    %v4027 = vld [vmem:[#allocation2 + $0x98] sm:$0xff]
    %v4028 = vld [vmem:[#allocation9] sm:$0xff]
    %v4029 = vld [vmem:[#allocation9 + $0x8] sm:$0xff]
    %v4030 = vld [vmem:[#allocation9 + $0x10] sm:$0xff]
    %v4031 = vld [vmem:[#allocation9 + $0x18] sm:$0xff]
    %v4032 = vld [vmem:[#allocation9 + $0x20] sm:$0xff]
    %v4033 = vld [vmem:[#allocation9 + $0x28] sm:$0xff]
    %v4034 = vld [vmem:[#allocation9 + $0x30] sm:$0xff]
    %v4035 = vld [vmem:[#allocation9 + $0x38] sm:$0xff]
    %v4036 = vld [vmem:[#allocation9 + $0x40] sm:$0xff]
    %v4037 = vld [vmem:[#allocation9 + $0x48] sm:$0xff]
    %v4038 = vld [vmem:[#allocation9 + $0x50] sm:$0xff]
    %v4039 = vld [vmem:[#allocation9 + $0x58] sm:$0xff]
    %v4040 = vld [vmem:[#allocation9 + $0x60] sm:$0xff]
    %v4041 = vld [vmem:[#allocation9 + $0x68] sm:$0xff]
    %v4042 = vld [vmem:[#allocation9 + $0x70] sm:$0xff]
    %v4043 = vld [vmem:[#allocation9 + $0x78] sm:$0xff]
    %v4044 = vld [vmem:[#allocation9 + $0x80] sm:$0xff]
    %v4045 = vld [vmem:[#allocation9 + $0x88] sm:$0xff]
    %v4046 = vld [vmem:[#allocation9 + $0x90] sm:$0xff]
    %v4047 = vld [vmem:[#allocation9 + $0x98] sm:$0xff]
    %v4048 = vld [vmem:[#allocation9 + $0xa0] sm:$0xff]
    %v4049 = vld [vmem:[#allocation9 + $0xa8] sm:$0xff]
    %v4050 = vld [vmem:[#allocation9 + $0xb0] sm:$0xff]
    %v4051 = vld [vmem:[#allocation9 + $0xb8] sm:$0xff]
    %v4052 = vld [vmem:[#allocation9 + $0xc0] sm:$0xff]
    %v4053 = vld [vmem:[#allocation9 + $0xc8] sm:$0xff]
    %v4054 = vld [vmem:[#allocation9 + $0xd0] sm:$0xff]
    %v4055 = vld [vmem:[#allocation9 + $0xd8] sm:$0xff]
    %v4056 = vld [vmem:[#allocation9 + $0xe0] sm:$0xff]
    %v4057 = vld [vmem:[#allocation9 + $0xe8] sm:$0xff]
    %v4058 = vld [vmem:[#allocation9 + $0xf0] sm:$0xff]
    %v4059 = vld [vmem:[#allocation9 + $0xf8] sm:$0xff]
    %v4092 = vunpack.c.l.b16 %v4028
    %v4093 = vunpack.c.h.b16 %v4028
    %v4094 = vunpack.c.l.b16 %v4029
    %v4095 = vunpack.c.h.b16 %v4029
    %v4096 = vunpack.c.l.b16 %v4030
    %v4097 = vunpack.c.h.b16 %v4030
    %v4098 = vunpack.c.l.b16 %v4031
    %v4099 = vunpack.c.h.b16 %v4031
    %v4100 = vunpack.c.l.b16 %v4032
    %v4101 = vunpack.c.h.b16 %v4032
    %v4102 = vunpack.c.l.b16 %v4033
    %v4103 = vunpack.c.h.b16 %v4033
    %v4104 = vunpack.c.l.b16 %v4034
    %v4105 = vunpack.c.h.b16 %v4034
    %v4106 = vunpack.c.l.b16 %v4035
    %v4107 = vunpack.c.h.b16 %v4035
    %v4108 = vunpack.c.l.b16 %v4036
    %v4109 = vunpack.c.h.b16 %v4036
    %v4110 = vunpack.c.l.b16 %v4037
    %v4111 = vunpack.c.h.b16 %v4037
    %v4112 = vunpack.c.l.b16 %v4038
    %v4113 = vunpack.c.h.b16 %v4038
    %v4114 = vunpack.c.l.b16 %v4039
    %v4115 = vunpack.c.h.b16 %v4039
    %v4116 = vunpack.c.l.b16 %v4040
    %v4117 = vunpack.c.h.b16 %v4040
    %v4118 = vunpack.c.l.b16 %v4041
    %v4119 = vunpack.c.h.b16 %v4041
    %v4120 = vunpack.c.l.b16 %v4042
    %v4121 = vunpack.c.h.b16 %v4042
    %v4122 = vunpack.c.l.b16 %v4043
    %v4123 = vunpack.c.h.b16 %v4043
    %v4124 = vunpack.c.l.b16 %v4044
    %v4125 = vunpack.c.h.b16 %v4044
    %v4126 = vunpack.c.l.b16 %v4045
    %v4127 = vunpack.c.h.b16 %v4045
    %v4128 = vunpack.c.l.b16 %v4046
    %v4129 = vunpack.c.h.b16 %v4046
    %v4130 = vunpack.c.l.b16 %v4047
    %v4131 = vunpack.c.h.b16 %v4047
    %v4132 = vunpack.c.l.b16 %v4048
    %v4133 = vunpack.c.h.b16 %v4048
    %v4134 = vunpack.c.l.b16 %v4049
    %v4135 = vunpack.c.h.b16 %v4049
    %v4136 = vunpack.c.l.b16 %v4050
    %v4137 = vunpack.c.h.b16 %v4050
    %v4138 = vunpack.c.l.b16 %v4051
    %v4139 = vunpack.c.h.b16 %v4051
    %v4140 = vunpack.c.l.b16 %v4052
    %v4141 = vunpack.c.h.b16 %v4052
    %v4142 = vunpack.c.l.b16 %v4053
    %v4143 = vunpack.c.h.b16 %v4053
    %v4144 = vunpack.c.l.b16 %v4054
    %v4145 = vunpack.c.h.b16 %v4054
    %v4146 = vunpack.c.l.b16 %v4055
    %v4147 = vunpack.c.h.b16 %v4055
    %v4148 = vunpack.c.l.b16 %v4056
    %v4149 = vunpack.c.h.b16 %v4056
    %v4150 = vunpack.c.l.b16 %v4057
    %v4151 = vunpack.c.h.b16 %v4057
    %v4152 = vunpack.c.l.b16 %v4058
    %v4153 = vunpack.c.h.b16 %v4058
    %v4154 = vunpack.c.l.b16 %v4059
    %v4155 = vunpack.c.h.b16 %v4059
    %v4156 = vpack.c.b16 %v4096, %v4092
    %v4157 = vpack.c.b16 %v4097, %v4093
    %v4158 = vpack.c.b16 %v4098, %v4094
    %v4159 = vpack.c.b16 %v4099, %v4095
    %v4160 = vpack.c.b16 %v4104, %v4100
    %v4161 = vpack.c.b16 %v4105, %v4101
    %v4162 = vpack.c.b16 %v4106, %v4102
    %v4163 = vpack.c.b16 %v4107, %v4103
    %v4164 = vpack.c.b16 %v4112, %v4108
    %v4165 = vpack.c.b16 %v4113, %v4109
    %v4166 = vpack.c.b16 %v4114, %v4110
    %v4167 = vpack.c.b16 %v4115, %v4111
    %v4168 = vpack.c.b16 %v4120, %v4116
    %v4169 = vpack.c.b16 %v4121, %v4117
    %v4170 = vpack.c.b16 %v4122, %v4118
    %v4171 = vpack.c.b16 %v4123, %v4119
    %v4172 = vpack.c.b16 %v4128, %v4124
    %v4173 = vpack.c.b16 %v4129, %v4125
    %v4174 = vpack.c.b16 %v4130, %v4126
    %v4175 = vpack.c.b16 %v4131, %v4127
    %v4176 = vpack.c.b16 %v4136, %v4132
    %v4177 = vpack.c.b16 %v4137, %v4133
    %v4178 = vpack.c.b16 %v4138, %v4134
    %v4179 = vpack.c.b16 %v4139, %v4135
    %v4180 = vpack.c.b16 %v4144, %v4140
    %v4181 = vpack.c.b16 %v4145, %v4141
    %v4182 = vpack.c.b16 %v4146, %v4142
    %v4183 = vpack.c.b16 %v4147, %v4143
    %v4184 = vpack.c.b16 %v4152, %v4148
    %v4185 = vpack.c.b16 %v4153, %v4149
    %v4186 = vpack.c.b16 %v4154, %v4150
    %v4187 = vpack.c.b16 %v4155, %v4151
    %4220 = vmatpush.bf16.msra.mxu0 %v4184
    %4221 = vmatpush.bf16.msra.mxu0 %v4180
    %4222 = vmatpush.bf16.msra.mxu0 %v4176
    %4223 = vmatpush.bf16.msra.mxu0 %v4172
    %4224 = vmatpush.bf16.msra.mxu0 %v4168
    %4225 = vmatpush.bf16.msra.mxu0 %v4164
    %4226 = vmatpush.bf16.msra.mxu0 %v4160
    %4227 = vmatpush.bf16.msra.mxu0 %v4156
    %4228 = vmatmul.bf16.gmra.mxu0 %v3466
    %v4229 = vpop.f32.mrf.mxu0
    %v4230 = vadd.f32 0.0, %v4229
    %v4231 = vpop.f32.mrf.mxu0
    %4232 = vdwg.mxu0
    %4233 = vmatpush.bf16.msra.mxu0 %v4185
    %4234 = vmatpush.bf16.msra.mxu0 %v4181
    %4235 = vmatpush.bf16.msra.mxu0 %v4177
    %4236 = vmatpush.bf16.msra.mxu0 %v4173
    %4237 = vmatpush.bf16.msra.mxu0 %v4169
    %4238 = vmatpush.bf16.msra.mxu0 %v4165
    %4239 = vmatpush.bf16.msra.mxu0 %v4161
    %4240 = vmatpush.bf16.msra.mxu0 %v4157
    %4241 = vmatmul.bf16.gmra.mxu0 %v3466
    %v4242 = vpop.f32.mrf.mxu0
    %v4243 = vadd.f32 0.0, %v4242
    %v4244 = vpop.f32.mrf.mxu0
    %4245 = vdwg.mxu0
    %4246 = vmatpush.bf16.msra.mxu0 %v4186
    %4247 = vmatpush.bf16.msra.mxu0 %v4182
    %4248 = vmatpush.bf16.msra.mxu0 %v4178
    %4249 = vmatpush.bf16.msra.mxu0 %v4174
    %4250 = vmatpush.bf16.msra.mxu0 %v4170
    %4251 = vmatpush.bf16.msra.mxu0 %v4166
    %4252 = vmatpush.bf16.msra.mxu0 %v4162
    %4253 = vmatpush.bf16.msra.mxu0 %v4158
    %4254 = vmatmul.bf16.gmra.mxu0 %v3466
    %v4255 = vpop.f32.mrf.mxu0
    %v4256 = vadd.f32 0.0, %v4255
    %v4257 = vpop.f32.mrf.mxu0
    %4258 = vdwg.mxu0
    %4259 = vmatpush.bf16.msra.mxu0 %v4187
    %4260 = vmatpush.bf16.msra.mxu0 %v4183
    %4261 = vmatpush.bf16.msra.mxu0 %v4179
    %4262 = vmatpush.bf16.msra.mxu0 %v4175
    %4263 = vmatpush.bf16.msra.mxu0 %v4171
    %4264 = vmatpush.bf16.msra.mxu0 %v4167
    %4265 = vmatpush.bf16.msra.mxu0 %v4163
    %4266 = vmatpush.bf16.msra.mxu0 %v4159
    %4267 = vmatmul.bf16.gmra.mxu0 %v3466
    %v4268 = vpop.f32.mrf.mxu0
    %v4269 = vadd.f32 0.0, %v4268
    %v4270 = vpop.f32.mrf.mxu0
    %4271 = vdwg.mxu0
    %v4272 = vadd.f32 %v4024, %v4230
    %v4273 = vadd.f32 %v4025, %v4243
    %v4274 = vadd.f32 %v4026, %v4256
    %v4275 = vadd.f32 %v4027, %v4269
    %v4276 = vxor.u32 %v4272, 2147483648
    %v4277 = vxor.u32 %v4273, 2147483648
    %v4278 = vxor.u32 %v4274, 2147483648
    %v4279 = vmul.f32 %v4276, 1.442695
    %v4280 = vpow.pop %v4279
    %v4281 = vmul.f32 %v4277, 1.442695
    %v4282 = vpow.pop %v4281
    %v4283 = vmul.f32 %v4278, 1.442695
    %v4284 = vpow.pop %v4283
    %v4285 = vadd.f32 %v4280, 1.0
    %v4286 = vadd.f32 %v4282, 1.0
    %v4287 = vadd.f32 %v4284, 1.0
    %v4288 = vrcp.pop %v4285
    %v4289 = vmul.f32 %v4285, %v4288
    %v4290 = vsub.f32 1.0, %v4289
    %v4291 = vmul.f32 %v4288, %v4290
    %v4292 = vadd.f32 %v4288, %v4291
    %vm4293 = vweird.f32 %v4285
    %vm4294 = vweird.f32 %v4288
    %vm4295 = vmor %vm4293, %vm4294
    %v4296 = vsel %vm4295, %v4288, %v4292
    %v4297 = vand.u32 2147483647, %v4285
    %vm4298 = vcmp.eq.f32.partialorder %v4297, 8.507059e+37
    %v4299 = vand.u32 %v4285, 2147483648
    %v4300 = vor.u32 1.1754944e-38, %v4299
    %v4301 = vsel %vm4298, %v4300, %v4296
    %v4302 = vmul.f32 1.0, %v4301
    %v4303 = vrcp.pop %v4286
    %v4304 = vmul.f32 %v4286, %v4303
    %v4305 = vsub.f32 1.0, %v4304
    %v4306 = vmul.f32 %v4303, %v4305
    %v4307 = vadd.f32 %v4303, %v4306
    %vm4308 = vweird.f32 %v4286
    %vm4309 = vweird.f32 %v4303
    %vm4310 = vmor %vm4308, %vm4309
    %v4311 = vsel %vm4310, %v4303, %v4307
    %v4312 = vand.u32 2147483647, %v4286
    %vm4313 = vcmp.eq.f32.partialorder %v4312, 8.507059e+37
    %v4314 = vand.u32 %v4286, 2147483648
    %v4315 = vor.u32 1.1754944e-38, %v4314
    %v4316 = vsel %vm4313, %v4315, %v4311
    %v4317 = vmul.f32 1.0, %v4316
    %v4318 = vrcp.pop %v4287
    %v4319 = vmul.f32 %v4287, %v4318
    %v4320 = vsub.f32 1.0, %v4319
    %v4321 = vmul.f32 %v4318, %v4320
    %v4322 = vadd.f32 %v4318, %v4321
    %vm4323 = vweird.f32 %v4287
    %vm4324 = vweird.f32 %v4318
    %vm4325 = vmor %vm4323, %vm4324
    %v4326 = vsel %vm4325, %v4318, %v4322
    %v4327 = vand.u32 2147483647, %v4287
    %vm4328 = vcmp.eq.f32.partialorder %v4327, 8.507059e+37
    %v4329 = vand.u32 %v4287, 2147483648
    %v4330 = vor.u32 1.1754944e-38, %v4329
    %v4331 = vsel %vm4328, %v4330, %v4326
    %v4332 = vmul.f32 1.0, %v4331
    %v4333 = vtanh.pop %v4275
    %v4334 = vmul.f32 %v4317, %v3463
    %v4335 = vmul.f32 %v4302, %v4333
    %v4336 = vadd.f32 %v4334, %v4335
    %v4337 = vtanh.pop %v4336
    %v4338 = vmul.f32 %v4332, %v4337
    %v4339 = vpack.c.bf16 %v4338, %v4338
    %v4340 = vld [vmem:[#allocation12] sm:$0xff]
    %v4341 = vld [vmem:[#allocation12 + $0x8] sm:$0xff]
    %v4342 = vld [vmem:[#allocation12 + $0x10] sm:$0xff]
    %v4343 = vld [vmem:[#allocation12 + $0x18] sm:$0xff]
    %v4344 = vld [vmem:[#allocation12 + $0x20] sm:$0xff]
    %v4345 = vld [vmem:[#allocation12 + $0x28] sm:$0xff]
    %v4346 = vld [vmem:[#allocation12 + $0x30] sm:$0xff]
    %v4347 = vld [vmem:[#allocation12 + $0x38] sm:$0xff]
    %v4348 = vld [vmem:[#allocation12 + $0x40] sm:$0xff]
    %v4349 = vld [vmem:[#allocation12 + $0x48] sm:$0xff]
    %v4350 = vld [vmem:[#allocation12 + $0x50] sm:$0xff]
    %v4351 = vld [vmem:[#allocation12 + $0x58] sm:$0xff]
    %v4352 = vld [vmem:[#allocation12 + $0x60] sm:$0xff]
    %v4353 = vld [vmem:[#allocation12 + $0x68] sm:$0xff]
    %v4354 = vld [vmem:[#allocation12 + $0x70] sm:$0xff]
    %v4355 = vld [vmem:[#allocation12 + $0x78] sm:$0xff]
    %v4356 = vld [vmem:[#allocation12 + $0x80] sm:$0xff]
    %v4357 = vld [vmem:[#allocation12 + $0x88] sm:$0xff]
    %v4358 = vld [vmem:[#allocation12 + $0x90] sm:$0xff]
    %v4359 = vld [vmem:[#allocation12 + $0x98] sm:$0xff]
    %v4360 = vld [vmem:[#allocation12 + $0xa0] sm:$0xff]
    %v4361 = vld [vmem:[#allocation12 + $0xa8] sm:$0xff]
    %v4362 = vld [vmem:[#allocation12 + $0xb0] sm:$0xff]
    %v4363 = vld [vmem:[#allocation12 + $0xb8] sm:$0xff]
    %v4364 = vld [vmem:[#allocation12 + $0xc0] sm:$0xff]
    %v4365 = vld [vmem:[#allocation12 + $0xc8] sm:$0xff]
    %v4366 = vld [vmem:[#allocation12 + $0xd0] sm:$0xff]
    %v4367 = vld [vmem:[#allocation12 + $0xd8] sm:$0xff]
    %v4368 = vld [vmem:[#allocation12 + $0xe0] sm:$0xff]
    %v4369 = vld [vmem:[#allocation12 + $0xe8] sm:$0xff]
    %v4370 = vld [vmem:[#allocation12 + $0xf0] sm:$0xff]
    %v4371 = vld [vmem:[#allocation12 + $0xf8] sm:$0xff]
    %v4372 = vpack.c.bf16 %v4022, %v4022
    %v4373 = vld [vmem:[#allocation13] sm:$0xff]
    %v4374 = vld [vmem:[#allocation13 + $0x8] sm:$0xff]
    %v4375 = vld [vmem:[#allocation13 + $0x10] sm:$0xff]
    %v4376 = vld [vmem:[#allocation13 + $0x18] sm:$0xff]
    %v4377 = vld [vmem:[#allocation13 + $0x20] sm:$0xff]
    %v4378 = vld [vmem:[#allocation13 + $0x28] sm:$0xff]
    %v4379 = vld [vmem:[#allocation13 + $0x30] sm:$0xff]
    %v4380 = vld [vmem:[#allocation13 + $0x38] sm:$0xff]
    %v4381 = vld [vmem:[#allocation13 + $0x40] sm:$0xff]
    %v4382 = vld [vmem:[#allocation13 + $0x48] sm:$0xff]
    %v4383 = vld [vmem:[#allocation13 + $0x50] sm:$0xff]
    %v4384 = vld [vmem:[#allocation13 + $0x58] sm:$0xff]
    %v4385 = vld [vmem:[#allocation13 + $0x60] sm:$0xff]
    %v4386 = vld [vmem:[#allocation13 + $0x68] sm:$0xff]
    %v4387 = vld [vmem:[#allocation13 + $0x70] sm:$0xff]
    %v4388 = vld [vmem:[#allocation13 + $0x78] sm:$0xff]
    %v4389 = vld [vmem:[#allocation13 + $0x80] sm:$0xff]
    %v4390 = vld [vmem:[#allocation13 + $0x88] sm:$0xff]
    %v4391 = vld [vmem:[#allocation13 + $0x90] sm:$0xff]
    %v4392 = vld [vmem:[#allocation13 + $0x98] sm:$0xff]
    %v4393 = vld [vmem:[#allocation13 + $0xa0] sm:$0xff]
    %v4394 = vld [vmem:[#allocation13 + $0xa8] sm:$0xff]
    %v4395 = vld [vmem:[#allocation13 + $0xb0] sm:$0xff]
    %v4396 = vld [vmem:[#allocation13 + $0xb8] sm:$0xff]
    %v4397 = vld [vmem:[#allocation13 + $0xc0] sm:$0xff]
    %v4398 = vld [vmem:[#allocation13 + $0xc8] sm:$0xff]
    %v4399 = vld [vmem:[#allocation13 + $0xd0] sm:$0xff]
    %v4400 = vld [vmem:[#allocation13 + $0xd8] sm:$0xff]
    %v4401 = vld [vmem:[#allocation13 + $0xe0] sm:$0xff]
    %v4402 = vld [vmem:[#allocation13 + $0xe8] sm:$0xff]
    %v4403 = vld [vmem:[#allocation13 + $0xf0] sm:$0xff]
    %v4404 = vld [vmem:[#allocation13 + $0xf8] sm:$0xff]
    %v4437 = vunpack.c.l.b16 %v4373
    %v4438 = vunpack.c.h.b16 %v4373
    %v4439 = vunpack.c.l.b16 %v4374
    %v4440 = vunpack.c.h.b16 %v4374
    %v4441 = vunpack.c.l.b16 %v4375
    %v4442 = vunpack.c.h.b16 %v4375
    %v4443 = vunpack.c.l.b16 %v4376
    %v4444 = vunpack.c.h.b16 %v4376
    %v4445 = vunpack.c.l.b16 %v4377
    %v4446 = vunpack.c.h.b16 %v4377
    %v4447 = vunpack.c.l.b16 %v4378
    %v4448 = vunpack.c.h.b16 %v4378
    %v4449 = vunpack.c.l.b16 %v4379
    %v4450 = vunpack.c.h.b16 %v4379
    %v4451 = vunpack.c.l.b16 %v4380
    %v4452 = vunpack.c.h.b16 %v4380
    %v4453 = vunpack.c.l.b16 %v4381
    %v4454 = vunpack.c.h.b16 %v4381
    %v4455 = vunpack.c.l.b16 %v4382
    %v4456 = vunpack.c.h.b16 %v4382
    %v4457 = vunpack.c.l.b16 %v4383
    %v4458 = vunpack.c.h.b16 %v4383
    %v4459 = vunpack.c.l.b16 %v4384
    %v4460 = vunpack.c.h.b16 %v4384
    %v4461 = vunpack.c.l.b16 %v4385
    %v4462 = vunpack.c.h.b16 %v4385
    %v4463 = vunpack.c.l.b16 %v4386
    %v4464 = vunpack.c.h.b16 %v4386
    %v4465 = vunpack.c.l.b16 %v4387
    %v4466 = vunpack.c.h.b16 %v4387
    %v4467 = vunpack.c.l.b16 %v4388
    %v4468 = vunpack.c.h.b16 %v4388
    %v4469 = vunpack.c.l.b16 %v4389
    %v4470 = vunpack.c.h.b16 %v4389
    %v4471 = vunpack.c.l.b16 %v4390
    %v4472 = vunpack.c.h.b16 %v4390
    %v4473 = vunpack.c.l.b16 %v4391
    %v4474 = vunpack.c.h.b16 %v4391
    %v4475 = vunpack.c.l.b16 %v4392
    %v4476 = vunpack.c.h.b16 %v4392
    %v4477 = vunpack.c.l.b16 %v4393
    %v4478 = vunpack.c.h.b16 %v4393
    %v4479 = vunpack.c.l.b16 %v4394
    %v4480 = vunpack.c.h.b16 %v4394
    %v4481 = vunpack.c.l.b16 %v4395
    %v4482 = vunpack.c.h.b16 %v4395
    %v4483 = vunpack.c.l.b16 %v4396
    %v4484 = vunpack.c.h.b16 %v4396
    %v4485 = vunpack.c.l.b16 %v4397
    %v4486 = vunpack.c.h.b16 %v4397
    %v4487 = vunpack.c.l.b16 %v4398
    %v4488 = vunpack.c.h.b16 %v4398
    %v4489 = vunpack.c.l.b16 %v4399
    %v4490 = vunpack.c.h.b16 %v4399
    %v4491 = vunpack.c.l.b16 %v4400
    %v4492 = vunpack.c.h.b16 %v4400
    %v4493 = vunpack.c.l.b16 %v4401
    %v4494 = vunpack.c.h.b16 %v4401
    %v4495 = vunpack.c.l.b16 %v4402
    %v4496 = vunpack.c.h.b16 %v4402
    %v4497 = vunpack.c.l.b16 %v4403
    %v4498 = vunpack.c.h.b16 %v4403
    %v4499 = vunpack.c.l.b16 %v4404
    %v4500 = vunpack.c.h.b16 %v4404
    %v4501 = vpack.c.b16 %v4441, %v4437
    %v4502 = vpack.c.b16 %v4442, %v4438
    %v4503 = vpack.c.b16 %v4443, %v4439
    %v4504 = vpack.c.b16 %v4444, %v4440
    %v4505 = vpack.c.b16 %v4449, %v4445
    %v4506 = vpack.c.b16 %v4450, %v4446
    %v4507 = vpack.c.b16 %v4451, %v4447
    %v4508 = vpack.c.b16 %v4452, %v4448
    %v4509 = vpack.c.b16 %v4457, %v4453
    %v4510 = vpack.c.b16 %v4458, %v4454
    %v4511 = vpack.c.b16 %v4459, %v4455
    %v4512 = vpack.c.b16 %v4460, %v4456
    %v4513 = vpack.c.b16 %v4465, %v4461
    %v4514 = vpack.c.b16 %v4466, %v4462
    %v4515 = vpack.c.b16 %v4467, %v4463
    %v4516 = vpack.c.b16 %v4468, %v4464
    %v4517 = vpack.c.b16 %v4473, %v4469
    %v4518 = vpack.c.b16 %v4474, %v4470
    %v4519 = vpack.c.b16 %v4475, %v4471
    %v4520 = vpack.c.b16 %v4476, %v4472
    %v4521 = vpack.c.b16 %v4481, %v4477
    %v4522 = vpack.c.b16 %v4482, %v4478
    %v4523 = vpack.c.b16 %v4483, %v4479
    %v4524 = vpack.c.b16 %v4484, %v4480
    %v4525 = vpack.c.b16 %v4489, %v4485
    %v4526 = vpack.c.b16 %v4490, %v4486
    %v4527 = vpack.c.b16 %v4491, %v4487
    %v4528 = vpack.c.b16 %v4492, %v4488
    %v4529 = vpack.c.b16 %v4497, %v4493
    %v4530 = vpack.c.b16 %v4498, %v4494
    %v4531 = vpack.c.b16 %v4499, %v4495
    %v4532 = vpack.c.b16 %v4500, %v4496
    %4565 = vmatpush.bf16.msra.mxu0 %v4529
    %4566 = vmatpush.bf16.msra.mxu0 %v4525
    %4567 = vmatpush.bf16.msra.mxu0 %v4521
    %4568 = vmatpush.bf16.msra.mxu0 %v4517
    %4569 = vmatpush.bf16.msra.mxu0 %v4513
    %4570 = vmatpush.bf16.msra.mxu0 %v4509
    %4571 = vmatpush.bf16.msra.mxu0 %v4505
    %4572 = vmatpush.bf16.msra.mxu0 %v4501
    %4573 = vmatmul.bf16.gmra.mxu0 %v4372
    %v4574 = vpop.f32.mrf.mxu0
    %v4575 = vadd.f32 0.0, %v4574
    %v4576 = vpop.f32.mrf.mxu0
    %4577 = vdwg.mxu0
    %4578 = vmatpush.bf16.msra.mxu0 %v4530
    %4579 = vmatpush.bf16.msra.mxu0 %v4526
    %4580 = vmatpush.bf16.msra.mxu0 %v4522
    %4581 = vmatpush.bf16.msra.mxu0 %v4518
    %4582 = vmatpush.bf16.msra.mxu0 %v4514
    %4583 = vmatpush.bf16.msra.mxu0 %v4510
    %4584 = vmatpush.bf16.msra.mxu0 %v4506
    %4585 = vmatpush.bf16.msra.mxu0 %v4502
    %4586 = vmatmul.bf16.gmra.mxu0 %v4372
    %v4587 = vpop.f32.mrf.mxu0
    %v4588 = vadd.f32 0.0, %v4587
    %v4589 = vpop.f32.mrf.mxu0
    %4590 = vdwg.mxu0
    %4591 = vmatpush.bf16.msra.mxu0 %v4531
    %4592 = vmatpush.bf16.msra.mxu0 %v4527
    %4593 = vmatpush.bf16.msra.mxu0 %v4523
    %4594 = vmatpush.bf16.msra.mxu0 %v4519
    %4595 = vmatpush.bf16.msra.mxu0 %v4515
    %4596 = vmatpush.bf16.msra.mxu0 %v4511
    %4597 = vmatpush.bf16.msra.mxu0 %v4507
    %4598 = vmatpush.bf16.msra.mxu0 %v4503
    %4599 = vmatmul.bf16.gmra.mxu0 %v4372
    %v4600 = vpop.f32.mrf.mxu0
    %v4601 = vadd.f32 0.0, %v4600
    %v4602 = vpop.f32.mrf.mxu0
    %4603 = vdwg.mxu0
    %4604 = vmatpush.bf16.msra.mxu0 %v4532
    %4605 = vmatpush.bf16.msra.mxu0 %v4528
    %4606 = vmatpush.bf16.msra.mxu0 %v4524
    %4607 = vmatpush.bf16.msra.mxu0 %v4520
    %4608 = vmatpush.bf16.msra.mxu0 %v4516
    %4609 = vmatpush.bf16.msra.mxu0 %v4512
    %4610 = vmatpush.bf16.msra.mxu0 %v4508
    %4611 = vmatpush.bf16.msra.mxu0 %v4504
    %4612 = vmatmul.bf16.gmra.mxu0 %v4372
    %v4613 = vpop.f32.mrf.mxu0
    %v4614 = vadd.f32 0.0, %v4613
    %v4615 = vpop.f32.mrf.mxu0
    %4616 = vdwg.mxu0
    %v4649 = vunpack.c.l.b16 %v4340
    %v4650 = vunpack.c.h.b16 %v4340
    %v4651 = vunpack.c.l.b16 %v4341
    %v4652 = vunpack.c.h.b16 %v4341
    %v4653 = vunpack.c.l.b16 %v4342
    %v4654 = vunpack.c.h.b16 %v4342
    %v4655 = vunpack.c.l.b16 %v4343
    %v4656 = vunpack.c.h.b16 %v4343
    %v4657 = vunpack.c.l.b16 %v4344
    %v4658 = vunpack.c.h.b16 %v4344
    %v4659 = vunpack.c.l.b16 %v4345
    %v4660 = vunpack.c.h.b16 %v4345
    %v4661 = vunpack.c.l.b16 %v4346
    %v4662 = vunpack.c.h.b16 %v4346
    %v4663 = vunpack.c.l.b16 %v4347
    %v4664 = vunpack.c.h.b16 %v4347
    %v4665 = vunpack.c.l.b16 %v4348
    %v4666 = vunpack.c.h.b16 %v4348
    %v4667 = vunpack.c.l.b16 %v4349
    %v4668 = vunpack.c.h.b16 %v4349
    %v4669 = vunpack.c.l.b16 %v4350
    %v4670 = vunpack.c.h.b16 %v4350
    %v4671 = vunpack.c.l.b16 %v4351
    %v4672 = vunpack.c.h.b16 %v4351
    %v4673 = vunpack.c.l.b16 %v4352
    %v4674 = vunpack.c.h.b16 %v4352
    %v4675 = vunpack.c.l.b16 %v4353
    %v4676 = vunpack.c.h.b16 %v4353
    %v4677 = vunpack.c.l.b16 %v4354
    %v4678 = vunpack.c.h.b16 %v4354
    %v4679 = vunpack.c.l.b16 %v4355
    %v4680 = vunpack.c.h.b16 %v4355
    %v4681 = vunpack.c.l.b16 %v4356
    %v4682 = vunpack.c.h.b16 %v4356
    %v4683 = vunpack.c.l.b16 %v4357
    %v4684 = vunpack.c.h.b16 %v4357
    %v4685 = vunpack.c.l.b16 %v4358
    %v4686 = vunpack.c.h.b16 %v4358
    %v4687 = vunpack.c.l.b16 %v4359
    %v4688 = vunpack.c.h.b16 %v4359
    %v4689 = vunpack.c.l.b16 %v4360
    %v4690 = vunpack.c.h.b16 %v4360
    %v4691 = vunpack.c.l.b16 %v4361
    %v4692 = vunpack.c.h.b16 %v4361
    %v4693 = vunpack.c.l.b16 %v4362
    %v4694 = vunpack.c.h.b16 %v4362
    %v4695 = vunpack.c.l.b16 %v4363
    %v4696 = vunpack.c.h.b16 %v4363
    %v4697 = vunpack.c.l.b16 %v4364
    %v4698 = vunpack.c.h.b16 %v4364
    %v4699 = vunpack.c.l.b16 %v4365
    %v4700 = vunpack.c.h.b16 %v4365
    %v4701 = vunpack.c.l.b16 %v4366
    %v4702 = vunpack.c.h.b16 %v4366
    %v4703 = vunpack.c.l.b16 %v4367
    %v4704 = vunpack.c.h.b16 %v4367
    %v4705 = vunpack.c.l.b16 %v4368
    %v4706 = vunpack.c.h.b16 %v4368
    %v4707 = vunpack.c.l.b16 %v4369
    %v4708 = vunpack.c.h.b16 %v4369
    %v4709 = vunpack.c.l.b16 %v4370
    %v4710 = vunpack.c.h.b16 %v4370
    %v4711 = vunpack.c.l.b16 %v4371
    %v4712 = vunpack.c.h.b16 %v4371
    %v4713 = vpack.c.b16 %v4653, %v4649
    %v4714 = vpack.c.b16 %v4654, %v4650
    %v4715 = vpack.c.b16 %v4655, %v4651
    %v4716 = vpack.c.b16 %v4656, %v4652
    %v4717 = vpack.c.b16 %v4661, %v4657
    %v4718 = vpack.c.b16 %v4662, %v4658
    %v4719 = vpack.c.b16 %v4663, %v4659
    %v4720 = vpack.c.b16 %v4664, %v4660
    %v4721 = vpack.c.b16 %v4669, %v4665
    %v4722 = vpack.c.b16 %v4670, %v4666
    %v4723 = vpack.c.b16 %v4671, %v4667
    %v4724 = vpack.c.b16 %v4672, %v4668
    %v4725 = vpack.c.b16 %v4677, %v4673
    %v4726 = vpack.c.b16 %v4678, %v4674
    %v4727 = vpack.c.b16 %v4679, %v4675
    %v4728 = vpack.c.b16 %v4680, %v4676
    %v4729 = vpack.c.b16 %v4685, %v4681
    %v4730 = vpack.c.b16 %v4686, %v4682
    %v4731 = vpack.c.b16 %v4687, %v4683
    %v4732 = vpack.c.b16 %v4688, %v4684
    %v4733 = vpack.c.b16 %v4693, %v4689
    %v4734 = vpack.c.b16 %v4694, %v4690
    %v4735 = vpack.c.b16 %v4695, %v4691
    %v4736 = vpack.c.b16 %v4696, %v4692
    %v4737 = vpack.c.b16 %v4701, %v4697
    %v4738 = vpack.c.b16 %v4702, %v4698
    %v4739 = vpack.c.b16 %v4703, %v4699
    %v4740 = vpack.c.b16 %v4704, %v4700
    %v4741 = vpack.c.b16 %v4709, %v4705
    %v4742 = vpack.c.b16 %v4710, %v4706
    %v4743 = vpack.c.b16 %v4711, %v4707
    %v4744 = vpack.c.b16 %v4712, %v4708
    %4777 = vmatpush.bf16.msra.mxu0 %v4741
    %4778 = vmatpush.bf16.msra.mxu0 %v4737
    %4779 = vmatpush.bf16.msra.mxu0 %v4733
    %4780 = vmatpush.bf16.msra.mxu0 %v4729
    %4781 = vmatpush.bf16.msra.mxu0 %v4725
    %4782 = vmatpush.bf16.msra.mxu0 %v4721
    %4783 = vmatpush.bf16.msra.mxu0 %v4717
    %4784 = vmatpush.bf16.msra.mxu0 %v4713
    %4785 = vmatmul.bf16.gmra.mxu0 %v4339
    %v4786 = vpop.f32.mrf.mxu0
    %v4787 = vadd.f32 %v4575, %v4786
    %v4788 = vpop.f32.mrf.mxu0
    %4789 = vdwg.mxu0
    %4790 = vmatpush.bf16.msra.mxu0 %v4742
    %4791 = vmatpush.bf16.msra.mxu0 %v4738
    %4792 = vmatpush.bf16.msra.mxu0 %v4734
    %4793 = vmatpush.bf16.msra.mxu0 %v4730
    %4794 = vmatpush.bf16.msra.mxu0 %v4726
    %4795 = vmatpush.bf16.msra.mxu0 %v4722
    %4796 = vmatpush.bf16.msra.mxu0 %v4718
    %4797 = vmatpush.bf16.msra.mxu0 %v4714
    %4798 = vmatmul.bf16.gmra.mxu0 %v4339
    %v4799 = vpop.f32.mrf.mxu0
    %v4800 = vadd.f32 %v4588, %v4799
    %v4801 = vpop.f32.mrf.mxu0
    %4802 = vdwg.mxu0
    %4803 = vmatpush.bf16.msra.mxu0 %v4743
    %4804 = vmatpush.bf16.msra.mxu0 %v4739
    %4805 = vmatpush.bf16.msra.mxu0 %v4735
    %4806 = vmatpush.bf16.msra.mxu0 %v4731
    %4807 = vmatpush.bf16.msra.mxu0 %v4727
    %4808 = vmatpush.bf16.msra.mxu0 %v4723
    %4809 = vmatpush.bf16.msra.mxu0 %v4719
    %4810 = vmatpush.bf16.msra.mxu0 %v4715
    %4811 = vmatmul.bf16.gmra.mxu0 %v4339
    %v4812 = vpop.f32.mrf.mxu0
    %v4813 = vadd.f32 %v4601, %v4812
    %v4814 = vpop.f32.mrf.mxu0
    %4815 = vdwg.mxu0
    %4816 = vmatpush.bf16.msra.mxu0 %v4744
    %4817 = vmatpush.bf16.msra.mxu0 %v4740
    %4818 = vmatpush.bf16.msra.mxu0 %v4736
    %4819 = vmatpush.bf16.msra.mxu0 %v4732
    %4820 = vmatpush.bf16.msra.mxu0 %v4728
    %4821 = vmatpush.bf16.msra.mxu0 %v4724
    %4822 = vmatpush.bf16.msra.mxu0 %v4720
    %4823 = vmatpush.bf16.msra.mxu0 %v4716
    %4824 = vmatmul.bf16.gmra.mxu0 %v4339
    %v4825 = vpop.f32.mrf.mxu0
    %v4826 = vadd.f32 %v4614, %v4825
    %v4827 = vpop.f32.mrf.mxu0
    %4828 = vdwg.mxu0
    %v4829 = vadd.f32 %v4787, %v525
    %v4830 = vadd.f32 %v4800, %v526
    %v4831 = vadd.f32 %v4813, %v527
    %v4832 = vadd.f32 %v4826, %v528
    %v4833 = vxor.u32 %v4829, 2147483648
    %v4834 = vxor.u32 %v4830, 2147483648
    %v4835 = vxor.u32 %v4831, 2147483648
    %v4836 = vmul.f32 %v4833, 1.442695
    %v4837 = vpow.pop %v4836
    %v4838 = vmul.f32 %v4834, 1.442695
    %v4839 = vpow.pop %v4838
    %v4840 = vmul.f32 %v4835, 1.442695
    %v4841 = vpow.pop %v4840
    %v4842 = vadd.f32 %v4837, 1.0
    %v4843 = vadd.f32 %v4839, 1.0
    %v4844 = vadd.f32 %v4841, 1.0
    %v4845 = vrcp.pop %v4842
    %v4846 = vmul.f32 %v4842, %v4845
    %v4847 = vsub.f32 1.0, %v4846
    %v4848 = vmul.f32 %v4845, %v4847
    %v4849 = vadd.f32 %v4845, %v4848
    %vm4850 = vweird.f32 %v4842
    %vm4851 = vweird.f32 %v4845
    %vm4852 = vmor %vm4850, %vm4851
    %v4853 = vsel %vm4852, %v4845, %v4849
    %v4854 = vand.u32 2147483647, %v4842
    %vm4855 = vcmp.eq.f32.partialorder %v4854, 8.507059e+37
    %v4856 = vand.u32 %v4842, 2147483648
    %v4857 = vor.u32 1.1754944e-38, %v4856
    %v4858 = vsel %vm4855, %v4857, %v4853
    %v4859 = vmul.f32 1.0, %v4858
    %v4860 = vrcp.pop %v4843
    %v4861 = vmul.f32 %v4843, %v4860
    %v4862 = vsub.f32 1.0, %v4861
    %v4863 = vmul.f32 %v4860, %v4862
    %v4864 = vadd.f32 %v4860, %v4863
    %vm4865 = vweird.f32 %v4843
    %vm4866 = vweird.f32 %v4860
    %vm4867 = vmor %vm4865, %vm4866
    %v4868 = vsel %vm4867, %v4860, %v4864
    %v4869 = vand.u32 2147483647, %v4843
    %vm4870 = vcmp.eq.f32.partialorder %v4869, 8.507059e+37
    %v4871 = vand.u32 %v4843, 2147483648
    %v4872 = vor.u32 1.1754944e-38, %v4871
    %v4873 = vsel %vm4870, %v4872, %v4868
    %v4874 = vmul.f32 1.0, %v4873
    %v4875 = vrcp.pop %v4844
    %v4876 = vmul.f32 %v4844, %v4875
    %v4877 = vsub.f32 1.0, %v4876
    %v4878 = vmul.f32 %v4875, %v4877
    %v4879 = vadd.f32 %v4875, %v4878
    %vm4880 = vweird.f32 %v4844
    %vm4881 = vweird.f32 %v4875
    %vm4882 = vmor %vm4880, %vm4881
    %v4883 = vsel %vm4882, %v4875, %v4879
    %v4884 = vand.u32 2147483647, %v4844
    %vm4885 = vcmp.eq.f32.partialorder %v4884, 8.507059e+37
    %v4886 = vand.u32 %v4844, 2147483648
    %v4887 = vor.u32 1.1754944e-38, %v4886
    %v4888 = vsel %vm4885, %v4887, %v4883
    %v4889 = vmul.f32 1.0, %v4888
    %v4890 = vtanh.pop %v4832
    %v4891 = vmul.f32 %v4874, %v4020
    %v4892 = vmul.f32 %v4859, %v4890
    %v4893 = vadd.f32 %v4891, %v4892
    %v4894 = vtanh.pop %v4893
    %v4895 = vmul.f32 %v4889, %v4894
    %4896 = vst [vmem:[#allocation3 + $0x20] sm:$0xff] %v4895
    %v4897 = vld [vmem:[#allocation2 + $0xa0] sm:$0xff]
    %v4898 = vld [vmem:[#allocation2 + $0xa8] sm:$0xff]
    %v4899 = vld [vmem:[#allocation2 + $0xb0] sm:$0xff]
    %v4900 = vld [vmem:[#allocation2 + $0xb8] sm:$0xff]
    %v4901 = vld [vmem:[#allocation9] sm:$0xff]
    %v4902 = vld [vmem:[#allocation9 + $0x8] sm:$0xff]
    %v4903 = vld [vmem:[#allocation9 + $0x10] sm:$0xff]
    %v4904 = vld [vmem:[#allocation9 + $0x18] sm:$0xff]
    %v4905 = vld [vmem:[#allocation9 + $0x20] sm:$0xff]
    %v4906 = vld [vmem:[#allocation9 + $0x28] sm:$0xff]
    %v4907 = vld [vmem:[#allocation9 + $0x30] sm:$0xff]
    %v4908 = vld [vmem:[#allocation9 + $0x38] sm:$0xff]
    %v4909 = vld [vmem:[#allocation9 + $0x40] sm:$0xff]
    %v4910 = vld [vmem:[#allocation9 + $0x48] sm:$0xff]
    %v4911 = vld [vmem:[#allocation9 + $0x50] sm:$0xff]
    %v4912 = vld [vmem:[#allocation9 + $0x58] sm:$0xff]
    %v4913 = vld [vmem:[#allocation9 + $0x60] sm:$0xff]
    %v4914 = vld [vmem:[#allocation9 + $0x68] sm:$0xff]
    %v4915 = vld [vmem:[#allocation9 + $0x70] sm:$0xff]
    %v4916 = vld [vmem:[#allocation9 + $0x78] sm:$0xff]
    %v4917 = vld [vmem:[#allocation9 + $0x80] sm:$0xff]
    %v4918 = vld [vmem:[#allocation9 + $0x88] sm:$0xff]
    %v4919 = vld [vmem:[#allocation9 + $0x90] sm:$0xff]
    %v4920 = vld [vmem:[#allocation9 + $0x98] sm:$0xff]
    %v4921 = vld [vmem:[#allocation9 + $0xa0] sm:$0xff]
    %v4922 = vld [vmem:[#allocation9 + $0xa8] sm:$0xff]
    %v4923 = vld [vmem:[#allocation9 + $0xb0] sm:$0xff]
    %v4924 = vld [vmem:[#allocation9 + $0xb8] sm:$0xff]
    %v4925 = vld [vmem:[#allocation9 + $0xc0] sm:$0xff]
    %v4926 = vld [vmem:[#allocation9 + $0xc8] sm:$0xff]
    %v4927 = vld [vmem:[#allocation9 + $0xd0] sm:$0xff]
    %v4928 = vld [vmem:[#allocation9 + $0xd8] sm:$0xff]
    %v4929 = vld [vmem:[#allocation9 + $0xe0] sm:$0xff]
    %v4930 = vld [vmem:[#allocation9 + $0xe8] sm:$0xff]
    %v4931 = vld [vmem:[#allocation9 + $0xf0] sm:$0xff]
    %v4932 = vld [vmem:[#allocation9 + $0xf8] sm:$0xff]
    %v4965 = vunpack.c.l.b16 %v4901
    %v4966 = vunpack.c.h.b16 %v4901
    %v4967 = vunpack.c.l.b16 %v4902
    %v4968 = vunpack.c.h.b16 %v4902
    %v4969 = vunpack.c.l.b16 %v4903
    %v4970 = vunpack.c.h.b16 %v4903
    %v4971 = vunpack.c.l.b16 %v4904
    %v4972 = vunpack.c.h.b16 %v4904
    %v4973 = vunpack.c.l.b16 %v4905
    %v4974 = vunpack.c.h.b16 %v4905
    %v4975 = vunpack.c.l.b16 %v4906
    %v4976 = vunpack.c.h.b16 %v4906
    %v4977 = vunpack.c.l.b16 %v4907
    %v4978 = vunpack.c.h.b16 %v4907
    %v4979 = vunpack.c.l.b16 %v4908
    %v4980 = vunpack.c.h.b16 %v4908
    %v4981 = vunpack.c.l.b16 %v4909
    %v4982 = vunpack.c.h.b16 %v4909
    %v4983 = vunpack.c.l.b16 %v4910
    %v4984 = vunpack.c.h.b16 %v4910
    %v4985 = vunpack.c.l.b16 %v4911
    %v4986 = vunpack.c.h.b16 %v4911
    %v4987 = vunpack.c.l.b16 %v4912
    %v4988 = vunpack.c.h.b16 %v4912
    %v4989 = vunpack.c.l.b16 %v4913
    %v4990 = vunpack.c.h.b16 %v4913
    %v4991 = vunpack.c.l.b16 %v4914
    %v4992 = vunpack.c.h.b16 %v4914
    %v4993 = vunpack.c.l.b16 %v4915
    %v4994 = vunpack.c.h.b16 %v4915
    %v4995 = vunpack.c.l.b16 %v4916
    %v4996 = vunpack.c.h.b16 %v4916
    %v4997 = vunpack.c.l.b16 %v4917
    %v4998 = vunpack.c.h.b16 %v4917
    %v4999 = vunpack.c.l.b16 %v4918
    %v5000 = vunpack.c.h.b16 %v4918
    %v5001 = vunpack.c.l.b16 %v4919
    %v5002 = vunpack.c.h.b16 %v4919
    %v5003 = vunpack.c.l.b16 %v4920
    %v5004 = vunpack.c.h.b16 %v4920
    %v5005 = vunpack.c.l.b16 %v4921
    %v5006 = vunpack.c.h.b16 %v4921
    %v5007 = vunpack.c.l.b16 %v4922
    %v5008 = vunpack.c.h.b16 %v4922
    %v5009 = vunpack.c.l.b16 %v4923
    %v5010 = vunpack.c.h.b16 %v4923
    %v5011 = vunpack.c.l.b16 %v4924
    %v5012 = vunpack.c.h.b16 %v4924
    %v5013 = vunpack.c.l.b16 %v4925
    %v5014 = vunpack.c.h.b16 %v4925
    %v5015 = vunpack.c.l.b16 %v4926
    %v5016 = vunpack.c.h.b16 %v4926
    %v5017 = vunpack.c.l.b16 %v4927
    %v5018 = vunpack.c.h.b16 %v4927
    %v5019 = vunpack.c.l.b16 %v4928
    %v5020 = vunpack.c.h.b16 %v4928
    %v5021 = vunpack.c.l.b16 %v4929
    %v5022 = vunpack.c.h.b16 %v4929
    %v5023 = vunpack.c.l.b16 %v4930
    %v5024 = vunpack.c.h.b16 %v4930
    %v5025 = vunpack.c.l.b16 %v4931
    %v5026 = vunpack.c.h.b16 %v4931
    %v5027 = vunpack.c.l.b16 %v4932
    %v5028 = vunpack.c.h.b16 %v4932
    %v5029 = vpack.c.b16 %v4969, %v4965
    %v5030 = vpack.c.b16 %v4970, %v4966
    %v5031 = vpack.c.b16 %v4971, %v4967
    %v5032 = vpack.c.b16 %v4972, %v4968
    %v5033 = vpack.c.b16 %v4977, %v4973
    %v5034 = vpack.c.b16 %v4978, %v4974
    %v5035 = vpack.c.b16 %v4979, %v4975
    %v5036 = vpack.c.b16 %v4980, %v4976
    %v5037 = vpack.c.b16 %v4985, %v4981
    %v5038 = vpack.c.b16 %v4986, %v4982
    %v5039 = vpack.c.b16 %v4987, %v4983
    %v5040 = vpack.c.b16 %v4988, %v4984
    %v5041 = vpack.c.b16 %v4993, %v4989
    %v5042 = vpack.c.b16 %v4994, %v4990
    %v5043 = vpack.c.b16 %v4995, %v4991
    %v5044 = vpack.c.b16 %v4996, %v4992
    %v5045 = vpack.c.b16 %v5001, %v4997
    %v5046 = vpack.c.b16 %v5002, %v4998
    %v5047 = vpack.c.b16 %v5003, %v4999
    %v5048 = vpack.c.b16 %v5004, %v5000
    %v5049 = vpack.c.b16 %v5009, %v5005
    %v5050 = vpack.c.b16 %v5010, %v5006
    %v5051 = vpack.c.b16 %v5011, %v5007
    %v5052 = vpack.c.b16 %v5012, %v5008
    %v5053 = vpack.c.b16 %v5017, %v5013
    %v5054 = vpack.c.b16 %v5018, %v5014
    %v5055 = vpack.c.b16 %v5019, %v5015
    %v5056 = vpack.c.b16 %v5020, %v5016
    %v5057 = vpack.c.b16 %v5025, %v5021
    %v5058 = vpack.c.b16 %v5026, %v5022
    %v5059 = vpack.c.b16 %v5027, %v5023
    %v5060 = vpack.c.b16 %v5028, %v5024
    %5093 = vmatpush.bf16.msra.mxu0 %v5057
    %5094 = vmatpush.bf16.msra.mxu0 %v5053
    %5095 = vmatpush.bf16.msra.mxu0 %v5049
    %5096 = vmatpush.bf16.msra.mxu0 %v5045
    %5097 = vmatpush.bf16.msra.mxu0 %v5041
    %5098 = vmatpush.bf16.msra.mxu0 %v5037
    %5099 = vmatpush.bf16.msra.mxu0 %v5033
    %5100 = vmatpush.bf16.msra.mxu0 %v5029
    %5101 = vmatmul.bf16.gmra.mxu0 %v4339
    %v5102 = vpop.f32.mrf.mxu0
    %v5103 = vadd.f32 0.0, %v5102
    %v5104 = vpop.f32.mrf.mxu0
    %5105 = vdwg.mxu0
    %5106 = vmatpush.bf16.msra.mxu0 %v5058
    %5107 = vmatpush.bf16.msra.mxu0 %v5054
    %5108 = vmatpush.bf16.msra.mxu0 %v5050
    %5109 = vmatpush.bf16.msra.mxu0 %v5046
    %5110 = vmatpush.bf16.msra.mxu0 %v5042
    %5111 = vmatpush.bf16.msra.mxu0 %v5038
    %5112 = vmatpush.bf16.msra.mxu0 %v5034
    %5113 = vmatpush.bf16.msra.mxu0 %v5030
    %5114 = vmatmul.bf16.gmra.mxu0 %v4339
    %v5115 = vpop.f32.mrf.mxu0
    %v5116 = vadd.f32 0.0, %v5115
    %v5117 = vpop.f32.mrf.mxu0
    %5118 = vdwg.mxu0
    %5119 = vmatpush.bf16.msra.mxu0 %v5059
    %5120 = vmatpush.bf16.msra.mxu0 %v5055
    %5121 = vmatpush.bf16.msra.mxu0 %v5051
    %5122 = vmatpush.bf16.msra.mxu0 %v5047
    %5123 = vmatpush.bf16.msra.mxu0 %v5043
    %5124 = vmatpush.bf16.msra.mxu0 %v5039
    %5125 = vmatpush.bf16.msra.mxu0 %v5035
    %5126 = vmatpush.bf16.msra.mxu0 %v5031
    %5127 = vmatmul.bf16.gmra.mxu0 %v4339
    %v5128 = vpop.f32.mrf.mxu0
    %v5129 = vadd.f32 0.0, %v5128
    %v5130 = vpop.f32.mrf.mxu0
    %5131 = vdwg.mxu0
    %5132 = vmatpush.bf16.msra.mxu0 %v5060
    %5133 = vmatpush.bf16.msra.mxu0 %v5056
    %5134 = vmatpush.bf16.msra.mxu0 %v5052
    %5135 = vmatpush.bf16.msra.mxu0 %v5048
    %5136 = vmatpush.bf16.msra.mxu0 %v5044
    %5137 = vmatpush.bf16.msra.mxu0 %v5040
    %5138 = vmatpush.bf16.msra.mxu0 %v5036
    %5139 = vmatpush.bf16.msra.mxu0 %v5032
    %5140 = vmatmul.bf16.gmra.mxu0 %v4339
    %v5141 = vpop.f32.mrf.mxu0
    %v5142 = vadd.f32 0.0, %v5141
    %v5143 = vpop.f32.mrf.mxu0
    %5144 = vdwg.mxu0
    %v5145 = vadd.f32 %v4897, %v5103
    %v5146 = vadd.f32 %v4898, %v5116
    %v5147 = vadd.f32 %v4899, %v5129
    %v5148 = vadd.f32 %v4900, %v5142
    %v5149 = vxor.u32 %v5145, 2147483648
    %v5150 = vxor.u32 %v5146, 2147483648
    %v5151 = vxor.u32 %v5147, 2147483648
    %v5152 = vmul.f32 %v5149, 1.442695
    %v5153 = vpow.pop %v5152
    %v5154 = vmul.f32 %v5150, 1.442695
    %v5155 = vpow.pop %v5154
    %v5156 = vmul.f32 %v5151, 1.442695
    %v5157 = vpow.pop %v5156
    %v5158 = vadd.f32 %v5153, 1.0
    %v5159 = vadd.f32 %v5155, 1.0
    %v5160 = vadd.f32 %v5157, 1.0
    %v5161 = vrcp.pop %v5158
    %v5162 = vmul.f32 %v5158, %v5161
    %v5163 = vsub.f32 1.0, %v5162
    %v5164 = vmul.f32 %v5161, %v5163
    %v5165 = vadd.f32 %v5161, %v5164
    %vm5166 = vweird.f32 %v5158
    %vm5167 = vweird.f32 %v5161
    %vm5168 = vmor %vm5166, %vm5167
    %v5169 = vsel %vm5168, %v5161, %v5165
    %v5170 = vand.u32 2147483647, %v5158
    %vm5171 = vcmp.eq.f32.partialorder %v5170, 8.507059e+37
    %v5172 = vand.u32 %v5158, 2147483648
    %v5173 = vor.u32 1.1754944e-38, %v5172
    %v5174 = vsel %vm5171, %v5173, %v5169
    %v5175 = vmul.f32 1.0, %v5174
    %v5176 = vrcp.pop %v5159
    %v5177 = vmul.f32 %v5159, %v5176
    %v5178 = vsub.f32 1.0, %v5177
    %v5179 = vmul.f32 %v5176, %v5178
    %v5180 = vadd.f32 %v5176, %v5179
    %vm5181 = vweird.f32 %v5159
    %vm5182 = vweird.f32 %v5176
    %vm5183 = vmor %vm5181, %vm5182
    %v5184 = vsel %vm5183, %v5176, %v5180
    %v5185 = vand.u32 2147483647, %v5159
    %vm5186 = vcmp.eq.f32.partialorder %v5185, 8.507059e+37
    %v5187 = vand.u32 %v5159, 2147483648
    %v5188 = vor.u32 1.1754944e-38, %v5187
    %v5189 = vsel %vm5186, %v5188, %v5184
    %v5190 = vmul.f32 1.0, %v5189
    %v5191 = vrcp.pop %v5160
    %v5192 = vmul.f32 %v5160, %v5191
    %v5193 = vsub.f32 1.0, %v5192
    %v5194 = vmul.f32 %v5191, %v5193
    %v5195 = vadd.f32 %v5191, %v5194
    %vm5196 = vweird.f32 %v5160
    %vm5197 = vweird.f32 %v5191
    %vm5198 = vmor %vm5196, %vm5197
    %v5199 = vsel %vm5198, %v5191, %v5195
    %v5200 = vand.u32 2147483647, %v5160
    %vm5201 = vcmp.eq.f32.partialorder %v5200, 8.507059e+37
    %v5202 = vand.u32 %v5160, 2147483648
    %v5203 = vor.u32 1.1754944e-38, %v5202
    %v5204 = vsel %vm5201, %v5203, %v5199
    %v5205 = vmul.f32 1.0, %v5204
    %v5206 = vtanh.pop %v5148
    %v5207 = vmul.f32 %v5190, %v4336
    %v5208 = vmul.f32 %v5175, %v5206
    %v5209 = vadd.f32 %v5207, %v5208
    %v5210 = vtanh.pop %v5209
    %v5211 = vmul.f32 %v5205, %v5210
    %v5212 = vpack.c.bf16 %v5211, %v5211
    %v5213 = vld [vmem:[#allocation12] sm:$0xff]
    %v5214 = vld [vmem:[#allocation12 + $0x8] sm:$0xff]
    %v5215 = vld [vmem:[#allocation12 + $0x10] sm:$0xff]
    %v5216 = vld [vmem:[#allocation12 + $0x18] sm:$0xff]
    %v5217 = vld [vmem:[#allocation12 + $0x20] sm:$0xff]
    %v5218 = vld [vmem:[#allocation12 + $0x28] sm:$0xff]
    %v5219 = vld [vmem:[#allocation12 + $0x30] sm:$0xff]
    %v5220 = vld [vmem:[#allocation12 + $0x38] sm:$0xff]
    %v5221 = vld [vmem:[#allocation12 + $0x40] sm:$0xff]
    %v5222 = vld [vmem:[#allocation12 + $0x48] sm:$0xff]
    %v5223 = vld [vmem:[#allocation12 + $0x50] sm:$0xff]
    %v5224 = vld [vmem:[#allocation12 + $0x58] sm:$0xff]
    %v5225 = vld [vmem:[#allocation12 + $0x60] sm:$0xff]
    %v5226 = vld [vmem:[#allocation12 + $0x68] sm:$0xff]
    %v5227 = vld [vmem:[#allocation12 + $0x70] sm:$0xff]
    %v5228 = vld [vmem:[#allocation12 + $0x78] sm:$0xff]
    %v5229 = vld [vmem:[#allocation12 + $0x80] sm:$0xff]
    %v5230 = vld [vmem:[#allocation12 + $0x88] sm:$0xff]
    %v5231 = vld [vmem:[#allocation12 + $0x90] sm:$0xff]
    %v5232 = vld [vmem:[#allocation12 + $0x98] sm:$0xff]
    %v5233 = vld [vmem:[#allocation12 + $0xa0] sm:$0xff]
    %v5234 = vld [vmem:[#allocation12 + $0xa8] sm:$0xff]
    %v5235 = vld [vmem:[#allocation12 + $0xb0] sm:$0xff]
    %v5236 = vld [vmem:[#allocation12 + $0xb8] sm:$0xff]
    %v5237 = vld [vmem:[#allocation12 + $0xc0] sm:$0xff]
    %v5238 = vld [vmem:[#allocation12 + $0xc8] sm:$0xff]
    %v5239 = vld [vmem:[#allocation12 + $0xd0] sm:$0xff]
    %v5240 = vld [vmem:[#allocation12 + $0xd8] sm:$0xff]
    %v5241 = vld [vmem:[#allocation12 + $0xe0] sm:$0xff]
    %v5242 = vld [vmem:[#allocation12 + $0xe8] sm:$0xff]
    %v5243 = vld [vmem:[#allocation12 + $0xf0] sm:$0xff]
    %v5244 = vld [vmem:[#allocation12 + $0xf8] sm:$0xff]
    %v5245 = vpack.c.bf16 %v4895, %v4895
    %v5246 = vld [vmem:[#allocation13] sm:$0xff]
    %v5247 = vld [vmem:[#allocation13 + $0x8] sm:$0xff]
    %v5248 = vld [vmem:[#allocation13 + $0x10] sm:$0xff]
    %v5249 = vld [vmem:[#allocation13 + $0x18] sm:$0xff]
    %v5250 = vld [vmem:[#allocation13 + $0x20] sm:$0xff]
    %v5251 = vld [vmem:[#allocation13 + $0x28] sm:$0xff]
    %v5252 = vld [vmem:[#allocation13 + $0x30] sm:$0xff]
    %v5253 = vld [vmem:[#allocation13 + $0x38] sm:$0xff]
    %v5254 = vld [vmem:[#allocation13 + $0x40] sm:$0xff]
    %v5255 = vld [vmem:[#allocation13 + $0x48] sm:$0xff]
    %v5256 = vld [vmem:[#allocation13 + $0x50] sm:$0xff]
    %v5257 = vld [vmem:[#allocation13 + $0x58] sm:$0xff]
    %v5258 = vld [vmem:[#allocation13 + $0x60] sm:$0xff]
    %v5259 = vld [vmem:[#allocation13 + $0x68] sm:$0xff]
    %v5260 = vld [vmem:[#allocation13 + $0x70] sm:$0xff]
    %v5261 = vld [vmem:[#allocation13 + $0x78] sm:$0xff]
    %v5262 = vld [vmem:[#allocation13 + $0x80] sm:$0xff]
    %v5263 = vld [vmem:[#allocation13 + $0x88] sm:$0xff]
    %v5264 = vld [vmem:[#allocation13 + $0x90] sm:$0xff]
    %v5265 = vld [vmem:[#allocation13 + $0x98] sm:$0xff]
    %v5266 = vld [vmem:[#allocation13 + $0xa0] sm:$0xff]
    %v5267 = vld [vmem:[#allocation13 + $0xa8] sm:$0xff]
    %v5268 = vld [vmem:[#allocation13 + $0xb0] sm:$0xff]
    %v5269 = vld [vmem:[#allocation13 + $0xb8] sm:$0xff]
    %v5270 = vld [vmem:[#allocation13 + $0xc0] sm:$0xff]
    %v5271 = vld [vmem:[#allocation13 + $0xc8] sm:$0xff]
    %v5272 = vld [vmem:[#allocation13 + $0xd0] sm:$0xff]
    %v5273 = vld [vmem:[#allocation13 + $0xd8] sm:$0xff]
    %v5274 = vld [vmem:[#allocation13 + $0xe0] sm:$0xff]
    %v5275 = vld [vmem:[#allocation13 + $0xe8] sm:$0xff]
    %v5276 = vld [vmem:[#allocation13 + $0xf0] sm:$0xff]
    %v5277 = vld [vmem:[#allocation13 + $0xf8] sm:$0xff]
    %v5310 = vunpack.c.l.b16 %v5246
    %v5311 = vunpack.c.h.b16 %v5246
    %v5312 = vunpack.c.l.b16 %v5247
    %v5313 = vunpack.c.h.b16 %v5247
    %v5314 = vunpack.c.l.b16 %v5248
    %v5315 = vunpack.c.h.b16 %v5248
    %v5316 = vunpack.c.l.b16 %v5249
    %v5317 = vunpack.c.h.b16 %v5249
    %v5318 = vunpack.c.l.b16 %v5250
    %v5319 = vunpack.c.h.b16 %v5250
    %v5320 = vunpack.c.l.b16 %v5251
    %v5321 = vunpack.c.h.b16 %v5251
    %v5322 = vunpack.c.l.b16 %v5252
    %v5323 = vunpack.c.h.b16 %v5252
    %v5324 = vunpack.c.l.b16 %v5253
    %v5325 = vunpack.c.h.b16 %v5253
    %v5326 = vunpack.c.l.b16 %v5254
    %v5327 = vunpack.c.h.b16 %v5254
    %v5328 = vunpack.c.l.b16 %v5255
    %v5329 = vunpack.c.h.b16 %v5255
    %v5330 = vunpack.c.l.b16 %v5256
    %v5331 = vunpack.c.h.b16 %v5256
    %v5332 = vunpack.c.l.b16 %v5257
    %v5333 = vunpack.c.h.b16 %v5257
    %v5334 = vunpack.c.l.b16 %v5258
    %v5335 = vunpack.c.h.b16 %v5258
    %v5336 = vunpack.c.l.b16 %v5259
    %v5337 = vunpack.c.h.b16 %v5259
    %v5338 = vunpack.c.l.b16 %v5260
    %v5339 = vunpack.c.h.b16 %v5260
    %v5340 = vunpack.c.l.b16 %v5261
    %v5341 = vunpack.c.h.b16 %v5261
    %v5342 = vunpack.c.l.b16 %v5262
    %v5343 = vunpack.c.h.b16 %v5262
    %v5344 = vunpack.c.l.b16 %v5263
    %v5345 = vunpack.c.h.b16 %v5263
    %v5346 = vunpack.c.l.b16 %v5264
    %v5347 = vunpack.c.h.b16 %v5264
    %v5348 = vunpack.c.l.b16 %v5265
    %v5349 = vunpack.c.h.b16 %v5265
    %v5350 = vunpack.c.l.b16 %v5266
    %v5351 = vunpack.c.h.b16 %v5266
    %v5352 = vunpack.c.l.b16 %v5267
    %v5353 = vunpack.c.h.b16 %v5267
    %v5354 = vunpack.c.l.b16 %v5268
    %v5355 = vunpack.c.h.b16 %v5268
    %v5356 = vunpack.c.l.b16 %v5269
    %v5357 = vunpack.c.h.b16 %v5269
    %v5358 = vunpack.c.l.b16 %v5270
    %v5359 = vunpack.c.h.b16 %v5270
    %v5360 = vunpack.c.l.b16 %v5271
    %v5361 = vunpack.c.h.b16 %v5271
    %v5362 = vunpack.c.l.b16 %v5272
    %v5363 = vunpack.c.h.b16 %v5272
    %v5364 = vunpack.c.l.b16 %v5273
    %v5365 = vunpack.c.h.b16 %v5273
    %v5366 = vunpack.c.l.b16 %v5274
    %v5367 = vunpack.c.h.b16 %v5274
    %v5368 = vunpack.c.l.b16 %v5275
    %v5369 = vunpack.c.h.b16 %v5275
    %v5370 = vunpack.c.l.b16 %v5276
    %v5371 = vunpack.c.h.b16 %v5276
    %v5372 = vunpack.c.l.b16 %v5277
    %v5373 = vunpack.c.h.b16 %v5277
    %v5374 = vpack.c.b16 %v5314, %v5310
    %v5375 = vpack.c.b16 %v5315, %v5311
    %v5376 = vpack.c.b16 %v5316, %v5312
    %v5377 = vpack.c.b16 %v5317, %v5313
    %v5378 = vpack.c.b16 %v5322, %v5318
    %v5379 = vpack.c.b16 %v5323, %v5319
    %v5380 = vpack.c.b16 %v5324, %v5320
    %v5381 = vpack.c.b16 %v5325, %v5321
    %v5382 = vpack.c.b16 %v5330, %v5326
    %v5383 = vpack.c.b16 %v5331, %v5327
    %v5384 = vpack.c.b16 %v5332, %v5328
    %v5385 = vpack.c.b16 %v5333, %v5329
    %v5386 = vpack.c.b16 %v5338, %v5334
    %v5387 = vpack.c.b16 %v5339, %v5335
    %v5388 = vpack.c.b16 %v5340, %v5336
    %v5389 = vpack.c.b16 %v5341, %v5337
    %v5390 = vpack.c.b16 %v5346, %v5342
    %v5391 = vpack.c.b16 %v5347, %v5343
    %v5392 = vpack.c.b16 %v5348, %v5344
    %v5393 = vpack.c.b16 %v5349, %v5345
    %v5394 = vpack.c.b16 %v5354, %v5350
    %v5395 = vpack.c.b16 %v5355, %v5351
    %v5396 = vpack.c.b16 %v5356, %v5352
    %v5397 = vpack.c.b16 %v5357, %v5353
    %v5398 = vpack.c.b16 %v5362, %v5358
    %v5399 = vpack.c.b16 %v5363, %v5359
    %v5400 = vpack.c.b16 %v5364, %v5360
    %v5401 = vpack.c.b16 %v5365, %v5361
    %v5402 = vpack.c.b16 %v5370, %v5366
    %v5403 = vpack.c.b16 %v5371, %v5367
    %v5404 = vpack.c.b16 %v5372, %v5368
    %v5405 = vpack.c.b16 %v5373, %v5369
    %5438 = vmatpush.bf16.msra.mxu0 %v5402
    %5439 = vmatpush.bf16.msra.mxu0 %v5398
    %5440 = vmatpush.bf16.msra.mxu0 %v5394
    %5441 = vmatpush.bf16.msra.mxu0 %v5390
    %5442 = vmatpush.bf16.msra.mxu0 %v5386
    %5443 = vmatpush.bf16.msra.mxu0 %v5382
    %5444 = vmatpush.bf16.msra.mxu0 %v5378
    %5445 = vmatpush.bf16.msra.mxu0 %v5374
    %5446 = vmatmul.bf16.gmra.mxu0 %v5245
    %v5447 = vpop.f32.mrf.mxu0
    %v5448 = vadd.f32 0.0, %v5447
    %v5449 = vpop.f32.mrf.mxu0
    %5450 = vdwg.mxu0
    %5451 = vmatpush.bf16.msra.mxu0 %v5403
    %5452 = vmatpush.bf16.msra.mxu0 %v5399
    %5453 = vmatpush.bf16.msra.mxu0 %v5395
    %5454 = vmatpush.bf16.msra.mxu0 %v5391
    %5455 = vmatpush.bf16.msra.mxu0 %v5387
    %5456 = vmatpush.bf16.msra.mxu0 %v5383
    %5457 = vmatpush.bf16.msra.mxu0 %v5379
    %5458 = vmatpush.bf16.msra.mxu0 %v5375
    %5459 = vmatmul.bf16.gmra.mxu0 %v5245
    %v5460 = vpop.f32.mrf.mxu0
    %v5461 = vadd.f32 0.0, %v5460
    %v5462 = vpop.f32.mrf.mxu0
    %5463 = vdwg.mxu0
    %5464 = vmatpush.bf16.msra.mxu0 %v5404
    %5465 = vmatpush.bf16.msra.mxu0 %v5400
    %5466 = vmatpush.bf16.msra.mxu0 %v5396
    %5467 = vmatpush.bf16.msra.mxu0 %v5392
    %5468 = vmatpush.bf16.msra.mxu0 %v5388
    %5469 = vmatpush.bf16.msra.mxu0 %v5384
    %5470 = vmatpush.bf16.msra.mxu0 %v5380
    %5471 = vmatpush.bf16.msra.mxu0 %v5376
    %5472 = vmatmul.bf16.gmra.mxu0 %v5245
    %v5473 = vpop.f32.mrf.mxu0
    %v5474 = vadd.f32 0.0, %v5473
    %v5475 = vpop.f32.mrf.mxu0
    %5476 = vdwg.mxu0
    %5477 = vmatpush.bf16.msra.mxu0 %v5405
    %5478 = vmatpush.bf16.msra.mxu0 %v5401
    %5479 = vmatpush.bf16.msra.mxu0 %v5397
    %5480 = vmatpush.bf16.msra.mxu0 %v5393
    %5481 = vmatpush.bf16.msra.mxu0 %v5389
    %5482 = vmatpush.bf16.msra.mxu0 %v5385
    %5483 = vmatpush.bf16.msra.mxu0 %v5381
    %5484 = vmatpush.bf16.msra.mxu0 %v5377
    %5485 = vmatmul.bf16.gmra.mxu0 %v5245
    %v5486 = vpop.f32.mrf.mxu0
    %v5487 = vadd.f32 0.0, %v5486
    %v5488 = vpop.f32.mrf.mxu0
    %5489 = vdwg.mxu0
    %v5522 = vunpack.c.l.b16 %v5213
    %v5523 = vunpack.c.h.b16 %v5213
    %v5524 = vunpack.c.l.b16 %v5214
    %v5525 = vunpack.c.h.b16 %v5214
    %v5526 = vunpack.c.l.b16 %v5215
    %v5527 = vunpack.c.h.b16 %v5215
    %v5528 = vunpack.c.l.b16 %v5216
    %v5529 = vunpack.c.h.b16 %v5216
    %v5530 = vunpack.c.l.b16 %v5217
    %v5531 = vunpack.c.h.b16 %v5217
    %v5532 = vunpack.c.l.b16 %v5218
    %v5533 = vunpack.c.h.b16 %v5218
    %v5534 = vunpack.c.l.b16 %v5219
    %v5535 = vunpack.c.h.b16 %v5219
    %v5536 = vunpack.c.l.b16 %v5220
    %v5537 = vunpack.c.h.b16 %v5220
    %v5538 = vunpack.c.l.b16 %v5221
    %v5539 = vunpack.c.h.b16 %v5221
    %v5540 = vunpack.c.l.b16 %v5222
    %v5541 = vunpack.c.h.b16 %v5222
    %v5542 = vunpack.c.l.b16 %v5223
    %v5543 = vunpack.c.h.b16 %v5223
    %v5544 = vunpack.c.l.b16 %v5224
    %v5545 = vunpack.c.h.b16 %v5224
    %v5546 = vunpack.c.l.b16 %v5225
    %v5547 = vunpack.c.h.b16 %v5225
    %v5548 = vunpack.c.l.b16 %v5226
    %v5549 = vunpack.c.h.b16 %v5226
    %v5550 = vunpack.c.l.b16 %v5227
    %v5551 = vunpack.c.h.b16 %v5227
    %v5552 = vunpack.c.l.b16 %v5228
    %v5553 = vunpack.c.h.b16 %v5228
    %v5554 = vunpack.c.l.b16 %v5229
    %v5555 = vunpack.c.h.b16 %v5229
    %v5556 = vunpack.c.l.b16 %v5230
    %v5557 = vunpack.c.h.b16 %v5230
    %v5558 = vunpack.c.l.b16 %v5231
    %v5559 = vunpack.c.h.b16 %v5231
    %v5560 = vunpack.c.l.b16 %v5232
    %v5561 = vunpack.c.h.b16 %v5232
    %v5562 = vunpack.c.l.b16 %v5233
    %v5563 = vunpack.c.h.b16 %v5233
    %v5564 = vunpack.c.l.b16 %v5234
    %v5565 = vunpack.c.h.b16 %v5234
    %v5566 = vunpack.c.l.b16 %v5235
    %v5567 = vunpack.c.h.b16 %v5235
    %v5568 = vunpack.c.l.b16 %v5236
    %v5569 = vunpack.c.h.b16 %v5236
    %v5570 = vunpack.c.l.b16 %v5237
    %v5571 = vunpack.c.h.b16 %v5237
    %v5572 = vunpack.c.l.b16 %v5238
    %v5573 = vunpack.c.h.b16 %v5238
    %v5574 = vunpack.c.l.b16 %v5239
    %v5575 = vunpack.c.h.b16 %v5239
    %v5576 = vunpack.c.l.b16 %v5240
    %v5577 = vunpack.c.h.b16 %v5240
    %v5578 = vunpack.c.l.b16 %v5241
    %v5579 = vunpack.c.h.b16 %v5241
    %v5580 = vunpack.c.l.b16 %v5242
    %v5581 = vunpack.c.h.b16 %v5242
    %v5582 = vunpack.c.l.b16 %v5243
    %v5583 = vunpack.c.h.b16 %v5243
    %v5584 = vunpack.c.l.b16 %v5244
    %v5585 = vunpack.c.h.b16 %v5244
    %v5586 = vpack.c.b16 %v5526, %v5522
    %v5587 = vpack.c.b16 %v5527, %v5523
    %v5588 = vpack.c.b16 %v5528, %v5524
    %v5589 = vpack.c.b16 %v5529, %v5525
    %v5590 = vpack.c.b16 %v5534, %v5530
    %v5591 = vpack.c.b16 %v5535, %v5531
    %v5592 = vpack.c.b16 %v5536, %v5532
    %v5593 = vpack.c.b16 %v5537, %v5533
    %v5594 = vpack.c.b16 %v5542, %v5538
    %v5595 = vpack.c.b16 %v5543, %v5539
    %v5596 = vpack.c.b16 %v5544, %v5540
    %v5597 = vpack.c.b16 %v5545, %v5541
    %v5598 = vpack.c.b16 %v5550, %v5546
    %v5599 = vpack.c.b16 %v5551, %v5547
    %v5600 = vpack.c.b16 %v5552, %v5548
    %v5601 = vpack.c.b16 %v5553, %v5549
    %v5602 = vpack.c.b16 %v5558, %v5554
    %v5603 = vpack.c.b16 %v5559, %v5555
    %v5604 = vpack.c.b16 %v5560, %v5556
    %v5605 = vpack.c.b16 %v5561, %v5557
    %v5606 = vpack.c.b16 %v5566, %v5562
    %v5607 = vpack.c.b16 %v5567, %v5563
    %v5608 = vpack.c.b16 %v5568, %v5564
    %v5609 = vpack.c.b16 %v5569, %v5565
    %v5610 = vpack.c.b16 %v5574, %v5570
    %v5611 = vpack.c.b16 %v5575, %v5571
    %v5612 = vpack.c.b16 %v5576, %v5572
    %v5613 = vpack.c.b16 %v5577, %v5573
    %v5614 = vpack.c.b16 %v5582, %v5578
    %v5615 = vpack.c.b16 %v5583, %v5579
    %v5616 = vpack.c.b16 %v5584, %v5580
    %v5617 = vpack.c.b16 %v5585, %v5581
    %5650 = vmatpush.bf16.msra.mxu0 %v5614
    %5651 = vmatpush.bf16.msra.mxu0 %v5610
    %5652 = vmatpush.bf16.msra.mxu0 %v5606
    %5653 = vmatpush.bf16.msra.mxu0 %v5602
    %5654 = vmatpush.bf16.msra.mxu0 %v5598
    %5655 = vmatpush.bf16.msra.mxu0 %v5594
    %5656 = vmatpush.bf16.msra.mxu0 %v5590
    %5657 = vmatpush.bf16.msra.mxu0 %v5586
    %5658 = vmatmul.bf16.gmra.mxu0 %v5212
    %v5659 = vpop.f32.mrf.mxu0
    %v5660 = vadd.f32 %v5448, %v5659
    %v5661 = vpop.f32.mrf.mxu0
    %5662 = vdwg.mxu0
    %5663 = vmatpush.bf16.msra.mxu0 %v5615
    %5664 = vmatpush.bf16.msra.mxu0 %v5611
    %5665 = vmatpush.bf16.msra.mxu0 %v5607
    %5666 = vmatpush.bf16.msra.mxu0 %v5603
    %5667 = vmatpush.bf16.msra.mxu0 %v5599
    %5668 = vmatpush.bf16.msra.mxu0 %v5595
    %5669 = vmatpush.bf16.msra.mxu0 %v5591
    %5670 = vmatpush.bf16.msra.mxu0 %v5587
    %5671 = vmatmul.bf16.gmra.mxu0 %v5212
    %v5672 = vpop.f32.mrf.mxu0
    %v5673 = vadd.f32 %v5461, %v5672
    %v5674 = vpop.f32.mrf.mxu0
    %5675 = vdwg.mxu0
    %5676 = vmatpush.bf16.msra.mxu0 %v5616
    %5677 = vmatpush.bf16.msra.mxu0 %v5612
    %5678 = vmatpush.bf16.msra.mxu0 %v5608
    %5679 = vmatpush.bf16.msra.mxu0 %v5604
    %5680 = vmatpush.bf16.msra.mxu0 %v5600
    %5681 = vmatpush.bf16.msra.mxu0 %v5596
    %5682 = vmatpush.bf16.msra.mxu0 %v5592
    %5683 = vmatpush.bf16.msra.mxu0 %v5588
    %5684 = vmatmul.bf16.gmra.mxu0 %v5212
    %v5685 = vpop.f32.mrf.mxu0
    %v5686 = vadd.f32 %v5474, %v5685
    %v5687 = vpop.f32.mrf.mxu0
    %5688 = vdwg.mxu0
    %5689 = vmatpush.bf16.msra.mxu0 %v5617
    %5690 = vmatpush.bf16.msra.mxu0 %v5613
    %5691 = vmatpush.bf16.msra.mxu0 %v5609
    %5692 = vmatpush.bf16.msra.mxu0 %v5605
    %5693 = vmatpush.bf16.msra.mxu0 %v5601
    %5694 = vmatpush.bf16.msra.mxu0 %v5597
    %5695 = vmatpush.bf16.msra.mxu0 %v5593
    %5696 = vmatpush.bf16.msra.mxu0 %v5589
    %5697 = vmatmul.bf16.gmra.mxu0 %v5212
    %v5698 = vpop.f32.mrf.mxu0
    %v5699 = vadd.f32 %v5487, %v5698
    %v5700 = vpop.f32.mrf.mxu0
    %5701 = vdwg.mxu0
    %v5702 = vadd.f32 %v5660, %v525
    %v5703 = vadd.f32 %v5673, %v526
    %v5704 = vadd.f32 %v5686, %v527
    %v5705 = vadd.f32 %v5699, %v528
    %v5706 = vxor.u32 %v5702, 2147483648
    %v5707 = vxor.u32 %v5703, 2147483648
    %v5708 = vxor.u32 %v5704, 2147483648
    %v5709 = vmul.f32 %v5706, 1.442695
    %v5710 = vpow.pop %v5709
    %v5711 = vmul.f32 %v5707, 1.442695
    %v5712 = vpow.pop %v5711
    %v5713 = vmul.f32 %v5708, 1.442695
    %v5714 = vpow.pop %v5713
    %v5715 = vadd.f32 %v5710, 1.0
    %v5716 = vadd.f32 %v5712, 1.0
    %v5717 = vadd.f32 %v5714, 1.0
    %v5718 = vrcp.pop %v5715
    %v5719 = vmul.f32 %v5715, %v5718
    %v5720 = vsub.f32 1.0, %v5719
    %v5721 = vmul.f32 %v5718, %v5720
    %v5722 = vadd.f32 %v5718, %v5721
    %vm5723 = vweird.f32 %v5715
    %vm5724 = vweird.f32 %v5718
    %vm5725 = vmor %vm5723, %vm5724
    %v5726 = vsel %vm5725, %v5718, %v5722
    %v5727 = vand.u32 2147483647, %v5715
    %vm5728 = vcmp.eq.f32.partialorder %v5727, 8.507059e+37
    %v5729 = vand.u32 %v5715, 2147483648
    %v5730 = vor.u32 1.1754944e-38, %v5729
    %v5731 = vsel %vm5728, %v5730, %v5726
    %v5732 = vmul.f32 1.0, %v5731
    %v5733 = vrcp.pop %v5716
    %v5734 = vmul.f32 %v5716, %v5733
    %v5735 = vsub.f32 1.0, %v5734
    %v5736 = vmul.f32 %v5733, %v5735
    %v5737 = vadd.f32 %v5733, %v5736
    %vm5738 = vweird.f32 %v5716
    %vm5739 = vweird.f32 %v5733
    %vm5740 = vmor %vm5738, %vm5739
    %v5741 = vsel %vm5740, %v5733, %v5737
    %v5742 = vand.u32 2147483647, %v5716
    %vm5743 = vcmp.eq.f32.partialorder %v5742, 8.507059e+37
    %v5744 = vand.u32 %v5716, 2147483648
    %v5745 = vor.u32 1.1754944e-38, %v5744
    %v5746 = vsel %vm5743, %v5745, %v5741
    %v5747 = vmul.f32 1.0, %v5746
    %v5748 = vrcp.pop %v5717
    %v5749 = vmul.f32 %v5717, %v5748
    %v5750 = vsub.f32 1.0, %v5749
    %v5751 = vmul.f32 %v5748, %v5750
    %v5752 = vadd.f32 %v5748, %v5751
    %vm5753 = vweird.f32 %v5717
    %vm5754 = vweird.f32 %v5748
    %vm5755 = vmor %vm5753, %vm5754
    %v5756 = vsel %vm5755, %v5748, %v5752
    %v5757 = vand.u32 2147483647, %v5717
    %vm5758 = vcmp.eq.f32.partialorder %v5757, 8.507059e+37
    %v5759 = vand.u32 %v5717, 2147483648
    %v5760 = vor.u32 1.1754944e-38, %v5759
    %v5761 = vsel %vm5758, %v5760, %v5756
    %v5762 = vmul.f32 1.0, %v5761
    %v5763 = vtanh.pop %v5705
    %v5764 = vmul.f32 %v5747, %v4893
    %v5765 = vmul.f32 %v5732, %v5763
    %v5766 = vadd.f32 %v5764, %v5765
    %v5767 = vtanh.pop %v5766
    %v5768 = vmul.f32 %v5762, %v5767
    %5769 = vst [vmem:[#allocation3 + $0x28] sm:$0xff] %v5768
    %v5770 = vld [vmem:[#allocation2 + $0xc0] sm:$0xff]
    %v5771 = vld [vmem:[#allocation2 + $0xc8] sm:$0xff]
    %v5772 = vld [vmem:[#allocation2 + $0xd0] sm:$0xff]
    %v5773 = vld [vmem:[#allocation2 + $0xd8] sm:$0xff]
    %v5774 = vld [vmem:[#allocation9] sm:$0xff]
    %v5775 = vld [vmem:[#allocation9 + $0x8] sm:$0xff]
    %v5776 = vld [vmem:[#allocation9 + $0x10] sm:$0xff]
    %v5777 = vld [vmem:[#allocation9 + $0x18] sm:$0xff]
    %v5778 = vld [vmem:[#allocation9 + $0x20] sm:$0xff]
    %v5779 = vld [vmem:[#allocation9 + $0x28] sm:$0xff]
    %v5780 = vld [vmem:[#allocation9 + $0x30] sm:$0xff]
    %v5781 = vld [vmem:[#allocation9 + $0x38] sm:$0xff]
    %v5782 = vld [vmem:[#allocation9 + $0x40] sm:$0xff]
    %v5783 = vld [vmem:[#allocation9 + $0x48] sm:$0xff]
    %v5784 = vld [vmem:[#allocation9 + $0x50] sm:$0xff]
    %v5785 = vld [vmem:[#allocation9 + $0x58] sm:$0xff]
    %v5786 = vld [vmem:[#allocation9 + $0x60] sm:$0xff]
    %v5787 = vld [vmem:[#allocation9 + $0x68] sm:$0xff]
    %v5788 = vld [vmem:[#allocation9 + $0x70] sm:$0xff]
    %v5789 = vld [vmem:[#allocation9 + $0x78] sm:$0xff]
    %v5790 = vld [vmem:[#allocation9 + $0x80] sm:$0xff]
    %v5791 = vld [vmem:[#allocation9 + $0x88] sm:$0xff]
    %v5792 = vld [vmem:[#allocation9 + $0x90] sm:$0xff]
    %v5793 = vld [vmem:[#allocation9 + $0x98] sm:$0xff]
    %v5794 = vld [vmem:[#allocation9 + $0xa0] sm:$0xff]
    %v5795 = vld [vmem:[#allocation9 + $0xa8] sm:$0xff]
    %v5796 = vld [vmem:[#allocation9 + $0xb0] sm:$0xff]
    %v5797 = vld [vmem:[#allocation9 + $0xb8] sm:$0xff]
    %v5798 = vld [vmem:[#allocation9 + $0xc0] sm:$0xff]
    %v5799 = vld [vmem:[#allocation9 + $0xc8] sm:$0xff]
    %v5800 = vld [vmem:[#allocation9 + $0xd0] sm:$0xff]
    %v5801 = vld [vmem:[#allocation9 + $0xd8] sm:$0xff]
    %v5802 = vld [vmem:[#allocation9 + $0xe0] sm:$0xff]
    %v5803 = vld [vmem:[#allocation9 + $0xe8] sm:$0xff]
    %v5804 = vld [vmem:[#allocation9 + $0xf0] sm:$0xff]
    %v5805 = vld [vmem:[#allocation9 + $0xf8] sm:$0xff]
    %v5838 = vunpack.c.l.b16 %v5774
    %v5839 = vunpack.c.h.b16 %v5774
    %v5840 = vunpack.c.l.b16 %v5775
    %v5841 = vunpack.c.h.b16 %v5775
    %v5842 = vunpack.c.l.b16 %v5776
    %v5843 = vunpack.c.h.b16 %v5776
    %v5844 = vunpack.c.l.b16 %v5777
    %v5845 = vunpack.c.h.b16 %v5777
    %v5846 = vunpack.c.l.b16 %v5778
    %v5847 = vunpack.c.h.b16 %v5778
    %v5848 = vunpack.c.l.b16 %v5779
    %v5849 = vunpack.c.h.b16 %v5779
    %v5850 = vunpack.c.l.b16 %v5780
    %v5851 = vunpack.c.h.b16 %v5780
    %v5852 = vunpack.c.l.b16 %v5781
    %v5853 = vunpack.c.h.b16 %v5781
    %v5854 = vunpack.c.l.b16 %v5782
    %v5855 = vunpack.c.h.b16 %v5782
    %v5856 = vunpack.c.l.b16 %v5783
    %v5857 = vunpack.c.h.b16 %v5783
    %v5858 = vunpack.c.l.b16 %v5784
    %v5859 = vunpack.c.h.b16 %v5784
    %v5860 = vunpack.c.l.b16 %v5785
    %v5861 = vunpack.c.h.b16 %v5785
    %v5862 = vunpack.c.l.b16 %v5786
    %v5863 = vunpack.c.h.b16 %v5786
    %v5864 = vunpack.c.l.b16 %v5787
    %v5865 = vunpack.c.h.b16 %v5787
    %v5866 = vunpack.c.l.b16 %v5788
    %v5867 = vunpack.c.h.b16 %v5788
    %v5868 = vunpack.c.l.b16 %v5789
    %v5869 = vunpack.c.h.b16 %v5789
    %v5870 = vunpack.c.l.b16 %v5790
    %v5871 = vunpack.c.h.b16 %v5790
    %v5872 = vunpack.c.l.b16 %v5791
    %v5873 = vunpack.c.h.b16 %v5791
    %v5874 = vunpack.c.l.b16 %v5792
    %v5875 = vunpack.c.h.b16 %v5792
    %v5876 = vunpack.c.l.b16 %v5793
    %v5877 = vunpack.c.h.b16 %v5793
    %v5878 = vunpack.c.l.b16 %v5794
    %v5879 = vunpack.c.h.b16 %v5794
    %v5880 = vunpack.c.l.b16 %v5795
    %v5881 = vunpack.c.h.b16 %v5795
    %v5882 = vunpack.c.l.b16 %v5796
    %v5883 = vunpack.c.h.b16 %v5796
    %v5884 = vunpack.c.l.b16 %v5797
    %v5885 = vunpack.c.h.b16 %v5797
    %v5886 = vunpack.c.l.b16 %v5798
    %v5887 = vunpack.c.h.b16 %v5798
    %v5888 = vunpack.c.l.b16 %v5799
    %v5889 = vunpack.c.h.b16 %v5799
    %v5890 = vunpack.c.l.b16 %v5800
    %v5891 = vunpack.c.h.b16 %v5800
    %v5892 = vunpack.c.l.b16 %v5801
    %v5893 = vunpack.c.h.b16 %v5801
    %v5894 = vunpack.c.l.b16 %v5802
    %v5895 = vunpack.c.h.b16 %v5802
    %v5896 = vunpack.c.l.b16 %v5803
    %v5897 = vunpack.c.h.b16 %v5803
    %v5898 = vunpack.c.l.b16 %v5804
    %v5899 = vunpack.c.h.b16 %v5804
    %v5900 = vunpack.c.l.b16 %v5805
    %v5901 = vunpack.c.h.b16 %v5805
    %v5902 = vpack.c.b16 %v5842, %v5838
    %v5903 = vpack.c.b16 %v5843, %v5839
    %v5904 = vpack.c.b16 %v5844, %v5840
    %v5905 = vpack.c.b16 %v5845, %v5841
    %v5906 = vpack.c.b16 %v5850, %v5846
    %v5907 = vpack.c.b16 %v5851, %v5847
    %v5908 = vpack.c.b16 %v5852, %v5848
    %v5909 = vpack.c.b16 %v5853, %v5849
    %v5910 = vpack.c.b16 %v5858, %v5854
    %v5911 = vpack.c.b16 %v5859, %v5855
    %v5912 = vpack.c.b16 %v5860, %v5856
    %v5913 = vpack.c.b16 %v5861, %v5857
    %v5914 = vpack.c.b16 %v5866, %v5862
    %v5915 = vpack.c.b16 %v5867, %v5863
    %v5916 = vpack.c.b16 %v5868, %v5864
    %v5917 = vpack.c.b16 %v5869, %v5865
    %v5918 = vpack.c.b16 %v5874, %v5870
    %v5919 = vpack.c.b16 %v5875, %v5871
    %v5920 = vpack.c.b16 %v5876, %v5872
    %v5921 = vpack.c.b16 %v5877, %v5873
    %v5922 = vpack.c.b16 %v5882, %v5878
    %v5923 = vpack.c.b16 %v5883, %v5879
    %v5924 = vpack.c.b16 %v5884, %v5880
    %v5925 = vpack.c.b16 %v5885, %v5881
    %v5926 = vpack.c.b16 %v5890, %v5886
    %v5927 = vpack.c.b16 %v5891, %v5887
    %v5928 = vpack.c.b16 %v5892, %v5888
    %v5929 = vpack.c.b16 %v5893, %v5889
    %v5930 = vpack.c.b16 %v5898, %v5894
    %v5931 = vpack.c.b16 %v5899, %v5895
    %v5932 = vpack.c.b16 %v5900, %v5896
    %v5933 = vpack.c.b16 %v5901, %v5897
    %5966 = vmatpush.bf16.msra.mxu0 %v5930
    %5967 = vmatpush.bf16.msra.mxu0 %v5926
    %5968 = vmatpush.bf16.msra.mxu0 %v5922
    %5969 = vmatpush.bf16.msra.mxu0 %v5918
    %5970 = vmatpush.bf16.msra.mxu0 %v5914
    %5971 = vmatpush.bf16.msra.mxu0 %v5910
    %5972 = vmatpush.bf16.msra.mxu0 %v5906
    %5973 = vmatpush.bf16.msra.mxu0 %v5902
    %5974 = vmatmul.bf16.gmra.mxu0 %v5212
    %v5975 = vpop.f32.mrf.mxu0
    %v5976 = vadd.f32 0.0, %v5975
    %v5977 = vpop.f32.mrf.mxu0
    %5978 = vdwg.mxu0
    %5979 = vmatpush.bf16.msra.mxu0 %v5931
    %5980 = vmatpush.bf16.msra.mxu0 %v5927
    %5981 = vmatpush.bf16.msra.mxu0 %v5923
    %5982 = vmatpush.bf16.msra.mxu0 %v5919
    %5983 = vmatpush.bf16.msra.mxu0 %v5915
    %5984 = vmatpush.bf16.msra.mxu0 %v5911
    %5985 = vmatpush.bf16.msra.mxu0 %v5907
    %5986 = vmatpush.bf16.msra.mxu0 %v5903
    %5987 = vmatmul.bf16.gmra.mxu0 %v5212
    %v5988 = vpop.f32.mrf.mxu0
    %v5989 = vadd.f32 0.0, %v5988
    %v5990 = vpop.f32.mrf.mxu0
    %5991 = vdwg.mxu0
    %5992 = vmatpush.bf16.msra.mxu0 %v5932
    %5993 = vmatpush.bf16.msra.mxu0 %v5928
    %5994 = vmatpush.bf16.msra.mxu0 %v5924
    %5995 = vmatpush.bf16.msra.mxu0 %v5920
    %5996 = vmatpush.bf16.msra.mxu0 %v5916
    %5997 = vmatpush.bf16.msra.mxu0 %v5912
    %5998 = vmatpush.bf16.msra.mxu0 %v5908
    %5999 = vmatpush.bf16.msra.mxu0 %v5904
    %6000 = vmatmul.bf16.gmra.mxu0 %v5212
    %v6001 = vpop.f32.mrf.mxu0
    %v6002 = vadd.f32 0.0, %v6001
    %v6003 = vpop.f32.mrf.mxu0
    %6004 = vdwg.mxu0
    %6005 = vmatpush.bf16.msra.mxu0 %v5933
    %6006 = vmatpush.bf16.msra.mxu0 %v5929
    %6007 = vmatpush.bf16.msra.mxu0 %v5925
    %6008 = vmatpush.bf16.msra.mxu0 %v5921
    %6009 = vmatpush.bf16.msra.mxu0 %v5917
    %6010 = vmatpush.bf16.msra.mxu0 %v5913
    %6011 = vmatpush.bf16.msra.mxu0 %v5909
    %6012 = vmatpush.bf16.msra.mxu0 %v5905
    %6013 = vmatmul.bf16.gmra.mxu0 %v5212
    %v6014 = vpop.f32.mrf.mxu0
    %v6015 = vadd.f32 0.0, %v6014
    %v6016 = vpop.f32.mrf.mxu0
    %6017 = vdwg.mxu0
    %v6018 = vadd.f32 %v5770, %v5976
    %v6019 = vadd.f32 %v5771, %v5989
    %v6020 = vadd.f32 %v5772, %v6002
    %v6021 = vadd.f32 %v5773, %v6015
    %v6022 = vxor.u32 %v6018, 2147483648
    %v6023 = vxor.u32 %v6019, 2147483648
    %v6024 = vxor.u32 %v6020, 2147483648
    %v6025 = vmul.f32 %v6022, 1.442695
    %v6026 = vpow.pop %v6025
    %v6027 = vmul.f32 %v6023, 1.442695
    %v6028 = vpow.pop %v6027
    %v6029 = vmul.f32 %v6024, 1.442695
    %v6030 = vpow.pop %v6029
    %v6031 = vadd.f32 %v6026, 1.0
    %v6032 = vadd.f32 %v6028, 1.0
    %v6033 = vadd.f32 %v6030, 1.0
    %v6034 = vrcp.pop %v6031
    %v6035 = vmul.f32 %v6031, %v6034
    %v6036 = vsub.f32 1.0, %v6035
    %v6037 = vmul.f32 %v6034, %v6036
    %v6038 = vadd.f32 %v6034, %v6037
    %vm6039 = vweird.f32 %v6031
    %vm6040 = vweird.f32 %v6034
    %vm6041 = vmor %vm6039, %vm6040
    %v6042 = vsel %vm6041, %v6034, %v6038
    %v6043 = vand.u32 2147483647, %v6031
    %vm6044 = vcmp.eq.f32.partialorder %v6043, 8.507059e+37
    %v6045 = vand.u32 %v6031, 2147483648
    %v6046 = vor.u32 1.1754944e-38, %v6045
    %v6047 = vsel %vm6044, %v6046, %v6042
    %v6048 = vmul.f32 1.0, %v6047
    %v6049 = vrcp.pop %v6032
    %v6050 = vmul.f32 %v6032, %v6049
    %v6051 = vsub.f32 1.0, %v6050
    %v6052 = vmul.f32 %v6049, %v6051
    %v6053 = vadd.f32 %v6049, %v6052
    %vm6054 = vweird.f32 %v6032
    %vm6055 = vweird.f32 %v6049
    %vm6056 = vmor %vm6054, %vm6055
    %v6057 = vsel %vm6056, %v6049, %v6053
    %v6058 = vand.u32 2147483647, %v6032
    %vm6059 = vcmp.eq.f32.partialorder %v6058, 8.507059e+37
    %v6060 = vand.u32 %v6032, 2147483648
    %v6061 = vor.u32 1.1754944e-38, %v6060
    %v6062 = vsel %vm6059, %v6061, %v6057
    %v6063 = vmul.f32 1.0, %v6062
    %v6064 = vrcp.pop %v6033
    %v6065 = vmul.f32 %v6033, %v6064
    %v6066 = vsub.f32 1.0, %v6065
    %v6067 = vmul.f32 %v6064, %v6066
    %v6068 = vadd.f32 %v6064, %v6067
    %vm6069 = vweird.f32 %v6033
    %vm6070 = vweird.f32 %v6064
    %vm6071 = vmor %vm6069, %vm6070
    %v6072 = vsel %vm6071, %v6064, %v6068
    %v6073 = vand.u32 2147483647, %v6033
    %vm6074 = vcmp.eq.f32.partialorder %v6073, 8.507059e+37
    %v6075 = vand.u32 %v6033, 2147483648
    %v6076 = vor.u32 1.1754944e-38, %v6075
    %v6077 = vsel %vm6074, %v6076, %v6072
    %v6078 = vmul.f32 1.0, %v6077
    %v6079 = vtanh.pop %v6021
    %v6080 = vmul.f32 %v6063, %v5209
    %v6081 = vmul.f32 %v6048, %v6079
    %v6082 = vadd.f32 %v6080, %v6081
    %v6083 = vtanh.pop %v6082
    %v6084 = vmul.f32 %v6078, %v6083
    %v6085 = vpack.c.bf16 %v6084, %v6084
    %v6086 = vld [vmem:[#allocation12] sm:$0xff]
    %v6087 = vld [vmem:[#allocation12 + $0x8] sm:$0xff]
    %v6088 = vld [vmem:[#allocation12 + $0x10] sm:$0xff]
    %v6089 = vld [vmem:[#allocation12 + $0x18] sm:$0xff]
    %v6090 = vld [vmem:[#allocation12 + $0x20] sm:$0xff]
    %v6091 = vld [vmem:[#allocation12 + $0x28] sm:$0xff]
    %v6092 = vld [vmem:[#allocation12 + $0x30] sm:$0xff]
    %v6093 = vld [vmem:[#allocation12 + $0x38] sm:$0xff]
    %v6094 = vld [vmem:[#allocation12 + $0x40] sm:$0xff]
    %v6095 = vld [vmem:[#allocation12 + $0x48] sm:$0xff]
    %v6096 = vld [vmem:[#allocation12 + $0x50] sm:$0xff]
    %v6097 = vld [vmem:[#allocation12 + $0x58] sm:$0xff]
    %v6098 = vld [vmem:[#allocation12 + $0x60] sm:$0xff]
    %v6099 = vld [vmem:[#allocation12 + $0x68] sm:$0xff]
    %v6100 = vld [vmem:[#allocation12 + $0x70] sm:$0xff]
    %v6101 = vld [vmem:[#allocation12 + $0x78] sm:$0xff]
    %v6102 = vld [vmem:[#allocation12 + $0x80] sm:$0xff]
    %v6103 = vld [vmem:[#allocation12 + $0x88] sm:$0xff]
    %v6104 = vld [vmem:[#allocation12 + $0x90] sm:$0xff]
    %v6105 = vld [vmem:[#allocation12 + $0x98] sm:$0xff]
    %v6106 = vld [vmem:[#allocation12 + $0xa0] sm:$0xff]
    %v6107 = vld [vmem:[#allocation12 + $0xa8] sm:$0xff]
    %v6108 = vld [vmem:[#allocation12 + $0xb0] sm:$0xff]
    %v6109 = vld [vmem:[#allocation12 + $0xb8] sm:$0xff]
    %v6110 = vld [vmem:[#allocation12 + $0xc0] sm:$0xff]
    %v6111 = vld [vmem:[#allocation12 + $0xc8] sm:$0xff]
    %v6112 = vld [vmem:[#allocation12 + $0xd0] sm:$0xff]
    %v6113 = vld [vmem:[#allocation12 + $0xd8] sm:$0xff]
    %v6114 = vld [vmem:[#allocation12 + $0xe0] sm:$0xff]
    %v6115 = vld [vmem:[#allocation12 + $0xe8] sm:$0xff]
    %v6116 = vld [vmem:[#allocation12 + $0xf0] sm:$0xff]
    %v6117 = vld [vmem:[#allocation12 + $0xf8] sm:$0xff]
    %v6118 = vpack.c.bf16 %v5768, %v5768
    %v6119 = vld [vmem:[#allocation13] sm:$0xff]
    %v6120 = vld [vmem:[#allocation13 + $0x8] sm:$0xff]
    %v6121 = vld [vmem:[#allocation13 + $0x10] sm:$0xff]
    %v6122 = vld [vmem:[#allocation13 + $0x18] sm:$0xff]
    %v6123 = vld [vmem:[#allocation13 + $0x20] sm:$0xff]
    %v6124 = vld [vmem:[#allocation13 + $0x28] sm:$0xff]
    %v6125 = vld [vmem:[#allocation13 + $0x30] sm:$0xff]
    %v6126 = vld [vmem:[#allocation13 + $0x38] sm:$0xff]
    %v6127 = vld [vmem:[#allocation13 + $0x40] sm:$0xff]
    %v6128 = vld [vmem:[#allocation13 + $0x48] sm:$0xff]
    %v6129 = vld [vmem:[#allocation13 + $0x50] sm:$0xff]
    %v6130 = vld [vmem:[#allocation13 + $0x58] sm:$0xff]
    %v6131 = vld [vmem:[#allocation13 + $0x60] sm:$0xff]
    %v6132 = vld [vmem:[#allocation13 + $0x68] sm:$0xff]
    %v6133 = vld [vmem:[#allocation13 + $0x70] sm:$0xff]
    %v6134 = vld [vmem:[#allocation13 + $0x78] sm:$0xff]
    %v6135 = vld [vmem:[#allocation13 + $0x80] sm:$0xff]
    %v6136 = vld [vmem:[#allocation13 + $0x88] sm:$0xff]
    %v6137 = vld [vmem:[#allocation13 + $0x90] sm:$0xff]
    %v6138 = vld [vmem:[#allocation13 + $0x98] sm:$0xff]
    %v6139 = vld [vmem:[#allocation13 + $0xa0] sm:$0xff]
    %v6140 = vld [vmem:[#allocation13 + $0xa8] sm:$0xff]
    %v6141 = vld [vmem:[#allocation13 + $0xb0] sm:$0xff]
    %v6142 = vld [vmem:[#allocation13 + $0xb8] sm:$0xff]
    %v6143 = vld [vmem:[#allocation13 + $0xc0] sm:$0xff]
    %v6144 = vld [vmem:[#allocation13 + $0xc8] sm:$0xff]
    %v6145 = vld [vmem:[#allocation13 + $0xd0] sm:$0xff]
    %v6146 = vld [vmem:[#allocation13 + $0xd8] sm:$0xff]
    %v6147 = vld [vmem:[#allocation13 + $0xe0] sm:$0xff]
    %v6148 = vld [vmem:[#allocation13 + $0xe8] sm:$0xff]
    %v6149 = vld [vmem:[#allocation13 + $0xf0] sm:$0xff]
    %v6150 = vld [vmem:[#allocation13 + $0xf8] sm:$0xff]
    %v6183 = vunpack.c.l.b16 %v6119
    %v6184 = vunpack.c.h.b16 %v6119
    %v6185 = vunpack.c.l.b16 %v6120
    %v6186 = vunpack.c.h.b16 %v6120
    %v6187 = vunpack.c.l.b16 %v6121
    %v6188 = vunpack.c.h.b16 %v6121
    %v6189 = vunpack.c.l.b16 %v6122
    %v6190 = vunpack.c.h.b16 %v6122
    %v6191 = vunpack.c.l.b16 %v6123
    %v6192 = vunpack.c.h.b16 %v6123
    %v6193 = vunpack.c.l.b16 %v6124
    %v6194 = vunpack.c.h.b16 %v6124
    %v6195 = vunpack.c.l.b16 %v6125
    %v6196 = vunpack.c.h.b16 %v6125
    %v6197 = vunpack.c.l.b16 %v6126
    %v6198 = vunpack.c.h.b16 %v6126
    %v6199 = vunpack.c.l.b16 %v6127
    %v6200 = vunpack.c.h.b16 %v6127
    %v6201 = vunpack.c.l.b16 %v6128
    %v6202 = vunpack.c.h.b16 %v6128
    %v6203 = vunpack.c.l.b16 %v6129
    %v6204 = vunpack.c.h.b16 %v6129
    %v6205 = vunpack.c.l.b16 %v6130
    %v6206 = vunpack.c.h.b16 %v6130
    %v6207 = vunpack.c.l.b16 %v6131
    %v6208 = vunpack.c.h.b16 %v6131
    %v6209 = vunpack.c.l.b16 %v6132
    %v6210 = vunpack.c.h.b16 %v6132
    %v6211 = vunpack.c.l.b16 %v6133
    %v6212 = vunpack.c.h.b16 %v6133
    %v6213 = vunpack.c.l.b16 %v6134
    %v6214 = vunpack.c.h.b16 %v6134
    %v6215 = vunpack.c.l.b16 %v6135
    %v6216 = vunpack.c.h.b16 %v6135
    %v6217 = vunpack.c.l.b16 %v6136
    %v6218 = vunpack.c.h.b16 %v6136
    %v6219 = vunpack.c.l.b16 %v6137
    %v6220 = vunpack.c.h.b16 %v6137
    %v6221 = vunpack.c.l.b16 %v6138
    %v6222 = vunpack.c.h.b16 %v6138
    %v6223 = vunpack.c.l.b16 %v6139
    %v6224 = vunpack.c.h.b16 %v6139
    %v6225 = vunpack.c.l.b16 %v6140
    %v6226 = vunpack.c.h.b16 %v6140
    %v6227 = vunpack.c.l.b16 %v6141
    %v6228 = vunpack.c.h.b16 %v6141
    %v6229 = vunpack.c.l.b16 %v6142
    %v6230 = vunpack.c.h.b16 %v6142
    %v6231 = vunpack.c.l.b16 %v6143
    %v6232 = vunpack.c.h.b16 %v6143
    %v6233 = vunpack.c.l.b16 %v6144
    %v6234 = vunpack.c.h.b16 %v6144
    %v6235 = vunpack.c.l.b16 %v6145
    %v6236 = vunpack.c.h.b16 %v6145
    %v6237 = vunpack.c.l.b16 %v6146
    %v6238 = vunpack.c.h.b16 %v6146
    %v6239 = vunpack.c.l.b16 %v6147
    %v6240 = vunpack.c.h.b16 %v6147
    %v6241 = vunpack.c.l.b16 %v6148
    %v6242 = vunpack.c.h.b16 %v6148
    %v6243 = vunpack.c.l.b16 %v6149
    %v6244 = vunpack.c.h.b16 %v6149
    %v6245 = vunpack.c.l.b16 %v6150
    %v6246 = vunpack.c.h.b16 %v6150
    %v6247 = vpack.c.b16 %v6187, %v6183
    %v6248 = vpack.c.b16 %v6188, %v6184
    %v6249 = vpack.c.b16 %v6189, %v6185
    %v6250 = vpack.c.b16 %v6190, %v6186
    %v6251 = vpack.c.b16 %v6195, %v6191
    %v6252 = vpack.c.b16 %v6196, %v6192
    %v6253 = vpack.c.b16 %v6197, %v6193
    %v6254 = vpack.c.b16 %v6198, %v6194
    %v6255 = vpack.c.b16 %v6203, %v6199
    %v6256 = vpack.c.b16 %v6204, %v6200
    %v6257 = vpack.c.b16 %v6205, %v6201
    %v6258 = vpack.c.b16 %v6206, %v6202
    %v6259 = vpack.c.b16 %v6211, %v6207
    %v6260 = vpack.c.b16 %v6212, %v6208
    %v6261 = vpack.c.b16 %v6213, %v6209
    %v6262 = vpack.c.b16 %v6214, %v6210
    %v6263 = vpack.c.b16 %v6219, %v6215
    %v6264 = vpack.c.b16 %v6220, %v6216
    %v6265 = vpack.c.b16 %v6221, %v6217
    %v6266 = vpack.c.b16 %v6222, %v6218
    %v6267 = vpack.c.b16 %v6227, %v6223
    %v6268 = vpack.c.b16 %v6228, %v6224
    %v6269 = vpack.c.b16 %v6229, %v6225
    %v6270 = vpack.c.b16 %v6230, %v6226
    %v6271 = vpack.c.b16 %v6235, %v6231
    %v6272 = vpack.c.b16 %v6236, %v6232
    %v6273 = vpack.c.b16 %v6237, %v6233
    %v6274 = vpack.c.b16 %v6238, %v6234
    %v6275 = vpack.c.b16 %v6243, %v6239
    %v6276 = vpack.c.b16 %v6244, %v6240
    %v6277 = vpack.c.b16 %v6245, %v6241
    %v6278 = vpack.c.b16 %v6246, %v6242
    %6311 = vmatpush.bf16.msra.mxu0 %v6275
    %6312 = vmatpush.bf16.msra.mxu0 %v6271
    %6313 = vmatpush.bf16.msra.mxu0 %v6267
    %6314 = vmatpush.bf16.msra.mxu0 %v6263
    %6315 = vmatpush.bf16.msra.mxu0 %v6259
    %6316 = vmatpush.bf16.msra.mxu0 %v6255
    %6317 = vmatpush.bf16.msra.mxu0 %v6251
    %6318 = vmatpush.bf16.msra.mxu0 %v6247
    %6319 = vmatmul.bf16.gmra.mxu0 %v6118
    %v6320 = vpop.f32.mrf.mxu0
    %v6321 = vadd.f32 0.0, %v6320
    %v6322 = vpop.f32.mrf.mxu0
    %6323 = vdwg.mxu0
    %6324 = vmatpush.bf16.msra.mxu0 %v6276
    %6325 = vmatpush.bf16.msra.mxu0 %v6272
    %6326 = vmatpush.bf16.msra.mxu0 %v6268
    %6327 = vmatpush.bf16.msra.mxu0 %v6264
    %6328 = vmatpush.bf16.msra.mxu0 %v6260
    %6329 = vmatpush.bf16.msra.mxu0 %v6256
    %6330 = vmatpush.bf16.msra.mxu0 %v6252
    %6331 = vmatpush.bf16.msra.mxu0 %v6248
    %6332 = vmatmul.bf16.gmra.mxu0 %v6118
    %v6333 = vpop.f32.mrf.mxu0
    %v6334 = vadd.f32 0.0, %v6333
    %v6335 = vpop.f32.mrf.mxu0
    %6336 = vdwg.mxu0
    %6337 = vmatpush.bf16.msra.mxu0 %v6277
    %6338 = vmatpush.bf16.msra.mxu0 %v6273
    %6339 = vmatpush.bf16.msra.mxu0 %v6269
    %6340 = vmatpush.bf16.msra.mxu0 %v6265
    %6341 = vmatpush.bf16.msra.mxu0 %v6261
    %6342 = vmatpush.bf16.msra.mxu0 %v6257
    %6343 = vmatpush.bf16.msra.mxu0 %v6253
    %6344 = vmatpush.bf16.msra.mxu0 %v6249
    %6345 = vmatmul.bf16.gmra.mxu0 %v6118
    %v6346 = vpop.f32.mrf.mxu0
    %v6347 = vadd.f32 0.0, %v6346
    %v6348 = vpop.f32.mrf.mxu0
    %6349 = vdwg.mxu0
    %6350 = vmatpush.bf16.msra.mxu0 %v6278
    %6351 = vmatpush.bf16.msra.mxu0 %v6274
    %6352 = vmatpush.bf16.msra.mxu0 %v6270
    %6353 = vmatpush.bf16.msra.mxu0 %v6266
    %6354 = vmatpush.bf16.msra.mxu0 %v6262
    %6355 = vmatpush.bf16.msra.mxu0 %v6258
    %6356 = vmatpush.bf16.msra.mxu0 %v6254
    %6357 = vmatpush.bf16.msra.mxu0 %v6250
    %6358 = vmatmul.bf16.gmra.mxu0 %v6118
    %v6359 = vpop.f32.mrf.mxu0
    %v6360 = vadd.f32 0.0, %v6359
    %v6361 = vpop.f32.mrf.mxu0
    %6362 = vdwg.mxu0
    %v6395 = vunpack.c.l.b16 %v6086
    %v6396 = vunpack.c.h.b16 %v6086
    %v6397 = vunpack.c.l.b16 %v6087
    %v6398 = vunpack.c.h.b16 %v6087
    %v6399 = vunpack.c.l.b16 %v6088
    %v6400 = vunpack.c.h.b16 %v6088
    %v6401 = vunpack.c.l.b16 %v6089
    %v6402 = vunpack.c.h.b16 %v6089
    %v6403 = vunpack.c.l.b16 %v6090
    %v6404 = vunpack.c.h.b16 %v6090
    %v6405 = vunpack.c.l.b16 %v6091
    %v6406 = vunpack.c.h.b16 %v6091
    %v6407 = vunpack.c.l.b16 %v6092
    %v6408 = vunpack.c.h.b16 %v6092
    %v6409 = vunpack.c.l.b16 %v6093
    %v6410 = vunpack.c.h.b16 %v6093
    %v6411 = vunpack.c.l.b16 %v6094
    %v6412 = vunpack.c.h.b16 %v6094
    %v6413 = vunpack.c.l.b16 %v6095
    %v6414 = vunpack.c.h.b16 %v6095
    %v6415 = vunpack.c.l.b16 %v6096
    %v6416 = vunpack.c.h.b16 %v6096
    %v6417 = vunpack.c.l.b16 %v6097
    %v6418 = vunpack.c.h.b16 %v6097
    %v6419 = vunpack.c.l.b16 %v6098
    %v6420 = vunpack.c.h.b16 %v6098
    %v6421 = vunpack.c.l.b16 %v6099
    %v6422 = vunpack.c.h.b16 %v6099
    %v6423 = vunpack.c.l.b16 %v6100
    %v6424 = vunpack.c.h.b16 %v6100
    %v6425 = vunpack.c.l.b16 %v6101
    %v6426 = vunpack.c.h.b16 %v6101
    %v6427 = vunpack.c.l.b16 %v6102
    %v6428 = vunpack.c.h.b16 %v6102
    %v6429 = vunpack.c.l.b16 %v6103
    %v6430 = vunpack.c.h.b16 %v6103
    %v6431 = vunpack.c.l.b16 %v6104
    %v6432 = vunpack.c.h.b16 %v6104
    %v6433 = vunpack.c.l.b16 %v6105
    %v6434 = vunpack.c.h.b16 %v6105
    %v6435 = vunpack.c.l.b16 %v6106
    %v6436 = vunpack.c.h.b16 %v6106
    %v6437 = vunpack.c.l.b16 %v6107
    %v6438 = vunpack.c.h.b16 %v6107
    %v6439 = vunpack.c.l.b16 %v6108
    %v6440 = vunpack.c.h.b16 %v6108
    %v6441 = vunpack.c.l.b16 %v6109
    %v6442 = vunpack.c.h.b16 %v6109
    %v6443 = vunpack.c.l.b16 %v6110
    %v6444 = vunpack.c.h.b16 %v6110
    %v6445 = vunpack.c.l.b16 %v6111
    %v6446 = vunpack.c.h.b16 %v6111
    %v6447 = vunpack.c.l.b16 %v6112
    %v6448 = vunpack.c.h.b16 %v6112
    %v6449 = vunpack.c.l.b16 %v6113
    %v6450 = vunpack.c.h.b16 %v6113
    %v6451 = vunpack.c.l.b16 %v6114
    %v6452 = vunpack.c.h.b16 %v6114
    %v6453 = vunpack.c.l.b16 %v6115
    %v6454 = vunpack.c.h.b16 %v6115
    %v6455 = vunpack.c.l.b16 %v6116
    %v6456 = vunpack.c.h.b16 %v6116
    %v6457 = vunpack.c.l.b16 %v6117
    %v6458 = vunpack.c.h.b16 %v6117
    %v6459 = vpack.c.b16 %v6399, %v6395
    %v6460 = vpack.c.b16 %v6400, %v6396
    %v6461 = vpack.c.b16 %v6401, %v6397
    %v6462 = vpack.c.b16 %v6402, %v6398
    %v6463 = vpack.c.b16 %v6407, %v6403
    %v6464 = vpack.c.b16 %v6408, %v6404
    %v6465 = vpack.c.b16 %v6409, %v6405
    %v6466 = vpack.c.b16 %v6410, %v6406
    %v6467 = vpack.c.b16 %v6415, %v6411
    %v6468 = vpack.c.b16 %v6416, %v6412
    %v6469 = vpack.c.b16 %v6417, %v6413
    %v6470 = vpack.c.b16 %v6418, %v6414
    %v6471 = vpack.c.b16 %v6423, %v6419
    %v6472 = vpack.c.b16 %v6424, %v6420
    %v6473 = vpack.c.b16 %v6425, %v6421
    %v6474 = vpack.c.b16 %v6426, %v6422
    %v6475 = vpack.c.b16 %v6431, %v6427
    %v6476 = vpack.c.b16 %v6432, %v6428
    %v6477 = vpack.c.b16 %v6433, %v6429
    %v6478 = vpack.c.b16 %v6434, %v6430
    %v6479 = vpack.c.b16 %v6439, %v6435
    %v6480 = vpack.c.b16 %v6440, %v6436
    %v6481 = vpack.c.b16 %v6441, %v6437
    %v6482 = vpack.c.b16 %v6442, %v6438
    %v6483 = vpack.c.b16 %v6447, %v6443
    %v6484 = vpack.c.b16 %v6448, %v6444
    %v6485 = vpack.c.b16 %v6449, %v6445
    %v6486 = vpack.c.b16 %v6450, %v6446
    %v6487 = vpack.c.b16 %v6455, %v6451
    %v6488 = vpack.c.b16 %v6456, %v6452
    %v6489 = vpack.c.b16 %v6457, %v6453
    %v6490 = vpack.c.b16 %v6458, %v6454
    %6523 = vmatpush.bf16.msra.mxu0 %v6487
    %6524 = vmatpush.bf16.msra.mxu0 %v6483
    %6525 = vmatpush.bf16.msra.mxu0 %v6479
    %6526 = vmatpush.bf16.msra.mxu0 %v6475
    %6527 = vmatpush.bf16.msra.mxu0 %v6471
    %6528 = vmatpush.bf16.msra.mxu0 %v6467
    %6529 = vmatpush.bf16.msra.mxu0 %v6463
    %6530 = vmatpush.bf16.msra.mxu0 %v6459
    %6531 = vmatmul.bf16.gmra.mxu0 %v6085
    %v6532 = vpop.f32.mrf.mxu0
    %v6533 = vadd.f32 %v6321, %v6532
    %v6534 = vpop.f32.mrf.mxu0
    %6535 = vdwg.mxu0
    %6536 = vmatpush.bf16.msra.mxu0 %v6488
    %6537 = vmatpush.bf16.msra.mxu0 %v6484
    %6538 = vmatpush.bf16.msra.mxu0 %v6480
    %6539 = vmatpush.bf16.msra.mxu0 %v6476
    %6540 = vmatpush.bf16.msra.mxu0 %v6472
    %6541 = vmatpush.bf16.msra.mxu0 %v6468
    %6542 = vmatpush.bf16.msra.mxu0 %v6464
    %6543 = vmatpush.bf16.msra.mxu0 %v6460
    %6544 = vmatmul.bf16.gmra.mxu0 %v6085
    %v6545 = vpop.f32.mrf.mxu0
    %v6546 = vadd.f32 %v6334, %v6545
    %v6547 = vpop.f32.mrf.mxu0
    %6548 = vdwg.mxu0
    %6549 = vmatpush.bf16.msra.mxu0 %v6489
    %6550 = vmatpush.bf16.msra.mxu0 %v6485
    %6551 = vmatpush.bf16.msra.mxu0 %v6481
    %6552 = vmatpush.bf16.msra.mxu0 %v6477
    %6553 = vmatpush.bf16.msra.mxu0 %v6473
    %6554 = vmatpush.bf16.msra.mxu0 %v6469
    %6555 = vmatpush.bf16.msra.mxu0 %v6465
    %6556 = vmatpush.bf16.msra.mxu0 %v6461
    %6557 = vmatmul.bf16.gmra.mxu0 %v6085
    %v6558 = vpop.f32.mrf.mxu0
    %v6559 = vadd.f32 %v6347, %v6558
    %v6560 = vpop.f32.mrf.mxu0
    %6561 = vdwg.mxu0
    %6562 = vmatpush.bf16.msra.mxu0 %v6490
    %6563 = vmatpush.bf16.msra.mxu0 %v6486
    %6564 = vmatpush.bf16.msra.mxu0 %v6482
    %6565 = vmatpush.bf16.msra.mxu0 %v6478
    %6566 = vmatpush.bf16.msra.mxu0 %v6474
    %6567 = vmatpush.bf16.msra.mxu0 %v6470
    %6568 = vmatpush.bf16.msra.mxu0 %v6466
    %6569 = vmatpush.bf16.msra.mxu0 %v6462
    %6570 = vmatmul.bf16.gmra.mxu0 %v6085
    %v6571 = vpop.f32.mrf.mxu0
    %v6572 = vadd.f32 %v6360, %v6571
    %v6573 = vpop.f32.mrf.mxu0
    %6574 = vdwg.mxu0
    %v6575 = vadd.f32 %v6533, %v525
    %v6576 = vadd.f32 %v6546, %v526
    %v6577 = vadd.f32 %v6559, %v527
    %v6578 = vadd.f32 %v6572, %v528
    %v6579 = vxor.u32 %v6575, 2147483648
    %v6580 = vxor.u32 %v6576, 2147483648
    %v6581 = vxor.u32 %v6577, 2147483648
    %v6582 = vmul.f32 %v6579, 1.442695
    %v6583 = vpow.pop %v6582
    %v6584 = vmul.f32 %v6580, 1.442695
    %v6585 = vpow.pop %v6584
    %v6586 = vmul.f32 %v6581, 1.442695
    %v6587 = vpow.pop %v6586
    %v6588 = vadd.f32 %v6583, 1.0
    %v6589 = vadd.f32 %v6585, 1.0
    %v6590 = vadd.f32 %v6587, 1.0
    %v6591 = vrcp.pop %v6588
    %v6592 = vmul.f32 %v6588, %v6591
    %v6593 = vsub.f32 1.0, %v6592
    %v6594 = vmul.f32 %v6591, %v6593
    %v6595 = vadd.f32 %v6591, %v6594
    %vm6596 = vweird.f32 %v6588
    %vm6597 = vweird.f32 %v6591
    %vm6598 = vmor %vm6596, %vm6597
    %v6599 = vsel %vm6598, %v6591, %v6595
    %v6600 = vand.u32 2147483647, %v6588
    %vm6601 = vcmp.eq.f32.partialorder %v6600, 8.507059e+37
    %v6602 = vand.u32 %v6588, 2147483648
    %v6603 = vor.u32 1.1754944e-38, %v6602
    %v6604 = vsel %vm6601, %v6603, %v6599
    %v6605 = vmul.f32 1.0, %v6604
    %v6606 = vrcp.pop %v6589
    %v6607 = vmul.f32 %v6589, %v6606
    %v6608 = vsub.f32 1.0, %v6607
    %v6609 = vmul.f32 %v6606, %v6608
    %v6610 = vadd.f32 %v6606, %v6609
    %vm6611 = vweird.f32 %v6589
    %vm6612 = vweird.f32 %v6606
    %vm6613 = vmor %vm6611, %vm6612
    %v6614 = vsel %vm6613, %v6606, %v6610
    %v6615 = vand.u32 2147483647, %v6589
    %vm6616 = vcmp.eq.f32.partialorder %v6615, 8.507059e+37
    %v6617 = vand.u32 %v6589, 2147483648
    %v6618 = vor.u32 1.1754944e-38, %v6617
    %v6619 = vsel %vm6616, %v6618, %v6614
    %v6620 = vmul.f32 1.0, %v6619
    %v6621 = vrcp.pop %v6590
    %v6622 = vmul.f32 %v6590, %v6621
    %v6623 = vsub.f32 1.0, %v6622
    %v6624 = vmul.f32 %v6621, %v6623
    %v6625 = vadd.f32 %v6621, %v6624
    %vm6626 = vweird.f32 %v6590
    %vm6627 = vweird.f32 %v6621
    %vm6628 = vmor %vm6626, %vm6627
    %v6629 = vsel %vm6628, %v6621, %v6625
    %v6630 = vand.u32 2147483647, %v6590
    %vm6631 = vcmp.eq.f32.partialorder %v6630, 8.507059e+37
    %v6632 = vand.u32 %v6590, 2147483648
    %v6633 = vor.u32 1.1754944e-38, %v6632
    %v6634 = vsel %vm6631, %v6633, %v6629
    %v6635 = vmul.f32 1.0, %v6634
    %v6636 = vtanh.pop %v6578
    %v6637 = vmul.f32 %v6620, %v5766
    %v6638 = vmul.f32 %v6605, %v6636
    %v6639 = vadd.f32 %v6637, %v6638
    %v6640 = vtanh.pop %v6639
    %v6641 = vmul.f32 %v6635, %v6640
    %6642 = vst [vmem:[#allocation3 + $0x30] sm:$0xff] %v6641
    %v6643 = vld [vmem:[#allocation2 + $0xe0] sm:$0xff]
    %v6644 = vld [vmem:[#allocation2 + $0xe8] sm:$0xff]
    %v6645 = vld [vmem:[#allocation2 + $0xf0] sm:$0xff]
    %v6646 = vld [vmem:[#allocation2 + $0xf8] sm:$0xff]
    %v6647 = vld [vmem:[#allocation9] sm:$0xff]
    %v6648 = vld [vmem:[#allocation9 + $0x8] sm:$0xff]
    %v6649 = vld [vmem:[#allocation9 + $0x10] sm:$0xff]
    %v6650 = vld [vmem:[#allocation9 + $0x18] sm:$0xff]
    %v6651 = vld [vmem:[#allocation9 + $0x20] sm:$0xff]
    %v6652 = vld [vmem:[#allocation9 + $0x28] sm:$0xff]
    %v6653 = vld [vmem:[#allocation9 + $0x30] sm:$0xff]
    %v6654 = vld [vmem:[#allocation9 + $0x38] sm:$0xff]
    %v6655 = vld [vmem:[#allocation9 + $0x40] sm:$0xff]
    %v6656 = vld [vmem:[#allocation9 + $0x48] sm:$0xff]
    %v6657 = vld [vmem:[#allocation9 + $0x50] sm:$0xff]
    %v6658 = vld [vmem:[#allocation9 + $0x58] sm:$0xff]
    %v6659 = vld [vmem:[#allocation9 + $0x60] sm:$0xff]
    %v6660 = vld [vmem:[#allocation9 + $0x68] sm:$0xff]
    %v6661 = vld [vmem:[#allocation9 + $0x70] sm:$0xff]
    %v6662 = vld [vmem:[#allocation9 + $0x78] sm:$0xff]
    %v6663 = vld [vmem:[#allocation9 + $0x80] sm:$0xff]
    %v6664 = vld [vmem:[#allocation9 + $0x88] sm:$0xff]
    %v6665 = vld [vmem:[#allocation9 + $0x90] sm:$0xff]
    %v6666 = vld [vmem:[#allocation9 + $0x98] sm:$0xff]
    %v6667 = vld [vmem:[#allocation9 + $0xa0] sm:$0xff]
    %v6668 = vld [vmem:[#allocation9 + $0xa8] sm:$0xff]
    %v6669 = vld [vmem:[#allocation9 + $0xb0] sm:$0xff]
    %v6670 = vld [vmem:[#allocation9 + $0xb8] sm:$0xff]
    %v6671 = vld [vmem:[#allocation9 + $0xc0] sm:$0xff]
    %v6672 = vld [vmem:[#allocation9 + $0xc8] sm:$0xff]
    %v6673 = vld [vmem:[#allocation9 + $0xd0] sm:$0xff]
    %v6674 = vld [vmem:[#allocation9 + $0xd8] sm:$0xff]
    %v6675 = vld [vmem:[#allocation9 + $0xe0] sm:$0xff]
    %v6676 = vld [vmem:[#allocation9 + $0xe8] sm:$0xff]
    %v6677 = vld [vmem:[#allocation9 + $0xf0] sm:$0xff]
    %v6678 = vld [vmem:[#allocation9 + $0xf8] sm:$0xff]
    %v6711 = vunpack.c.l.b16 %v6647
    %v6712 = vunpack.c.h.b16 %v6647
    %v6713 = vunpack.c.l.b16 %v6648
    %v6714 = vunpack.c.h.b16 %v6648
    %v6715 = vunpack.c.l.b16 %v6649
    %v6716 = vunpack.c.h.b16 %v6649
    %v6717 = vunpack.c.l.b16 %v6650
    %v6718 = vunpack.c.h.b16 %v6650
    %v6719 = vunpack.c.l.b16 %v6651
    %v6720 = vunpack.c.h.b16 %v6651
    %v6721 = vunpack.c.l.b16 %v6652
    %v6722 = vunpack.c.h.b16 %v6652
    %v6723 = vunpack.c.l.b16 %v6653
    %v6724 = vunpack.c.h.b16 %v6653
    %v6725 = vunpack.c.l.b16 %v6654
    %v6726 = vunpack.c.h.b16 %v6654
    %v6727 = vunpack.c.l.b16 %v6655
    %v6728 = vunpack.c.h.b16 %v6655
    %v6729 = vunpack.c.l.b16 %v6656
    %v6730 = vunpack.c.h.b16 %v6656
    %v6731 = vunpack.c.l.b16 %v6657
    %v6732 = vunpack.c.h.b16 %v6657
    %v6733 = vunpack.c.l.b16 %v6658
    %v6734 = vunpack.c.h.b16 %v6658
    %v6735 = vunpack.c.l.b16 %v6659
    %v6736 = vunpack.c.h.b16 %v6659
    %v6737 = vunpack.c.l.b16 %v6660
    %v6738 = vunpack.c.h.b16 %v6660
    %v6739 = vunpack.c.l.b16 %v6661
    %v6740 = vunpack.c.h.b16 %v6661
    %v6741 = vunpack.c.l.b16 %v6662
    %v6742 = vunpack.c.h.b16 %v6662
    %v6743 = vunpack.c.l.b16 %v6663
    %v6744 = vunpack.c.h.b16 %v6663
    %v6745 = vunpack.c.l.b16 %v6664
    %v6746 = vunpack.c.h.b16 %v6664
    %v6747 = vunpack.c.l.b16 %v6665
    %v6748 = vunpack.c.h.b16 %v6665
    %v6749 = vunpack.c.l.b16 %v6666
    %v6750 = vunpack.c.h.b16 %v6666
    %v6751 = vunpack.c.l.b16 %v6667
    %v6752 = vunpack.c.h.b16 %v6667
    %v6753 = vunpack.c.l.b16 %v6668
    %v6754 = vunpack.c.h.b16 %v6668
    %v6755 = vunpack.c.l.b16 %v6669
    %v6756 = vunpack.c.h.b16 %v6669
    %v6757 = vunpack.c.l.b16 %v6670
    %v6758 = vunpack.c.h.b16 %v6670
    %v6759 = vunpack.c.l.b16 %v6671
    %v6760 = vunpack.c.h.b16 %v6671
    %v6761 = vunpack.c.l.b16 %v6672
    %v6762 = vunpack.c.h.b16 %v6672
    %v6763 = vunpack.c.l.b16 %v6673
    %v6764 = vunpack.c.h.b16 %v6673
    %v6765 = vunpack.c.l.b16 %v6674
    %v6766 = vunpack.c.h.b16 %v6674
    %v6767 = vunpack.c.l.b16 %v6675
    %v6768 = vunpack.c.h.b16 %v6675
    %v6769 = vunpack.c.l.b16 %v6676
    %v6770 = vunpack.c.h.b16 %v6676
    %v6771 = vunpack.c.l.b16 %v6677
    %v6772 = vunpack.c.h.b16 %v6677
    %v6773 = vunpack.c.l.b16 %v6678
    %v6774 = vunpack.c.h.b16 %v6678
    %v6775 = vpack.c.b16 %v6715, %v6711
    %v6776 = vpack.c.b16 %v6716, %v6712
    %v6777 = vpack.c.b16 %v6717, %v6713
    %v6778 = vpack.c.b16 %v6718, %v6714
    %v6779 = vpack.c.b16 %v6723, %v6719
    %v6780 = vpack.c.b16 %v6724, %v6720
    %v6781 = vpack.c.b16 %v6725, %v6721
    %v6782 = vpack.c.b16 %v6726, %v6722
    %v6783 = vpack.c.b16 %v6731, %v6727
    %v6784 = vpack.c.b16 %v6732, %v6728
    %v6785 = vpack.c.b16 %v6733, %v6729
    %v6786 = vpack.c.b16 %v6734, %v6730
    %v6787 = vpack.c.b16 %v6739, %v6735
    %v6788 = vpack.c.b16 %v6740, %v6736
    %v6789 = vpack.c.b16 %v6741, %v6737
    %v6790 = vpack.c.b16 %v6742, %v6738
    %v6791 = vpack.c.b16 %v6747, %v6743
    %v6792 = vpack.c.b16 %v6748, %v6744
    %v6793 = vpack.c.b16 %v6749, %v6745
    %v6794 = vpack.c.b16 %v6750, %v6746
    %v6795 = vpack.c.b16 %v6755, %v6751
    %v6796 = vpack.c.b16 %v6756, %v6752
    %v6797 = vpack.c.b16 %v6757, %v6753
    %v6798 = vpack.c.b16 %v6758, %v6754
    %v6799 = vpack.c.b16 %v6763, %v6759
    %v6800 = vpack.c.b16 %v6764, %v6760
    %v6801 = vpack.c.b16 %v6765, %v6761
    %v6802 = vpack.c.b16 %v6766, %v6762
    %v6803 = vpack.c.b16 %v6771, %v6767
    %v6804 = vpack.c.b16 %v6772, %v6768
    %v6805 = vpack.c.b16 %v6773, %v6769
    %v6806 = vpack.c.b16 %v6774, %v6770
    %6839 = vmatpush.bf16.msra.mxu0 %v6803
    %6840 = vmatpush.bf16.msra.mxu0 %v6799
    %6841 = vmatpush.bf16.msra.mxu0 %v6795
    %6842 = vmatpush.bf16.msra.mxu0 %v6791
    %6843 = vmatpush.bf16.msra.mxu0 %v6787
    %6844 = vmatpush.bf16.msra.mxu0 %v6783
    %6845 = vmatpush.bf16.msra.mxu0 %v6779
    %6846 = vmatpush.bf16.msra.mxu0 %v6775
    %6847 = vmatmul.bf16.gmra.mxu0 %v6085
    %v6848 = vpop.f32.mrf.mxu0
    %v6849 = vadd.f32 0.0, %v6848
    %v6850 = vpop.f32.mrf.mxu0
    %6851 = vdwg.mxu0
    %6852 = vmatpush.bf16.msra.mxu0 %v6804
    %6853 = vmatpush.bf16.msra.mxu0 %v6800
    %6854 = vmatpush.bf16.msra.mxu0 %v6796
    %6855 = vmatpush.bf16.msra.mxu0 %v6792
    %6856 = vmatpush.bf16.msra.mxu0 %v6788
    %6857 = vmatpush.bf16.msra.mxu0 %v6784
    %6858 = vmatpush.bf16.msra.mxu0 %v6780
    %6859 = vmatpush.bf16.msra.mxu0 %v6776
    %6860 = vmatmul.bf16.gmra.mxu0 %v6085
    %v6861 = vpop.f32.mrf.mxu0
    %v6862 = vadd.f32 0.0, %v6861
    %v6863 = vpop.f32.mrf.mxu0
    %6864 = vdwg.mxu0
    %6865 = vmatpush.bf16.msra.mxu0 %v6805
    %6866 = vmatpush.bf16.msra.mxu0 %v6801
    %6867 = vmatpush.bf16.msra.mxu0 %v6797
    %6868 = vmatpush.bf16.msra.mxu0 %v6793
    %6869 = vmatpush.bf16.msra.mxu0 %v6789
    %6870 = vmatpush.bf16.msra.mxu0 %v6785
    %6871 = vmatpush.bf16.msra.mxu0 %v6781
    %6872 = vmatpush.bf16.msra.mxu0 %v6777
    %6873 = vmatmul.bf16.gmra.mxu0 %v6085
    %v6874 = vpop.f32.mrf.mxu0
    %v6875 = vadd.f32 0.0, %v6874
    %v6876 = vpop.f32.mrf.mxu0
    %6877 = vdwg.mxu0
    %6878 = vmatpush.bf16.msra.mxu0 %v6806
    %6879 = vmatpush.bf16.msra.mxu0 %v6802
    %6880 = vmatpush.bf16.msra.mxu0 %v6798
    %6881 = vmatpush.bf16.msra.mxu0 %v6794
    %6882 = vmatpush.bf16.msra.mxu0 %v6790
    %6883 = vmatpush.bf16.msra.mxu0 %v6786
    %6884 = vmatpush.bf16.msra.mxu0 %v6782
    %6885 = vmatpush.bf16.msra.mxu0 %v6778
    %6886 = vmatmul.bf16.gmra.mxu0 %v6085
    %v6887 = vpop.f32.mrf.mxu0
    %v6888 = vadd.f32 0.0, %v6887
    %v6889 = vpop.f32.mrf.mxu0
    %6890 = vdwg.mxu0
    %v6891 = vadd.f32 %v6643, %v6849
    %v6892 = vadd.f32 %v6644, %v6862
    %v6893 = vadd.f32 %v6645, %v6875
    %v6894 = vadd.f32 %v6646, %v6888
    %v6895 = vxor.u32 %v6891, 2147483648
    %v6896 = vxor.u32 %v6892, 2147483648
    %v6897 = vxor.u32 %v6893, 2147483648
    %v6898 = vmul.f32 %v6895, 1.442695
    %v6899 = vpow.pop %v6898
    %v6900 = vmul.f32 %v6896, 1.442695
    %v6901 = vpow.pop %v6900
    %v6902 = vmul.f32 %v6897, 1.442695
    %v6903 = vpow.pop %v6902
    %v6904 = vadd.f32 %v6899, 1.0
    %v6905 = vadd.f32 %v6901, 1.0
    %v6906 = vadd.f32 %v6903, 1.0
    %v6907 = vrcp.pop %v6904
    %v6908 = vmul.f32 %v6904, %v6907
    %v6909 = vsub.f32 1.0, %v6908
    %v6910 = vmul.f32 %v6907, %v6909
    %v6911 = vadd.f32 %v6907, %v6910
    %vm6912 = vweird.f32 %v6904
    %vm6913 = vweird.f32 %v6907
    %vm6914 = vmor %vm6912, %vm6913
    %v6915 = vsel %vm6914, %v6907, %v6911
    %v6916 = vand.u32 2147483647, %v6904
    %vm6917 = vcmp.eq.f32.partialorder %v6916, 8.507059e+37
    %v6918 = vand.u32 %v6904, 2147483648
    %v6919 = vor.u32 1.1754944e-38, %v6918
    %v6920 = vsel %vm6917, %v6919, %v6915
    %v6921 = vmul.f32 1.0, %v6920
    %v6922 = vrcp.pop %v6905
    %v6923 = vmul.f32 %v6905, %v6922
    %v6924 = vsub.f32 1.0, %v6923
    %v6925 = vmul.f32 %v6922, %v6924
    %v6926 = vadd.f32 %v6922, %v6925
    %vm6927 = vweird.f32 %v6905
    %vm6928 = vweird.f32 %v6922
    %vm6929 = vmor %vm6927, %vm6928
    %v6930 = vsel %vm6929, %v6922, %v6926
    %v6931 = vand.u32 2147483647, %v6905
    %vm6932 = vcmp.eq.f32.partialorder %v6931, 8.507059e+37
    %v6933 = vand.u32 %v6905, 2147483648
    %v6934 = vor.u32 1.1754944e-38, %v6933
    %v6935 = vsel %vm6932, %v6934, %v6930
    %v6936 = vmul.f32 1.0, %v6935
    %v6937 = vrcp.pop %v6906
    %v6938 = vmul.f32 %v6906, %v6937
    %v6939 = vsub.f32 1.0, %v6938
    %v6940 = vmul.f32 %v6937, %v6939
    %v6941 = vadd.f32 %v6937, %v6940
    %vm6942 = vweird.f32 %v6906
    %vm6943 = vweird.f32 %v6937
    %vm6944 = vmor %vm6942, %vm6943
    %v6945 = vsel %vm6944, %v6937, %v6941
    %v6946 = vand.u32 2147483647, %v6906
    %vm6947 = vcmp.eq.f32.partialorder %v6946, 8.507059e+37
    %v6948 = vand.u32 %v6906, 2147483648
    %v6949 = vor.u32 1.1754944e-38, %v6948
    %v6950 = vsel %vm6947, %v6949, %v6945
    %v6951 = vmul.f32 1.0, %v6950
    %v6952 = vtanh.pop %v6894
    %v6953 = vmul.f32 %v6936, %v6082
    %v6954 = vmul.f32 %v6921, %v6952
    %v6955 = vadd.f32 %v6953, %v6954
    %v6956 = vtanh.pop %v6955
    %v6957 = vmul.f32 %v6951, %v6956
    %v6958 = vpack.c.bf16 %v6957, %v6957
    %v6959 = vld [vmem:[#allocation12] sm:$0xff]
    %v6960 = vld [vmem:[#allocation12 + $0x8] sm:$0xff]
    %v6961 = vld [vmem:[#allocation12 + $0x10] sm:$0xff]
    %v6962 = vld [vmem:[#allocation12 + $0x18] sm:$0xff]
    %v6963 = vld [vmem:[#allocation12 + $0x20] sm:$0xff]
    %v6964 = vld [vmem:[#allocation12 + $0x28] sm:$0xff]
    %v6965 = vld [vmem:[#allocation12 + $0x30] sm:$0xff]
    %v6966 = vld [vmem:[#allocation12 + $0x38] sm:$0xff]
    %v6967 = vld [vmem:[#allocation12 + $0x40] sm:$0xff]
    %v6968 = vld [vmem:[#allocation12 + $0x48] sm:$0xff]
    %v6969 = vld [vmem:[#allocation12 + $0x50] sm:$0xff]
    %v6970 = vld [vmem:[#allocation12 + $0x58] sm:$0xff]
    %v6971 = vld [vmem:[#allocation12 + $0x60] sm:$0xff]
    %v6972 = vld [vmem:[#allocation12 + $0x68] sm:$0xff]
    %v6973 = vld [vmem:[#allocation12 + $0x70] sm:$0xff]
    %v6974 = vld [vmem:[#allocation12 + $0x78] sm:$0xff]
    %v6975 = vld [vmem:[#allocation12 + $0x80] sm:$0xff]
    %v6976 = vld [vmem:[#allocation12 + $0x88] sm:$0xff]
    %v6977 = vld [vmem:[#allocation12 + $0x90] sm:$0xff]
    %v6978 = vld [vmem:[#allocation12 + $0x98] sm:$0xff]
    %v6979 = vld [vmem:[#allocation12 + $0xa0] sm:$0xff]
    %v6980 = vld [vmem:[#allocation12 + $0xa8] sm:$0xff]
    %v6981 = vld [vmem:[#allocation12 + $0xb0] sm:$0xff]
    %v6982 = vld [vmem:[#allocation12 + $0xb8] sm:$0xff]
    %v6983 = vld [vmem:[#allocation12 + $0xc0] sm:$0xff]
    %v6984 = vld [vmem:[#allocation12 + $0xc8] sm:$0xff]
    %v6985 = vld [vmem:[#allocation12 + $0xd0] sm:$0xff]
    %v6986 = vld [vmem:[#allocation12 + $0xd8] sm:$0xff]
    %v6987 = vld [vmem:[#allocation12 + $0xe0] sm:$0xff]
    %v6988 = vld [vmem:[#allocation12 + $0xe8] sm:$0xff]
    %v6989 = vld [vmem:[#allocation12 + $0xf0] sm:$0xff]
    %v6990 = vld [vmem:[#allocation12 + $0xf8] sm:$0xff]
    %v6991 = vpack.c.bf16 %v6641, %v6641
    %v6992 = vld [vmem:[#allocation13] sm:$0xff]
    %v6993 = vld [vmem:[#allocation13 + $0x8] sm:$0xff]
    %v6994 = vld [vmem:[#allocation13 + $0x10] sm:$0xff]
    %v6995 = vld [vmem:[#allocation13 + $0x18] sm:$0xff]
    %v6996 = vld [vmem:[#allocation13 + $0x20] sm:$0xff]
    %v6997 = vld [vmem:[#allocation13 + $0x28] sm:$0xff]
    %v6998 = vld [vmem:[#allocation13 + $0x30] sm:$0xff]
    %v6999 = vld [vmem:[#allocation13 + $0x38] sm:$0xff]
    %v7000 = vld [vmem:[#allocation13 + $0x40] sm:$0xff]
    %v7001 = vld [vmem:[#allocation13 + $0x48] sm:$0xff]
    %v7002 = vld [vmem:[#allocation13 + $0x50] sm:$0xff]
    %v7003 = vld [vmem:[#allocation13 + $0x58] sm:$0xff]
    %v7004 = vld [vmem:[#allocation13 + $0x60] sm:$0xff]
    %v7005 = vld [vmem:[#allocation13 + $0x68] sm:$0xff]
    %v7006 = vld [vmem:[#allocation13 + $0x70] sm:$0xff]
    %v7007 = vld [vmem:[#allocation13 + $0x78] sm:$0xff]
    %v7008 = vld [vmem:[#allocation13 + $0x80] sm:$0xff]
    %v7009 = vld [vmem:[#allocation13 + $0x88] sm:$0xff]
    %v7010 = vld [vmem:[#allocation13 + $0x90] sm:$0xff]
    %v7011 = vld [vmem:[#allocation13 + $0x98] sm:$0xff]
    %v7012 = vld [vmem:[#allocation13 + $0xa0] sm:$0xff]
    %v7013 = vld [vmem:[#allocation13 + $0xa8] sm:$0xff]
    %v7014 = vld [vmem:[#allocation13 + $0xb0] sm:$0xff]
    %v7015 = vld [vmem:[#allocation13 + $0xb8] sm:$0xff]
    %v7016 = vld [vmem:[#allocation13 + $0xc0] sm:$0xff]
    %v7017 = vld [vmem:[#allocation13 + $0xc8] sm:$0xff]
    %v7018 = vld [vmem:[#allocation13 + $0xd0] sm:$0xff]
    %v7019 = vld [vmem:[#allocation13 + $0xd8] sm:$0xff]
    %v7020 = vld [vmem:[#allocation13 + $0xe0] sm:$0xff]
    %v7021 = vld [vmem:[#allocation13 + $0xe8] sm:$0xff]
    %v7022 = vld [vmem:[#allocation13 + $0xf0] sm:$0xff]
    %v7023 = vld [vmem:[#allocation13 + $0xf8] sm:$0xff]
    %v7056 = vunpack.c.l.b16 %v6992
    %v7057 = vunpack.c.h.b16 %v6992
    %v7058 = vunpack.c.l.b16 %v6993
    %v7059 = vunpack.c.h.b16 %v6993
    %v7060 = vunpack.c.l.b16 %v6994
    %v7061 = vunpack.c.h.b16 %v6994
    %v7062 = vunpack.c.l.b16 %v6995
    %v7063 = vunpack.c.h.b16 %v6995
    %v7064 = vunpack.c.l.b16 %v6996
    %v7065 = vunpack.c.h.b16 %v6996
    %v7066 = vunpack.c.l.b16 %v6997
    %v7067 = vunpack.c.h.b16 %v6997
    %v7068 = vunpack.c.l.b16 %v6998
    %v7069 = vunpack.c.h.b16 %v6998
    %v7070 = vunpack.c.l.b16 %v6999
    %v7071 = vunpack.c.h.b16 %v6999
    %v7072 = vunpack.c.l.b16 %v7000
    %v7073 = vunpack.c.h.b16 %v7000
    %v7074 = vunpack.c.l.b16 %v7001
    %v7075 = vunpack.c.h.b16 %v7001
    %v7076 = vunpack.c.l.b16 %v7002
    %v7077 = vunpack.c.h.b16 %v7002
    %v7078 = vunpack.c.l.b16 %v7003
    %v7079 = vunpack.c.h.b16 %v7003
    %v7080 = vunpack.c.l.b16 %v7004
    %v7081 = vunpack.c.h.b16 %v7004
    %v7082 = vunpack.c.l.b16 %v7005
    %v7083 = vunpack.c.h.b16 %v7005
    %v7084 = vunpack.c.l.b16 %v7006
    %v7085 = vunpack.c.h.b16 %v7006
    %v7086 = vunpack.c.l.b16 %v7007
    %v7087 = vunpack.c.h.b16 %v7007
    %v7088 = vunpack.c.l.b16 %v7008
    %v7089 = vunpack.c.h.b16 %v7008
    %v7090 = vunpack.c.l.b16 %v7009
    %v7091 = vunpack.c.h.b16 %v7009
    %v7092 = vunpack.c.l.b16 %v7010
    %v7093 = vunpack.c.h.b16 %v7010
    %v7094 = vunpack.c.l.b16 %v7011
    %v7095 = vunpack.c.h.b16 %v7011
    %v7096 = vunpack.c.l.b16 %v7012
    %v7097 = vunpack.c.h.b16 %v7012
    %v7098 = vunpack.c.l.b16 %v7013
    %v7099 = vunpack.c.h.b16 %v7013
    %v7100 = vunpack.c.l.b16 %v7014
    %v7101 = vunpack.c.h.b16 %v7014
    %v7102 = vunpack.c.l.b16 %v7015
    %v7103 = vunpack.c.h.b16 %v7015
    %v7104 = vunpack.c.l.b16 %v7016
    %v7105 = vunpack.c.h.b16 %v7016
    %v7106 = vunpack.c.l.b16 %v7017
    %v7107 = vunpack.c.h.b16 %v7017
    %v7108 = vunpack.c.l.b16 %v7018
    %v7109 = vunpack.c.h.b16 %v7018
    %v7110 = vunpack.c.l.b16 %v7019
    %v7111 = vunpack.c.h.b16 %v7019
    %v7112 = vunpack.c.l.b16 %v7020
    %v7113 = vunpack.c.h.b16 %v7020
    %v7114 = vunpack.c.l.b16 %v7021
    %v7115 = vunpack.c.h.b16 %v7021
    %v7116 = vunpack.c.l.b16 %v7022
    %v7117 = vunpack.c.h.b16 %v7022
    %v7118 = vunpack.c.l.b16 %v7023
    %v7119 = vunpack.c.h.b16 %v7023
    %v7120 = vpack.c.b16 %v7060, %v7056
    %v7121 = vpack.c.b16 %v7061, %v7057
    %v7122 = vpack.c.b16 %v7062, %v7058
    %v7123 = vpack.c.b16 %v7063, %v7059
    %v7124 = vpack.c.b16 %v7068, %v7064
    %v7125 = vpack.c.b16 %v7069, %v7065
    %v7126 = vpack.c.b16 %v7070, %v7066
    %v7127 = vpack.c.b16 %v7071, %v7067
    %v7128 = vpack.c.b16 %v7076, %v7072
    %v7129 = vpack.c.b16 %v7077, %v7073
    %v7130 = vpack.c.b16 %v7078, %v7074
    %v7131 = vpack.c.b16 %v7079, %v7075
    %v7132 = vpack.c.b16 %v7084, %v7080
    %v7133 = vpack.c.b16 %v7085, %v7081
    %v7134 = vpack.c.b16 %v7086, %v7082
    %v7135 = vpack.c.b16 %v7087, %v7083
    %v7136 = vpack.c.b16 %v7092, %v7088
    %v7137 = vpack.c.b16 %v7093, %v7089
    %v7138 = vpack.c.b16 %v7094, %v7090
    %v7139 = vpack.c.b16 %v7095, %v7091
    %v7140 = vpack.c.b16 %v7100, %v7096
    %v7141 = vpack.c.b16 %v7101, %v7097
    %v7142 = vpack.c.b16 %v7102, %v7098
    %v7143 = vpack.c.b16 %v7103, %v7099
    %v7144 = vpack.c.b16 %v7108, %v7104
    %v7145 = vpack.c.b16 %v7109, %v7105
    %v7146 = vpack.c.b16 %v7110, %v7106
    %v7147 = vpack.c.b16 %v7111, %v7107
    %v7148 = vpack.c.b16 %v7116, %v7112
    %v7149 = vpack.c.b16 %v7117, %v7113
    %v7150 = vpack.c.b16 %v7118, %v7114
    %v7151 = vpack.c.b16 %v7119, %v7115
    %7184 = vmatpush.bf16.msra.mxu0 %v7148
    %7185 = vmatpush.bf16.msra.mxu0 %v7144
    %7186 = vmatpush.bf16.msra.mxu0 %v7140
    %7187 = vmatpush.bf16.msra.mxu0 %v7136
    %7188 = vmatpush.bf16.msra.mxu0 %v7132
    %7189 = vmatpush.bf16.msra.mxu0 %v7128
    %7190 = vmatpush.bf16.msra.mxu0 %v7124
    %7191 = vmatpush.bf16.msra.mxu0 %v7120
    %7192 = vmatmul.bf16.gmra.mxu0 %v6991
    %v7193 = vpop.f32.mrf.mxu0
    %v7194 = vadd.f32 0.0, %v7193
    %v7195 = vpop.f32.mrf.mxu0
    %7196 = vdwg.mxu0
    %7197 = vmatpush.bf16.msra.mxu0 %v7149
    %7198 = vmatpush.bf16.msra.mxu0 %v7145
    %7199 = vmatpush.bf16.msra.mxu0 %v7141
    %7200 = vmatpush.bf16.msra.mxu0 %v7137
    %7201 = vmatpush.bf16.msra.mxu0 %v7133
    %7202 = vmatpush.bf16.msra.mxu0 %v7129
    %7203 = vmatpush.bf16.msra.mxu0 %v7125
    %7204 = vmatpush.bf16.msra.mxu0 %v7121
    %7205 = vmatmul.bf16.gmra.mxu0 %v6991
    %v7206 = vpop.f32.mrf.mxu0
    %v7207 = vadd.f32 0.0, %v7206
    %v7208 = vpop.f32.mrf.mxu0
    %7209 = vdwg.mxu0
    %7210 = vmatpush.bf16.msra.mxu0 %v7150
    %7211 = vmatpush.bf16.msra.mxu0 %v7146
    %7212 = vmatpush.bf16.msra.mxu0 %v7142
    %7213 = vmatpush.bf16.msra.mxu0 %v7138
    %7214 = vmatpush.bf16.msra.mxu0 %v7134
    %7215 = vmatpush.bf16.msra.mxu0 %v7130
    %7216 = vmatpush.bf16.msra.mxu0 %v7126
    %7217 = vmatpush.bf16.msra.mxu0 %v7122
    %7218 = vmatmul.bf16.gmra.mxu0 %v6991
    %v7219 = vpop.f32.mrf.mxu0
    %v7220 = vadd.f32 0.0, %v7219
    %v7221 = vpop.f32.mrf.mxu0
    %7222 = vdwg.mxu0
    %7223 = vmatpush.bf16.msra.mxu0 %v7151
    %7224 = vmatpush.bf16.msra.mxu0 %v7147
    %7225 = vmatpush.bf16.msra.mxu0 %v7143
    %7226 = vmatpush.bf16.msra.mxu0 %v7139
    %7227 = vmatpush.bf16.msra.mxu0 %v7135
    %7228 = vmatpush.bf16.msra.mxu0 %v7131
    %7229 = vmatpush.bf16.msra.mxu0 %v7127
    %7230 = vmatpush.bf16.msra.mxu0 %v7123
    %7231 = vmatmul.bf16.gmra.mxu0 %v6991
    %v7232 = vpop.f32.mrf.mxu0
    %v7233 = vadd.f32 0.0, %v7232
    %v7234 = vpop.f32.mrf.mxu0
    %7235 = vdwg.mxu0
    %v7268 = vunpack.c.l.b16 %v6959
    %v7269 = vunpack.c.h.b16 %v6959
    %v7270 = vunpack.c.l.b16 %v6960
    %v7271 = vunpack.c.h.b16 %v6960
    %v7272 = vunpack.c.l.b16 %v6961
    %v7273 = vunpack.c.h.b16 %v6961
    %v7274 = vunpack.c.l.b16 %v6962
    %v7275 = vunpack.c.h.b16 %v6962
    %v7276 = vunpack.c.l.b16 %v6963
    %v7277 = vunpack.c.h.b16 %v6963
    %v7278 = vunpack.c.l.b16 %v6964
    %v7279 = vunpack.c.h.b16 %v6964
    %v7280 = vunpack.c.l.b16 %v6965
    %v7281 = vunpack.c.h.b16 %v6965
    %v7282 = vunpack.c.l.b16 %v6966
    %v7283 = vunpack.c.h.b16 %v6966
    %v7284 = vunpack.c.l.b16 %v6967
    %v7285 = vunpack.c.h.b16 %v6967
    %v7286 = vunpack.c.l.b16 %v6968
    %v7287 = vunpack.c.h.b16 %v6968
    %v7288 = vunpack.c.l.b16 %v6969
    %v7289 = vunpack.c.h.b16 %v6969
    %v7290 = vunpack.c.l.b16 %v6970
    %v7291 = vunpack.c.h.b16 %v6970
    %v7292 = vunpack.c.l.b16 %v6971
    %v7293 = vunpack.c.h.b16 %v6971
    %v7294 = vunpack.c.l.b16 %v6972
    %v7295 = vunpack.c.h.b16 %v6972
    %v7296 = vunpack.c.l.b16 %v6973
    %v7297 = vunpack.c.h.b16 %v6973
    %v7298 = vunpack.c.l.b16 %v6974
    %v7299 = vunpack.c.h.b16 %v6974
    %v7300 = vunpack.c.l.b16 %v6975
    %v7301 = vunpack.c.h.b16 %v6975
    %v7302 = vunpack.c.l.b16 %v6976
    %v7303 = vunpack.c.h.b16 %v6976
    %v7304 = vunpack.c.l.b16 %v6977
    %v7305 = vunpack.c.h.b16 %v6977
    %v7306 = vunpack.c.l.b16 %v6978
    %v7307 = vunpack.c.h.b16 %v6978
    %v7308 = vunpack.c.l.b16 %v6979
    %v7309 = vunpack.c.h.b16 %v6979
    %v7310 = vunpack.c.l.b16 %v6980
    %v7311 = vunpack.c.h.b16 %v6980
    %v7312 = vunpack.c.l.b16 %v6981
    %v7313 = vunpack.c.h.b16 %v6981
    %v7314 = vunpack.c.l.b16 %v6982
    %v7315 = vunpack.c.h.b16 %v6982
    %v7316 = vunpack.c.l.b16 %v6983
    %v7317 = vunpack.c.h.b16 %v6983
    %v7318 = vunpack.c.l.b16 %v6984
    %v7319 = vunpack.c.h.b16 %v6984
    %v7320 = vunpack.c.l.b16 %v6985
    %v7321 = vunpack.c.h.b16 %v6985
    %v7322 = vunpack.c.l.b16 %v6986
    %v7323 = vunpack.c.h.b16 %v6986
    %v7324 = vunpack.c.l.b16 %v6987
    %v7325 = vunpack.c.h.b16 %v6987
    %v7326 = vunpack.c.l.b16 %v6988
    %v7327 = vunpack.c.h.b16 %v6988
    %v7328 = vunpack.c.l.b16 %v6989
    %v7329 = vunpack.c.h.b16 %v6989
    %v7330 = vunpack.c.l.b16 %v6990
    %v7331 = vunpack.c.h.b16 %v6990
    %v7332 = vpack.c.b16 %v7272, %v7268
    %v7333 = vpack.c.b16 %v7273, %v7269
    %v7334 = vpack.c.b16 %v7274, %v7270
    %v7335 = vpack.c.b16 %v7275, %v7271
    %v7336 = vpack.c.b16 %v7280, %v7276
    %v7337 = vpack.c.b16 %v7281, %v7277
    %v7338 = vpack.c.b16 %v7282, %v7278
    %v7339 = vpack.c.b16 %v7283, %v7279
    %v7340 = vpack.c.b16 %v7288, %v7284
    %v7341 = vpack.c.b16 %v7289, %v7285
    %v7342 = vpack.c.b16 %v7290, %v7286
    %v7343 = vpack.c.b16 %v7291, %v7287
    %v7344 = vpack.c.b16 %v7296, %v7292
    %v7345 = vpack.c.b16 %v7297, %v7293
    %v7346 = vpack.c.b16 %v7298, %v7294
    %v7347 = vpack.c.b16 %v7299, %v7295
    %v7348 = vpack.c.b16 %v7304, %v7300
    %v7349 = vpack.c.b16 %v7305, %v7301
    %v7350 = vpack.c.b16 %v7306, %v7302
    %v7351 = vpack.c.b16 %v7307, %v7303
    %v7352 = vpack.c.b16 %v7312, %v7308
    %v7353 = vpack.c.b16 %v7313, %v7309
    %v7354 = vpack.c.b16 %v7314, %v7310
    %v7355 = vpack.c.b16 %v7315, %v7311
    %v7356 = vpack.c.b16 %v7320, %v7316
    %v7357 = vpack.c.b16 %v7321, %v7317
    %v7358 = vpack.c.b16 %v7322, %v7318
    %v7359 = vpack.c.b16 %v7323, %v7319
    %v7360 = vpack.c.b16 %v7328, %v7324
    %v7361 = vpack.c.b16 %v7329, %v7325
    %v7362 = vpack.c.b16 %v7330, %v7326
    %v7363 = vpack.c.b16 %v7331, %v7327
    %7396 = vmatpush.bf16.msra.mxu0 %v7360
    %7397 = vmatpush.bf16.msra.mxu0 %v7356
    %7398 = vmatpush.bf16.msra.mxu0 %v7352
    %7399 = vmatpush.bf16.msra.mxu0 %v7348
    %7400 = vmatpush.bf16.msra.mxu0 %v7344
    %7401 = vmatpush.bf16.msra.mxu0 %v7340
    %7402 = vmatpush.bf16.msra.mxu0 %v7336
    %7403 = vmatpush.bf16.msra.mxu0 %v7332
    %7404 = vmatmul.bf16.gmra.mxu0 %v6958
    %v7405 = vpop.f32.mrf.mxu0
    %v7406 = vadd.f32 %v7194, %v7405
    %v7407 = vpop.f32.mrf.mxu0
    %7408 = vdwg.mxu0
    %7409 = vmatpush.bf16.msra.mxu0 %v7361
    %7410 = vmatpush.bf16.msra.mxu0 %v7357
    %7411 = vmatpush.bf16.msra.mxu0 %v7353
    %7412 = vmatpush.bf16.msra.mxu0 %v7349
    %7413 = vmatpush.bf16.msra.mxu0 %v7345
    %7414 = vmatpush.bf16.msra.mxu0 %v7341
    %7415 = vmatpush.bf16.msra.mxu0 %v7337
    %7416 = vmatpush.bf16.msra.mxu0 %v7333
    %7417 = vmatmul.bf16.gmra.mxu0 %v6958
    %v7418 = vpop.f32.mrf.mxu0
    %v7419 = vadd.f32 %v7207, %v7418
    %v7420 = vpop.f32.mrf.mxu0
    %7421 = vdwg.mxu0
    %7422 = vmatpush.bf16.msra.mxu0 %v7362
    %7423 = vmatpush.bf16.msra.mxu0 %v7358
    %7424 = vmatpush.bf16.msra.mxu0 %v7354
    %7425 = vmatpush.bf16.msra.mxu0 %v7350
    %7426 = vmatpush.bf16.msra.mxu0 %v7346
    %7427 = vmatpush.bf16.msra.mxu0 %v7342
    %7428 = vmatpush.bf16.msra.mxu0 %v7338
    %7429 = vmatpush.bf16.msra.mxu0 %v7334
    %7430 = vmatmul.bf16.gmra.mxu0 %v6958
    %v7431 = vpop.f32.mrf.mxu0
    %v7432 = vadd.f32 %v7220, %v7431
    %v7433 = vpop.f32.mrf.mxu0
    %7434 = vdwg.mxu0
    %7435 = vmatpush.bf16.msra.mxu0 %v7363
    %7436 = vmatpush.bf16.msra.mxu0 %v7359
    %7437 = vmatpush.bf16.msra.mxu0 %v7355
    %7438 = vmatpush.bf16.msra.mxu0 %v7351
    %7439 = vmatpush.bf16.msra.mxu0 %v7347
    %7440 = vmatpush.bf16.msra.mxu0 %v7343
    %7441 = vmatpush.bf16.msra.mxu0 %v7339
    %7442 = vmatpush.bf16.msra.mxu0 %v7335
    %7443 = vmatmul.bf16.gmra.mxu0 %v6958
    %v7444 = vpop.f32.mrf.mxu0
    %v7445 = vadd.f32 %v7233, %v7444
    %v7446 = vpop.f32.mrf.mxu0
    %7447 = vdwg.mxu0
    %v7448 = vadd.f32 %v7406, %v525
    %v7449 = vadd.f32 %v7419, %v526
    %v7450 = vadd.f32 %v7432, %v527
    %v7451 = vadd.f32 %v7445, %v528
    %v7452 = vxor.u32 %v7448, 2147483648
    %v7453 = vxor.u32 %v7449, 2147483648
    %v7454 = vxor.u32 %v7450, 2147483648
    %v7455 = vmul.f32 %v7452, 1.442695
    %v7456 = vpow.pop %v7455
    %v7457 = vmul.f32 %v7453, 1.442695
    %v7458 = vpow.pop %v7457
    %v7459 = vmul.f32 %v7454, 1.442695
    %v7460 = vpow.pop %v7459
    %v7461 = vadd.f32 %v7456, 1.0
    %v7462 = vadd.f32 %v7458, 1.0
    %v7463 = vadd.f32 %v7460, 1.0
    %v7464 = vrcp.pop %v7461
    %v7465 = vmul.f32 %v7461, %v7464
    %v7466 = vsub.f32 1.0, %v7465
    %v7467 = vmul.f32 %v7464, %v7466
    %v7468 = vadd.f32 %v7464, %v7467
    %vm7469 = vweird.f32 %v7461
    %vm7470 = vweird.f32 %v7464
    %vm7471 = vmor %vm7469, %vm7470
    %v7472 = vsel %vm7471, %v7464, %v7468
    %v7473 = vand.u32 2147483647, %v7461
    %vm7474 = vcmp.eq.f32.partialorder %v7473, 8.507059e+37
    %v7475 = vand.u32 %v7461, 2147483648
    %v7476 = vor.u32 1.1754944e-38, %v7475
    %v7477 = vsel %vm7474, %v7476, %v7472
    %v7478 = vmul.f32 1.0, %v7477
    %v7479 = vrcp.pop %v7462
    %v7480 = vmul.f32 %v7462, %v7479
    %v7481 = vsub.f32 1.0, %v7480
    %v7482 = vmul.f32 %v7479, %v7481
    %v7483 = vadd.f32 %v7479, %v7482
    %vm7484 = vweird.f32 %v7462
    %vm7485 = vweird.f32 %v7479
    %vm7486 = vmor %vm7484, %vm7485
    %v7487 = vsel %vm7486, %v7479, %v7483
    %v7488 = vand.u32 2147483647, %v7462
    %vm7489 = vcmp.eq.f32.partialorder %v7488, 8.507059e+37
    %v7490 = vand.u32 %v7462, 2147483648
    %v7491 = vor.u32 1.1754944e-38, %v7490
    %v7492 = vsel %vm7489, %v7491, %v7487
    %v7493 = vmul.f32 1.0, %v7492
    %v7494 = vrcp.pop %v7463
    %v7495 = vmul.f32 %v7463, %v7494
    %v7496 = vsub.f32 1.0, %v7495
    %v7497 = vmul.f32 %v7494, %v7496
    %v7498 = vadd.f32 %v7494, %v7497
    %vm7499 = vweird.f32 %v7463
    %vm7500 = vweird.f32 %v7494
    %vm7501 = vmor %vm7499, %vm7500
    %v7502 = vsel %vm7501, %v7494, %v7498
    %v7503 = vand.u32 2147483647, %v7463
    %vm7504 = vcmp.eq.f32.partialorder %v7503, 8.507059e+37
    %v7505 = vand.u32 %v7463, 2147483648
    %v7506 = vor.u32 1.1754944e-38, %v7505
    %v7507 = vsel %vm7504, %v7506, %v7502
    %v7508 = vmul.f32 1.0, %v7507
    %v7509 = vtanh.pop %v7451
    %v7510 = vmul.f32 %v7493, %v6639
    %v7511 = vmul.f32 %v7478, %v7509
    %v7512 = vadd.f32 %v7510, %v7511
    %v7513 = vtanh.pop %v7512
    %v7514 = vmul.f32 %v7508, %v7513
    %7515 = vst [vmem:[#allocation3 + $0x38] sm:$0xff] %v7514
    %v7516 = vld [vmem:[#allocation3] sm:$0xff]
    %v7517 = vld [vmem:[#allocation3 + $0x8] sm:$0xff]
    %v7518 = vld [vmem:[#allocation3 + $0x10] sm:$0xff]
    %v7519 = vld [vmem:[#allocation3 + $0x18] sm:$0xff]
    %v7520 = vld [vmem:[#allocation3 + $0x20] sm:$0xff]
    %v7521 = vld [vmem:[#allocation3 + $0x28] sm:$0xff]
    %v7522 = vld [vmem:[#allocation3 + $0x30] sm:$0xff]
    %v7523 = vld [vmem:[#allocation3 + $0x38] sm:$0xff]
    %v7524 = vpack.c.bf16 %v7517, %v7516
    %v7525 = vpack.c.bf16 %v7519, %v7518
    %v7526 = vpack.c.bf16 %v7521, %v7520
    %v7527 = vpack.c.bf16 %v7523, %v7522
    %v7528 = vld [vmem:[#allocation15] sm:$0xf]
    %v7529 = vld [vmem:[#allocation15 + $0x4] sm:$0xf]
    %v7530 = vld [vmem:[#allocation15 + $0x8] sm:$0xf]
    %v7531 = vld [vmem:[#allocation15 + $0xc] sm:$0xf]
    %v7532 = vld [vmem:[#allocation15 + $0x10] sm:$0xf]
    %v7533 = vld [vmem:[#allocation15 + $0x14] sm:$0xf]
    %v7534 = vld [vmem:[#allocation15 + $0x18] sm:$0xf]
    %v7535 = vld [vmem:[#allocation15 + $0x1c] sm:$0xf]
    %v7536 = vld [vmem:[#allocation15 + $0x20] sm:$0xf]
    %v7537 = vld [vmem:[#allocation15 + $0x24] sm:$0xf]
    %v7538 = vld [vmem:[#allocation15 + $0x28] sm:$0xf]
    %v7539 = vld [vmem:[#allocation15 + $0x2c] sm:$0xf]
    %v7540 = vld [vmem:[#allocation15 + $0x30] sm:$0xf]
    %v7541 = vld [vmem:[#allocation15 + $0x34] sm:$0xf]
    %v7542 = vld [vmem:[#allocation15 + $0x38] sm:$0xf]
    %v7543 = vld [vmem:[#allocation15 + $0x3c] sm:$0xf]
    %v7544 = vld [vmem:[%s8] sm:$0x1]
    %v7546 = vperm.slane %v7544, 0
    %v7564 = vunpack.c.l.b16 %v7528
    %v7565 = vunpack.c.l.b16 %v7529
    %v7566 = vunpack.c.l.b16 %v7530
    %v7567 = vunpack.c.l.b16 %v7531
    %v7568 = vunpack.c.l.b16 %v7532
    %v7569 = vunpack.c.l.b16 %v7533
    %v7570 = vunpack.c.l.b16 %v7534
    %v7571 = vunpack.c.l.b16 %v7535
    %v7572 = vunpack.c.l.b16 %v7536
    %v7573 = vunpack.c.l.b16 %v7537
    %v7574 = vunpack.c.l.b16 %v7538
    %v7575 = vunpack.c.l.b16 %v7539
    %v7576 = vunpack.c.l.b16 %v7540
    %v7577 = vunpack.c.l.b16 %v7541
    %v7578 = vunpack.c.l.b16 %v7542
    %v7579 = vunpack.c.l.b16 %v7543
    %v7580 = vpack.c.b16 %v7565, %v7564
    %v7581 = vpack.c.b16 %v7567, %v7566
    %v7582 = vpack.c.b16 %v7569, %v7568
    %v7583 = vpack.c.b16 %v7571, %v7570
    %v7584 = vpack.c.b16 %v7573, %v7572
    %v7585 = vpack.c.b16 %v7575, %v7574
    %v7586 = vpack.c.b16 %v7577, %v7576
    %v7587 = vpack.c.b16 %v7579, %v7578
    %7596 = vmatpush.bf16.msra.mxu0 %v7587
    %7597 = vmatpush.bf16.msra.mxu0 %v7586
    %7598 = vmatpush.bf16.msra.mxu0 %v7585
    %7599 = vmatpush.bf16.msra.mxu0 %v7584
    %7600 = vmatpush.bf16.msra.mxu0 %v7583
    %7601 = vmatpush.bf16.msra.mxu0 %v7582
    %7602 = vmatpush.bf16.msra.mxu0 %v7581
    %7603 = vmatpush.bf16.msra.mxu0 %v7580
    %7604 = vmatmul.bf16.gmra.mxu0 %v7524
    %v7605 = vpop.f32.mrf.mxu0
    %v7606 = vadd.f32 %v7546, %v7605
    %v7607 = vpop.f32.mrf.mxu0
    %v7608 = vadd.f32 %v7546, %v7607
    %7609 = vmatmul.bf16.gmra.mxu0 %v7525
    %v7610 = vpop.f32.mrf.mxu0
    %v7611 = vadd.f32 %v7546, %v7610
    %v7612 = vpop.f32.mrf.mxu0
    %v7613 = vadd.f32 %v7546, %v7612
    %7614 = vmatmul.bf16.gmra.mxu0 %v7526
    %v7615 = vpop.f32.mrf.mxu0
    %v7616 = vadd.f32 %v7546, %v7615
    %v7617 = vpop.f32.mrf.mxu0
    %v7618 = vadd.f32 %v7546, %v7617
    %7619 = vmatmul.bf16.gmra.mxu0 %v7527
    %v7620 = vpop.f32.mrf.mxu0
    %v7621 = vadd.f32 %v7546, %v7620
    %v7622 = vpop.f32.mrf.mxu0
    %v7623 = vadd.f32 %v7546, %v7622
    %7624 = vdwg.mxu0
    %7625 = vst [vmem:[#allocation16] sm:$0xff] %v7606
    %7626 = vst [vmem:[#allocation16 + $0x8] sm:$0xff] %v7608
    %7627 = vst [vmem:[#allocation16 + $0x10] sm:$0xff] %v7611
    %7628 = vst [vmem:[#allocation16 + $0x18] sm:$0xff] %v7613
    %7629 = vst [vmem:[#allocation16 + $0x20] sm:$0xff] %v7616
    %7630 = vst [vmem:[#allocation16 + $0x28] sm:$0xff] %v7618
    %7631 = vst [vmem:[#allocation16 + $0x30] sm:$0xff] %v7621
    %7632 = vst [vmem:[#allocation16 + $0x38] sm:$0xff] %v7623
    // Predicated region
    $region66: #{tpu_custom_call.1} parent=1 // pred_check
      _
    $region67: #{tpu_custom_call.1} parent=1 // pred_check_branch
      %7634 = sbr.rel (0) target = $region69
    $region68: #{tpu_custom_call.1} parent=1 // pred_region
      %7636 = vsyncadd [#allocation6], 0
      %s7637 = sshll.u32 [#allocation16], 4
      %s7638 = int_to_ptr.vmem [resolvable:$true] %s7637
      %s7639 = sshll.u32 %s9, 4
      %s7640 = int_to_ptr.hbm [resolvable:$true] %s7639
      %7645 = dma.vmem_to_hbm [thread:$0]  %s7638, 1024, %s7640, [#allocation6], 128, 128, 8
    $region69: #{tpu_custom_call.1} parent=1 // pred_fallthru
      _
    // Predicated region
    $region70: #{tpu_custom_call.1} parent=1 // pred_check
      _
    $region71: #{tpu_custom_call.1} parent=1 // pred_check_branch
      %7647 = sbr.rel (0) target = $region73
    $region72: #{tpu_custom_call.1} parent=1 // pred_region
      %7649 = dma.done [#allocation6], 1024
    $region73: #{tpu_custom_call.1} parent=1 // pred_fallthru
      _
    %7650 = vsyncpa [#allocation5], 1
    %7651 = vsyncpa [#allocation8], 1
    %7652 = vsyncpa [#allocation11], 1
    %7653 = vsyncpa [#allocation14], 1
    %7654 = vsyncpa [#allocation6], 1

</llo_original>
